<compile_context>
chip_gen: v7x
topology: tpu7x:2x2x1
jax: 0.10.0
libtpu: 0.0.40
codegen_flags: <defaults>
</compile_context>

<pallas_src>
import math

import jax
import jax.numpy as jnp
from jax.experimental import pallas as pl
from jax.experimental.pallas import tpu as pltpu

HIDDEN = 768
NUM_CLASSES = 4
_NORM_FACT = 1.0 / math.sqrt(HIDDEN)
_MAX_BT = 32  # examples per grid step (Bt * S = 256 rows at S=8)


# ----------------------------------------------------------------------------
# Fused kernel: QKV projection + self-attention + mean pooling + MLP head
# ----------------------------------------------------------------------------
def _fused_kernel(x_ref, wqkv_ref, bqkv_ref, w1_ref, b1_ref, w2_ref, b2_ref,
                  w3_ref, b3_ref, o_ref):
    Bt, S, H = x_ref.shape

    # Single fused QKV matmul: (Bt*S, H) @ (H, 3H) in bf16, f32 accumulation.
    x2d = x_ref[...].reshape(Bt * S, H)                       # bf16
    qkv = jnp.dot(x2d, wqkv_ref[...],
                  preferred_element_type=jnp.float32) + bqkv_ref[...]  # (Bt*S, 3H) f32

    # Static, lane-aligned slices (offsets are multiples of 128).
    q = qkv[:, 0 * H:1 * H].reshape(Bt, S, H)
    k = qkv[:, 1 * H:2 * H].reshape(Bt, S, H)
    v = qkv[:, 2 * H:3 * H].reshape(Bt, S, H)

    # scores = Q @ K^T * (1/sqrt(H)) without materializing K^T
    scores = jnp.einsum("bqd,bkd->bqk", q, k,
                        preferred_element_type=jnp.float32) * _NORM_FACT
    scores = scores - jnp.max(scores, axis=-1, keepdims=True)
    e = jnp.exp(scores)
    attn = e / jnp.sum(e, axis=-1, keepdims=True)             # (Bt, S, S)

    # mean over queries first (linearity of the mean), then contract with V:
    # pooled[b, h] = sum_k mean_q(attn[b, q, k]) * v[b, k, h]
    attn_mean = jnp.mean(attn, axis=1)                        # (Bt, S)
    pooled = jnp.sum(attn_mean[:, :, None] * v, axis=1)       # (Bt, H) f32

    # MLP head 768 -> 128 -> 16 -> num_classes, then softmax over classes.
    # TODO(synk): Dropout(0.5) has no effect in eval mode; treated as identity.
    h = jnp.dot(pooled.astype(jnp.bfloat16), w1_ref[...],
                preferred_element_type=jnp.float32) + b1_ref[...]
    h = jnp.dot(h.astype(jnp.bfloat16), w2_ref[...],
                preferred_element_type=jnp.float32) + b2_ref[...]
    logits = jnp.dot(h.astype(jnp.bfloat16), w3_ref[...],
                     preferred_element_type=jnp.float32) + b3_ref[...]
    logits = logits - jnp.max(logits, axis=1, keepdims=True)
    e2 = jnp.exp(logits)
    o_ref[...] = e2 / jnp.sum(e2, axis=1, keepdims=True)


def transformer_attention_forward(tokens, params):
    """tokens: [B, S, H] float32; params: output of prepare_params()."""
    B, S, H = tokens.shape
    C = params["w3"].shape[1]

    Bt = B if B <= _MAX_BT else _MAX_BT
    pad = (-B) % Bt
    x = tokens.astype(jnp.bfloat16)
    if pad:
        x = jnp.pad(x, ((0, pad), (0, 0), (0, 0)))
    Bp = B + pad

    const = lambda i: (0, 0)  # weights/biases are grid-invariant
    out = pl.pallas_call(
        _fused_kernel,
        out_shape=jax.ShapeDtypeStruct((Bp, C), jnp.float32),
        grid_spec=pltpu.PrefetchScalarGridSpec(
            num_scalar_prefetch=0,
            grid=(Bp // Bt,),
            in_specs=[
                pl.BlockSpec((Bt, S, H), lambda i: (i, 0, 0)),   # tokens
                pl.BlockSpec((H, 3 * H), const),                 # fused W_qkv (bf16)
                pl.BlockSpec((1, 3 * H), const),                 # fused b_qkv (f32)
                pl.BlockSpec((H, 128), const),                   # w1
                pl.BlockSpec((1, 128), const),                   # b1
                pl.BlockSpec((128, 16), const),                  # w2
                pl.BlockSpec((1, 16), const),                    # b2
                pl.BlockSpec((16, C), const),                    # w3
                pl.BlockSpec((1, C), const),                     # b3
            ],
            out_specs=pl.BlockSpec((Bt, C), lambda i: (i, 0)),
        ),
        compiler_params=pltpu.CompilerParams(
            # "arbitrary": weight-DMA-bound kernel — don't duplicate the weight
            # stream across TensorCores (v7x megacore).
            dimension_semantics=("arbitrary",),
            vmem_limit_bytes=32 * 1024 * 1024,
        ),
    )(x, params["w_qkv"], params["b_qkv"], params["w1"], params["b1"],
      params["w2"], params["b2"], params["w3"], params["b3"])
    return out[:B]


# ----------------------------------------------------------------------------
# Parameters & reference
# ----------------------------------------------------------------------------
def init_params(key):
    ks = jax.random.split(key, 12)
    scale = 0.02

    def lin(kw, kb, fan_in, fan_out):
        w = scale * jax.random.normal(kw, (fan_in, fan_out), jnp.float32)
        b = scale * jax.random.normal(kb, (1, fan_out), jnp.float32)
        return w, b

    wq, bq = lin(ks[0], ks[1], HIDDEN, HIDDEN)
    wk, bk = lin(ks[2], ks[3], HIDDEN, HIDDEN)
    wv, bv = lin(ks[4], ks[5], HIDDEN, HIDDEN)
    w1, b1 = lin(ks[6], ks[7], HIDDEN, 128)
    w2, b2 = lin(ks[8], ks[9], 128, 16)
    w3, b3 = lin(ks[10], ks[11], 16, NUM_CLASSES)
    return dict(wq=wq, bq=bq, wk=wk, bk=bk, wv=wv, bv=bv,
                w1=w1, b1=b1, w2=w2, b2=b2, w3=w3, b3=b3)


def prepare_params(p):
    """Fuse Q|K|V and cast matmul weights to bf16 (biases stay f32)."""
    w_qkv = jnp.concatenate([p["wq"], p["wk"], p["wv"]], axis=1).astype(jnp.bfloat16)
    b_qkv = jnp.concatenate([p["bq"], p["bk"], p["bv"]], axis=1)  # f32
    return dict(
        w_qkv=w_qkv, b_qkv=b_qkv,
        w1=p["w1"].astype(jnp.bfloat16), b1=p["b1"],
        w2=p["w2"].astype(jnp.bfloat16), b2=p["b2"],
        w3=p["w3"].astype(jnp.bfloat16), b3=p["b3"],
    )


def _reference_forward(tokens, p):
    """Pure-JAX reference using the same bf16 weights / f32 accumulation."""
    H = HIDDEN
    x = tokens.astype(jnp.bfloat16)
    qkv = jnp.einsum("bsh,hd->bsd", x, p["w_qkv"],
                     preferred_element_type=jnp.float32) + p["b_qkv"][0]
    q, k, v = qkv[..., :H], qkv[..., H:2 * H], qkv[..., 2 * H:]
    scores = jnp.einsum("bqd,bkd->bqk", q, k,
                        preferred_element_type=jnp.float32) * _NORM_FACT
    attn = jax.nn.softmax(scores, axis=-1)
    ctx = jnp.einsum("bqk,bkd->bqd", attn, v)
    pooled = jnp.mean(ctx, axis=1)
    h = jnp.dot(pooled.astype(jnp.bfloat16), p["w1"],
                preferred_element_type=jnp.float32) + p["b1"][0]
    h = jnp.dot(h.astype(jnp.bfloat16), p["w2"],
                preferred_element_type=jnp.float32) + p["b2"][0]
    logits = jnp.dot(h.astype(jnp.bfloat16), p["w3"],
                     preferred_element_type=jnp.float32) + p["b3"][0]
    return jax.nn.softmax(logits, axis=1)


if __name__ == "__main__":
    key = jax.random.PRNGKey(0)
    k_tok, k_par = jax.random.split(key)

    B, S = 2, 8
    tokens = jax.random.normal(k_tok, (B, S, HIDDEN), jnp.float32)
    params = prepare_params(init_params(k_par))

    out = transformer_attention_forward(tokens, params)
    out = jax.block_until_ready(out)

    ref = _reference_forward(tokens, params)
    assert out.shape == (B, NUM_CLASSES)
    assert jnp.allclose(out, ref, atol=2e-3, rtol=2e-3), "mismatch vs reference"

    print("KERNEL_OK")
</pallas_src>

<mosaic_0001>
module attributes {stable_mosaic.version = 11 : i64} {
  func.func @_fused_kernel(%arg0: i32, %arg1: memref<2x8x768xbf16, #tpu.memory_space<vmem>>, %arg2: memref<768x2304xbf16, #tpu.memory_space<vmem>>, %arg3: memref<1x2304xf32, #tpu.memory_space<vmem>>, %arg4: memref<768x128xbf16, #tpu.memory_space<vmem>>, %arg5: memref<1x128xf32, #tpu.memory_space<vmem>>, %arg6: memref<128x16xbf16, #tpu.memory_space<vmem>>, %arg7: memref<1x16xf32, #tpu.memory_space<vmem>>, %arg8: memref<16x4xbf16, #tpu.memory_space<vmem>>, %arg9: memref<1x4xf32, #tpu.memory_space<vmem>>, %arg10: memref<2x4xf32, #tpu.memory_space<vmem>>) attributes {dimension_semantics = [#tpu.dimension_semantics<arbitrary>], iteration_bounds = array<i64: 1>, scalar_prefetch = 0 : i64, scratch_operands = 0 : i64, tpu.core_type = #tpu.core_type<tc>, window_params = [{transform_indices = @transform_0, window_bounds = array<i64: 2, 8, 768>}, {pipeline_mode = #tpu.pipeline_mode<synchronous>, transform_indices = @transform_1, window_bounds = array<i64: 768, 2304>}, {pipeline_mode = #tpu.pipeline_mode<synchronous>, transform_indices = @transform_2, window_bounds = array<i64: 1, 2304>}, {pipeline_mode = #tpu.pipeline_mode<synchronous>, transform_indices = @transform_3, window_bounds = array<i64: 768, 128>}, {pipeline_mode = #tpu.pipeline_mode<synchronous>, transform_indices = @transform_4, window_bounds = array<i64: 1, 128>}, {pipeline_mode = #tpu.pipeline_mode<synchronous>, transform_indices = @transform_5, window_bounds = array<i64: 128, 16>}, {pipeline_mode = #tpu.pipeline_mode<synchronous>, transform_indices = @transform_6, window_bounds = array<i64: 1, 16>}, {pipeline_mode = #tpu.pipeline_mode<synchronous>, transform_indices = @transform_7, window_bounds = array<i64: 16, 4>}, {pipeline_mode = #tpu.pipeline_mode<synchronous>, transform_indices = @transform_8, window_bounds = array<i64: 1, 4>}, {transform_indices = @transform_9, window_bounds = array<i64: 2, 4>}]} {
    %c0 = arith.constant 0 : index
    %c0_0 = arith.constant 0 : index
    %c0_1 = arith.constant 0 : index
    %0 = vector.load %arg1[%c0, %c0_0, %c0_1] : memref<2x8x768xbf16, #tpu.memory_space<vmem>>, vector<2x8x768xbf16>
    %1 = vector.shape_cast %0 : vector<2x8x768xbf16> to vector<16x768xbf16>
    %c0_2 = arith.constant 0 : index
    %c0_3 = arith.constant 0 : index
    %2 = vector.load %arg2[%c0_2, %c0_3] : memref<768x2304xbf16, #tpu.memory_space<vmem>>, vector<768x2304xbf16>
    %cst = arith.constant dense<0.000000e+00> : vector<16x2304xf32>
    %3 = tpu.matmul %1, %2, %cst {dimension_numbers = #tpu.dot_dimension_numbers<[1], [0], [0], [1], [0, 0, 1, 1], [], []>} : vector<16x768xbf16>, vector<768x2304xbf16>, vector<16x2304xf32> -> vector<16x2304xf32>
    %c0_4 = arith.constant 0 : index
    %c0_5 = arith.constant 0 : index
    %4 = vector.load %arg3[%c0_4, %c0_5] : memref<1x2304xf32, #tpu.memory_space<vmem>>, vector<1x2304xf32>
    %5 = vector.broadcast %4 : vector<1x2304xf32> to vector<16x2304xf32>
    %6 = arith.addf %3, %5 : vector<16x2304xf32>
    %7 = vector.extract_strided_slice %6 {offsets = [0, 0], sizes = [16, 768], strides = [1, 1]} : vector<16x2304xf32> to vector<16x768xf32>
    %8 = vector.shape_cast %7 : vector<16x768xf32> to vector<2x8x768xf32>
    %9 = vector.extract_strided_slice %6 {offsets = [0, 768], sizes = [16, 768], strides = [1, 1]} : vector<16x2304xf32> to vector<16x768xf32>
    %10 = vector.shape_cast %9 : vector<16x768xf32> to vector<2x8x768xf32>
    %11 = vector.extract_strided_slice %6 {offsets = [0, 1536], sizes = [16, 768], strides = [1, 1]} : vector<16x2304xf32> to vector<16x768xf32>
    %12 = vector.shape_cast %11 : vector<16x768xf32> to vector<2x8x768xf32>
    "tpu.trace_start"() <{level = 10 : i32, message = "bqd,bkd->bqk"}> : () -> ()
    %cst_6 = arith.constant dense<0.000000e+00> : vector<2x8x8xf32>
    %13 = tpu.matmul %8, %10, %cst_6 {dimension_numbers = #tpu.dot_dimension_numbers<[2], [2], [1], [1], [0, 0, 0, 1, 1, 1], [0], [0]>} : vector<2x8x768xf32>, vector<2x8x768xf32>, vector<2x8x8xf32> -> vector<2x8x8xf32>
    "tpu.trace_stop"() : () -> ()
    %cst_7 = arith.constant 0.0360843912 : f32
    %14 = vector.broadcast %cst_7 : f32 to vector<2x8x8xf32>
    %15 = arith.mulf %13, %14 : vector<2x8x8xf32>
    %cst_8 = arith.constant dense<0xFF800000> : vector<2x8xf32>
    %16 = vector.multi_reduction <maximumf>, %15, %cst_8 [2] : vector<2x8x8xf32> to vector<2x8xf32>
    %17 = vector.shape_cast %16 : vector<2x8xf32> to vector<2x8x1xf32>
    %18 = vector.broadcast %17 : vector<2x8x1xf32> to vector<2x8x8xf32>
    %19 = arith.subf %15, %18 : vector<2x8x8xf32>
    %20 = math.exp %19 : vector<2x8x8xf32>
    %cst_9 = arith.constant dense<0.000000e+00> : vector<2x8xf32>
    %21 = vector.multi_reduction <add>, %20, %cst_9 [2] : vector<2x8x8xf32> to vector<2x8xf32>
    %22 = vector.shape_cast %21 : vector<2x8xf32> to vector<2x8x1xf32>
    %23 = vector.broadcast %22 : vector<2x8x1xf32> to vector<2x8x8xf32>
    %24 = arith.divf %20, %23 : vector<2x8x8xf32>
    %cst_10 = arith.constant dense<0.000000e+00> : vector<2x8xf32>
    %25 = vector.multi_reduction <add>, %24, %cst_10 [1] : vector<2x8x8xf32> to vector<2x8xf32>
    %cst_11 = arith.constant 8.000000e+00 : f32
    %26 = vector.broadcast %cst_11 : f32 to vector<2x8xf32>
    %27 = arith.divf %25, %26 : vector<2x8xf32>
    %28 = vector.shape_cast %27 : vector<2x8xf32> to vector<2x8x1xf32>
    %29 = vector.broadcast %28 : vector<2x8x1xf32> to vector<2x8x768xf32>
    %30 = arith.mulf %29, %12 : vector<2x8x768xf32>
    %cst_12 = arith.constant dense<0.000000e+00> : vector<2x768xf32>
    %31 = vector.multi_reduction <add>, %30, %cst_12 [1] : vector<2x8x768xf32> to vector<2x768xf32>
    %32 = arith.truncf %31 : vector<2x768xf32> to vector<2x768xbf16>
    %c0_13 = arith.constant 0 : index
    %c0_14 = arith.constant 0 : index
    %33 = vector.load %arg4[%c0_13, %c0_14] : memref<768x128xbf16, #tpu.memory_space<vmem>>, vector<768x128xbf16>
    %cst_15 = arith.constant dense<0.000000e+00> : vector<2x128xf32>
    %34 = tpu.matmul %32, %33, %cst_15 {dimension_numbers = #tpu.dot_dimension_numbers<[1], [0], [0], [1], [0, 0, 1, 1], [], []>} : vector<2x768xbf16>, vector<768x128xbf16>, vector<2x128xf32> -> vector<2x128xf32>
    %c0_16 = arith.constant 0 : index
    %c0_17 = arith.constant 0 : index
    %35 = vector.load %arg5[%c0_16, %c0_17] : memref<1x128xf32, #tpu.memory_space<vmem>>, vector<1x128xf32>
    %36 = vector.broadcast %35 : vector<1x128xf32> to vector<2x128xf32>
    %37 = arith.addf %34, %36 : vector<2x128xf32>
    %38 = arith.truncf %37 : vector<2x128xf32> to vector<2x128xbf16>
    %c0_18 = arith.constant 0 : index
    %c0_19 = arith.constant 0 : index
    %39 = vector.load %arg6[%c0_18, %c0_19] : memref<128x16xbf16, #tpu.memory_space<vmem>>, vector<128x16xbf16>
    %cst_20 = arith.constant dense<0.000000e+00> : vector<2x16xf32>
    %40 = tpu.matmul %38, %39, %cst_20 {dimension_numbers = #tpu.dot_dimension_numbers<[1], [0], [0], [1], [0, 0, 1, 1], [], []>} : vector<2x128xbf16>, vector<128x16xbf16>, vector<2x16xf32> -> vector<2x16xf32>
    %c0_21 = arith.constant 0 : index
    %c0_22 = arith.constant 0 : index
    %41 = vector.load %arg7[%c0_21, %c0_22] : memref<1x16xf32, #tpu.memory_space<vmem>>, vector<1x16xf32>
    %42 = vector.broadcast %41 : vector<1x16xf32> to vector<2x16xf32>
    %43 = arith.addf %40, %42 : vector<2x16xf32>
    %44 = arith.truncf %43 : vector<2x16xf32> to vector<2x16xbf16>
    %c0_23 = arith.constant 0 : index
    %c0_24 = arith.constant 0 : index
    %45 = vector.load %arg8[%c0_23, %c0_24] : memref<16x4xbf16, #tpu.memory_space<vmem>>, vector<16x4xbf16>
    %cst_25 = arith.constant dense<0.000000e+00> : vector<2x4xf32>
    %46 = tpu.matmul %44, %45, %cst_25 {dimension_numbers = #tpu.dot_dimension_numbers<[1], [0], [0], [1], [0, 0, 1, 1], [], []>} : vector<2x16xbf16>, vector<16x4xbf16>, vector<2x4xf32> -> vector<2x4xf32>
    %c0_26 = arith.constant 0 : index
    %c0_27 = arith.constant 0 : index
    %47 = vector.load %arg9[%c0_26, %c0_27] : memref<1x4xf32, #tpu.memory_space<vmem>>, vector<1x4xf32>
    %48 = vector.broadcast %47 : vector<1x4xf32> to vector<2x4xf32>
    %49 = arith.addf %46, %48 : vector<2x4xf32>
    %cst_28 = arith.constant dense<0xFF800000> : vector<2xf32>
    %50 = vector.multi_reduction <maximumf>, %49, %cst_28 [1] : vector<2x4xf32> to vector<2xf32>
    %51 = vector.shape_cast %50 : vector<2xf32> to vector<2x1xf32>
    %52 = vector.broadcast %51 : vector<2x1xf32> to vector<2x4xf32>
    %53 = arith.subf %49, %52 : vector<2x4xf32>
    %54 = math.exp %53 : vector<2x4xf32>
    %cst_29 = arith.constant dense<0.000000e+00> : vector<2xf32>
    %55 = vector.multi_reduction <add>, %54, %cst_29 [1] : vector<2x4xf32> to vector<2xf32>
    %56 = vector.shape_cast %55 : vector<2xf32> to vector<2x1xf32>
    %57 = vector.broadcast %56 : vector<2x1xf32> to vector<2x4xf32>
    %58 = arith.divf %54, %57 : vector<2x4xf32>
    %c0_30 = arith.constant 0 : index
    %c0_31 = arith.constant 0 : index
    %59 = vector.load %arg10[%c0_30, %c0_31] : memref<2x4xf32, #tpu.memory_space<vmem>>, vector<2x4xf32>
    tpu.vector_store %arg10[%c0_30, %c0_31], %58 {strides = array<i32>} : memref<2x4xf32, #tpu.memory_space<vmem>>, vector<2x4xf32>,
    return
  }
  func.func @transform_0(%arg0: i32) -> (i32, i32, i32) {
    %c0_i32 = arith.constant 0 : i32
    %c0_i32_0 = arith.constant 0 : i32
    %c0_i32_1 = arith.constant 0 : i32
    return %arg0, %c0_i32, %c0_i32_0 : i32, i32, i32
  }
  func.func @transform_1(%arg0: i32) -> (i32, i32) {
    %c0_i32 = arith.constant 0 : i32
    %c0_i32_0 = arith.constant 0 : i32
    %c0_i32_1 = arith.constant 0 : i32
    return %c0_i32, %c0_i32_0 : i32, i32
  }
  func.func @transform_2(%arg0: i32) -> (i32, i32) {
    %c0_i32 = arith.constant 0 : i32
    %c0_i32_0 = arith.constant 0 : i32
    %c0_i32_1 = arith.constant 0 : i32
    return %c0_i32, %c0_i32_0 : i32, i32
  }
  func.func @transform_3(%arg0: i32) -> (i32, i32) {
    %c0_i32 = arith.constant 0 : i32
    %c0_i32_0 = arith.constant 0 : i32
    %c0_i32_1 = arith.constant 0 : i32
    return %c0_i32, %c0_i32_0 : i32, i32
  }
  func.func @transform_4(%arg0: i32) -> (i32, i32) {
    %c0_i32 = arith.constant 0 : i32
    %c0_i32_0 = arith.constant 0 : i32
    %c0_i32_1 = arith.constant 0 : i32
    return %c0_i32, %c0_i32_0 : i32, i32
  }
  func.func @transform_5(%arg0: i32) -> (i32, i32) {
    %c0_i32 = arith.constant 0 : i32
    %c0_i32_0 = arith.constant 0 : i32
    %c0_i32_1 = arith.constant 0 : i32
    return %c0_i32, %c0_i32_0 : i32, i32
  }
  func.func @transform_6(%arg0: i32) -> (i32, i32) {
    %c0_i32 = arith.constant 0 : i32
    %c0_i32_0 = arith.constant 0 : i32
    %c0_i32_1 = arith.constant 0 : i32
    return %c0_i32, %c0_i32_0 : i32, i32
  }
  func.func @transform_7(%arg0: i32) -> (i32, i32) {
    %c0_i32 = arith.constant 0 : i32
    %c0_i32_0 = arith.constant 0 : i32
    %c0_i32_1 = arith.constant 0 : i32
    return %c0_i32, %c0_i32_0 : i32, i32
  }
  func.func @transform_8(%arg0: i32) -> (i32, i32) {
    %c0_i32 = arith.constant 0 : i32
    %c0_i32_0 = arith.constant 0 : i32
    %c0_i32_1 = arith.constant 0 : i32
    return %c0_i32, %c0_i32_0 : i32, i32
  }
  func.func @transform_9(%arg0: i32) -> (i32, i32) {
    %c0_i32 = arith.constant 0 : i32
    %c0_i32_0 = arith.constant 0 : i32
    return %arg0, %c0_i32 : i32, i32
  }
}

</mosaic_0001>

<llo_original>
// kernel: tpu_custom_call.1
$region0: #{tpu_custom_call.1}
  #allocation0 [shape = 'u32[]', space=smem, size = 0x4, offset = 0x4, fixed_abs, tag = 'smem constant byte address 0x4 - core index']
  #allocation1 [shape = 'u32[144,128]{1,0:T(1,128)}', space=vmem, size = 0x12000, scoped, tag = 'internal scratch']
  %s0 = inlined_call_operand.hbm [shape: bf16[2,8,768], index: 0, kind: input, shape index: {}]
  %s1 = inlined_call_operand.hbm [shape: bf16[768,2304], index: 1, kind: input, shape index: {}]
  %s2 = inlined_call_operand.hbm [shape: f32[1,2304], index: 2, kind: input, shape index: {}]
  %s3 = inlined_call_operand.hbm [shape: bf16[768,128], index: 3, kind: input, shape index: {}]
  %s4 = inlined_call_operand.hbm [shape: f32[1,128], index: 4, kind: input, shape index: {}]
  %s5 = inlined_call_operand.vmem [shape: bf16[128,16], index: 5, kind: input, shape index: {}]
  %s6 = inlined_call_operand.hbm [shape: f32[1,16], index: 6, kind: input, shape index: {}]
  %s7 = inlined_call_operand.vmem [shape: bf16[16,4], index: 7, kind: input, shape index: {}]
  %s8 = inlined_call_operand.hbm [shape: f32[1,4], index: 8, kind: input, shape index: {}]
  %s9 = inlined_call_operand.hbm [shape: f32[2,4], index: 9, kind: output, shape index: {}]
  %s10 = sld [smem:[#allocation0]]
  $region74: #{tpu_custom_call.1} parent=0
    _
  %s12 = ssub.s32 1, %s10
  %s13 = scalar_select 0, %s12, %s10
  $region1: #{tpu_custom_call.1} parent=0
    #allocation2 [shape = 'u8[24576]{0}', space=vmem, size = 0x6000, scoped, tag = 'input window, operand 0, single buffered']
    #allocation3 [shape = 's32[1]{0}', space=sflag, size = 0x4, scoped, tag = 'scoped memory for tpu_custom_call.1']
    #allocation4 [shape = 's32[1]{0}', space=sflag, size = 0x4, scoped, tag = 'scoped memory for tpu_custom_call.1']
    #allocation5 [shape = 'u8[3538944]{0}', space=vmem, size = 0x360000, scoped, tag = 'input window, operand 1, single buffered']
    #allocation6 [shape = 's32[1]{0}', space=sflag, size = 0x4, scoped, tag = 'scoped memory for tpu_custom_call.1']
    #allocation7 [shape = 'u8[9216]{0}', space=vmem, size = 0x2400, scoped, tag = 'input window, operand 2, single buffered']
    #allocation8 [shape = 'u8[196608]{0}', space=vmem, size = 0x30000, scoped, tag = 'input window, operand 3, single buffered']
    #allocation9 [shape = 's32[1]{0}', space=sflag, size = 0x4, scoped, tag = 'scoped memory for tpu_custom_call.1']
    #allocation10 [shape = 'u8[512]{0}', space=vmem, size = 0x400, scoped, tag = 'input window, operand 4, single buffered']
    #allocation11 [shape = 'u8[512]{0}', space=vmem, size = 0x400, scoped, tag = 'input window, operand 6, single buffered']
    #allocation12 [shape = 's32[1]{0}', space=sflag, size = 0x4, scoped, tag = 'scoped memory for tpu_custom_call.1']
    #allocation13 [shape = 'u8[512]{0}', space=vmem, size = 0x400, scoped, tag = 'input window, operand 8, single buffered']
    #allocation14 [shape = 'u8[1024]{0}', space=vmem, size = 0x400, scoped, tag = 'output window, operand 0, single buffered']
    %14 = vsyncpa [#allocation3], 0
    %15 = vsyncpa [#allocation6], 0
    %16 = vsyncpa [#allocation9], 0
    %17 = vsyncpa [#allocation12], 0
    %18 = vsyncpa [#allocation4], 0
    // Predicated region
    $region2: #{tpu_custom_call.1} parent=1 // pred_check
      _
    $region3: #{tpu_custom_call.1} parent=1 // pred_check_branch
      %20 = sbr.rel (0) target = $region5
    $region4: #{tpu_custom_call.1} parent=1 // pred_region
      %s22 = ssub.s32 768, 768
      %23 = vsyncadd [#allocation3], %s22
      %s24 = sshll.u32 [#allocation2], 4
      %s25 = int_to_ptr.vmem [resolvable:$true] %s24
      %30 = dma.hbm_to_vmem [thread:$0]  %s0, 768, %s25, [#allocation3], 384, 384, 24
    $region5: #{tpu_custom_call.1} parent=1 // pred_fallthru
      _
    // Predicated region
    $region6: #{tpu_custom_call.1} parent=1 // pred_check
      _
    $region7: #{tpu_custom_call.1} parent=1 // pred_check_branch
      %32 = sbr.rel (0) target = $region9
    $region8: #{tpu_custom_call.1} parent=1 // pred_region
      %s34 = ssub.s32 110592, 110592
      %35 = vsyncadd [#allocation6], %s34
      %s36 = sshll.u32 [#allocation5], 4
      %s37 = int_to_ptr.vmem [resolvable:$true] %s36
      %42 = dma.hbm_to_vmem [thread:$0]  %s1, 110592, %s37, [#allocation6], 1152, 1152, 72
    $region9: #{tpu_custom_call.1} parent=1 // pred_fallthru
      _
    // Predicated region
    $region10: #{tpu_custom_call.1} parent=1 // pred_check
      _
    $region11: #{tpu_custom_call.1} parent=1 // pred_check_branch
      %44 = sbr.rel (0) target = $region13
    $region12: #{tpu_custom_call.1} parent=1 // pred_region
      %s46 = ssub.s32 288, 288
      %47 = vsyncadd [#allocation6], %s46
      %s49 = sshll.u32 [#allocation7], 4
      %s50 = int_to_ptr.vmem [resolvable:$true] %s49
      %52 = dma.hbm_to_vmem [thread:$0]  %s2, 288, %s50, [#allocation6]
    $region13: #{tpu_custom_call.1} parent=1 // pred_fallthru
      _
    // Predicated region
    $region14: #{tpu_custom_call.1} parent=1 // pred_check
      _
    $region15: #{tpu_custom_call.1} parent=1 // pred_check_branch
      %54 = sbr.rel (0) target = $region17
    $region16: #{tpu_custom_call.1} parent=1 // pred_region
      %s56 = ssub.s32 6144, 6144
      %57 = vsyncadd [#allocation9], %s56
      %s58 = sshll.u32 [#allocation8], 4
      %s59 = int_to_ptr.vmem [resolvable:$true] %s58
      %64 = dma.hbm_to_vmem [thread:$0]  %s3, 6144, %s59, [#allocation9], 64, 64, 4
    $region17: #{tpu_custom_call.1} parent=1 // pred_fallthru
      _
    // Predicated region
    $region18: #{tpu_custom_call.1} parent=1 // pred_check
      _
    $region19: #{tpu_custom_call.1} parent=1 // pred_check_branch
      %66 = sbr.rel (0) target = $region21
    $region20: #{tpu_custom_call.1} parent=1 // pred_region
      %s68 = ssub.s32 16, 16
      %69 = vsyncadd [#allocation9], %s68
      %s71 = sshll.u32 [#allocation10], 4
      %s72 = int_to_ptr.vmem [resolvable:$true] %s71
      %74 = dma.hbm_to_vmem [thread:$0]  %s4, 16, %s72, [#allocation9]
    $region21: #{tpu_custom_call.1} parent=1 // pred_fallthru
      _
    // Predicated region
    $region22: #{tpu_custom_call.1} parent=1 // pred_check
      _
    $region23: #{tpu_custom_call.1} parent=1 // pred_check_branch
      %76 = sbr.rel (0) target = $region25
    $region24: #{tpu_custom_call.1} parent=1 // pred_region
      _
    $region25: #{tpu_custom_call.1} parent=1 // pred_fallthru
      _
    // Predicated region
    $region26: #{tpu_custom_call.1} parent=1 // pred_check
      _
    $region27: #{tpu_custom_call.1} parent=1 // pred_check_branch
      %78 = sbr.rel (0) target = $region29
    $region28: #{tpu_custom_call.1} parent=1 // pred_region
      %s80 = ssub.s32 16, 16
      %81 = vsyncadd [#allocation12], %s80
      %s83 = sshll.u32 [#allocation11], 4
      %s84 = int_to_ptr.vmem [resolvable:$true] %s83
      %86 = dma.hbm_to_vmem [thread:$0]  %s6, 16, %s84, [#allocation12]
    $region29: #{tpu_custom_call.1} parent=1 // pred_fallthru
      _
    // Predicated region
    $region30: #{tpu_custom_call.1} parent=1 // pred_check
      _
    $region31: #{tpu_custom_call.1} parent=1 // pred_check_branch
      %88 = sbr.rel (0) target = $region33
    $region32: #{tpu_custom_call.1} parent=1 // pred_region
      _
    $region33: #{tpu_custom_call.1} parent=1 // pred_fallthru
      _
    // Predicated region
    $region34: #{tpu_custom_call.1} parent=1 // pred_check
      _
    $region35: #{tpu_custom_call.1} parent=1 // pred_check_branch
      %90 = sbr.rel (0) target = $region37
    $region36: #{tpu_custom_call.1} parent=1 // pred_region
      %s92 = ssub.s32 16, 16
      %93 = vsyncadd [#allocation12], %s92
      %s95 = sshll.u32 [#allocation13], 4
      %s96 = int_to_ptr.vmem [resolvable:$true] %s95
      %98 = dma.hbm_to_vmem [thread:$0]  %s8, 16, %s96, [#allocation12]
    $region37: #{tpu_custom_call.1} parent=1 // pred_fallthru
      _
    // Predicated region
    $region38: #{tpu_custom_call.1} parent=1 // pred_check
      _
    $region39: #{tpu_custom_call.1} parent=1 // pred_check_branch
      %100 = sbr.rel (0) target = $region41
    $region40: #{tpu_custom_call.1} parent=1 // pred_region
      %101 = dma.done [#allocation3], 768
    $region41: #{tpu_custom_call.1} parent=1 // pred_fallthru
      _
    // Predicated region
    $region42: #{tpu_custom_call.1} parent=1 // pred_check
      _
    $region43: #{tpu_custom_call.1} parent=1 // pred_check_branch
      %103 = sbr.rel (0) target = $region45
    $region44: #{tpu_custom_call.1} parent=1 // pred_region
      %104 = dma.done [#allocation6], 110592
    $region45: #{tpu_custom_call.1} parent=1 // pred_fallthru
      _
    // Predicated region
    $region46: #{tpu_custom_call.1} parent=1 // pred_check
      _
    $region47: #{tpu_custom_call.1} parent=1 // pred_check_branch
      %106 = sbr.rel (0) target = $region49
    $region48: #{tpu_custom_call.1} parent=1 // pred_region
      %107 = dma.done [#allocation6], 288
    $region49: #{tpu_custom_call.1} parent=1 // pred_fallthru
      _
    // Predicated region
    $region50: #{tpu_custom_call.1} parent=1 // pred_check
      _
    $region51: #{tpu_custom_call.1} parent=1 // pred_check_branch
      %109 = sbr.rel (0) target = $region53
    $region52: #{tpu_custom_call.1} parent=1 // pred_region
      %110 = dma.done [#allocation9], 6144
    $region53: #{tpu_custom_call.1} parent=1 // pred_fallthru
      _
    // Predicated region
    $region54: #{tpu_custom_call.1} parent=1 // pred_check
      _
    $region55: #{tpu_custom_call.1} parent=1 // pred_check_branch
      %112 = sbr.rel (0) target = $region57
    $region56: #{tpu_custom_call.1} parent=1 // pred_region
      %113 = dma.done [#allocation9], 16
    $region57: #{tpu_custom_call.1} parent=1 // pred_fallthru
      _
    // Predicated region
    $region58: #{tpu_custom_call.1} parent=1 // pred_check
      _
    $region59: #{tpu_custom_call.1} parent=1 // pred_check_branch
      %115 = sbr.rel (0) target = $region61
    $region60: #{tpu_custom_call.1} parent=1 // pred_region
      %116 = dma.done [#allocation12], 16
    $region61: #{tpu_custom_call.1} parent=1 // pred_fallthru
      _
    // Predicated region
    $region62: #{tpu_custom_call.1} parent=1 // pred_check
      _
    $region63: #{tpu_custom_call.1} parent=1 // pred_check_branch
      %118 = sbr.rel (0) target = $region65
    $region64: #{tpu_custom_call.1} parent=1 // pred_region
      %119 = dma.done [#allocation12], 16
    $region65: #{tpu_custom_call.1} parent=1 // pred_fallthru
      _
    %v121 = vld [vmem:[#allocation2] sm:$0xff]
    %v122 = vld [vmem:[#allocation2 + $0x8] sm:$0xff]
    %v123 = vld [vmem:[#allocation2 + $0x10] sm:$0xff]
    %v124 = vld [vmem:[#allocation2 + $0x18] sm:$0xff]
    %v125 = vld [vmem:[#allocation2 + $0x20] sm:$0xff]
    %v126 = vld [vmem:[#allocation2 + $0x28] sm:$0xff]
    %v127 = vld [vmem:[#allocation5] sm:$0xff]
    %v128 = vld [vmem:[#allocation5 + $0x8] sm:$0xff]
    %v129 = vld [vmem:[#allocation5 + $0x10] sm:$0xff]
    %v130 = vld [vmem:[#allocation5 + $0x18] sm:$0xff]
    %v131 = vld [vmem:[#allocation5 + $0x20] sm:$0xff]
    %v132 = vld [vmem:[#allocation5 + $0x28] sm:$0xff]
    %v133 = vld [vmem:[#allocation5 + $0x30] sm:$0xff]
    %v134 = vld [vmem:[#allocation5 + $0x38] sm:$0xff]
    %v135 = vld [vmem:[#allocation5 + $0x40] sm:$0xff]
    %v136 = vld [vmem:[#allocation5 + $0x48] sm:$0xff]
    %v137 = vld [vmem:[#allocation5 + $0x50] sm:$0xff]
    %v138 = vld [vmem:[#allocation5 + $0x58] sm:$0xff]
    %v139 = vld [vmem:[#allocation5 + $0x60] sm:$0xff]
    %v140 = vld [vmem:[#allocation5 + $0x68] sm:$0xff]
    %v141 = vld [vmem:[#allocation5 + $0x70] sm:$0xff]
    %v142 = vld [vmem:[#allocation5 + $0x78] sm:$0xff]
    %v143 = vld [vmem:[#allocation5 + $0x80] sm:$0xff]
    %v144 = vld [vmem:[#allocation5 + $0x88] sm:$0xff]
    %v145 = vld [vmem:[#allocation5 + $0x90] sm:$0xff]
    %v146 = vld [vmem:[#allocation5 + $0x98] sm:$0xff]
    %v147 = vld [vmem:[#allocation5 + $0xa0] sm:$0xff]
    %v148 = vld [vmem:[#allocation5 + $0xa8] sm:$0xff]
    %v149 = vld [vmem:[#allocation5 + $0xb0] sm:$0xff]
    %v150 = vld [vmem:[#allocation5 + $0xb8] sm:$0xff]
    %v151 = vld [vmem:[#allocation5 + $0xc0] sm:$0xff]
    %v152 = vld [vmem:[#allocation5 + $0xc8] sm:$0xff]
    %v153 = vld [vmem:[#allocation5 + $0xd0] sm:$0xff]
    %v154 = vld [vmem:[#allocation5 + $0xd8] sm:$0xff]
    %v155 = vld [vmem:[#allocation5 + $0xe0] sm:$0xff]
    %v156 = vld [vmem:[#allocation5 + $0xe8] sm:$0xff]
    %v157 = vld [vmem:[#allocation5 + $0xf0] sm:$0xff]
    %v158 = vld [vmem:[#allocation5 + $0xf8] sm:$0xff]
    %v159 = vld [vmem:[#allocation5 + $0x100] sm:$0xff]
    %v160 = vld [vmem:[#allocation5 + $0x108] sm:$0xff]
    %v161 = vld [vmem:[#allocation5 + $0x110] sm:$0xff]
    %v162 = vld [vmem:[#allocation5 + $0x118] sm:$0xff]
    %v163 = vld [vmem:[#allocation5 + $0x120] sm:$0xff]
    %v164 = vld [vmem:[#allocation5 + $0x128] sm:$0xff]
    %v165 = vld [vmem:[#allocation5 + $0x130] sm:$0xff]
    %v166 = vld [vmem:[#allocation5 + $0x138] sm:$0xff]
    %v167 = vld [vmem:[#allocation5 + $0x140] sm:$0xff]
    %v168 = vld [vmem:[#allocation5 + $0x148] sm:$0xff]
    %v169 = vld [vmem:[#allocation5 + $0x150] sm:$0xff]
    %v170 = vld [vmem:[#allocation5 + $0x158] sm:$0xff]
    %v171 = vld [vmem:[#allocation5 + $0x160] sm:$0xff]
    %v172 = vld [vmem:[#allocation5 + $0x168] sm:$0xff]
    %v173 = vld [vmem:[#allocation5 + $0x170] sm:$0xff]
    %v174 = vld [vmem:[#allocation5 + $0x178] sm:$0xff]
    %v175 = vld [vmem:[#allocation5 + $0x180] sm:$0xff]
    %v176 = vld [vmem:[#allocation5 + $0x188] sm:$0xff]
    %v177 = vld [vmem:[#allocation5 + $0x190] sm:$0xff]
    %v178 = vld [vmem:[#allocation5 + $0x198] sm:$0xff]
    %v179 = vld [vmem:[#allocation5 + $0x1a0] sm:$0xff]
    %v180 = vld [vmem:[#allocation5 + $0x1a8] sm:$0xff]
    %v181 = vld [vmem:[#allocation5 + $0x1b0] sm:$0xff]
    %v182 = vld [vmem:[#allocation5 + $0x1b8] sm:$0xff]
    %v183 = vld [vmem:[#allocation5 + $0x1c0] sm:$0xff]
    %v184 = vld [vmem:[#allocation5 + $0x1c8] sm:$0xff]
    %v185 = vld [vmem:[#allocation5 + $0x1d0] sm:$0xff]
    %v186 = vld [vmem:[#allocation5 + $0x1d8] sm:$0xff]
    %v187 = vld [vmem:[#allocation5 + $0x1e0] sm:$0xff]
    %v188 = vld [vmem:[#allocation5 + $0x1e8] sm:$0xff]
    %v189 = vld [vmem:[#allocation5 + $0x1f0] sm:$0xff]
    %v190 = vld [vmem:[#allocation5 + $0x1f8] sm:$0xff]
    %v191 = vld [vmem:[#allocation5 + $0x200] sm:$0xff]
    %v192 = vld [vmem:[#allocation5 + $0x208] sm:$0xff]
    %v193 = vld [vmem:[#allocation5 + $0x210] sm:$0xff]
    %v194 = vld [vmem:[#allocation5 + $0x218] sm:$0xff]
    %v195 = vld [vmem:[#allocation5 + $0x220] sm:$0xff]
    %v196 = vld [vmem:[#allocation5 + $0x228] sm:$0xff]
    %v197 = vld [vmem:[#allocation5 + $0x230] sm:$0xff]
    %v198 = vld [vmem:[#allocation5 + $0x238] sm:$0xff]
    %v199 = vld [vmem:[#allocation5 + $0x240] sm:$0xff]
    %v200 = vld [vmem:[#allocation5 + $0x248] sm:$0xff]
    %v201 = vld [vmem:[#allocation5 + $0x250] sm:$0xff]
    %v202 = vld [vmem:[#allocation5 + $0x258] sm:$0xff]
    %v203 = vld [vmem:[#allocation5 + $0x260] sm:$0xff]
    %v204 = vld [vmem:[#allocation5 + $0x268] sm:$0xff]
    %v205 = vld [vmem:[#allocation5 + $0x270] sm:$0xff]
    %v206 = vld [vmem:[#allocation5 + $0x278] sm:$0xff]
    %v207 = vld [vmem:[#allocation5 + $0x280] sm:$0xff]
    %v208 = vld [vmem:[#allocation5 + $0x288] sm:$0xff]
    %v209 = vld [vmem:[#allocation5 + $0x290] sm:$0xff]
    %v210 = vld [vmem:[#allocation5 + $0x298] sm:$0xff]
    %v211 = vld [vmem:[#allocation5 + $0x2a0] sm:$0xff]
    %v212 = vld [vmem:[#allocation5 + $0x2a8] sm:$0xff]
    %v213 = vld [vmem:[#allocation5 + $0x2b0] sm:$0xff]
    %v214 = vld [vmem:[#allocation5 + $0x2b8] sm:$0xff]
    %v215 = vld [vmem:[#allocation5 + $0x2c0] sm:$0xff]
    %v216 = vld [vmem:[#allocation5 + $0x2c8] sm:$0xff]
    %v217 = vld [vmem:[#allocation5 + $0x2d0] sm:$0xff]
    %v218 = vld [vmem:[#allocation5 + $0x2d8] sm:$0xff]
    %v219 = vld [vmem:[#allocation5 + $0x2e0] sm:$0xff]
    %v220 = vld [vmem:[#allocation5 + $0x2e8] sm:$0xff]
    %v221 = vld [vmem:[#allocation5 + $0x2f0] sm:$0xff]
    %v222 = vld [vmem:[#allocation5 + $0x2f8] sm:$0xff]
    %v223 = vld [vmem:[#allocation5 + $0x300] sm:$0xff]
    %v224 = vld [vmem:[#allocation5 + $0x308] sm:$0xff]
    %v225 = vld [vmem:[#allocation5 + $0x310] sm:$0xff]
    %v226 = vld [vmem:[#allocation5 + $0x318] sm:$0xff]
    %v227 = vld [vmem:[#allocation5 + $0x320] sm:$0xff]
    %v228 = vld [vmem:[#allocation5 + $0x328] sm:$0xff]
    %v229 = vld [vmem:[#allocation5 + $0x330] sm:$0xff]
    %v230 = vld [vmem:[#allocation5 + $0x338] sm:$0xff]
    %v231 = vld [vmem:[#allocation5 + $0x340] sm:$0xff]
    %v232 = vld [vmem:[#allocation5 + $0x348] sm:$0xff]
    %v233 = vld [vmem:[#allocation5 + $0x350] sm:$0xff]
    %v234 = vld [vmem:[#allocation5 + $0x358] sm:$0xff]
    %v235 = vld [vmem:[#allocation5 + $0x360] sm:$0xff]
    %v236 = vld [vmem:[#allocation5 + $0x368] sm:$0xff]
    %v237 = vld [vmem:[#allocation5 + $0x370] sm:$0xff]
    %v238 = vld [vmem:[#allocation5 + $0x378] sm:$0xff]
    %v239 = vld [vmem:[#allocation5 + $0x380] sm:$0xff]
    %v240 = vld [vmem:[#allocation5 + $0x388] sm:$0xff]
    %v241 = vld [vmem:[#allocation5 + $0x390] sm:$0xff]
    %v242 = vld [vmem:[#allocation5 + $0x398] sm:$0xff]
    %v243 = vld [vmem:[#allocation5 + $0x3a0] sm:$0xff]
    %v244 = vld [vmem:[#allocation5 + $0x3a8] sm:$0xff]
    %v245 = vld [vmem:[#allocation5 + $0x3b0] sm:$0xff]
    %v246 = vld [vmem:[#allocation5 + $0x3b8] sm:$0xff]
    %v247 = vld [vmem:[#allocation5 + $0x3c0] sm:$0xff]
    %v248 = vld [vmem:[#allocation5 + $0x3c8] sm:$0xff]
    %v249 = vld [vmem:[#allocation5 + $0x3d0] sm:$0xff]
    %v250 = vld [vmem:[#allocation5 + $0x3d8] sm:$0xff]
    %v251 = vld [vmem:[#allocation5 + $0x3e0] sm:$0xff]
    %v252 = vld [vmem:[#allocation5 + $0x3e8] sm:$0xff]
    %v253 = vld [vmem:[#allocation5 + $0x3f0] sm:$0xff]
    %v254 = vld [vmem:[#allocation5 + $0x3f8] sm:$0xff]
    %v255 = vld [vmem:[#allocation5 + $0x400] sm:$0xff]
    %v256 = vld [vmem:[#allocation5 + $0x408] sm:$0xff]
    %v257 = vld [vmem:[#allocation5 + $0x410] sm:$0xff]
    %v258 = vld [vmem:[#allocation5 + $0x418] sm:$0xff]
    %v259 = vld [vmem:[#allocation5 + $0x420] sm:$0xff]
    %v260 = vld [vmem:[#allocation5 + $0x428] sm:$0xff]
    %v261 = vld [vmem:[#allocation5 + $0x430] sm:$0xff]
    %v262 = vld [vmem:[#allocation5 + $0x438] sm:$0xff]
    %v263 = vld [vmem:[#allocation5 + $0x440] sm:$0xff]
    %v264 = vld [vmem:[#allocation5 + $0x448] sm:$0xff]
    %v265 = vld [vmem:[#allocation5 + $0x450] sm:$0xff]
    %v266 = vld [vmem:[#allocation5 + $0x458] sm:$0xff]
    %v267 = vld [vmem:[#allocation5 + $0x460] sm:$0xff]
    %v268 = vld [vmem:[#allocation5 + $0x468] sm:$0xff]
    %v269 = vld [vmem:[#allocation5 + $0x470] sm:$0xff]
    %v270 = vld [vmem:[#allocation5 + $0x478] sm:$0xff]
    %v271 = vld [vmem:[#allocation5 + $0x480] sm:$0xff]
    %v272 = vld [vmem:[#allocation5 + $0x488] sm:$0xff]
    %v273 = vld [vmem:[#allocation5 + $0x490] sm:$0xff]
    %v274 = vld [vmem:[#allocation5 + $0x498] sm:$0xff]
    %v275 = vld [vmem:[#allocation5 + $0x4a0] sm:$0xff]
    %v276 = vld [vmem:[#allocation5 + $0x4a8] sm:$0xff]
    %v277 = vld [vmem:[#allocation5 + $0x4b0] sm:$0xff]
    %v278 = vld [vmem:[#allocation5 + $0x4b8] sm:$0xff]
    %v279 = vld [vmem:[#allocation5 + $0x4c0] sm:$0xff]
    %v280 = vld [vmem:[#allocation5 + $0x4c8] sm:$0xff]
    %v281 = vld [vmem:[#allocation5 + $0x4d0] sm:$0xff]
    %v282 = vld [vmem:[#allocation5 + $0x4d8] sm:$0xff]
    %v283 = vld [vmem:[#allocation5 + $0x4e0] sm:$0xff]
    %v284 = vld [vmem:[#allocation5 + $0x4e8] sm:$0xff]
    %v285 = vld [vmem:[#allocation5 + $0x4f0] sm:$0xff]
    %v286 = vld [vmem:[#allocation5 + $0x4f8] sm:$0xff]
    %v287 = vld [vmem:[#allocation5 + $0x500] sm:$0xff]
    %v288 = vld [vmem:[#allocation5 + $0x508] sm:$0xff]
    %v289 = vld [vmem:[#allocation5 + $0x510] sm:$0xff]
    %v290 = vld [vmem:[#allocation5 + $0x518] sm:$0xff]
    %v291 = vld [vmem:[#allocation5 + $0x520] sm:$0xff]
    %v292 = vld [vmem:[#allocation5 + $0x528] sm:$0xff]
    %v293 = vld [vmem:[#allocation5 + $0x530] sm:$0xff]
    %v294 = vld [vmem:[#allocation5 + $0x538] sm:$0xff]
    %v295 = vld [vmem:[#allocation5 + $0x540] sm:$0xff]
    %v296 = vld [vmem:[#allocation5 + $0x548] sm:$0xff]
    %v297 = vld [vmem:[#allocation5 + $0x550] sm:$0xff]
    %v298 = vld [vmem:[#allocation5 + $0x558] sm:$0xff]
    %v299 = vld [vmem:[#allocation5 + $0x560] sm:$0xff]
    %v300 = vld [vmem:[#allocation5 + $0x568] sm:$0xff]
    %v301 = vld [vmem:[#allocation5 + $0x570] sm:$0xff]
    %v302 = vld [vmem:[#allocation5 + $0x578] sm:$0xff]
    %v303 = vld [vmem:[#allocation5 + $0x580] sm:$0xff]
    %v304 = vld [vmem:[#allocation5 + $0x588] sm:$0xff]
    %v305 = vld [vmem:[#allocation5 + $0x590] sm:$0xff]
    %v306 = vld [vmem:[#allocation5 + $0x598] sm:$0xff]
    %v307 = vld [vmem:[#allocation5 + $0x5a0] sm:$0xff]
    %v308 = vld [vmem:[#allocation5 + $0x5a8] sm:$0xff]
    %v309 = vld [vmem:[#allocation5 + $0x5b0] sm:$0xff]
    %v310 = vld [vmem:[#allocation5 + $0x5b8] sm:$0xff]
    %v311 = vld [vmem:[#allocation5 + $0x5c0] sm:$0xff]
    %v312 = vld [vmem:[#allocation5 + $0x5c8] sm:$0xff]
    %v313 = vld [vmem:[#allocation5 + $0x5d0] sm:$0xff]
    %v314 = vld [vmem:[#allocation5 + $0x5d8] sm:$0xff]
    %v315 = vld [vmem:[#allocation5 + $0x5e0] sm:$0xff]
    %v316 = vld [vmem:[#allocation5 + $0x5e8] sm:$0xff]
    %v317 = vld [vmem:[#allocation5 + $0x5f0] sm:$0xff]
    %v318 = vld [vmem:[#allocation5 + $0x5f8] sm:$0xff]
    %v319 = vld [vmem:[#allocation5 + $0x600] sm:$0xff]
    %v320 = vld [vmem:[#allocation5 + $0x608] sm:$0xff]
    %v321 = vld [vmem:[#allocation5 + $0x610] sm:$0xff]
    %v322 = vld [vmem:[#allocation5 + $0x618] sm:$0xff]
    %v323 = vld [vmem:[#allocation5 + $0x620] sm:$0xff]
    %v324 = vld [vmem:[#allocation5 + $0x628] sm:$0xff]
    %v325 = vld [vmem:[#allocation5 + $0x630] sm:$0xff]
    %v326 = vld [vmem:[#allocation5 + $0x638] sm:$0xff]
    %v327 = vld [vmem:[#allocation5 + $0x640] sm:$0xff]
    %v328 = vld [vmem:[#allocation5 + $0x648] sm:$0xff]
    %v329 = vld [vmem:[#allocation5 + $0x650] sm:$0xff]
    %v330 = vld [vmem:[#allocation5 + $0x658] sm:$0xff]
    %v331 = vld [vmem:[#allocation5 + $0x660] sm:$0xff]
    %v332 = vld [vmem:[#allocation5 + $0x668] sm:$0xff]
    %v333 = vld [vmem:[#allocation5 + $0x670] sm:$0xff]
    %v334 = vld [vmem:[#allocation5 + $0x678] sm:$0xff]
    %v335 = vld [vmem:[#allocation5 + $0x680] sm:$0xff]
    %v336 = vld [vmem:[#allocation5 + $0x688] sm:$0xff]
    %v337 = vld [vmem:[#allocation5 + $0x690] sm:$0xff]
    %v338 = vld [vmem:[#allocation5 + $0x698] sm:$0xff]
    %v339 = vld [vmem:[#allocation5 + $0x6a0] sm:$0xff]
    %v340 = vld [vmem:[#allocation5 + $0x6a8] sm:$0xff]
    %v341 = vld [vmem:[#allocation5 + $0x6b0] sm:$0xff]
    %v342 = vld [vmem:[#allocation5 + $0x6b8] sm:$0xff]
    %v343 = vld [vmem:[#allocation5 + $0x6c0] sm:$0xff]
    %v344 = vld [vmem:[#allocation5 + $0x6c8] sm:$0xff]
    %v345 = vld [vmem:[#allocation5 + $0x6d0] sm:$0xff]
    %v346 = vld [vmem:[#allocation5 + $0x6d8] sm:$0xff]
    %v347 = vld [vmem:[#allocation5 + $0x6e0] sm:$0xff]
    %v348 = vld [vmem:[#allocation5 + $0x6e8] sm:$0xff]
    %v349 = vld [vmem:[#allocation5 + $0x6f0] sm:$0xff]
    %v350 = vld [vmem:[#allocation5 + $0x6f8] sm:$0xff]
    %v351 = vld [vmem:[#allocation5 + $0x700] sm:$0xff]
    %v352 = vld [vmem:[#allocation5 + $0x708] sm:$0xff]
    %v353 = vld [vmem:[#allocation5 + $0x710] sm:$0xff]
    %v354 = vld [vmem:[#allocation5 + $0x718] sm:$0xff]
    %v355 = vld [vmem:[#allocation5 + $0x720] sm:$0xff]
    %v356 = vld [vmem:[#allocation5 + $0x728] sm:$0xff]
    %v357 = vld [vmem:[#allocation5 + $0x730] sm:$0xff]
    %v358 = vld [vmem:[#allocation5 + $0x738] sm:$0xff]
    %v359 = vld [vmem:[#allocation5 + $0x740] sm:$0xff]
    %v360 = vld [vmem:[#allocation5 + $0x748] sm:$0xff]
    %v361 = vld [vmem:[#allocation5 + $0x750] sm:$0xff]
    %v362 = vld [vmem:[#allocation5 + $0x758] sm:$0xff]
    %v363 = vld [vmem:[#allocation5 + $0x760] sm:$0xff]
    %v364 = vld [vmem:[#allocation5 + $0x768] sm:$0xff]
    %v365 = vld [vmem:[#allocation5 + $0x770] sm:$0xff]
    %v366 = vld [vmem:[#allocation5 + $0x778] sm:$0xff]
    %v367 = vld [vmem:[#allocation5 + $0x780] sm:$0xff]
    %v368 = vld [vmem:[#allocation5 + $0x788] sm:$0xff]
    %v369 = vld [vmem:[#allocation5 + $0x790] sm:$0xff]
    %v370 = vld [vmem:[#allocation5 + $0x798] sm:$0xff]
    %v371 = vld [vmem:[#allocation5 + $0x7a0] sm:$0xff]
    %v372 = vld [vmem:[#allocation5 + $0x7a8] sm:$0xff]
    %v373 = vld [vmem:[#allocation5 + $0x7b0] sm:$0xff]
    %v374 = vld [vmem:[#allocation5 + $0x7b8] sm:$0xff]
    %v375 = vld [vmem:[#allocation5 + $0x7c0] sm:$0xff]
    %v376 = vld [vmem:[#allocation5 + $0x7c8] sm:$0xff]
    %v377 = vld [vmem:[#allocation5 + $0x7d0] sm:$0xff]
    %v378 = vld [vmem:[#allocation5 + $0x7d8] sm:$0xff]
    %v379 = vld [vmem:[#allocation5 + $0x7e0] sm:$0xff]
    %v380 = vld [vmem:[#allocation5 + $0x7e8] sm:$0xff]
    %v381 = vld [vmem:[#allocation5 + $0x7f0] sm:$0xff]
    %v382 = vld [vmem:[#allocation5 + $0x7f8] sm:$0xff]
    %v383 = vld [vmem:[#allocation5 + $0x800] sm:$0xff]
    %v384 = vld [vmem:[#allocation5 + $0x808] sm:$0xff]
    %v385 = vld [vmem:[#allocation5 + $0x810] sm:$0xff]
    %v386 = vld [vmem:[#allocation5 + $0x818] sm:$0xff]
    %v387 = vld [vmem:[#allocation5 + $0x820] sm:$0xff]
    %v388 = vld [vmem:[#allocation5 + $0x828] sm:$0xff]
    %v389 = vld [vmem:[#allocation5 + $0x830] sm:$0xff]
    %v390 = vld [vmem:[#allocation5 + $0x838] sm:$0xff]
    %v391 = vld [vmem:[#allocation5 + $0x840] sm:$0xff]
    %v392 = vld [vmem:[#allocation5 + $0x848] sm:$0xff]
    %v393 = vld [vmem:[#allocation5 + $0x850] sm:$0xff]
    %v394 = vld [vmem:[#allocation5 + $0x858] sm:$0xff]
    %v395 = vld [vmem:[#allocation5 + $0x860] sm:$0xff]
    %v396 = vld [vmem:[#allocation5 + $0x868] sm:$0xff]
    %v397 = vld [vmem:[#allocation5 + $0x870] sm:$0xff]
    %v398 = vld [vmem:[#allocation5 + $0x878] sm:$0xff]
    %v399 = vld [vmem:[#allocation5 + $0x880] sm:$0xff]
    %v400 = vld [vmem:[#allocation5 + $0x888] sm:$0xff]
    %v401 = vld [vmem:[#allocation5 + $0x890] sm:$0xff]
    %v402 = vld [vmem:[#allocation5 + $0x898] sm:$0xff]
    %v403 = vld [vmem:[#allocation5 + $0x8a0] sm:$0xff]
    %v404 = vld [vmem:[#allocation5 + $0x8a8] sm:$0xff]
    %v405 = vld [vmem:[#allocation5 + $0x8b0] sm:$0xff]
    %v406 = vld [vmem:[#allocation5 + $0x8b8] sm:$0xff]
    %v407 = vld [vmem:[#allocation5 + $0x8c0] sm:$0xff]
    %v408 = vld [vmem:[#allocation5 + $0x8c8] sm:$0xff]
    %v409 = vld [vmem:[#allocation5 + $0x8d0] sm:$0xff]
    %v410 = vld [vmem:[#allocation5 + $0x8d8] sm:$0xff]
    %v411 = vld [vmem:[#allocation5 + $0x8e0] sm:$0xff]
    %v412 = vld [vmem:[#allocation5 + $0x8e8] sm:$0xff]
    %v413 = vld [vmem:[#allocation5 + $0x8f0] sm:$0xff]
    %v414 = vld [vmem:[#allocation5 + $0x8f8] sm:$0xff]
    %v415 = vld [vmem:[#allocation5 + $0x900] sm:$0xff]
    %v416 = vld [vmem:[#allocation5 + $0x908] sm:$0xff]
    %v417 = vld [vmem:[#allocation5 + $0x910] sm:$0xff]
    %v418 = vld [vmem:[#allocation5 + $0x918] sm:$0xff]
    %v419 = vld [vmem:[#allocation5 + $0x920] sm:$0xff]
    %v420 = vld [vmem:[#allocation5 + $0x928] sm:$0xff]
    %v421 = vld [vmem:[#allocation5 + $0x930] sm:$0xff]
    %v422 = vld [vmem:[#allocation5 + $0x938] sm:$0xff]
    %v423 = vld [vmem:[#allocation5 + $0x940] sm:$0xff]
    %v424 = vld [vmem:[#allocation5 + $0x948] sm:$0xff]
    %v425 = vld [vmem:[#allocation5 + $0x950] sm:$0xff]
    %v426 = vld [vmem:[#allocation5 + $0x958] sm:$0xff]
    %v427 = vld [vmem:[#allocation5 + $0x960] sm:$0xff]
    %v428 = vld [vmem:[#allocation5 + $0x968] sm:$0xff]
    %v429 = vld [vmem:[#allocation5 + $0x970] sm:$0xff]
    %v430 = vld [vmem:[#allocation5 + $0x978] sm:$0xff]
    %v431 = vld [vmem:[#allocation5 + $0x980] sm:$0xff]
    %v432 = vld [vmem:[#allocation5 + $0x988] sm:$0xff]
    %v433 = vld [vmem:[#allocation5 + $0x990] sm:$0xff]
    %v434 = vld [vmem:[#allocation5 + $0x998] sm:$0xff]
    %v435 = vld [vmem:[#allocation5 + $0x9a0] sm:$0xff]
    %v436 = vld [vmem:[#allocation5 + $0x9a8] sm:$0xff]
    %v437 = vld [vmem:[#allocation5 + $0x9b0] sm:$0xff]
    %v438 = vld [vmem:[#allocation5 + $0x9b8] sm:$0xff]
    %v439 = vld [vmem:[#allocation5 + $0x9c0] sm:$0xff]
    %v440 = vld [vmem:[#allocation5 + $0x9c8] sm:$0xff]
    %v441 = vld [vmem:[#allocation5 + $0x9d0] sm:$0xff]
    %v442 = vld [vmem:[#allocation5 + $0x9d8] sm:$0xff]
    %v443 = vld [vmem:[#allocation5 + $0x9e0] sm:$0xff]
    %v444 = vld [vmem:[#allocation5 + $0x9e8] sm:$0xff]
    %v445 = vld [vmem:[#allocation5 + $0x9f0] sm:$0xff]
    %v446 = vld [vmem:[#allocation5 + $0x9f8] sm:$0xff]
    %v447 = vld [vmem:[#allocation5 + $0xa00] sm:$0xff]
    %v448 = vld [vmem:[#allocation5 + $0xa08] sm:$0xff]
    %v449 = vld [vmem:[#allocation5 + $0xa10] sm:$0xff]
    %v450 = vld [vmem:[#allocation5 + $0xa18] sm:$0xff]
    %v451 = vld [vmem:[#allocation5 + $0xa20] sm:$0xff]
    %v452 = vld [vmem:[#allocation5 + $0xa28] sm:$0xff]
    %v453 = vld [vmem:[#allocation5 + $0xa30] sm:$0xff]
    %v454 = vld [vmem:[#allocation5 + $0xa38] sm:$0xff]
    %v455 = vld [vmem:[#allocation5 + $0xa40] sm:$0xff]
    %v456 = vld [vmem:[#allocation5 + $0xa48] sm:$0xff]
    %v457 = vld [vmem:[#allocation5 + $0xa50] sm:$0xff]
    %v458 = vld [vmem:[#allocation5 + $0xa58] sm:$0xff]
    %v459 = vld [vmem:[#allocation5 + $0xa60] sm:$0xff]
    %v460 = vld [vmem:[#allocation5 + $0xa68] sm:$0xff]
    %v461 = vld [vmem:[#allocation5 + $0xa70] sm:$0xff]
    %v462 = vld [vmem:[#allocation5 + $0xa78] sm:$0xff]
    %v463 = vld [vmem:[#allocation5 + $0xa80] sm:$0xff]
    %v464 = vld [vmem:[#allocation5 + $0xa88] sm:$0xff]
    %v465 = vld [vmem:[#allocation5 + $0xa90] sm:$0xff]
    %v466 = vld [vmem:[#allocation5 + $0xa98] sm:$0xff]
    %v467 = vld [vmem:[#allocation5 + $0xaa0] sm:$0xff]
    %v468 = vld [vmem:[#allocation5 + $0xaa8] sm:$0xff]
    %v469 = vld [vmem:[#allocation5 + $0xab0] sm:$0xff]
    %v470 = vld [vmem:[#allocation5 + $0xab8] sm:$0xff]
    %v471 = vld [vmem:[#allocation5 + $0xac0] sm:$0xff]
    %v472 = vld [vmem:[#allocation5 + $0xac8] sm:$0xff]
    %v473 = vld [vmem:[#allocation5 + $0xad0] sm:$0xff]
    %v474 = vld [vmem:[#allocation5 + $0xad8] sm:$0xff]
    %v475 = vld [vmem:[#allocation5 + $0xae0] sm:$0xff]
    %v476 = vld [vmem:[#allocation5 + $0xae8] sm:$0xff]
    %v477 = vld [vmem:[#allocation5 + $0xaf0] sm:$0xff]
    %v478 = vld [vmem:[#allocation5 + $0xaf8] sm:$0xff]
    %v479 = vld [vmem:[#allocation5 + $0xb00] sm:$0xff]
    %v480 = vld [vmem:[#allocation5 + $0xb08] sm:$0xff]
    %v481 = vld [vmem:[#allocation5 + $0xb10] sm:$0xff]
    %v482 = vld [vmem:[#allocation5 + $0xb18] sm:$0xff]
    %v483 = vld [vmem:[#allocation5 + $0xb20] sm:$0xff]
    %v484 = vld [vmem:[#allocation5 + $0xb28] sm:$0xff]
    %v485 = vld [vmem:[#allocation5 + $0xb30] sm:$0xff]
    %v486 = vld [vmem:[#allocation5 + $0xb38] sm:$0xff]
    %v487 = vld [vmem:[#allocation5 + $0xb40] sm:$0xff]
    %v488 = vld [vmem:[#allocation5 + $0xb48] sm:$0xff]
    %v489 = vld [vmem:[#allocation5 + $0xb50] sm:$0xff]
    %v490 = vld [vmem:[#allocation5 + $0xb58] sm:$0xff]
    %v491 = vld [vmem:[#allocation5 + $0xb60] sm:$0xff]
    %v492 = vld [vmem:[#allocation5 + $0xb68] sm:$0xff]
    %v493 = vld [vmem:[#allocation5 + $0xb70] sm:$0xff]
    %v494 = vld [vmem:[#allocation5 + $0xb78] sm:$0xff]
    %v495 = vld [vmem:[#allocation5 + $0xb80] sm:$0xff]
    %v496 = vld [vmem:[#allocation5 + $0xb88] sm:$0xff]
    %v497 = vld [vmem:[#allocation5 + $0xb90] sm:$0xff]
    %v498 = vld [vmem:[#allocation5 + $0xb98] sm:$0xff]
    %v499 = vld [vmem:[#allocation5 + $0xba0] sm:$0xff]
    %v500 = vld [vmem:[#allocation5 + $0xba8] sm:$0xff]
    %v501 = vld [vmem:[#allocation5 + $0xbb0] sm:$0xff]
    %v502 = vld [vmem:[#allocation5 + $0xbb8] sm:$0xff]
    %v503 = vld [vmem:[#allocation5 + $0xbc0] sm:$0xff]
    %v504 = vld [vmem:[#allocation5 + $0xbc8] sm:$0xff]
    %v505 = vld [vmem:[#allocation5 + $0xbd0] sm:$0xff]
    %v506 = vld [vmem:[#allocation5 + $0xbd8] sm:$0xff]
    %v507 = vld [vmem:[#allocation5 + $0xbe0] sm:$0xff]
    %v508 = vld [vmem:[#allocation5 + $0xbe8] sm:$0xff]
    %v509 = vld [vmem:[#allocation5 + $0xbf0] sm:$0xff]
    %v510 = vld [vmem:[#allocation5 + $0xbf8] sm:$0xff]
    %v511 = vld [vmem:[#allocation5 + $0xc00] sm:$0xff]
    %v512 = vld [vmem:[#allocation5 + $0xc08] sm:$0xff]
    %v513 = vld [vmem:[#allocation5 + $0xc10] sm:$0xff]
    %v514 = vld [vmem:[#allocation5 + $0xc18] sm:$0xff]
    %v515 = vld [vmem:[#allocation5 + $0xc20] sm:$0xff]
    %v516 = vld [vmem:[#allocation5 + $0xc28] sm:$0xff]
    %v517 = vld [vmem:[#allocation5 + $0xc30] sm:$0xff]
    %v518 = vld [vmem:[#allocation5 + $0xc38] sm:$0xff]
    %v519 = vld [vmem:[#allocation5 + $0xc40] sm:$0xff]
    %v520 = vld [vmem:[#allocation5 + $0xc48] sm:$0xff]
    %v521 = vld [vmem:[#allocation5 + $0xc50] sm:$0xff]
    %v522 = vld [vmem:[#allocation5 + $0xc58] sm:$0xff]
    %v523 = vld [vmem:[#allocation5 + $0xc60] sm:$0xff]
    %v524 = vld [vmem:[#allocation5 + $0xc68] sm:$0xff]
    %v525 = vld [vmem:[#allocation5 + $0xc70] sm:$0xff]
    %v526 = vld [vmem:[#allocation5 + $0xc78] sm:$0xff]
    %v527 = vld [vmem:[#allocation5 + $0xc80] sm:$0xff]
    %v528 = vld [vmem:[#allocation5 + $0xc88] sm:$0xff]
    %v529 = vld [vmem:[#allocation5 + $0xc90] sm:$0xff]
    %v530 = vld [vmem:[#allocation5 + $0xc98] sm:$0xff]
    %v531 = vld [vmem:[#allocation5 + $0xca0] sm:$0xff]
    %v532 = vld [vmem:[#allocation5 + $0xca8] sm:$0xff]
    %v533 = vld [vmem:[#allocation5 + $0xcb0] sm:$0xff]
    %v534 = vld [vmem:[#allocation5 + $0xcb8] sm:$0xff]
    %v535 = vld [vmem:[#allocation5 + $0xcc0] sm:$0xff]
    %v536 = vld [vmem:[#allocation5 + $0xcc8] sm:$0xff]
    %v537 = vld [vmem:[#allocation5 + $0xcd0] sm:$0xff]
    %v538 = vld [vmem:[#allocation5 + $0xcd8] sm:$0xff]
    %v539 = vld [vmem:[#allocation5 + $0xce0] sm:$0xff]
    %v540 = vld [vmem:[#allocation5 + $0xce8] sm:$0xff]
    %v541 = vld [vmem:[#allocation5 + $0xcf0] sm:$0xff]
    %v542 = vld [vmem:[#allocation5 + $0xcf8] sm:$0xff]
    %v543 = vld [vmem:[#allocation5 + $0xd00] sm:$0xff]
    %v544 = vld [vmem:[#allocation5 + $0xd08] sm:$0xff]
    %v545 = vld [vmem:[#allocation5 + $0xd10] sm:$0xff]
    %v546 = vld [vmem:[#allocation5 + $0xd18] sm:$0xff]
    %v547 = vld [vmem:[#allocation5 + $0xd20] sm:$0xff]
    %v548 = vld [vmem:[#allocation5 + $0xd28] sm:$0xff]
    %v549 = vld [vmem:[#allocation5 + $0xd30] sm:$0xff]
    %v550 = vld [vmem:[#allocation5 + $0xd38] sm:$0xff]
    %v551 = vld [vmem:[#allocation5 + $0xd40] sm:$0xff]
    %v552 = vld [vmem:[#allocation5 + $0xd48] sm:$0xff]
    %v553 = vld [vmem:[#allocation5 + $0xd50] sm:$0xff]
    %v554 = vld [vmem:[#allocation5 + $0xd58] sm:$0xff]
    %v555 = vld [vmem:[#allocation5 + $0xd60] sm:$0xff]
    %v556 = vld [vmem:[#allocation5 + $0xd68] sm:$0xff]
    %v557 = vld [vmem:[#allocation5 + $0xd70] sm:$0xff]
    %v558 = vld [vmem:[#allocation5 + $0xd78] sm:$0xff]
    %v559 = vld [vmem:[#allocation5 + $0xd80] sm:$0xff]
    %v560 = vld [vmem:[#allocation5 + $0xd88] sm:$0xff]
    %v561 = vld [vmem:[#allocation5 + $0xd90] sm:$0xff]
    %v562 = vld [vmem:[#allocation5 + $0xd98] sm:$0xff]
    %v563 = vld [vmem:[#allocation5 + $0xda0] sm:$0xff]
    %v564 = vld [vmem:[#allocation5 + $0xda8] sm:$0xff]
    %v565 = vld [vmem:[#allocation5 + $0xdb0] sm:$0xff]
    %v566 = vld [vmem:[#allocation5 + $0xdb8] sm:$0xff]
    %v567 = vld [vmem:[#allocation5 + $0xdc0] sm:$0xff]
    %v568 = vld [vmem:[#allocation5 + $0xdc8] sm:$0xff]
    %v569 = vld [vmem:[#allocation5 + $0xdd0] sm:$0xff]
    %v570 = vld [vmem:[#allocation5 + $0xdd8] sm:$0xff]
    %v571 = vld [vmem:[#allocation5 + $0xde0] sm:$0xff]
    %v572 = vld [vmem:[#allocation5 + $0xde8] sm:$0xff]
    %v573 = vld [vmem:[#allocation5 + $0xdf0] sm:$0xff]
    %v574 = vld [vmem:[#allocation5 + $0xdf8] sm:$0xff]
    %v575 = vld [vmem:[#allocation5 + $0xe00] sm:$0xff]
    %v576 = vld [vmem:[#allocation5 + $0xe08] sm:$0xff]
    %v577 = vld [vmem:[#allocation5 + $0xe10] sm:$0xff]
    %v578 = vld [vmem:[#allocation5 + $0xe18] sm:$0xff]
    %v579 = vld [vmem:[#allocation5 + $0xe20] sm:$0xff]
    %v580 = vld [vmem:[#allocation5 + $0xe28] sm:$0xff]
    %v581 = vld [vmem:[#allocation5 + $0xe30] sm:$0xff]
    %v582 = vld [vmem:[#allocation5 + $0xe38] sm:$0xff]
    %v583 = vld [vmem:[#allocation5 + $0xe40] sm:$0xff]
    %v584 = vld [vmem:[#allocation5 + $0xe48] sm:$0xff]
    %v585 = vld [vmem:[#allocation5 + $0xe50] sm:$0xff]
    %v586 = vld [vmem:[#allocation5 + $0xe58] sm:$0xff]
    %v587 = vld [vmem:[#allocation5 + $0xe60] sm:$0xff]
    %v588 = vld [vmem:[#allocation5 + $0xe68] sm:$0xff]
    %v589 = vld [vmem:[#allocation5 + $0xe70] sm:$0xff]
    %v590 = vld [vmem:[#allocation5 + $0xe78] sm:$0xff]
    %v591 = vld [vmem:[#allocation5 + $0xe80] sm:$0xff]
    %v592 = vld [vmem:[#allocation5 + $0xe88] sm:$0xff]
    %v593 = vld [vmem:[#allocation5 + $0xe90] sm:$0xff]
    %v594 = vld [vmem:[#allocation5 + $0xe98] sm:$0xff]
    %v595 = vld [vmem:[#allocation5 + $0xea0] sm:$0xff]
    %v596 = vld [vmem:[#allocation5 + $0xea8] sm:$0xff]
    %v597 = vld [vmem:[#allocation5 + $0xeb0] sm:$0xff]
    %v598 = vld [vmem:[#allocation5 + $0xeb8] sm:$0xff]
    %v599 = vld [vmem:[#allocation5 + $0xec0] sm:$0xff]
    %v600 = vld [vmem:[#allocation5 + $0xec8] sm:$0xff]
    %v601 = vld [vmem:[#allocation5 + $0xed0] sm:$0xff]
    %v602 = vld [vmem:[#allocation5 + $0xed8] sm:$0xff]
    %v603 = vld [vmem:[#allocation5 + $0xee0] sm:$0xff]
    %v604 = vld [vmem:[#allocation5 + $0xee8] sm:$0xff]
    %v605 = vld [vmem:[#allocation5 + $0xef0] sm:$0xff]
    %v606 = vld [vmem:[#allocation5 + $0xef8] sm:$0xff]
    %v607 = vld [vmem:[#allocation5 + $0xf00] sm:$0xff]
    %v608 = vld [vmem:[#allocation5 + $0xf08] sm:$0xff]
    %v609 = vld [vmem:[#allocation5 + $0xf10] sm:$0xff]
    %v610 = vld [vmem:[#allocation5 + $0xf18] sm:$0xff]
    %v611 = vld [vmem:[#allocation5 + $0xf20] sm:$0xff]
    %v612 = vld [vmem:[#allocation5 + $0xf28] sm:$0xff]
    %v613 = vld [vmem:[#allocation5 + $0xf30] sm:$0xff]
    %v614 = vld [vmem:[#allocation5 + $0xf38] sm:$0xff]
    %v615 = vld [vmem:[#allocation5 + $0xf40] sm:$0xff]
    %v616 = vld [vmem:[#allocation5 + $0xf48] sm:$0xff]
    %v617 = vld [vmem:[#allocation5 + $0xf50] sm:$0xff]
    %v618 = vld [vmem:[#allocation5 + $0xf58] sm:$0xff]
    %v619 = vld [vmem:[#allocation5 + $0xf60] sm:$0xff]
    %v620 = vld [vmem:[#allocation5 + $0xf68] sm:$0xff]
    %v621 = vld [vmem:[#allocation5 + $0xf70] sm:$0xff]
    %v622 = vld [vmem:[#allocation5 + $0xf78] sm:$0xff]
    %v623 = vld [vmem:[#allocation5 + $0xf80] sm:$0xff]
    %v624 = vld [vmem:[#allocation5 + $0xf88] sm:$0xff]
    %v625 = vld [vmem:[#allocation5 + $0xf90] sm:$0xff]
    %v626 = vld [vmem:[#allocation5 + $0xf98] sm:$0xff]
    %v627 = vld [vmem:[#allocation5 + $0xfa0] sm:$0xff]
    %v628 = vld [vmem:[#allocation5 + $0xfa8] sm:$0xff]
    %v629 = vld [vmem:[#allocation5 + $0xfb0] sm:$0xff]
    %v630 = vld [vmem:[#allocation5 + $0xfb8] sm:$0xff]
    %v631 = vld [vmem:[#allocation5 + $0xfc0] sm:$0xff]
    %v632 = vld [vmem:[#allocation5 + $0xfc8] sm:$0xff]
    %v633 = vld [vmem:[#allocation5 + $0xfd0] sm:$0xff]
    %v634 = vld [vmem:[#allocation5 + $0xfd8] sm:$0xff]
    %v635 = vld [vmem:[#allocation5 + $0xfe0] sm:$0xff]
    %v636 = vld [vmem:[#allocation5 + $0xfe8] sm:$0xff]
    %v637 = vld [vmem:[#allocation5 + $0xff0] sm:$0xff]
    %v638 = vld [vmem:[#allocation5 + $0xff8] sm:$0xff]
    %v639 = vld [vmem:[#allocation5 + $0x1000] sm:$0xff]
    %v640 = vld [vmem:[#allocation5 + $0x1008] sm:$0xff]
    %v641 = vld [vmem:[#allocation5 + $0x1010] sm:$0xff]
    %v642 = vld [vmem:[#allocation5 + $0x1018] sm:$0xff]
    %v643 = vld [vmem:[#allocation5 + $0x1020] sm:$0xff]
    %v644 = vld [vmem:[#allocation5 + $0x1028] sm:$0xff]
    %v645 = vld [vmem:[#allocation5 + $0x1030] sm:$0xff]
    %v646 = vld [vmem:[#allocation5 + $0x1038] sm:$0xff]
    %v647 = vld [vmem:[#allocation5 + $0x1040] sm:$0xff]
    %v648 = vld [vmem:[#allocation5 + $0x1048] sm:$0xff]
    %v649 = vld [vmem:[#allocation5 + $0x1050] sm:$0xff]
    %v650 = vld [vmem:[#allocation5 + $0x1058] sm:$0xff]
    %v651 = vld [vmem:[#allocation5 + $0x1060] sm:$0xff]
    %v652 = vld [vmem:[#allocation5 + $0x1068] sm:$0xff]
    %v653 = vld [vmem:[#allocation5 + $0x1070] sm:$0xff]
    %v654 = vld [vmem:[#allocation5 + $0x1078] sm:$0xff]
    %v655 = vld [vmem:[#allocation5 + $0x1080] sm:$0xff]
    %v656 = vld [vmem:[#allocation5 + $0x1088] sm:$0xff]
    %v657 = vld [vmem:[#allocation5 + $0x1090] sm:$0xff]
    %v658 = vld [vmem:[#allocation5 + $0x1098] sm:$0xff]
    %v659 = vld [vmem:[#allocation5 + $0x10a0] sm:$0xff]
    %v660 = vld [vmem:[#allocation5 + $0x10a8] sm:$0xff]
    %v661 = vld [vmem:[#allocation5 + $0x10b0] sm:$0xff]
    %v662 = vld [vmem:[#allocation5 + $0x10b8] sm:$0xff]
    %v663 = vld [vmem:[#allocation5 + $0x10c0] sm:$0xff]
    %v664 = vld [vmem:[#allocation5 + $0x10c8] sm:$0xff]
    %v665 = vld [vmem:[#allocation5 + $0x10d0] sm:$0xff]
    %v666 = vld [vmem:[#allocation5 + $0x10d8] sm:$0xff]
    %v667 = vld [vmem:[#allocation5 + $0x10e0] sm:$0xff]
    %v668 = vld [vmem:[#allocation5 + $0x10e8] sm:$0xff]
    %v669 = vld [vmem:[#allocation5 + $0x10f0] sm:$0xff]
    %v670 = vld [vmem:[#allocation5 + $0x10f8] sm:$0xff]
    %v671 = vld [vmem:[#allocation5 + $0x1100] sm:$0xff]
    %v672 = vld [vmem:[#allocation5 + $0x1108] sm:$0xff]
    %v673 = vld [vmem:[#allocation5 + $0x1110] sm:$0xff]
    %v674 = vld [vmem:[#allocation5 + $0x1118] sm:$0xff]
    %v675 = vld [vmem:[#allocation5 + $0x1120] sm:$0xff]
    %v676 = vld [vmem:[#allocation5 + $0x1128] sm:$0xff]
    %v677 = vld [vmem:[#allocation5 + $0x1130] sm:$0xff]
    %v678 = vld [vmem:[#allocation5 + $0x1138] sm:$0xff]
    %v679 = vld [vmem:[#allocation5 + $0x1140] sm:$0xff]
    %v680 = vld [vmem:[#allocation5 + $0x1148] sm:$0xff]
    %v681 = vld [vmem:[#allocation5 + $0x1150] sm:$0xff]
    %v682 = vld [vmem:[#allocation5 + $0x1158] sm:$0xff]
    %v683 = vld [vmem:[#allocation5 + $0x1160] sm:$0xff]
    %v684 = vld [vmem:[#allocation5 + $0x1168] sm:$0xff]
    %v685 = vld [vmem:[#allocation5 + $0x1170] sm:$0xff]
    %v686 = vld [vmem:[#allocation5 + $0x1178] sm:$0xff]
    %v687 = vld [vmem:[#allocation5 + $0x1180] sm:$0xff]
    %v688 = vld [vmem:[#allocation5 + $0x1188] sm:$0xff]
    %v689 = vld [vmem:[#allocation5 + $0x1190] sm:$0xff]
    %v690 = vld [vmem:[#allocation5 + $0x1198] sm:$0xff]
    %v691 = vld [vmem:[#allocation5 + $0x11a0] sm:$0xff]
    %v692 = vld [vmem:[#allocation5 + $0x11a8] sm:$0xff]
    %v693 = vld [vmem:[#allocation5 + $0x11b0] sm:$0xff]
    %v694 = vld [vmem:[#allocation5 + $0x11b8] sm:$0xff]
    %v695 = vld [vmem:[#allocation5 + $0x11c0] sm:$0xff]
    %v696 = vld [vmem:[#allocation5 + $0x11c8] sm:$0xff]
    %v697 = vld [vmem:[#allocation5 + $0x11d0] sm:$0xff]
    %v698 = vld [vmem:[#allocation5 + $0x11d8] sm:$0xff]
    %v699 = vld [vmem:[#allocation5 + $0x11e0] sm:$0xff]
    %v700 = vld [vmem:[#allocation5 + $0x11e8] sm:$0xff]
    %v701 = vld [vmem:[#allocation5 + $0x11f0] sm:$0xff]
    %v702 = vld [vmem:[#allocation5 + $0x11f8] sm:$0xff]
    %v703 = vld [vmem:[#allocation5 + $0x1200] sm:$0xff]
    %v704 = vld [vmem:[#allocation5 + $0x1208] sm:$0xff]
    %v705 = vld [vmem:[#allocation5 + $0x1210] sm:$0xff]
    %v706 = vld [vmem:[#allocation5 + $0x1218] sm:$0xff]
    %v707 = vld [vmem:[#allocation5 + $0x1220] sm:$0xff]
    %v708 = vld [vmem:[#allocation5 + $0x1228] sm:$0xff]
    %v709 = vld [vmem:[#allocation5 + $0x1230] sm:$0xff]
    %v710 = vld [vmem:[#allocation5 + $0x1238] sm:$0xff]
    %v711 = vld [vmem:[#allocation5 + $0x1240] sm:$0xff]
    %v712 = vld [vmem:[#allocation5 + $0x1248] sm:$0xff]
    %v713 = vld [vmem:[#allocation5 + $0x1250] sm:$0xff]
    %v714 = vld [vmem:[#allocation5 + $0x1258] sm:$0xff]
    %v715 = vld [vmem:[#allocation5 + $0x1260] sm:$0xff]
    %v716 = vld [vmem:[#allocation5 + $0x1268] sm:$0xff]
    %v717 = vld [vmem:[#allocation5 + $0x1270] sm:$0xff]
    %v718 = vld [vmem:[#allocation5 + $0x1278] sm:$0xff]
    %v719 = vld [vmem:[#allocation5 + $0x1280] sm:$0xff]
    %v720 = vld [vmem:[#allocation5 + $0x1288] sm:$0xff]
    %v721 = vld [vmem:[#allocation5 + $0x1290] sm:$0xff]
    %v722 = vld [vmem:[#allocation5 + $0x1298] sm:$0xff]
    %v723 = vld [vmem:[#allocation5 + $0x12a0] sm:$0xff]
    %v724 = vld [vmem:[#allocation5 + $0x12a8] sm:$0xff]
    %v725 = vld [vmem:[#allocation5 + $0x12b0] sm:$0xff]
    %v726 = vld [vmem:[#allocation5 + $0x12b8] sm:$0xff]
    %v727 = vld [vmem:[#allocation5 + $0x12c0] sm:$0xff]
    %v728 = vld [vmem:[#allocation5 + $0x12c8] sm:$0xff]
    %v729 = vld [vmem:[#allocation5 + $0x12d0] sm:$0xff]
    %v730 = vld [vmem:[#allocation5 + $0x12d8] sm:$0xff]
    %v731 = vld [vmem:[#allocation5 + $0x12e0] sm:$0xff]
    %v732 = vld [vmem:[#allocation5 + $0x12e8] sm:$0xff]
    %v733 = vld [vmem:[#allocation5 + $0x12f0] sm:$0xff]
    %v734 = vld [vmem:[#allocation5 + $0x12f8] sm:$0xff]
    %v735 = vld [vmem:[#allocation5 + $0x1300] sm:$0xff]
    %v736 = vld [vmem:[#allocation5 + $0x1308] sm:$0xff]
    %v737 = vld [vmem:[#allocation5 + $0x1310] sm:$0xff]
    %v738 = vld [vmem:[#allocation5 + $0x1318] sm:$0xff]
    %v739 = vld [vmem:[#allocation5 + $0x1320] sm:$0xff]
    %v740 = vld [vmem:[#allocation5 + $0x1328] sm:$0xff]
    %v741 = vld [vmem:[#allocation5 + $0x1330] sm:$0xff]
    %v742 = vld [vmem:[#allocation5 + $0x1338] sm:$0xff]
    %v743 = vld [vmem:[#allocation5 + $0x1340] sm:$0xff]
    %v744 = vld [vmem:[#allocation5 + $0x1348] sm:$0xff]
    %v745 = vld [vmem:[#allocation5 + $0x1350] sm:$0xff]
    %v746 = vld [vmem:[#allocation5 + $0x1358] sm:$0xff]
    %v747 = vld [vmem:[#allocation5 + $0x1360] sm:$0xff]
    %v748 = vld [vmem:[#allocation5 + $0x1368] sm:$0xff]
    %v749 = vld [vmem:[#allocation5 + $0x1370] sm:$0xff]
    %v750 = vld [vmem:[#allocation5 + $0x1378] sm:$0xff]
    %v751 = vld [vmem:[#allocation5 + $0x1380] sm:$0xff]
    %v752 = vld [vmem:[#allocation5 + $0x1388] sm:$0xff]
    %v753 = vld [vmem:[#allocation5 + $0x1390] sm:$0xff]
    %v754 = vld [vmem:[#allocation5 + $0x1398] sm:$0xff]
    %v755 = vld [vmem:[#allocation5 + $0x13a0] sm:$0xff]
    %v756 = vld [vmem:[#allocation5 + $0x13a8] sm:$0xff]
    %v757 = vld [vmem:[#allocation5 + $0x13b0] sm:$0xff]
    %v758 = vld [vmem:[#allocation5 + $0x13b8] sm:$0xff]
    %v759 = vld [vmem:[#allocation5 + $0x13c0] sm:$0xff]
    %v760 = vld [vmem:[#allocation5 + $0x13c8] sm:$0xff]
    %v761 = vld [vmem:[#allocation5 + $0x13d0] sm:$0xff]
    %v762 = vld [vmem:[#allocation5 + $0x13d8] sm:$0xff]
    %v763 = vld [vmem:[#allocation5 + $0x13e0] sm:$0xff]
    %v764 = vld [vmem:[#allocation5 + $0x13e8] sm:$0xff]
    %v765 = vld [vmem:[#allocation5 + $0x13f0] sm:$0xff]
    %v766 = vld [vmem:[#allocation5 + $0x13f8] sm:$0xff]
    %v767 = vld [vmem:[#allocation5 + $0x1400] sm:$0xff]
    %v768 = vld [vmem:[#allocation5 + $0x1408] sm:$0xff]
    %v769 = vld [vmem:[#allocation5 + $0x1410] sm:$0xff]
    %v770 = vld [vmem:[#allocation5 + $0x1418] sm:$0xff]
    %v771 = vld [vmem:[#allocation5 + $0x1420] sm:$0xff]
    %v772 = vld [vmem:[#allocation5 + $0x1428] sm:$0xff]
    %v773 = vld [vmem:[#allocation5 + $0x1430] sm:$0xff]
    %v774 = vld [vmem:[#allocation5 + $0x1438] sm:$0xff]
    %v775 = vld [vmem:[#allocation5 + $0x1440] sm:$0xff]
    %v776 = vld [vmem:[#allocation5 + $0x1448] sm:$0xff]
    %v777 = vld [vmem:[#allocation5 + $0x1450] sm:$0xff]
    %v778 = vld [vmem:[#allocation5 + $0x1458] sm:$0xff]
    %v779 = vld [vmem:[#allocation5 + $0x1460] sm:$0xff]
    %v780 = vld [vmem:[#allocation5 + $0x1468] sm:$0xff]
    %v781 = vld [vmem:[#allocation5 + $0x1470] sm:$0xff]
    %v782 = vld [vmem:[#allocation5 + $0x1478] sm:$0xff]
    %v783 = vld [vmem:[#allocation5 + $0x1480] sm:$0xff]
    %v784 = vld [vmem:[#allocation5 + $0x1488] sm:$0xff]
    %v785 = vld [vmem:[#allocation5 + $0x1490] sm:$0xff]
    %v786 = vld [vmem:[#allocation5 + $0x1498] sm:$0xff]
    %v787 = vld [vmem:[#allocation5 + $0x14a0] sm:$0xff]
    %v788 = vld [vmem:[#allocation5 + $0x14a8] sm:$0xff]
    %v789 = vld [vmem:[#allocation5 + $0x14b0] sm:$0xff]
    %v790 = vld [vmem:[#allocation5 + $0x14b8] sm:$0xff]
    %v791 = vld [vmem:[#allocation5 + $0x14c0] sm:$0xff]
    %v792 = vld [vmem:[#allocation5 + $0x14c8] sm:$0xff]
    %v793 = vld [vmem:[#allocation5 + $0x14d0] sm:$0xff]
    %v794 = vld [vmem:[#allocation5 + $0x14d8] sm:$0xff]
    %v795 = vld [vmem:[#allocation5 + $0x14e0] sm:$0xff]
    %v796 = vld [vmem:[#allocation5 + $0x14e8] sm:$0xff]
    %v797 = vld [vmem:[#allocation5 + $0x14f0] sm:$0xff]
    %v798 = vld [vmem:[#allocation5 + $0x14f8] sm:$0xff]
    %v799 = vld [vmem:[#allocation5 + $0x1500] sm:$0xff]
    %v800 = vld [vmem:[#allocation5 + $0x1508] sm:$0xff]
    %v801 = vld [vmem:[#allocation5 + $0x1510] sm:$0xff]
    %v802 = vld [vmem:[#allocation5 + $0x1518] sm:$0xff]
    %v803 = vld [vmem:[#allocation5 + $0x1520] sm:$0xff]
    %v804 = vld [vmem:[#allocation5 + $0x1528] sm:$0xff]
    %v805 = vld [vmem:[#allocation5 + $0x1530] sm:$0xff]
    %v806 = vld [vmem:[#allocation5 + $0x1538] sm:$0xff]
    %v807 = vld [vmem:[#allocation5 + $0x1540] sm:$0xff]
    %v808 = vld [vmem:[#allocation5 + $0x1548] sm:$0xff]
    %v809 = vld [vmem:[#allocation5 + $0x1550] sm:$0xff]
    %v810 = vld [vmem:[#allocation5 + $0x1558] sm:$0xff]
    %v811 = vld [vmem:[#allocation5 + $0x1560] sm:$0xff]
    %v812 = vld [vmem:[#allocation5 + $0x1568] sm:$0xff]
    %v813 = vld [vmem:[#allocation5 + $0x1570] sm:$0xff]
    %v814 = vld [vmem:[#allocation5 + $0x1578] sm:$0xff]
    %v815 = vld [vmem:[#allocation5 + $0x1580] sm:$0xff]
    %v816 = vld [vmem:[#allocation5 + $0x1588] sm:$0xff]
    %v817 = vld [vmem:[#allocation5 + $0x1590] sm:$0xff]
    %v818 = vld [vmem:[#allocation5 + $0x1598] sm:$0xff]
    %v819 = vld [vmem:[#allocation5 + $0x15a0] sm:$0xff]
    %v820 = vld [vmem:[#allocation5 + $0x15a8] sm:$0xff]
    %v821 = vld [vmem:[#allocation5 + $0x15b0] sm:$0xff]
    %v822 = vld [vmem:[#allocation5 + $0x15b8] sm:$0xff]
    %v823 = vld [vmem:[#allocation5 + $0x15c0] sm:$0xff]
    %v824 = vld [vmem:[#allocation5 + $0x15c8] sm:$0xff]
    %v825 = vld [vmem:[#allocation5 + $0x15d0] sm:$0xff]
    %v826 = vld [vmem:[#allocation5 + $0x15d8] sm:$0xff]
    %v827 = vld [vmem:[#allocation5 + $0x15e0] sm:$0xff]
    %v828 = vld [vmem:[#allocation5 + $0x15e8] sm:$0xff]
    %v829 = vld [vmem:[#allocation5 + $0x15f0] sm:$0xff]
    %v830 = vld [vmem:[#allocation5 + $0x15f8] sm:$0xff]
    %v831 = vld [vmem:[#allocation5 + $0x1600] sm:$0xff]
    %v832 = vld [vmem:[#allocation5 + $0x1608] sm:$0xff]
    %v833 = vld [vmem:[#allocation5 + $0x1610] sm:$0xff]
    %v834 = vld [vmem:[#allocation5 + $0x1618] sm:$0xff]
    %v835 = vld [vmem:[#allocation5 + $0x1620] sm:$0xff]
    %v836 = vld [vmem:[#allocation5 + $0x1628] sm:$0xff]
    %v837 = vld [vmem:[#allocation5 + $0x1630] sm:$0xff]
    %v838 = vld [vmem:[#allocation5 + $0x1638] sm:$0xff]
    %v839 = vld [vmem:[#allocation5 + $0x1640] sm:$0xff]
    %v840 = vld [vmem:[#allocation5 + $0x1648] sm:$0xff]
    %v841 = vld [vmem:[#allocation5 + $0x1650] sm:$0xff]
    %v842 = vld [vmem:[#allocation5 + $0x1658] sm:$0xff]
    %v843 = vld [vmem:[#allocation5 + $0x1660] sm:$0xff]
    %v844 = vld [vmem:[#allocation5 + $0x1668] sm:$0xff]
    %v845 = vld [vmem:[#allocation5 + $0x1670] sm:$0xff]
    %v846 = vld [vmem:[#allocation5 + $0x1678] sm:$0xff]
    %v847 = vld [vmem:[#allocation5 + $0x1680] sm:$0xff]
    %v848 = vld [vmem:[#allocation5 + $0x1688] sm:$0xff]
    %v849 = vld [vmem:[#allocation5 + $0x1690] sm:$0xff]
    %v850 = vld [vmem:[#allocation5 + $0x1698] sm:$0xff]
    %v851 = vld [vmem:[#allocation5 + $0x16a0] sm:$0xff]
    %v852 = vld [vmem:[#allocation5 + $0x16a8] sm:$0xff]
    %v853 = vld [vmem:[#allocation5 + $0x16b0] sm:$0xff]
    %v854 = vld [vmem:[#allocation5 + $0x16b8] sm:$0xff]
    %v855 = vld [vmem:[#allocation5 + $0x16c0] sm:$0xff]
    %v856 = vld [vmem:[#allocation5 + $0x16c8] sm:$0xff]
    %v857 = vld [vmem:[#allocation5 + $0x16d0] sm:$0xff]
    %v858 = vld [vmem:[#allocation5 + $0x16d8] sm:$0xff]
    %v859 = vld [vmem:[#allocation5 + $0x16e0] sm:$0xff]
    %v860 = vld [vmem:[#allocation5 + $0x16e8] sm:$0xff]
    %v861 = vld [vmem:[#allocation5 + $0x16f0] sm:$0xff]
    %v862 = vld [vmem:[#allocation5 + $0x16f8] sm:$0xff]
    %v863 = vld [vmem:[#allocation5 + $0x1700] sm:$0xff]
    %v864 = vld [vmem:[#allocation5 + $0x1708] sm:$0xff]
    %v865 = vld [vmem:[#allocation5 + $0x1710] sm:$0xff]
    %v866 = vld [vmem:[#allocation5 + $0x1718] sm:$0xff]
    %v867 = vld [vmem:[#allocation5 + $0x1720] sm:$0xff]
    %v868 = vld [vmem:[#allocation5 + $0x1728] sm:$0xff]
    %v869 = vld [vmem:[#allocation5 + $0x1730] sm:$0xff]
    %v870 = vld [vmem:[#allocation5 + $0x1738] sm:$0xff]
    %v871 = vld [vmem:[#allocation5 + $0x1740] sm:$0xff]
    %v872 = vld [vmem:[#allocation5 + $0x1748] sm:$0xff]
    %v873 = vld [vmem:[#allocation5 + $0x1750] sm:$0xff]
    %v874 = vld [vmem:[#allocation5 + $0x1758] sm:$0xff]
    %v875 = vld [vmem:[#allocation5 + $0x1760] sm:$0xff]
    %v876 = vld [vmem:[#allocation5 + $0x1768] sm:$0xff]
    %v877 = vld [vmem:[#allocation5 + $0x1770] sm:$0xff]
    %v878 = vld [vmem:[#allocation5 + $0x1778] sm:$0xff]
    %v879 = vld [vmem:[#allocation5 + $0x1780] sm:$0xff]
    %v880 = vld [vmem:[#allocation5 + $0x1788] sm:$0xff]
    %v881 = vld [vmem:[#allocation5 + $0x1790] sm:$0xff]
    %v882 = vld [vmem:[#allocation5 + $0x1798] sm:$0xff]
    %v883 = vld [vmem:[#allocation5 + $0x17a0] sm:$0xff]
    %v884 = vld [vmem:[#allocation5 + $0x17a8] sm:$0xff]
    %v885 = vld [vmem:[#allocation5 + $0x17b0] sm:$0xff]
    %v886 = vld [vmem:[#allocation5 + $0x17b8] sm:$0xff]
    %v887 = vld [vmem:[#allocation5 + $0x17c0] sm:$0xff]
    %v888 = vld [vmem:[#allocation5 + $0x17c8] sm:$0xff]
    %v889 = vld [vmem:[#allocation5 + $0x17d0] sm:$0xff]
    %v890 = vld [vmem:[#allocation5 + $0x17d8] sm:$0xff]
    %v891 = vld [vmem:[#allocation5 + $0x17e0] sm:$0xff]
    %v892 = vld [vmem:[#allocation5 + $0x17e8] sm:$0xff]
    %v893 = vld [vmem:[#allocation5 + $0x17f0] sm:$0xff]
    %v894 = vld [vmem:[#allocation5 + $0x17f8] sm:$0xff]
    %v895 = vld [vmem:[#allocation5 + $0x1800] sm:$0xff]
    %v896 = vld [vmem:[#allocation5 + $0x1808] sm:$0xff]
    %v897 = vld [vmem:[#allocation5 + $0x1810] sm:$0xff]
    %v898 = vld [vmem:[#allocation5 + $0x1818] sm:$0xff]
    %v899 = vld [vmem:[#allocation5 + $0x1820] sm:$0xff]
    %v900 = vld [vmem:[#allocation5 + $0x1828] sm:$0xff]
    %v901 = vld [vmem:[#allocation5 + $0x1830] sm:$0xff]
    %v902 = vld [vmem:[#allocation5 + $0x1838] sm:$0xff]
    %v903 = vld [vmem:[#allocation5 + $0x1840] sm:$0xff]
    %v904 = vld [vmem:[#allocation5 + $0x1848] sm:$0xff]
    %v905 = vld [vmem:[#allocation5 + $0x1850] sm:$0xff]
    %v906 = vld [vmem:[#allocation5 + $0x1858] sm:$0xff]
    %v907 = vld [vmem:[#allocation5 + $0x1860] sm:$0xff]
    %v908 = vld [vmem:[#allocation5 + $0x1868] sm:$0xff]
    %v909 = vld [vmem:[#allocation5 + $0x1870] sm:$0xff]
    %v910 = vld [vmem:[#allocation5 + $0x1878] sm:$0xff]
    %v911 = vld [vmem:[#allocation5 + $0x1880] sm:$0xff]
    %v912 = vld [vmem:[#allocation5 + $0x1888] sm:$0xff]
    %v913 = vld [vmem:[#allocation5 + $0x1890] sm:$0xff]
    %v914 = vld [vmem:[#allocation5 + $0x1898] sm:$0xff]
    %v915 = vld [vmem:[#allocation5 + $0x18a0] sm:$0xff]
    %v916 = vld [vmem:[#allocation5 + $0x18a8] sm:$0xff]
    %v917 = vld [vmem:[#allocation5 + $0x18b0] sm:$0xff]
    %v918 = vld [vmem:[#allocation5 + $0x18b8] sm:$0xff]
    %v919 = vld [vmem:[#allocation5 + $0x18c0] sm:$0xff]
    %v920 = vld [vmem:[#allocation5 + $0x18c8] sm:$0xff]
    %v921 = vld [vmem:[#allocation5 + $0x18d0] sm:$0xff]
    %v922 = vld [vmem:[#allocation5 + $0x18d8] sm:$0xff]
    %v923 = vld [vmem:[#allocation5 + $0x18e0] sm:$0xff]
    %v924 = vld [vmem:[#allocation5 + $0x18e8] sm:$0xff]
    %v925 = vld [vmem:[#allocation5 + $0x18f0] sm:$0xff]
    %v926 = vld [vmem:[#allocation5 + $0x18f8] sm:$0xff]
    %v927 = vld [vmem:[#allocation5 + $0x1900] sm:$0xff]
    %v928 = vld [vmem:[#allocation5 + $0x1908] sm:$0xff]
    %v929 = vld [vmem:[#allocation5 + $0x1910] sm:$0xff]
    %v930 = vld [vmem:[#allocation5 + $0x1918] sm:$0xff]
    %v931 = vld [vmem:[#allocation5 + $0x1920] sm:$0xff]
    %v932 = vld [vmem:[#allocation5 + $0x1928] sm:$0xff]
    %v933 = vld [vmem:[#allocation5 + $0x1930] sm:$0xff]
    %v934 = vld [vmem:[#allocation5 + $0x1938] sm:$0xff]
    %v935 = vld [vmem:[#allocation5 + $0x1940] sm:$0xff]
    %v936 = vld [vmem:[#allocation5 + $0x1948] sm:$0xff]
    %v937 = vld [vmem:[#allocation5 + $0x1950] sm:$0xff]
    %v938 = vld [vmem:[#allocation5 + $0x1958] sm:$0xff]
    %v939 = vld [vmem:[#allocation5 + $0x1960] sm:$0xff]
    %v940 = vld [vmem:[#allocation5 + $0x1968] sm:$0xff]
    %v941 = vld [vmem:[#allocation5 + $0x1970] sm:$0xff]
    %v942 = vld [vmem:[#allocation5 + $0x1978] sm:$0xff]
    %v943 = vld [vmem:[#allocation5 + $0x1980] sm:$0xff]
    %v944 = vld [vmem:[#allocation5 + $0x1988] sm:$0xff]
    %v945 = vld [vmem:[#allocation5 + $0x1990] sm:$0xff]
    %v946 = vld [vmem:[#allocation5 + $0x1998] sm:$0xff]
    %v947 = vld [vmem:[#allocation5 + $0x19a0] sm:$0xff]
    %v948 = vld [vmem:[#allocation5 + $0x19a8] sm:$0xff]
    %v949 = vld [vmem:[#allocation5 + $0x19b0] sm:$0xff]
    %v950 = vld [vmem:[#allocation5 + $0x19b8] sm:$0xff]
    %v951 = vld [vmem:[#allocation5 + $0x19c0] sm:$0xff]
    %v952 = vld [vmem:[#allocation5 + $0x19c8] sm:$0xff]
    %v953 = vld [vmem:[#allocation5 + $0x19d0] sm:$0xff]
    %v954 = vld [vmem:[#allocation5 + $0x19d8] sm:$0xff]
    %v955 = vld [vmem:[#allocation5 + $0x19e0] sm:$0xff]
    %v956 = vld [vmem:[#allocation5 + $0x19e8] sm:$0xff]
    %v957 = vld [vmem:[#allocation5 + $0x19f0] sm:$0xff]
    %v958 = vld [vmem:[#allocation5 + $0x19f8] sm:$0xff]
    %v959 = vld [vmem:[#allocation5 + $0x1a00] sm:$0xff]
    %v960 = vld [vmem:[#allocation5 + $0x1a08] sm:$0xff]
    %v961 = vld [vmem:[#allocation5 + $0x1a10] sm:$0xff]
    %v962 = vld [vmem:[#allocation5 + $0x1a18] sm:$0xff]
    %v963 = vld [vmem:[#allocation5 + $0x1a20] sm:$0xff]
    %v964 = vld [vmem:[#allocation5 + $0x1a28] sm:$0xff]
    %v965 = vld [vmem:[#allocation5 + $0x1a30] sm:$0xff]
    %v966 = vld [vmem:[#allocation5 + $0x1a38] sm:$0xff]
    %v967 = vld [vmem:[#allocation5 + $0x1a40] sm:$0xff]
    %v968 = vld [vmem:[#allocation5 + $0x1a48] sm:$0xff]
    %v969 = vld [vmem:[#allocation5 + $0x1a50] sm:$0xff]
    %v970 = vld [vmem:[#allocation5 + $0x1a58] sm:$0xff]
    %v971 = vld [vmem:[#allocation5 + $0x1a60] sm:$0xff]
    %v972 = vld [vmem:[#allocation5 + $0x1a68] sm:$0xff]
    %v973 = vld [vmem:[#allocation5 + $0x1a70] sm:$0xff]
    %v974 = vld [vmem:[#allocation5 + $0x1a78] sm:$0xff]
    %v975 = vld [vmem:[#allocation5 + $0x1a80] sm:$0xff]
    %v976 = vld [vmem:[#allocation5 + $0x1a88] sm:$0xff]
    %v977 = vld [vmem:[#allocation5 + $0x1a90] sm:$0xff]
    %v978 = vld [vmem:[#allocation5 + $0x1a98] sm:$0xff]
    %v979 = vld [vmem:[#allocation5 + $0x1aa0] sm:$0xff]
    %v980 = vld [vmem:[#allocation5 + $0x1aa8] sm:$0xff]
    %v981 = vld [vmem:[#allocation5 + $0x1ab0] sm:$0xff]
    %v982 = vld [vmem:[#allocation5 + $0x1ab8] sm:$0xff]
    %v983 = vld [vmem:[#allocation5 + $0x1ac0] sm:$0xff]
    %v984 = vld [vmem:[#allocation5 + $0x1ac8] sm:$0xff]
    %v985 = vld [vmem:[#allocation5 + $0x1ad0] sm:$0xff]
    %v986 = vld [vmem:[#allocation5 + $0x1ad8] sm:$0xff]
    %v987 = vld [vmem:[#allocation5 + $0x1ae0] sm:$0xff]
    %v988 = vld [vmem:[#allocation5 + $0x1ae8] sm:$0xff]
    %v989 = vld [vmem:[#allocation5 + $0x1af0] sm:$0xff]
    %v990 = vld [vmem:[#allocation5 + $0x1af8] sm:$0xff]
    %v991 = vld [vmem:[#allocation7] sm:$0xff]
    %v992 = vld [vmem:[#allocation7 + $0x8] sm:$0xff]
    %v993 = vld [vmem:[#allocation7 + $0x10] sm:$0x3]
    %v997 = vlaneseq
    %v998 = vshrl.u32 %v997, 7
    %v999 = vsub.s32 0, %v998
    %v1000 = vrot.slane %v991, %v999
    %v1001 = vlaneseq
    %v1002 = vshrl.u32 %v1001, 7
    %v1003 = vsub.s32 1, %v1002
    %v1004 = vrot.slane %v991, %v1003
    %v1005 = vlaneseq
    %v1006 = vshrl.u32 %v1005, 7
    %v1007 = vsub.s32 2, %v1006
    %v1008 = vrot.slane %v991, %v1007
    %v1009 = vlaneseq
    %v1010 = vshrl.u32 %v1009, 7
    %v1011 = vsub.s32 3, %v1010
    %v1012 = vrot.slane %v991, %v1011
    %v1013 = vlaneseq
    %v1014 = vshrl.u32 %v1013, 7
    %v1015 = vsub.s32 4, %v1014
    %v1016 = vrot.slane %v991, %v1015
    %v1017 = vlaneseq
    %v1018 = vshrl.u32 %v1017, 7
    %v1019 = vsub.s32 5, %v1018
    %v1020 = vrot.slane %v991, %v1019
    %v1021 = vlaneseq
    %v1022 = vshrl.u32 %v1021, 7
    %v1023 = vsub.s32 6, %v1022
    %v1024 = vrot.slane %v991, %v1023
    %v1025 = vlaneseq
    %v1026 = vshrl.u32 %v1025, 7
    %v1027 = vsub.s32 7, %v1026
    %v1028 = vrot.slane %v991, %v1027
    %v1029 = vlaneseq
    %v1030 = vshrl.u32 %v1029, 7
    %v1031 = vsub.s32 0, %v1030
    %v1032 = vrot.slane %v992, %v1031
    %v1033 = vlaneseq
    %v1034 = vshrl.u32 %v1033, 7
    %v1035 = vsub.s32 1, %v1034
    %v1036 = vrot.slane %v992, %v1035
    %v1037 = vlaneseq
    %v1038 = vshrl.u32 %v1037, 7
    %v1039 = vsub.s32 2, %v1038
    %v1040 = vrot.slane %v992, %v1039
    %v1041 = vlaneseq
    %v1042 = vshrl.u32 %v1041, 7
    %v1043 = vsub.s32 3, %v1042
    %v1044 = vrot.slane %v992, %v1043
    %v1045 = vlaneseq
    %v1046 = vshrl.u32 %v1045, 7
    %v1047 = vsub.s32 4, %v1046
    %v1048 = vrot.slane %v992, %v1047
    %v1049 = vlaneseq
    %v1050 = vshrl.u32 %v1049, 7
    %v1051 = vsub.s32 5, %v1050
    %v1052 = vrot.slane %v992, %v1051
    %v1053 = vlaneseq
    %v1054 = vshrl.u32 %v1053, 7
    %v1055 = vsub.s32 6, %v1054
    %v1056 = vrot.slane %v992, %v1055
    %v1057 = vlaneseq
    %v1058 = vshrl.u32 %v1057, 7
    %v1059 = vsub.s32 7, %v1058
    %v1060 = vrot.slane %v992, %v1059
    %v1061 = vlaneseq
    %v1062 = vshrl.u32 %v1061, 7
    %v1063 = vsub.s32 0, %v1062
    %v1064 = vrot.slane %v993, %v1063
    %v1065 = vlaneseq
    %v1066 = vshrl.u32 %v1065, 7
    %v1067 = vsub.s32 1, %v1066
    %v1068 = vrot.slane %v993, %v1067
    %v1093 = vunpack.c.l.b16 %v121
    %v1094 = vunpack.c.h.b16 %v121
    %v1095 = vunpack.c.l.b16 %v122
    %v1096 = vunpack.c.h.b16 %v122
    %v1097 = vunpack.c.l.b16 %v123
    %v1098 = vunpack.c.h.b16 %v123
    %v1099 = vunpack.c.l.b16 %v124
    %v1100 = vunpack.c.h.b16 %v124
    %v1101 = vunpack.c.l.b16 %v125
    %v1102 = vunpack.c.h.b16 %v125
    %v1103 = vunpack.c.l.b16 %v126
    %v1104 = vunpack.c.h.b16 %v126
    %v1105 = vpack.c.b16 %v1099, %v1093
    %v1106 = vpack.c.b16 %v1100, %v1094
    %v1107 = vpack.c.b16 %v1101, %v1095
    %v1108 = vpack.c.b16 %v1102, %v1096
    %v1109 = vpack.c.b16 %v1103, %v1097
    %v1110 = vpack.c.b16 %v1104, %v1098
    %v1981 = vunpack.c.l.b16 %v127
    %v1982 = vunpack.c.h.b16 %v127
    %v1983 = vunpack.c.l.b16 %v128
    %v1984 = vunpack.c.h.b16 %v128
    %v1985 = vunpack.c.l.b16 %v129
    %v1986 = vunpack.c.h.b16 %v129
    %v1987 = vunpack.c.l.b16 %v130
    %v1988 = vunpack.c.h.b16 %v130
    %v1989 = vunpack.c.l.b16 %v131
    %v1990 = vunpack.c.h.b16 %v131
    %v1991 = vunpack.c.l.b16 %v132
    %v1992 = vunpack.c.h.b16 %v132
    %v1993 = vunpack.c.l.b16 %v133
    %v1994 = vunpack.c.h.b16 %v133
    %v1995 = vunpack.c.l.b16 %v134
    %v1996 = vunpack.c.h.b16 %v134
    %v1997 = vunpack.c.l.b16 %v135
    %v1998 = vunpack.c.h.b16 %v135
    %v1999 = vunpack.c.l.b16 %v136
    %v2000 = vunpack.c.h.b16 %v136
    %v2001 = vunpack.c.l.b16 %v137
    %v2002 = vunpack.c.h.b16 %v137
    %v2003 = vunpack.c.l.b16 %v138
    %v2004 = vunpack.c.h.b16 %v138
    %v2005 = vunpack.c.l.b16 %v139
    %v2006 = vunpack.c.h.b16 %v139
    %v2007 = vunpack.c.l.b16 %v140
    %v2008 = vunpack.c.h.b16 %v140
    %v2009 = vunpack.c.l.b16 %v141
    %v2010 = vunpack.c.h.b16 %v141
    %v2011 = vunpack.c.l.b16 %v142
    %v2012 = vunpack.c.h.b16 %v142
    %v2013 = vunpack.c.l.b16 %v143
    %v2014 = vunpack.c.h.b16 %v143
    %v2015 = vunpack.c.l.b16 %v144
    %v2016 = vunpack.c.h.b16 %v144
    %v2017 = vunpack.c.l.b16 %v145
    %v2018 = vunpack.c.h.b16 %v145
    %v2019 = vunpack.c.l.b16 %v146
    %v2020 = vunpack.c.h.b16 %v146
    %v2021 = vunpack.c.l.b16 %v147
    %v2022 = vunpack.c.h.b16 %v147
    %v2023 = vunpack.c.l.b16 %v148
    %v2024 = vunpack.c.h.b16 %v148
    %v2025 = vunpack.c.l.b16 %v149
    %v2026 = vunpack.c.h.b16 %v149
    %v2027 = vunpack.c.l.b16 %v150
    %v2028 = vunpack.c.h.b16 %v150
    %v2029 = vunpack.c.l.b16 %v151
    %v2030 = vunpack.c.h.b16 %v151
    %v2031 = vunpack.c.l.b16 %v152
    %v2032 = vunpack.c.h.b16 %v152
    %v2033 = vunpack.c.l.b16 %v153
    %v2034 = vunpack.c.h.b16 %v153
    %v2035 = vunpack.c.l.b16 %v154
    %v2036 = vunpack.c.h.b16 %v154
    %v2037 = vunpack.c.l.b16 %v155
    %v2038 = vunpack.c.h.b16 %v155
    %v2039 = vunpack.c.l.b16 %v156
    %v2040 = vunpack.c.h.b16 %v156
    %v2041 = vunpack.c.l.b16 %v157
    %v2042 = vunpack.c.h.b16 %v157
    %v2043 = vunpack.c.l.b16 %v158
    %v2044 = vunpack.c.h.b16 %v158
    %v2045 = vunpack.c.l.b16 %v159
    %v2046 = vunpack.c.h.b16 %v159
    %v2047 = vunpack.c.l.b16 %v160
    %v2048 = vunpack.c.h.b16 %v160
    %v2049 = vunpack.c.l.b16 %v161
    %v2050 = vunpack.c.h.b16 %v161
    %v2051 = vunpack.c.l.b16 %v162
    %v2052 = vunpack.c.h.b16 %v162
    %v2053 = vunpack.c.l.b16 %v163
    %v2054 = vunpack.c.h.b16 %v163
    %v2055 = vunpack.c.l.b16 %v164
    %v2056 = vunpack.c.h.b16 %v164
    %v2057 = vunpack.c.l.b16 %v165
    %v2058 = vunpack.c.h.b16 %v165
    %v2059 = vunpack.c.l.b16 %v166
    %v2060 = vunpack.c.h.b16 %v166
    %v2061 = vunpack.c.l.b16 %v167
    %v2062 = vunpack.c.h.b16 %v167
    %v2063 = vunpack.c.l.b16 %v168
    %v2064 = vunpack.c.h.b16 %v168
    %v2065 = vunpack.c.l.b16 %v169
    %v2066 = vunpack.c.h.b16 %v169
    %v2067 = vunpack.c.l.b16 %v170
    %v2068 = vunpack.c.h.b16 %v170
    %v2069 = vunpack.c.l.b16 %v171
    %v2070 = vunpack.c.h.b16 %v171
    %v2071 = vunpack.c.l.b16 %v172
    %v2072 = vunpack.c.h.b16 %v172
    %v2073 = vunpack.c.l.b16 %v173
    %v2074 = vunpack.c.h.b16 %v173
    %v2075 = vunpack.c.l.b16 %v174
    %v2076 = vunpack.c.h.b16 %v174
    %v2077 = vunpack.c.l.b16 %v175
    %v2078 = vunpack.c.h.b16 %v175
    %v2079 = vunpack.c.l.b16 %v176
    %v2080 = vunpack.c.h.b16 %v176
    %v2081 = vunpack.c.l.b16 %v177
    %v2082 = vunpack.c.h.b16 %v177
    %v2083 = vunpack.c.l.b16 %v178
    %v2084 = vunpack.c.h.b16 %v178
    %v2085 = vunpack.c.l.b16 %v179
    %v2086 = vunpack.c.h.b16 %v179
    %v2087 = vunpack.c.l.b16 %v180
    %v2088 = vunpack.c.h.b16 %v180
    %v2089 = vunpack.c.l.b16 %v181
    %v2090 = vunpack.c.h.b16 %v181
    %v2091 = vunpack.c.l.b16 %v182
    %v2092 = vunpack.c.h.b16 %v182
    %v2093 = vunpack.c.l.b16 %v183
    %v2094 = vunpack.c.h.b16 %v183
    %v2095 = vunpack.c.l.b16 %v184
    %v2096 = vunpack.c.h.b16 %v184
    %v2097 = vunpack.c.l.b16 %v185
    %v2098 = vunpack.c.h.b16 %v185
    %v2099 = vunpack.c.l.b16 %v186
    %v2100 = vunpack.c.h.b16 %v186
    %v2101 = vunpack.c.l.b16 %v187
    %v2102 = vunpack.c.h.b16 %v187
    %v2103 = vunpack.c.l.b16 %v188
    %v2104 = vunpack.c.h.b16 %v188
    %v2105 = vunpack.c.l.b16 %v189
    %v2106 = vunpack.c.h.b16 %v189
    %v2107 = vunpack.c.l.b16 %v190
    %v2108 = vunpack.c.h.b16 %v190
    %v2109 = vunpack.c.l.b16 %v191
    %v2110 = vunpack.c.h.b16 %v191
    %v2111 = vunpack.c.l.b16 %v192
    %v2112 = vunpack.c.h.b16 %v192
    %v2113 = vunpack.c.l.b16 %v193
    %v2114 = vunpack.c.h.b16 %v193
    %v2115 = vunpack.c.l.b16 %v194
    %v2116 = vunpack.c.h.b16 %v194
    %v2117 = vunpack.c.l.b16 %v195
    %v2118 = vunpack.c.h.b16 %v195
    %v2119 = vunpack.c.l.b16 %v196
    %v2120 = vunpack.c.h.b16 %v196
    %v2121 = vunpack.c.l.b16 %v197
    %v2122 = vunpack.c.h.b16 %v197
    %v2123 = vunpack.c.l.b16 %v198
    %v2124 = vunpack.c.h.b16 %v198
    %v2125 = vunpack.c.l.b16 %v199
    %v2126 = vunpack.c.h.b16 %v199
    %v2127 = vunpack.c.l.b16 %v200
    %v2128 = vunpack.c.h.b16 %v200
    %v2129 = vunpack.c.l.b16 %v201
    %v2130 = vunpack.c.h.b16 %v201
    %v2131 = vunpack.c.l.b16 %v202
    %v2132 = vunpack.c.h.b16 %v202
    %v2133 = vunpack.c.l.b16 %v203
    %v2134 = vunpack.c.h.b16 %v203
    %v2135 = vunpack.c.l.b16 %v204
    %v2136 = vunpack.c.h.b16 %v204
    %v2137 = vunpack.c.l.b16 %v205
    %v2138 = vunpack.c.h.b16 %v205
    %v2139 = vunpack.c.l.b16 %v206
    %v2140 = vunpack.c.h.b16 %v206
    %v2141 = vunpack.c.l.b16 %v207
    %v2142 = vunpack.c.h.b16 %v207
    %v2143 = vunpack.c.l.b16 %v208
    %v2144 = vunpack.c.h.b16 %v208
    %v2145 = vunpack.c.l.b16 %v209
    %v2146 = vunpack.c.h.b16 %v209
    %v2147 = vunpack.c.l.b16 %v210
    %v2148 = vunpack.c.h.b16 %v210
    %v2149 = vunpack.c.l.b16 %v211
    %v2150 = vunpack.c.h.b16 %v211
    %v2151 = vunpack.c.l.b16 %v212
    %v2152 = vunpack.c.h.b16 %v212
    %v2153 = vunpack.c.l.b16 %v213
    %v2154 = vunpack.c.h.b16 %v213
    %v2155 = vunpack.c.l.b16 %v214
    %v2156 = vunpack.c.h.b16 %v214
    %v2157 = vunpack.c.l.b16 %v215
    %v2158 = vunpack.c.h.b16 %v215
    %v2159 = vunpack.c.l.b16 %v216
    %v2160 = vunpack.c.h.b16 %v216
    %v2161 = vunpack.c.l.b16 %v217
    %v2162 = vunpack.c.h.b16 %v217
    %v2163 = vunpack.c.l.b16 %v218
    %v2164 = vunpack.c.h.b16 %v218
    %v2165 = vunpack.c.l.b16 %v219
    %v2166 = vunpack.c.h.b16 %v219
    %v2167 = vunpack.c.l.b16 %v220
    %v2168 = vunpack.c.h.b16 %v220
    %v2169 = vunpack.c.l.b16 %v221
    %v2170 = vunpack.c.h.b16 %v221
    %v2171 = vunpack.c.l.b16 %v222
    %v2172 = vunpack.c.h.b16 %v222
    %v2173 = vunpack.c.l.b16 %v223
    %v2174 = vunpack.c.h.b16 %v223
    %v2175 = vunpack.c.l.b16 %v224
    %v2176 = vunpack.c.h.b16 %v224
    %v2177 = vunpack.c.l.b16 %v225
    %v2178 = vunpack.c.h.b16 %v225
    %v2179 = vunpack.c.l.b16 %v226
    %v2180 = vunpack.c.h.b16 %v226
    %v2181 = vunpack.c.l.b16 %v227
    %v2182 = vunpack.c.h.b16 %v227
    %v2183 = vunpack.c.l.b16 %v228
    %v2184 = vunpack.c.h.b16 %v228
    %v2185 = vunpack.c.l.b16 %v229
    %v2186 = vunpack.c.h.b16 %v229
    %v2187 = vunpack.c.l.b16 %v230
    %v2188 = vunpack.c.h.b16 %v230
    %v2189 = vunpack.c.l.b16 %v231
    %v2190 = vunpack.c.h.b16 %v231
    %v2191 = vunpack.c.l.b16 %v232
    %v2192 = vunpack.c.h.b16 %v232
    %v2193 = vunpack.c.l.b16 %v233
    %v2194 = vunpack.c.h.b16 %v233
    %v2195 = vunpack.c.l.b16 %v234
    %v2196 = vunpack.c.h.b16 %v234
    %v2197 = vunpack.c.l.b16 %v235
    %v2198 = vunpack.c.h.b16 %v235
    %v2199 = vunpack.c.l.b16 %v236
    %v2200 = vunpack.c.h.b16 %v236
    %v2201 = vunpack.c.l.b16 %v237
    %v2202 = vunpack.c.h.b16 %v237
    %v2203 = vunpack.c.l.b16 %v238
    %v2204 = vunpack.c.h.b16 %v238
    %v2205 = vunpack.c.l.b16 %v239
    %v2206 = vunpack.c.h.b16 %v239
    %v2207 = vunpack.c.l.b16 %v240
    %v2208 = vunpack.c.h.b16 %v240
    %v2209 = vunpack.c.l.b16 %v241
    %v2210 = vunpack.c.h.b16 %v241
    %v2211 = vunpack.c.l.b16 %v242
    %v2212 = vunpack.c.h.b16 %v242
    %v2213 = vunpack.c.l.b16 %v243
    %v2214 = vunpack.c.h.b16 %v243
    %v2215 = vunpack.c.l.b16 %v244
    %v2216 = vunpack.c.h.b16 %v244
    %v2217 = vunpack.c.l.b16 %v245
    %v2218 = vunpack.c.h.b16 %v245
    %v2219 = vunpack.c.l.b16 %v246
    %v2220 = vunpack.c.h.b16 %v246
    %v2221 = vunpack.c.l.b16 %v247
    %v2222 = vunpack.c.h.b16 %v247
    %v2223 = vunpack.c.l.b16 %v248
    %v2224 = vunpack.c.h.b16 %v248
    %v2225 = vunpack.c.l.b16 %v249
    %v2226 = vunpack.c.h.b16 %v249
    %v2227 = vunpack.c.l.b16 %v250
    %v2228 = vunpack.c.h.b16 %v250
    %v2229 = vunpack.c.l.b16 %v251
    %v2230 = vunpack.c.h.b16 %v251
    %v2231 = vunpack.c.l.b16 %v252
    %v2232 = vunpack.c.h.b16 %v252
    %v2233 = vunpack.c.l.b16 %v253
    %v2234 = vunpack.c.h.b16 %v253
    %v2235 = vunpack.c.l.b16 %v254
    %v2236 = vunpack.c.h.b16 %v254
    %v2237 = vunpack.c.l.b16 %v255
    %v2238 = vunpack.c.h.b16 %v255
    %v2239 = vunpack.c.l.b16 %v256
    %v2240 = vunpack.c.h.b16 %v256
    %v2241 = vunpack.c.l.b16 %v257
    %v2242 = vunpack.c.h.b16 %v257
    %v2243 = vunpack.c.l.b16 %v258
    %v2244 = vunpack.c.h.b16 %v258
    %v2245 = vunpack.c.l.b16 %v259
    %v2246 = vunpack.c.h.b16 %v259
    %v2247 = vunpack.c.l.b16 %v260
    %v2248 = vunpack.c.h.b16 %v260
    %v2249 = vunpack.c.l.b16 %v261
    %v2250 = vunpack.c.h.b16 %v261
    %v2251 = vunpack.c.l.b16 %v262
    %v2252 = vunpack.c.h.b16 %v262
    %v2253 = vunpack.c.l.b16 %v263
    %v2254 = vunpack.c.h.b16 %v263
    %v2255 = vunpack.c.l.b16 %v264
    %v2256 = vunpack.c.h.b16 %v264
    %v2257 = vunpack.c.l.b16 %v265
    %v2258 = vunpack.c.h.b16 %v265
    %v2259 = vunpack.c.l.b16 %v266
    %v2260 = vunpack.c.h.b16 %v266
    %v2261 = vunpack.c.l.b16 %v267
    %v2262 = vunpack.c.h.b16 %v267
    %v2263 = vunpack.c.l.b16 %v268
    %v2264 = vunpack.c.h.b16 %v268
    %v2265 = vunpack.c.l.b16 %v269
    %v2266 = vunpack.c.h.b16 %v269
    %v2267 = vunpack.c.l.b16 %v270
    %v2268 = vunpack.c.h.b16 %v270
    %v2269 = vunpack.c.l.b16 %v271
    %v2270 = vunpack.c.h.b16 %v271
    %v2271 = vunpack.c.l.b16 %v272
    %v2272 = vunpack.c.h.b16 %v272
    %v2273 = vunpack.c.l.b16 %v273
    %v2274 = vunpack.c.h.b16 %v273
    %v2275 = vunpack.c.l.b16 %v274
    %v2276 = vunpack.c.h.b16 %v274
    %v2277 = vunpack.c.l.b16 %v275
    %v2278 = vunpack.c.h.b16 %v275
    %v2279 = vunpack.c.l.b16 %v276
    %v2280 = vunpack.c.h.b16 %v276
    %v2281 = vunpack.c.l.b16 %v277
    %v2282 = vunpack.c.h.b16 %v277
    %v2283 = vunpack.c.l.b16 %v278
    %v2284 = vunpack.c.h.b16 %v278
    %v2285 = vunpack.c.l.b16 %v279
    %v2286 = vunpack.c.h.b16 %v279
    %v2287 = vunpack.c.l.b16 %v280
    %v2288 = vunpack.c.h.b16 %v280
    %v2289 = vunpack.c.l.b16 %v281
    %v2290 = vunpack.c.h.b16 %v281
    %v2291 = vunpack.c.l.b16 %v282
    %v2292 = vunpack.c.h.b16 %v282
    %v2293 = vunpack.c.l.b16 %v283
    %v2294 = vunpack.c.h.b16 %v283
    %v2295 = vunpack.c.l.b16 %v284
    %v2296 = vunpack.c.h.b16 %v284
    %v2297 = vunpack.c.l.b16 %v285
    %v2298 = vunpack.c.h.b16 %v285
    %v2299 = vunpack.c.l.b16 %v286
    %v2300 = vunpack.c.h.b16 %v286
    %v2301 = vunpack.c.l.b16 %v287
    %v2302 = vunpack.c.h.b16 %v287
    %v2303 = vunpack.c.l.b16 %v288
    %v2304 = vunpack.c.h.b16 %v288
    %v2305 = vunpack.c.l.b16 %v289
    %v2306 = vunpack.c.h.b16 %v289
    %v2307 = vunpack.c.l.b16 %v290
    %v2308 = vunpack.c.h.b16 %v290
    %v2309 = vunpack.c.l.b16 %v291
    %v2310 = vunpack.c.h.b16 %v291
    %v2311 = vunpack.c.l.b16 %v292
    %v2312 = vunpack.c.h.b16 %v292
    %v2313 = vunpack.c.l.b16 %v293
    %v2314 = vunpack.c.h.b16 %v293
    %v2315 = vunpack.c.l.b16 %v294
    %v2316 = vunpack.c.h.b16 %v294
    %v2317 = vunpack.c.l.b16 %v295
    %v2318 = vunpack.c.h.b16 %v295
    %v2319 = vunpack.c.l.b16 %v296
    %v2320 = vunpack.c.h.b16 %v296
    %v2321 = vunpack.c.l.b16 %v297
    %v2322 = vunpack.c.h.b16 %v297
    %v2323 = vunpack.c.l.b16 %v298
    %v2324 = vunpack.c.h.b16 %v298
    %v2325 = vunpack.c.l.b16 %v299
    %v2326 = vunpack.c.h.b16 %v299
    %v2327 = vunpack.c.l.b16 %v300
    %v2328 = vunpack.c.h.b16 %v300
    %v2329 = vunpack.c.l.b16 %v301
    %v2330 = vunpack.c.h.b16 %v301
    %v2331 = vunpack.c.l.b16 %v302
    %v2332 = vunpack.c.h.b16 %v302
    %v2333 = vunpack.c.l.b16 %v303
    %v2334 = vunpack.c.h.b16 %v303
    %v2335 = vunpack.c.l.b16 %v304
    %v2336 = vunpack.c.h.b16 %v304
    %v2337 = vunpack.c.l.b16 %v305
    %v2338 = vunpack.c.h.b16 %v305
    %v2339 = vunpack.c.l.b16 %v306
    %v2340 = vunpack.c.h.b16 %v306
    %v2341 = vunpack.c.l.b16 %v307
    %v2342 = vunpack.c.h.b16 %v307
    %v2343 = vunpack.c.l.b16 %v308
    %v2344 = vunpack.c.h.b16 %v308
    %v2345 = vunpack.c.l.b16 %v309
    %v2346 = vunpack.c.h.b16 %v309
    %v2347 = vunpack.c.l.b16 %v310
    %v2348 = vunpack.c.h.b16 %v310
    %v2349 = vunpack.c.l.b16 %v311
    %v2350 = vunpack.c.h.b16 %v311
    %v2351 = vunpack.c.l.b16 %v312
    %v2352 = vunpack.c.h.b16 %v312
    %v2353 = vunpack.c.l.b16 %v313
    %v2354 = vunpack.c.h.b16 %v313
    %v2355 = vunpack.c.l.b16 %v314
    %v2356 = vunpack.c.h.b16 %v314
    %v2357 = vunpack.c.l.b16 %v315
    %v2358 = vunpack.c.h.b16 %v315
    %v2359 = vunpack.c.l.b16 %v316
    %v2360 = vunpack.c.h.b16 %v316
    %v2361 = vunpack.c.l.b16 %v317
    %v2362 = vunpack.c.h.b16 %v317
    %v2363 = vunpack.c.l.b16 %v318
    %v2364 = vunpack.c.h.b16 %v318
    %v2365 = vunpack.c.l.b16 %v319
    %v2366 = vunpack.c.h.b16 %v319
    %v2367 = vunpack.c.l.b16 %v320
    %v2368 = vunpack.c.h.b16 %v320
    %v2369 = vunpack.c.l.b16 %v321
    %v2370 = vunpack.c.h.b16 %v321
    %v2371 = vunpack.c.l.b16 %v322
    %v2372 = vunpack.c.h.b16 %v322
    %v2373 = vunpack.c.l.b16 %v323
    %v2374 = vunpack.c.h.b16 %v323
    %v2375 = vunpack.c.l.b16 %v324
    %v2376 = vunpack.c.h.b16 %v324
    %v2377 = vunpack.c.l.b16 %v325
    %v2378 = vunpack.c.h.b16 %v325
    %v2379 = vunpack.c.l.b16 %v326
    %v2380 = vunpack.c.h.b16 %v326
    %v2381 = vunpack.c.l.b16 %v327
    %v2382 = vunpack.c.h.b16 %v327
    %v2383 = vunpack.c.l.b16 %v328
    %v2384 = vunpack.c.h.b16 %v328
    %v2385 = vunpack.c.l.b16 %v329
    %v2386 = vunpack.c.h.b16 %v329
    %v2387 = vunpack.c.l.b16 %v330
    %v2388 = vunpack.c.h.b16 %v330
    %v2389 = vunpack.c.l.b16 %v331
    %v2390 = vunpack.c.h.b16 %v331
    %v2391 = vunpack.c.l.b16 %v332
    %v2392 = vunpack.c.h.b16 %v332
    %v2393 = vunpack.c.l.b16 %v333
    %v2394 = vunpack.c.h.b16 %v333
    %v2395 = vunpack.c.l.b16 %v334
    %v2396 = vunpack.c.h.b16 %v334
    %v2397 = vunpack.c.l.b16 %v335
    %v2398 = vunpack.c.h.b16 %v335
    %v2399 = vunpack.c.l.b16 %v336
    %v2400 = vunpack.c.h.b16 %v336
    %v2401 = vunpack.c.l.b16 %v337
    %v2402 = vunpack.c.h.b16 %v337
    %v2403 = vunpack.c.l.b16 %v338
    %v2404 = vunpack.c.h.b16 %v338
    %v2405 = vunpack.c.l.b16 %v339
    %v2406 = vunpack.c.h.b16 %v339
    %v2407 = vunpack.c.l.b16 %v340
    %v2408 = vunpack.c.h.b16 %v340
    %v2409 = vunpack.c.l.b16 %v341
    %v2410 = vunpack.c.h.b16 %v341
    %v2411 = vunpack.c.l.b16 %v342
    %v2412 = vunpack.c.h.b16 %v342
    %v2413 = vunpack.c.l.b16 %v343
    %v2414 = vunpack.c.h.b16 %v343
    %v2415 = vunpack.c.l.b16 %v344
    %v2416 = vunpack.c.h.b16 %v344
    %v2417 = vunpack.c.l.b16 %v345
    %v2418 = vunpack.c.h.b16 %v345
    %v2419 = vunpack.c.l.b16 %v346
    %v2420 = vunpack.c.h.b16 %v346
    %v2421 = vunpack.c.l.b16 %v347
    %v2422 = vunpack.c.h.b16 %v347
    %v2423 = vunpack.c.l.b16 %v348
    %v2424 = vunpack.c.h.b16 %v348
    %v2425 = vunpack.c.l.b16 %v349
    %v2426 = vunpack.c.h.b16 %v349
    %v2427 = vunpack.c.l.b16 %v350
    %v2428 = vunpack.c.h.b16 %v350
    %v2429 = vunpack.c.l.b16 %v351
    %v2430 = vunpack.c.h.b16 %v351
    %v2431 = vunpack.c.l.b16 %v352
    %v2432 = vunpack.c.h.b16 %v352
    %v2433 = vunpack.c.l.b16 %v353
    %v2434 = vunpack.c.h.b16 %v353
    %v2435 = vunpack.c.l.b16 %v354
    %v2436 = vunpack.c.h.b16 %v354
    %v2437 = vunpack.c.l.b16 %v355
    %v2438 = vunpack.c.h.b16 %v355
    %v2439 = vunpack.c.l.b16 %v356
    %v2440 = vunpack.c.h.b16 %v356
    %v2441 = vunpack.c.l.b16 %v357
    %v2442 = vunpack.c.h.b16 %v357
    %v2443 = vunpack.c.l.b16 %v358
    %v2444 = vunpack.c.h.b16 %v358
    %v2445 = vunpack.c.l.b16 %v359
    %v2446 = vunpack.c.h.b16 %v359
    %v2447 = vunpack.c.l.b16 %v360
    %v2448 = vunpack.c.h.b16 %v360
    %v2449 = vunpack.c.l.b16 %v361
    %v2450 = vunpack.c.h.b16 %v361
    %v2451 = vunpack.c.l.b16 %v362
    %v2452 = vunpack.c.h.b16 %v362
    %v2453 = vunpack.c.l.b16 %v363
    %v2454 = vunpack.c.h.b16 %v363
    %v2455 = vunpack.c.l.b16 %v364
    %v2456 = vunpack.c.h.b16 %v364
    %v2457 = vunpack.c.l.b16 %v365
    %v2458 = vunpack.c.h.b16 %v365
    %v2459 = vunpack.c.l.b16 %v366
    %v2460 = vunpack.c.h.b16 %v366
    %v2461 = vunpack.c.l.b16 %v367
    %v2462 = vunpack.c.h.b16 %v367
    %v2463 = vunpack.c.l.b16 %v368
    %v2464 = vunpack.c.h.b16 %v368
    %v2465 = vunpack.c.l.b16 %v369
    %v2466 = vunpack.c.h.b16 %v369
    %v2467 = vunpack.c.l.b16 %v370
    %v2468 = vunpack.c.h.b16 %v370
    %v2469 = vunpack.c.l.b16 %v371
    %v2470 = vunpack.c.h.b16 %v371
    %v2471 = vunpack.c.l.b16 %v372
    %v2472 = vunpack.c.h.b16 %v372
    %v2473 = vunpack.c.l.b16 %v373
    %v2474 = vunpack.c.h.b16 %v373
    %v2475 = vunpack.c.l.b16 %v374
    %v2476 = vunpack.c.h.b16 %v374
    %v2477 = vunpack.c.l.b16 %v375
    %v2478 = vunpack.c.h.b16 %v375
    %v2479 = vunpack.c.l.b16 %v376
    %v2480 = vunpack.c.h.b16 %v376
    %v2481 = vunpack.c.l.b16 %v377
    %v2482 = vunpack.c.h.b16 %v377
    %v2483 = vunpack.c.l.b16 %v378
    %v2484 = vunpack.c.h.b16 %v378
    %v2485 = vunpack.c.l.b16 %v379
    %v2486 = vunpack.c.h.b16 %v379
    %v2487 = vunpack.c.l.b16 %v380
    %v2488 = vunpack.c.h.b16 %v380
    %v2489 = vunpack.c.l.b16 %v381
    %v2490 = vunpack.c.h.b16 %v381
    %v2491 = vunpack.c.l.b16 %v382
    %v2492 = vunpack.c.h.b16 %v382
    %v2493 = vunpack.c.l.b16 %v383
    %v2494 = vunpack.c.h.b16 %v383
    %v2495 = vunpack.c.l.b16 %v384
    %v2496 = vunpack.c.h.b16 %v384
    %v2497 = vunpack.c.l.b16 %v385
    %v2498 = vunpack.c.h.b16 %v385
    %v2499 = vunpack.c.l.b16 %v386
    %v2500 = vunpack.c.h.b16 %v386
    %v2501 = vunpack.c.l.b16 %v387
    %v2502 = vunpack.c.h.b16 %v387
    %v2503 = vunpack.c.l.b16 %v388
    %v2504 = vunpack.c.h.b16 %v388
    %v2505 = vunpack.c.l.b16 %v389
    %v2506 = vunpack.c.h.b16 %v389
    %v2507 = vunpack.c.l.b16 %v390
    %v2508 = vunpack.c.h.b16 %v390
    %v2509 = vunpack.c.l.b16 %v391
    %v2510 = vunpack.c.h.b16 %v391
    %v2511 = vunpack.c.l.b16 %v392
    %v2512 = vunpack.c.h.b16 %v392
    %v2513 = vunpack.c.l.b16 %v393
    %v2514 = vunpack.c.h.b16 %v393
    %v2515 = vunpack.c.l.b16 %v394
    %v2516 = vunpack.c.h.b16 %v394
    %v2517 = vunpack.c.l.b16 %v395
    %v2518 = vunpack.c.h.b16 %v395
    %v2519 = vunpack.c.l.b16 %v396
    %v2520 = vunpack.c.h.b16 %v396
    %v2521 = vunpack.c.l.b16 %v397
    %v2522 = vunpack.c.h.b16 %v397
    %v2523 = vunpack.c.l.b16 %v398
    %v2524 = vunpack.c.h.b16 %v398
    %v2525 = vunpack.c.l.b16 %v399
    %v2526 = vunpack.c.h.b16 %v399
    %v2527 = vunpack.c.l.b16 %v400
    %v2528 = vunpack.c.h.b16 %v400
    %v2529 = vunpack.c.l.b16 %v401
    %v2530 = vunpack.c.h.b16 %v401
    %v2531 = vunpack.c.l.b16 %v402
    %v2532 = vunpack.c.h.b16 %v402
    %v2533 = vunpack.c.l.b16 %v403
    %v2534 = vunpack.c.h.b16 %v403
    %v2535 = vunpack.c.l.b16 %v404
    %v2536 = vunpack.c.h.b16 %v404
    %v2537 = vunpack.c.l.b16 %v405
    %v2538 = vunpack.c.h.b16 %v405
    %v2539 = vunpack.c.l.b16 %v406
    %v2540 = vunpack.c.h.b16 %v406
    %v2541 = vunpack.c.l.b16 %v407
    %v2542 = vunpack.c.h.b16 %v407
    %v2543 = vunpack.c.l.b16 %v408
    %v2544 = vunpack.c.h.b16 %v408
    %v2545 = vunpack.c.l.b16 %v409
    %v2546 = vunpack.c.h.b16 %v409
    %v2547 = vunpack.c.l.b16 %v410
    %v2548 = vunpack.c.h.b16 %v410
    %v2549 = vunpack.c.l.b16 %v411
    %v2550 = vunpack.c.h.b16 %v411
    %v2551 = vunpack.c.l.b16 %v412
    %v2552 = vunpack.c.h.b16 %v412
    %v2553 = vunpack.c.l.b16 %v413
    %v2554 = vunpack.c.h.b16 %v413
    %v2555 = vunpack.c.l.b16 %v414
    %v2556 = vunpack.c.h.b16 %v414
    %v2557 = vunpack.c.l.b16 %v415
    %v2558 = vunpack.c.h.b16 %v415
    %v2559 = vunpack.c.l.b16 %v416
    %v2560 = vunpack.c.h.b16 %v416
    %v2561 = vunpack.c.l.b16 %v417
    %v2562 = vunpack.c.h.b16 %v417
    %v2563 = vunpack.c.l.b16 %v418
    %v2564 = vunpack.c.h.b16 %v418
    %v2565 = vunpack.c.l.b16 %v419
    %v2566 = vunpack.c.h.b16 %v419
    %v2567 = vunpack.c.l.b16 %v420
    %v2568 = vunpack.c.h.b16 %v420
    %v2569 = vunpack.c.l.b16 %v421
    %v2570 = vunpack.c.h.b16 %v421
    %v2571 = vunpack.c.l.b16 %v422
    %v2572 = vunpack.c.h.b16 %v422
    %v2573 = vunpack.c.l.b16 %v423
    %v2574 = vunpack.c.h.b16 %v423
    %v2575 = vunpack.c.l.b16 %v424
    %v2576 = vunpack.c.h.b16 %v424
    %v2577 = vunpack.c.l.b16 %v425
    %v2578 = vunpack.c.h.b16 %v425
    %v2579 = vunpack.c.l.b16 %v426
    %v2580 = vunpack.c.h.b16 %v426
    %v2581 = vunpack.c.l.b16 %v427
    %v2582 = vunpack.c.h.b16 %v427
    %v2583 = vunpack.c.l.b16 %v428
    %v2584 = vunpack.c.h.b16 %v428
    %v2585 = vunpack.c.l.b16 %v429
    %v2586 = vunpack.c.h.b16 %v429
    %v2587 = vunpack.c.l.b16 %v430
    %v2588 = vunpack.c.h.b16 %v430
    %v2589 = vunpack.c.l.b16 %v431
    %v2590 = vunpack.c.h.b16 %v431
    %v2591 = vunpack.c.l.b16 %v432
    %v2592 = vunpack.c.h.b16 %v432
    %v2593 = vunpack.c.l.b16 %v433
    %v2594 = vunpack.c.h.b16 %v433
    %v2595 = vunpack.c.l.b16 %v434
    %v2596 = vunpack.c.h.b16 %v434
    %v2597 = vunpack.c.l.b16 %v435
    %v2598 = vunpack.c.h.b16 %v435
    %v2599 = vunpack.c.l.b16 %v436
    %v2600 = vunpack.c.h.b16 %v436
    %v2601 = vunpack.c.l.b16 %v437
    %v2602 = vunpack.c.h.b16 %v437
    %v2603 = vunpack.c.l.b16 %v438
    %v2604 = vunpack.c.h.b16 %v438
    %v2605 = vunpack.c.l.b16 %v439
    %v2606 = vunpack.c.h.b16 %v439
    %v2607 = vunpack.c.l.b16 %v440
    %v2608 = vunpack.c.h.b16 %v440
    %v2609 = vunpack.c.l.b16 %v441
    %v2610 = vunpack.c.h.b16 %v441
    %v2611 = vunpack.c.l.b16 %v442
    %v2612 = vunpack.c.h.b16 %v442
    %v2613 = vunpack.c.l.b16 %v443
    %v2614 = vunpack.c.h.b16 %v443
    %v2615 = vunpack.c.l.b16 %v444
    %v2616 = vunpack.c.h.b16 %v444
    %v2617 = vunpack.c.l.b16 %v445
    %v2618 = vunpack.c.h.b16 %v445
    %v2619 = vunpack.c.l.b16 %v446
    %v2620 = vunpack.c.h.b16 %v446
    %v2621 = vunpack.c.l.b16 %v447
    %v2622 = vunpack.c.h.b16 %v447
    %v2623 = vunpack.c.l.b16 %v448
    %v2624 = vunpack.c.h.b16 %v448
    %v2625 = vunpack.c.l.b16 %v449
    %v2626 = vunpack.c.h.b16 %v449
    %v2627 = vunpack.c.l.b16 %v450
    %v2628 = vunpack.c.h.b16 %v450
    %v2629 = vunpack.c.l.b16 %v451
    %v2630 = vunpack.c.h.b16 %v451
    %v2631 = vunpack.c.l.b16 %v452
    %v2632 = vunpack.c.h.b16 %v452
    %v2633 = vunpack.c.l.b16 %v453
    %v2634 = vunpack.c.h.b16 %v453
    %v2635 = vunpack.c.l.b16 %v454
    %v2636 = vunpack.c.h.b16 %v454
    %v2637 = vunpack.c.l.b16 %v455
    %v2638 = vunpack.c.h.b16 %v455
    %v2639 = vunpack.c.l.b16 %v456
    %v2640 = vunpack.c.h.b16 %v456
    %v2641 = vunpack.c.l.b16 %v457
    %v2642 = vunpack.c.h.b16 %v457
    %v2643 = vunpack.c.l.b16 %v458
    %v2644 = vunpack.c.h.b16 %v458
    %v2645 = vunpack.c.l.b16 %v459
    %v2646 = vunpack.c.h.b16 %v459
    %v2647 = vunpack.c.l.b16 %v460
    %v2648 = vunpack.c.h.b16 %v460
    %v2649 = vunpack.c.l.b16 %v461
    %v2650 = vunpack.c.h.b16 %v461
    %v2651 = vunpack.c.l.b16 %v462
    %v2652 = vunpack.c.h.b16 %v462
    %v2653 = vunpack.c.l.b16 %v463
    %v2654 = vunpack.c.h.b16 %v463
    %v2655 = vunpack.c.l.b16 %v464
    %v2656 = vunpack.c.h.b16 %v464
    %v2657 = vunpack.c.l.b16 %v465
    %v2658 = vunpack.c.h.b16 %v465
    %v2659 = vunpack.c.l.b16 %v466
    %v2660 = vunpack.c.h.b16 %v466
    %v2661 = vunpack.c.l.b16 %v467
    %v2662 = vunpack.c.h.b16 %v467
    %v2663 = vunpack.c.l.b16 %v468
    %v2664 = vunpack.c.h.b16 %v468
    %v2665 = vunpack.c.l.b16 %v469
    %v2666 = vunpack.c.h.b16 %v469
    %v2667 = vunpack.c.l.b16 %v470
    %v2668 = vunpack.c.h.b16 %v470
    %v2669 = vunpack.c.l.b16 %v471
    %v2670 = vunpack.c.h.b16 %v471
    %v2671 = vunpack.c.l.b16 %v472
    %v2672 = vunpack.c.h.b16 %v472
    %v2673 = vunpack.c.l.b16 %v473
    %v2674 = vunpack.c.h.b16 %v473
    %v2675 = vunpack.c.l.b16 %v474
    %v2676 = vunpack.c.h.b16 %v474
    %v2677 = vunpack.c.l.b16 %v475
    %v2678 = vunpack.c.h.b16 %v475
    %v2679 = vunpack.c.l.b16 %v476
    %v2680 = vunpack.c.h.b16 %v476
    %v2681 = vunpack.c.l.b16 %v477
    %v2682 = vunpack.c.h.b16 %v477
    %v2683 = vunpack.c.l.b16 %v478
    %v2684 = vunpack.c.h.b16 %v478
    %v2685 = vunpack.c.l.b16 %v479
    %v2686 = vunpack.c.h.b16 %v479
    %v2687 = vunpack.c.l.b16 %v480
    %v2688 = vunpack.c.h.b16 %v480
    %v2689 = vunpack.c.l.b16 %v481
    %v2690 = vunpack.c.h.b16 %v481
    %v2691 = vunpack.c.l.b16 %v482
    %v2692 = vunpack.c.h.b16 %v482
    %v2693 = vunpack.c.l.b16 %v483
    %v2694 = vunpack.c.h.b16 %v483
    %v2695 = vunpack.c.l.b16 %v484
    %v2696 = vunpack.c.h.b16 %v484
    %v2697 = vunpack.c.l.b16 %v485
    %v2698 = vunpack.c.h.b16 %v485
    %v2699 = vunpack.c.l.b16 %v486
    %v2700 = vunpack.c.h.b16 %v486
    %v2701 = vunpack.c.l.b16 %v487
    %v2702 = vunpack.c.h.b16 %v487
    %v2703 = vunpack.c.l.b16 %v488
    %v2704 = vunpack.c.h.b16 %v488
    %v2705 = vunpack.c.l.b16 %v489
    %v2706 = vunpack.c.h.b16 %v489
    %v2707 = vunpack.c.l.b16 %v490
    %v2708 = vunpack.c.h.b16 %v490
    %v2709 = vunpack.c.l.b16 %v491
    %v2710 = vunpack.c.h.b16 %v491
    %v2711 = vunpack.c.l.b16 %v492
    %v2712 = vunpack.c.h.b16 %v492
    %v2713 = vunpack.c.l.b16 %v493
    %v2714 = vunpack.c.h.b16 %v493
    %v2715 = vunpack.c.l.b16 %v494
    %v2716 = vunpack.c.h.b16 %v494
    %v2717 = vunpack.c.l.b16 %v495
    %v2718 = vunpack.c.h.b16 %v495
    %v2719 = vunpack.c.l.b16 %v496
    %v2720 = vunpack.c.h.b16 %v496
    %v2721 = vunpack.c.l.b16 %v497
    %v2722 = vunpack.c.h.b16 %v497
    %v2723 = vunpack.c.l.b16 %v498
    %v2724 = vunpack.c.h.b16 %v498
    %v2725 = vunpack.c.l.b16 %v499
    %v2726 = vunpack.c.h.b16 %v499
    %v2727 = vunpack.c.l.b16 %v500
    %v2728 = vunpack.c.h.b16 %v500
    %v2729 = vunpack.c.l.b16 %v501
    %v2730 = vunpack.c.h.b16 %v501
    %v2731 = vunpack.c.l.b16 %v502
    %v2732 = vunpack.c.h.b16 %v502
    %v2733 = vunpack.c.l.b16 %v503
    %v2734 = vunpack.c.h.b16 %v503
    %v2735 = vunpack.c.l.b16 %v504
    %v2736 = vunpack.c.h.b16 %v504
    %v2737 = vunpack.c.l.b16 %v505
    %v2738 = vunpack.c.h.b16 %v505
    %v2739 = vunpack.c.l.b16 %v506
    %v2740 = vunpack.c.h.b16 %v506
    %v2741 = vunpack.c.l.b16 %v507
    %v2742 = vunpack.c.h.b16 %v507
    %v2743 = vunpack.c.l.b16 %v508
    %v2744 = vunpack.c.h.b16 %v508
    %v2745 = vunpack.c.l.b16 %v509
    %v2746 = vunpack.c.h.b16 %v509
    %v2747 = vunpack.c.l.b16 %v510
    %v2748 = vunpack.c.h.b16 %v510
    %v2749 = vunpack.c.l.b16 %v511
    %v2750 = vunpack.c.h.b16 %v511
    %v2751 = vunpack.c.l.b16 %v512
    %v2752 = vunpack.c.h.b16 %v512
    %v2753 = vunpack.c.l.b16 %v513
    %v2754 = vunpack.c.h.b16 %v513
    %v2755 = vunpack.c.l.b16 %v514
    %v2756 = vunpack.c.h.b16 %v514
    %v2757 = vunpack.c.l.b16 %v515
    %v2758 = vunpack.c.h.b16 %v515
    %v2759 = vunpack.c.l.b16 %v516
    %v2760 = vunpack.c.h.b16 %v516
    %v2761 = vunpack.c.l.b16 %v517
    %v2762 = vunpack.c.h.b16 %v517
    %v2763 = vunpack.c.l.b16 %v518
    %v2764 = vunpack.c.h.b16 %v518
    %v2765 = vunpack.c.l.b16 %v519
    %v2766 = vunpack.c.h.b16 %v519
    %v2767 = vunpack.c.l.b16 %v520
    %v2768 = vunpack.c.h.b16 %v520
    %v2769 = vunpack.c.l.b16 %v521
    %v2770 = vunpack.c.h.b16 %v521
    %v2771 = vunpack.c.l.b16 %v522
    %v2772 = vunpack.c.h.b16 %v522
    %v2773 = vunpack.c.l.b16 %v523
    %v2774 = vunpack.c.h.b16 %v523
    %v2775 = vunpack.c.l.b16 %v524
    %v2776 = vunpack.c.h.b16 %v524
    %v2777 = vunpack.c.l.b16 %v525
    %v2778 = vunpack.c.h.b16 %v525
    %v2779 = vunpack.c.l.b16 %v526
    %v2780 = vunpack.c.h.b16 %v526
    %v2781 = vunpack.c.l.b16 %v527
    %v2782 = vunpack.c.h.b16 %v527
    %v2783 = vunpack.c.l.b16 %v528
    %v2784 = vunpack.c.h.b16 %v528
    %v2785 = vunpack.c.l.b16 %v529
    %v2786 = vunpack.c.h.b16 %v529
    %v2787 = vunpack.c.l.b16 %v530
    %v2788 = vunpack.c.h.b16 %v530
    %v2789 = vunpack.c.l.b16 %v531
    %v2790 = vunpack.c.h.b16 %v531
    %v2791 = vunpack.c.l.b16 %v532
    %v2792 = vunpack.c.h.b16 %v532
    %v2793 = vunpack.c.l.b16 %v533
    %v2794 = vunpack.c.h.b16 %v533
    %v2795 = vunpack.c.l.b16 %v534
    %v2796 = vunpack.c.h.b16 %v534
    %v2797 = vunpack.c.l.b16 %v535
    %v2798 = vunpack.c.h.b16 %v535
    %v2799 = vunpack.c.l.b16 %v536
    %v2800 = vunpack.c.h.b16 %v536
    %v2801 = vunpack.c.l.b16 %v537
    %v2802 = vunpack.c.h.b16 %v537
    %v2803 = vunpack.c.l.b16 %v538
    %v2804 = vunpack.c.h.b16 %v538
    %v2805 = vunpack.c.l.b16 %v539
    %v2806 = vunpack.c.h.b16 %v539
    %v2807 = vunpack.c.l.b16 %v540
    %v2808 = vunpack.c.h.b16 %v540
    %v2809 = vunpack.c.l.b16 %v541
    %v2810 = vunpack.c.h.b16 %v541
    %v2811 = vunpack.c.l.b16 %v542
    %v2812 = vunpack.c.h.b16 %v542
    %v2813 = vunpack.c.l.b16 %v543
    %v2814 = vunpack.c.h.b16 %v543
    %v2815 = vunpack.c.l.b16 %v544
    %v2816 = vunpack.c.h.b16 %v544
    %v2817 = vunpack.c.l.b16 %v545
    %v2818 = vunpack.c.h.b16 %v545
    %v2819 = vunpack.c.l.b16 %v546
    %v2820 = vunpack.c.h.b16 %v546
    %v2821 = vunpack.c.l.b16 %v547
    %v2822 = vunpack.c.h.b16 %v547
    %v2823 = vunpack.c.l.b16 %v548
    %v2824 = vunpack.c.h.b16 %v548
    %v2825 = vunpack.c.l.b16 %v549
    %v2826 = vunpack.c.h.b16 %v549
    %v2827 = vunpack.c.l.b16 %v550
    %v2828 = vunpack.c.h.b16 %v550
    %v2829 = vunpack.c.l.b16 %v551
    %v2830 = vunpack.c.h.b16 %v551
    %v2831 = vunpack.c.l.b16 %v552
    %v2832 = vunpack.c.h.b16 %v552
    %v2833 = vunpack.c.l.b16 %v553
    %v2834 = vunpack.c.h.b16 %v553
    %v2835 = vunpack.c.l.b16 %v554
    %v2836 = vunpack.c.h.b16 %v554
    %v2837 = vunpack.c.l.b16 %v555
    %v2838 = vunpack.c.h.b16 %v555
    %v2839 = vunpack.c.l.b16 %v556
    %v2840 = vunpack.c.h.b16 %v556
    %v2841 = vunpack.c.l.b16 %v557
    %v2842 = vunpack.c.h.b16 %v557
    %v2843 = vunpack.c.l.b16 %v558
    %v2844 = vunpack.c.h.b16 %v558
    %v2845 = vunpack.c.l.b16 %v559
    %v2846 = vunpack.c.h.b16 %v559
    %v2847 = vunpack.c.l.b16 %v560
    %v2848 = vunpack.c.h.b16 %v560
    %v2849 = vunpack.c.l.b16 %v561
    %v2850 = vunpack.c.h.b16 %v561
    %v2851 = vunpack.c.l.b16 %v562
    %v2852 = vunpack.c.h.b16 %v562
    %v2853 = vunpack.c.l.b16 %v563
    %v2854 = vunpack.c.h.b16 %v563
    %v2855 = vunpack.c.l.b16 %v564
    %v2856 = vunpack.c.h.b16 %v564
    %v2857 = vunpack.c.l.b16 %v565
    %v2858 = vunpack.c.h.b16 %v565
    %v2859 = vunpack.c.l.b16 %v566
    %v2860 = vunpack.c.h.b16 %v566
    %v2861 = vunpack.c.l.b16 %v567
    %v2862 = vunpack.c.h.b16 %v567
    %v2863 = vunpack.c.l.b16 %v568
    %v2864 = vunpack.c.h.b16 %v568
    %v2865 = vunpack.c.l.b16 %v569
    %v2866 = vunpack.c.h.b16 %v569
    %v2867 = vunpack.c.l.b16 %v570
    %v2868 = vunpack.c.h.b16 %v570
    %v2869 = vunpack.c.l.b16 %v571
    %v2870 = vunpack.c.h.b16 %v571
    %v2871 = vunpack.c.l.b16 %v572
    %v2872 = vunpack.c.h.b16 %v572
    %v2873 = vunpack.c.l.b16 %v573
    %v2874 = vunpack.c.h.b16 %v573
    %v2875 = vunpack.c.l.b16 %v574
    %v2876 = vunpack.c.h.b16 %v574
    %v2877 = vunpack.c.l.b16 %v575
    %v2878 = vunpack.c.h.b16 %v575
    %v2879 = vunpack.c.l.b16 %v576
    %v2880 = vunpack.c.h.b16 %v576
    %v2881 = vunpack.c.l.b16 %v577
    %v2882 = vunpack.c.h.b16 %v577
    %v2883 = vunpack.c.l.b16 %v578
    %v2884 = vunpack.c.h.b16 %v578
    %v2885 = vunpack.c.l.b16 %v579
    %v2886 = vunpack.c.h.b16 %v579
    %v2887 = vunpack.c.l.b16 %v580
    %v2888 = vunpack.c.h.b16 %v580
    %v2889 = vunpack.c.l.b16 %v581
    %v2890 = vunpack.c.h.b16 %v581
    %v2891 = vunpack.c.l.b16 %v582
    %v2892 = vunpack.c.h.b16 %v582
    %v2893 = vunpack.c.l.b16 %v583
    %v2894 = vunpack.c.h.b16 %v583
    %v2895 = vunpack.c.l.b16 %v584
    %v2896 = vunpack.c.h.b16 %v584
    %v2897 = vunpack.c.l.b16 %v585
    %v2898 = vunpack.c.h.b16 %v585
    %v2899 = vunpack.c.l.b16 %v586
    %v2900 = vunpack.c.h.b16 %v586
    %v2901 = vunpack.c.l.b16 %v587
    %v2902 = vunpack.c.h.b16 %v587
    %v2903 = vunpack.c.l.b16 %v588
    %v2904 = vunpack.c.h.b16 %v588
    %v2905 = vunpack.c.l.b16 %v589
    %v2906 = vunpack.c.h.b16 %v589
    %v2907 = vunpack.c.l.b16 %v590
    %v2908 = vunpack.c.h.b16 %v590
    %v2909 = vunpack.c.l.b16 %v591
    %v2910 = vunpack.c.h.b16 %v591
    %v2911 = vunpack.c.l.b16 %v592
    %v2912 = vunpack.c.h.b16 %v592
    %v2913 = vunpack.c.l.b16 %v593
    %v2914 = vunpack.c.h.b16 %v593
    %v2915 = vunpack.c.l.b16 %v594
    %v2916 = vunpack.c.h.b16 %v594
    %v2917 = vunpack.c.l.b16 %v595
    %v2918 = vunpack.c.h.b16 %v595
    %v2919 = vunpack.c.l.b16 %v596
    %v2920 = vunpack.c.h.b16 %v596
    %v2921 = vunpack.c.l.b16 %v597
    %v2922 = vunpack.c.h.b16 %v597
    %v2923 = vunpack.c.l.b16 %v598
    %v2924 = vunpack.c.h.b16 %v598
    %v2925 = vunpack.c.l.b16 %v599
    %v2926 = vunpack.c.h.b16 %v599
    %v2927 = vunpack.c.l.b16 %v600
    %v2928 = vunpack.c.h.b16 %v600
    %v2929 = vunpack.c.l.b16 %v601
    %v2930 = vunpack.c.h.b16 %v601
    %v2931 = vunpack.c.l.b16 %v602
    %v2932 = vunpack.c.h.b16 %v602
    %v2933 = vunpack.c.l.b16 %v603
    %v2934 = vunpack.c.h.b16 %v603
    %v2935 = vunpack.c.l.b16 %v604
    %v2936 = vunpack.c.h.b16 %v604
    %v2937 = vunpack.c.l.b16 %v605
    %v2938 = vunpack.c.h.b16 %v605
    %v2939 = vunpack.c.l.b16 %v606
    %v2940 = vunpack.c.h.b16 %v606
    %v2941 = vunpack.c.l.b16 %v607
    %v2942 = vunpack.c.h.b16 %v607
    %v2943 = vunpack.c.l.b16 %v608
    %v2944 = vunpack.c.h.b16 %v608
    %v2945 = vunpack.c.l.b16 %v609
    %v2946 = vunpack.c.h.b16 %v609
    %v2947 = vunpack.c.l.b16 %v610
    %v2948 = vunpack.c.h.b16 %v610
    %v2949 = vunpack.c.l.b16 %v611
    %v2950 = vunpack.c.h.b16 %v611
    %v2951 = vunpack.c.l.b16 %v612
    %v2952 = vunpack.c.h.b16 %v612
    %v2953 = vunpack.c.l.b16 %v613
    %v2954 = vunpack.c.h.b16 %v613
    %v2955 = vunpack.c.l.b16 %v614
    %v2956 = vunpack.c.h.b16 %v614
    %v2957 = vunpack.c.l.b16 %v615
    %v2958 = vunpack.c.h.b16 %v615
    %v2959 = vunpack.c.l.b16 %v616
    %v2960 = vunpack.c.h.b16 %v616
    %v2961 = vunpack.c.l.b16 %v617
    %v2962 = vunpack.c.h.b16 %v617
    %v2963 = vunpack.c.l.b16 %v618
    %v2964 = vunpack.c.h.b16 %v618
    %v2965 = vunpack.c.l.b16 %v619
    %v2966 = vunpack.c.h.b16 %v619
    %v2967 = vunpack.c.l.b16 %v620
    %v2968 = vunpack.c.h.b16 %v620
    %v2969 = vunpack.c.l.b16 %v621
    %v2970 = vunpack.c.h.b16 %v621
    %v2971 = vunpack.c.l.b16 %v622
    %v2972 = vunpack.c.h.b16 %v622
    %v2973 = vunpack.c.l.b16 %v623
    %v2974 = vunpack.c.h.b16 %v623
    %v2975 = vunpack.c.l.b16 %v624
    %v2976 = vunpack.c.h.b16 %v624
    %v2977 = vunpack.c.l.b16 %v625
    %v2978 = vunpack.c.h.b16 %v625
    %v2979 = vunpack.c.l.b16 %v626
    %v2980 = vunpack.c.h.b16 %v626
    %v2981 = vunpack.c.l.b16 %v627
    %v2982 = vunpack.c.h.b16 %v627
    %v2983 = vunpack.c.l.b16 %v628
    %v2984 = vunpack.c.h.b16 %v628
    %v2985 = vunpack.c.l.b16 %v629
    %v2986 = vunpack.c.h.b16 %v629
    %v2987 = vunpack.c.l.b16 %v630
    %v2988 = vunpack.c.h.b16 %v630
    %v2989 = vunpack.c.l.b16 %v631
    %v2990 = vunpack.c.h.b16 %v631
    %v2991 = vunpack.c.l.b16 %v632
    %v2992 = vunpack.c.h.b16 %v632
    %v2993 = vunpack.c.l.b16 %v633
    %v2994 = vunpack.c.h.b16 %v633
    %v2995 = vunpack.c.l.b16 %v634
    %v2996 = vunpack.c.h.b16 %v634
    %v2997 = vunpack.c.l.b16 %v635
    %v2998 = vunpack.c.h.b16 %v635
    %v2999 = vunpack.c.l.b16 %v636
    %v3000 = vunpack.c.h.b16 %v636
    %v3001 = vunpack.c.l.b16 %v637
    %v3002 = vunpack.c.h.b16 %v637
    %v3003 = vunpack.c.l.b16 %v638
    %v3004 = vunpack.c.h.b16 %v638
    %v3005 = vunpack.c.l.b16 %v639
    %v3006 = vunpack.c.h.b16 %v639
    %v3007 = vunpack.c.l.b16 %v640
    %v3008 = vunpack.c.h.b16 %v640
    %v3009 = vunpack.c.l.b16 %v641
    %v3010 = vunpack.c.h.b16 %v641
    %v3011 = vunpack.c.l.b16 %v642
    %v3012 = vunpack.c.h.b16 %v642
    %v3013 = vunpack.c.l.b16 %v643
    %v3014 = vunpack.c.h.b16 %v643
    %v3015 = vunpack.c.l.b16 %v644
    %v3016 = vunpack.c.h.b16 %v644
    %v3017 = vunpack.c.l.b16 %v645
    %v3018 = vunpack.c.h.b16 %v645
    %v3019 = vunpack.c.l.b16 %v646
    %v3020 = vunpack.c.h.b16 %v646
    %v3021 = vunpack.c.l.b16 %v647
    %v3022 = vunpack.c.h.b16 %v647
    %v3023 = vunpack.c.l.b16 %v648
    %v3024 = vunpack.c.h.b16 %v648
    %v3025 = vunpack.c.l.b16 %v649
    %v3026 = vunpack.c.h.b16 %v649
    %v3027 = vunpack.c.l.b16 %v650
    %v3028 = vunpack.c.h.b16 %v650
    %v3029 = vunpack.c.l.b16 %v651
    %v3030 = vunpack.c.h.b16 %v651
    %v3031 = vunpack.c.l.b16 %v652
    %v3032 = vunpack.c.h.b16 %v652
    %v3033 = vunpack.c.l.b16 %v653
    %v3034 = vunpack.c.h.b16 %v653
    %v3035 = vunpack.c.l.b16 %v654
    %v3036 = vunpack.c.h.b16 %v654
    %v3037 = vunpack.c.l.b16 %v655
    %v3038 = vunpack.c.h.b16 %v655
    %v3039 = vunpack.c.l.b16 %v656
    %v3040 = vunpack.c.h.b16 %v656
    %v3041 = vunpack.c.l.b16 %v657
    %v3042 = vunpack.c.h.b16 %v657
    %v3043 = vunpack.c.l.b16 %v658
    %v3044 = vunpack.c.h.b16 %v658
    %v3045 = vunpack.c.l.b16 %v659
    %v3046 = vunpack.c.h.b16 %v659
    %v3047 = vunpack.c.l.b16 %v660
    %v3048 = vunpack.c.h.b16 %v660
    %v3049 = vunpack.c.l.b16 %v661
    %v3050 = vunpack.c.h.b16 %v661
    %v3051 = vunpack.c.l.b16 %v662
    %v3052 = vunpack.c.h.b16 %v662
    %v3053 = vunpack.c.l.b16 %v663
    %v3054 = vunpack.c.h.b16 %v663
    %v3055 = vunpack.c.l.b16 %v664
    %v3056 = vunpack.c.h.b16 %v664
    %v3057 = vunpack.c.l.b16 %v665
    %v3058 = vunpack.c.h.b16 %v665
    %v3059 = vunpack.c.l.b16 %v666
    %v3060 = vunpack.c.h.b16 %v666
    %v3061 = vunpack.c.l.b16 %v667
    %v3062 = vunpack.c.h.b16 %v667
    %v3063 = vunpack.c.l.b16 %v668
    %v3064 = vunpack.c.h.b16 %v668
    %v3065 = vunpack.c.l.b16 %v669
    %v3066 = vunpack.c.h.b16 %v669
    %v3067 = vunpack.c.l.b16 %v670
    %v3068 = vunpack.c.h.b16 %v670
    %v3069 = vunpack.c.l.b16 %v671
    %v3070 = vunpack.c.h.b16 %v671
    %v3071 = vunpack.c.l.b16 %v672
    %v3072 = vunpack.c.h.b16 %v672
    %v3073 = vunpack.c.l.b16 %v673
    %v3074 = vunpack.c.h.b16 %v673
    %v3075 = vunpack.c.l.b16 %v674
    %v3076 = vunpack.c.h.b16 %v674
    %v3077 = vunpack.c.l.b16 %v675
    %v3078 = vunpack.c.h.b16 %v675
    %v3079 = vunpack.c.l.b16 %v676
    %v3080 = vunpack.c.h.b16 %v676
    %v3081 = vunpack.c.l.b16 %v677
    %v3082 = vunpack.c.h.b16 %v677
    %v3083 = vunpack.c.l.b16 %v678
    %v3084 = vunpack.c.h.b16 %v678
    %v3085 = vunpack.c.l.b16 %v679
    %v3086 = vunpack.c.h.b16 %v679
    %v3087 = vunpack.c.l.b16 %v680
    %v3088 = vunpack.c.h.b16 %v680
    %v3089 = vunpack.c.l.b16 %v681
    %v3090 = vunpack.c.h.b16 %v681
    %v3091 = vunpack.c.l.b16 %v682
    %v3092 = vunpack.c.h.b16 %v682
    %v3093 = vunpack.c.l.b16 %v683
    %v3094 = vunpack.c.h.b16 %v683
    %v3095 = vunpack.c.l.b16 %v684
    %v3096 = vunpack.c.h.b16 %v684
    %v3097 = vunpack.c.l.b16 %v685
    %v3098 = vunpack.c.h.b16 %v685
    %v3099 = vunpack.c.l.b16 %v686
    %v3100 = vunpack.c.h.b16 %v686
    %v3101 = vunpack.c.l.b16 %v687
    %v3102 = vunpack.c.h.b16 %v687
    %v3103 = vunpack.c.l.b16 %v688
    %v3104 = vunpack.c.h.b16 %v688
    %v3105 = vunpack.c.l.b16 %v689
    %v3106 = vunpack.c.h.b16 %v689
    %v3107 = vunpack.c.l.b16 %v690
    %v3108 = vunpack.c.h.b16 %v690
    %v3109 = vunpack.c.l.b16 %v691
    %v3110 = vunpack.c.h.b16 %v691
    %v3111 = vunpack.c.l.b16 %v692
    %v3112 = vunpack.c.h.b16 %v692
    %v3113 = vunpack.c.l.b16 %v693
    %v3114 = vunpack.c.h.b16 %v693
    %v3115 = vunpack.c.l.b16 %v694
    %v3116 = vunpack.c.h.b16 %v694
    %v3117 = vunpack.c.l.b16 %v695
    %v3118 = vunpack.c.h.b16 %v695
    %v3119 = vunpack.c.l.b16 %v696
    %v3120 = vunpack.c.h.b16 %v696
    %v3121 = vunpack.c.l.b16 %v697
    %v3122 = vunpack.c.h.b16 %v697
    %v3123 = vunpack.c.l.b16 %v698
    %v3124 = vunpack.c.h.b16 %v698
    %v3125 = vunpack.c.l.b16 %v699
    %v3126 = vunpack.c.h.b16 %v699
    %v3127 = vunpack.c.l.b16 %v700
    %v3128 = vunpack.c.h.b16 %v700
    %v3129 = vunpack.c.l.b16 %v701
    %v3130 = vunpack.c.h.b16 %v701
    %v3131 = vunpack.c.l.b16 %v702
    %v3132 = vunpack.c.h.b16 %v702
    %v3133 = vunpack.c.l.b16 %v703
    %v3134 = vunpack.c.h.b16 %v703
    %v3135 = vunpack.c.l.b16 %v704
    %v3136 = vunpack.c.h.b16 %v704
    %v3137 = vunpack.c.l.b16 %v705
    %v3138 = vunpack.c.h.b16 %v705
    %v3139 = vunpack.c.l.b16 %v706
    %v3140 = vunpack.c.h.b16 %v706
    %v3141 = vunpack.c.l.b16 %v707
    %v3142 = vunpack.c.h.b16 %v707
    %v3143 = vunpack.c.l.b16 %v708
    %v3144 = vunpack.c.h.b16 %v708
    %v3145 = vunpack.c.l.b16 %v709
    %v3146 = vunpack.c.h.b16 %v709
    %v3147 = vunpack.c.l.b16 %v710
    %v3148 = vunpack.c.h.b16 %v710
    %v3149 = vunpack.c.l.b16 %v711
    %v3150 = vunpack.c.h.b16 %v711
    %v3151 = vunpack.c.l.b16 %v712
    %v3152 = vunpack.c.h.b16 %v712
    %v3153 = vunpack.c.l.b16 %v713
    %v3154 = vunpack.c.h.b16 %v713
    %v3155 = vunpack.c.l.b16 %v714
    %v3156 = vunpack.c.h.b16 %v714
    %v3157 = vunpack.c.l.b16 %v715
    %v3158 = vunpack.c.h.b16 %v715
    %v3159 = vunpack.c.l.b16 %v716
    %v3160 = vunpack.c.h.b16 %v716
    %v3161 = vunpack.c.l.b16 %v717
    %v3162 = vunpack.c.h.b16 %v717
    %v3163 = vunpack.c.l.b16 %v718
    %v3164 = vunpack.c.h.b16 %v718
    %v3165 = vunpack.c.l.b16 %v719
    %v3166 = vunpack.c.h.b16 %v719
    %v3167 = vunpack.c.l.b16 %v720
    %v3168 = vunpack.c.h.b16 %v720
    %v3169 = vunpack.c.l.b16 %v721
    %v3170 = vunpack.c.h.b16 %v721
    %v3171 = vunpack.c.l.b16 %v722
    %v3172 = vunpack.c.h.b16 %v722
    %v3173 = vunpack.c.l.b16 %v723
    %v3174 = vunpack.c.h.b16 %v723
    %v3175 = vunpack.c.l.b16 %v724
    %v3176 = vunpack.c.h.b16 %v724
    %v3177 = vunpack.c.l.b16 %v725
    %v3178 = vunpack.c.h.b16 %v725
    %v3179 = vunpack.c.l.b16 %v726
    %v3180 = vunpack.c.h.b16 %v726
    %v3181 = vunpack.c.l.b16 %v727
    %v3182 = vunpack.c.h.b16 %v727
    %v3183 = vunpack.c.l.b16 %v728
    %v3184 = vunpack.c.h.b16 %v728
    %v3185 = vunpack.c.l.b16 %v729
    %v3186 = vunpack.c.h.b16 %v729
    %v3187 = vunpack.c.l.b16 %v730
    %v3188 = vunpack.c.h.b16 %v730
    %v3189 = vunpack.c.l.b16 %v731
    %v3190 = vunpack.c.h.b16 %v731
    %v3191 = vunpack.c.l.b16 %v732
    %v3192 = vunpack.c.h.b16 %v732
    %v3193 = vunpack.c.l.b16 %v733
    %v3194 = vunpack.c.h.b16 %v733
    %v3195 = vunpack.c.l.b16 %v734
    %v3196 = vunpack.c.h.b16 %v734
    %v3197 = vunpack.c.l.b16 %v735
    %v3198 = vunpack.c.h.b16 %v735
    %v3199 = vunpack.c.l.b16 %v736
    %v3200 = vunpack.c.h.b16 %v736
    %v3201 = vunpack.c.l.b16 %v737
    %v3202 = vunpack.c.h.b16 %v737
    %v3203 = vunpack.c.l.b16 %v738
    %v3204 = vunpack.c.h.b16 %v738
    %v3205 = vunpack.c.l.b16 %v739
    %v3206 = vunpack.c.h.b16 %v739
    %v3207 = vunpack.c.l.b16 %v740
    %v3208 = vunpack.c.h.b16 %v740
    %v3209 = vunpack.c.l.b16 %v741
    %v3210 = vunpack.c.h.b16 %v741
    %v3211 = vunpack.c.l.b16 %v742
    %v3212 = vunpack.c.h.b16 %v742
    %v3213 = vunpack.c.l.b16 %v743
    %v3214 = vunpack.c.h.b16 %v743
    %v3215 = vunpack.c.l.b16 %v744
    %v3216 = vunpack.c.h.b16 %v744
    %v3217 = vunpack.c.l.b16 %v745
    %v3218 = vunpack.c.h.b16 %v745
    %v3219 = vunpack.c.l.b16 %v746
    %v3220 = vunpack.c.h.b16 %v746
    %v3221 = vunpack.c.l.b16 %v747
    %v3222 = vunpack.c.h.b16 %v747
    %v3223 = vunpack.c.l.b16 %v748
    %v3224 = vunpack.c.h.b16 %v748
    %v3225 = vunpack.c.l.b16 %v749
    %v3226 = vunpack.c.h.b16 %v749
    %v3227 = vunpack.c.l.b16 %v750
    %v3228 = vunpack.c.h.b16 %v750
    %v3229 = vunpack.c.l.b16 %v751
    %v3230 = vunpack.c.h.b16 %v751
    %v3231 = vunpack.c.l.b16 %v752
    %v3232 = vunpack.c.h.b16 %v752
    %v3233 = vunpack.c.l.b16 %v753
    %v3234 = vunpack.c.h.b16 %v753
    %v3235 = vunpack.c.l.b16 %v754
    %v3236 = vunpack.c.h.b16 %v754
    %v3237 = vunpack.c.l.b16 %v755
    %v3238 = vunpack.c.h.b16 %v755
    %v3239 = vunpack.c.l.b16 %v756
    %v3240 = vunpack.c.h.b16 %v756
    %v3241 = vunpack.c.l.b16 %v757
    %v3242 = vunpack.c.h.b16 %v757
    %v3243 = vunpack.c.l.b16 %v758
    %v3244 = vunpack.c.h.b16 %v758
    %v3245 = vunpack.c.l.b16 %v759
    %v3246 = vunpack.c.h.b16 %v759
    %v3247 = vunpack.c.l.b16 %v760
    %v3248 = vunpack.c.h.b16 %v760
    %v3249 = vunpack.c.l.b16 %v761
    %v3250 = vunpack.c.h.b16 %v761
    %v3251 = vunpack.c.l.b16 %v762
    %v3252 = vunpack.c.h.b16 %v762
    %v3253 = vunpack.c.l.b16 %v763
    %v3254 = vunpack.c.h.b16 %v763
    %v3255 = vunpack.c.l.b16 %v764
    %v3256 = vunpack.c.h.b16 %v764
    %v3257 = vunpack.c.l.b16 %v765
    %v3258 = vunpack.c.h.b16 %v765
    %v3259 = vunpack.c.l.b16 %v766
    %v3260 = vunpack.c.h.b16 %v766
    %v3261 = vunpack.c.l.b16 %v767
    %v3262 = vunpack.c.h.b16 %v767
    %v3263 = vunpack.c.l.b16 %v768
    %v3264 = vunpack.c.h.b16 %v768
    %v3265 = vunpack.c.l.b16 %v769
    %v3266 = vunpack.c.h.b16 %v769
    %v3267 = vunpack.c.l.b16 %v770
    %v3268 = vunpack.c.h.b16 %v770
    %v3269 = vunpack.c.l.b16 %v771
    %v3270 = vunpack.c.h.b16 %v771
    %v3271 = vunpack.c.l.b16 %v772
    %v3272 = vunpack.c.h.b16 %v772
    %v3273 = vunpack.c.l.b16 %v773
    %v3274 = vunpack.c.h.b16 %v773
    %v3275 = vunpack.c.l.b16 %v774
    %v3276 = vunpack.c.h.b16 %v774
    %v3277 = vunpack.c.l.b16 %v775
    %v3278 = vunpack.c.h.b16 %v775
    %v3279 = vunpack.c.l.b16 %v776
    %v3280 = vunpack.c.h.b16 %v776
    %v3281 = vunpack.c.l.b16 %v777
    %v3282 = vunpack.c.h.b16 %v777
    %v3283 = vunpack.c.l.b16 %v778
    %v3284 = vunpack.c.h.b16 %v778
    %v3285 = vunpack.c.l.b16 %v779
    %v3286 = vunpack.c.h.b16 %v779
    %v3287 = vunpack.c.l.b16 %v780
    %v3288 = vunpack.c.h.b16 %v780
    %v3289 = vunpack.c.l.b16 %v781
    %v3290 = vunpack.c.h.b16 %v781
    %v3291 = vunpack.c.l.b16 %v782
    %v3292 = vunpack.c.h.b16 %v782
    %v3293 = vunpack.c.l.b16 %v783
    %v3294 = vunpack.c.h.b16 %v783
    %v3295 = vunpack.c.l.b16 %v784
    %v3296 = vunpack.c.h.b16 %v784
    %v3297 = vunpack.c.l.b16 %v785
    %v3298 = vunpack.c.h.b16 %v785
    %v3299 = vunpack.c.l.b16 %v786
    %v3300 = vunpack.c.h.b16 %v786
    %v3301 = vunpack.c.l.b16 %v787
    %v3302 = vunpack.c.h.b16 %v787
    %v3303 = vunpack.c.l.b16 %v788
    %v3304 = vunpack.c.h.b16 %v788
    %v3305 = vunpack.c.l.b16 %v789
    %v3306 = vunpack.c.h.b16 %v789
    %v3307 = vunpack.c.l.b16 %v790
    %v3308 = vunpack.c.h.b16 %v790
    %v3309 = vunpack.c.l.b16 %v791
    %v3310 = vunpack.c.h.b16 %v791
    %v3311 = vunpack.c.l.b16 %v792
    %v3312 = vunpack.c.h.b16 %v792
    %v3313 = vunpack.c.l.b16 %v793
    %v3314 = vunpack.c.h.b16 %v793
    %v3315 = vunpack.c.l.b16 %v794
    %v3316 = vunpack.c.h.b16 %v794
    %v3317 = vunpack.c.l.b16 %v795
    %v3318 = vunpack.c.h.b16 %v795
    %v3319 = vunpack.c.l.b16 %v796
    %v3320 = vunpack.c.h.b16 %v796
    %v3321 = vunpack.c.l.b16 %v797
    %v3322 = vunpack.c.h.b16 %v797
    %v3323 = vunpack.c.l.b16 %v798
    %v3324 = vunpack.c.h.b16 %v798
    %v3325 = vunpack.c.l.b16 %v799
    %v3326 = vunpack.c.h.b16 %v799
    %v3327 = vunpack.c.l.b16 %v800
    %v3328 = vunpack.c.h.b16 %v800
    %v3329 = vunpack.c.l.b16 %v801
    %v3330 = vunpack.c.h.b16 %v801
    %v3331 = vunpack.c.l.b16 %v802
    %v3332 = vunpack.c.h.b16 %v802
    %v3333 = vunpack.c.l.b16 %v803
    %v3334 = vunpack.c.h.b16 %v803
    %v3335 = vunpack.c.l.b16 %v804
    %v3336 = vunpack.c.h.b16 %v804
    %v3337 = vunpack.c.l.b16 %v805
    %v3338 = vunpack.c.h.b16 %v805
    %v3339 = vunpack.c.l.b16 %v806
    %v3340 = vunpack.c.h.b16 %v806
    %v3341 = vunpack.c.l.b16 %v807
    %v3342 = vunpack.c.h.b16 %v807
    %v3343 = vunpack.c.l.b16 %v808
    %v3344 = vunpack.c.h.b16 %v808
    %v3345 = vunpack.c.l.b16 %v809
    %v3346 = vunpack.c.h.b16 %v809
    %v3347 = vunpack.c.l.b16 %v810
    %v3348 = vunpack.c.h.b16 %v810
    %v3349 = vunpack.c.l.b16 %v811
    %v3350 = vunpack.c.h.b16 %v811
    %v3351 = vunpack.c.l.b16 %v812
    %v3352 = vunpack.c.h.b16 %v812
    %v3353 = vunpack.c.l.b16 %v813
    %v3354 = vunpack.c.h.b16 %v813
    %v3355 = vunpack.c.l.b16 %v814
    %v3356 = vunpack.c.h.b16 %v814
    %v3357 = vunpack.c.l.b16 %v815
    %v3358 = vunpack.c.h.b16 %v815
    %v3359 = vunpack.c.l.b16 %v816
    %v3360 = vunpack.c.h.b16 %v816
    %v3361 = vunpack.c.l.b16 %v817
    %v3362 = vunpack.c.h.b16 %v817
    %v3363 = vunpack.c.l.b16 %v818
    %v3364 = vunpack.c.h.b16 %v818
    %v3365 = vunpack.c.l.b16 %v819
    %v3366 = vunpack.c.h.b16 %v819
    %v3367 = vunpack.c.l.b16 %v820
    %v3368 = vunpack.c.h.b16 %v820
    %v3369 = vunpack.c.l.b16 %v821
    %v3370 = vunpack.c.h.b16 %v821
    %v3371 = vunpack.c.l.b16 %v822
    %v3372 = vunpack.c.h.b16 %v822
    %v3373 = vunpack.c.l.b16 %v823
    %v3374 = vunpack.c.h.b16 %v823
    %v3375 = vunpack.c.l.b16 %v824
    %v3376 = vunpack.c.h.b16 %v824
    %v3377 = vunpack.c.l.b16 %v825
    %v3378 = vunpack.c.h.b16 %v825
    %v3379 = vunpack.c.l.b16 %v826
    %v3380 = vunpack.c.h.b16 %v826
    %v3381 = vunpack.c.l.b16 %v827
    %v3382 = vunpack.c.h.b16 %v827
    %v3383 = vunpack.c.l.b16 %v828
    %v3384 = vunpack.c.h.b16 %v828
    %v3385 = vunpack.c.l.b16 %v829
    %v3386 = vunpack.c.h.b16 %v829
    %v3387 = vunpack.c.l.b16 %v830
    %v3388 = vunpack.c.h.b16 %v830
    %v3389 = vunpack.c.l.b16 %v831
    %v3390 = vunpack.c.h.b16 %v831
    %v3391 = vunpack.c.l.b16 %v832
    %v3392 = vunpack.c.h.b16 %v832
    %v3393 = vunpack.c.l.b16 %v833
    %v3394 = vunpack.c.h.b16 %v833
    %v3395 = vunpack.c.l.b16 %v834
    %v3396 = vunpack.c.h.b16 %v834
    %v3397 = vunpack.c.l.b16 %v835
    %v3398 = vunpack.c.h.b16 %v835
    %v3399 = vunpack.c.l.b16 %v836
    %v3400 = vunpack.c.h.b16 %v836
    %v3401 = vunpack.c.l.b16 %v837
    %v3402 = vunpack.c.h.b16 %v837
    %v3403 = vunpack.c.l.b16 %v838
    %v3404 = vunpack.c.h.b16 %v838
    %v3405 = vunpack.c.l.b16 %v839
    %v3406 = vunpack.c.h.b16 %v839
    %v3407 = vunpack.c.l.b16 %v840
    %v3408 = vunpack.c.h.b16 %v840
    %v3409 = vunpack.c.l.b16 %v841
    %v3410 = vunpack.c.h.b16 %v841
    %v3411 = vunpack.c.l.b16 %v842
    %v3412 = vunpack.c.h.b16 %v842
    %v3413 = vunpack.c.l.b16 %v843
    %v3414 = vunpack.c.h.b16 %v843
    %v3415 = vunpack.c.l.b16 %v844
    %v3416 = vunpack.c.h.b16 %v844
    %v3417 = vunpack.c.l.b16 %v845
    %v3418 = vunpack.c.h.b16 %v845
    %v3419 = vunpack.c.l.b16 %v846
    %v3420 = vunpack.c.h.b16 %v846
    %v3421 = vunpack.c.l.b16 %v847
    %v3422 = vunpack.c.h.b16 %v847
    %v3423 = vunpack.c.l.b16 %v848
    %v3424 = vunpack.c.h.b16 %v848
    %v3425 = vunpack.c.l.b16 %v849
    %v3426 = vunpack.c.h.b16 %v849
    %v3427 = vunpack.c.l.b16 %v850
    %v3428 = vunpack.c.h.b16 %v850
    %v3429 = vunpack.c.l.b16 %v851
    %v3430 = vunpack.c.h.b16 %v851
    %v3431 = vunpack.c.l.b16 %v852
    %v3432 = vunpack.c.h.b16 %v852
    %v3433 = vunpack.c.l.b16 %v853
    %v3434 = vunpack.c.h.b16 %v853
    %v3435 = vunpack.c.l.b16 %v854
    %v3436 = vunpack.c.h.b16 %v854
    %v3437 = vunpack.c.l.b16 %v855
    %v3438 = vunpack.c.h.b16 %v855
    %v3439 = vunpack.c.l.b16 %v856
    %v3440 = vunpack.c.h.b16 %v856
    %v3441 = vunpack.c.l.b16 %v857
    %v3442 = vunpack.c.h.b16 %v857
    %v3443 = vunpack.c.l.b16 %v858
    %v3444 = vunpack.c.h.b16 %v858
    %v3445 = vunpack.c.l.b16 %v859
    %v3446 = vunpack.c.h.b16 %v859
    %v3447 = vunpack.c.l.b16 %v860
    %v3448 = vunpack.c.h.b16 %v860
    %v3449 = vunpack.c.l.b16 %v861
    %v3450 = vunpack.c.h.b16 %v861
    %v3451 = vunpack.c.l.b16 %v862
    %v3452 = vunpack.c.h.b16 %v862
    %v3453 = vunpack.c.l.b16 %v863
    %v3454 = vunpack.c.h.b16 %v863
    %v3455 = vunpack.c.l.b16 %v864
    %v3456 = vunpack.c.h.b16 %v864
    %v3457 = vunpack.c.l.b16 %v865
    %v3458 = vunpack.c.h.b16 %v865
    %v3459 = vunpack.c.l.b16 %v866
    %v3460 = vunpack.c.h.b16 %v866
    %v3461 = vunpack.c.l.b16 %v867
    %v3462 = vunpack.c.h.b16 %v867
    %v3463 = vunpack.c.l.b16 %v868
    %v3464 = vunpack.c.h.b16 %v868
    %v3465 = vunpack.c.l.b16 %v869
    %v3466 = vunpack.c.h.b16 %v869
    %v3467 = vunpack.c.l.b16 %v870
    %v3468 = vunpack.c.h.b16 %v870
    %v3469 = vunpack.c.l.b16 %v871
    %v3470 = vunpack.c.h.b16 %v871
    %v3471 = vunpack.c.l.b16 %v872
    %v3472 = vunpack.c.h.b16 %v872
    %v3473 = vunpack.c.l.b16 %v873
    %v3474 = vunpack.c.h.b16 %v873
    %v3475 = vunpack.c.l.b16 %v874
    %v3476 = vunpack.c.h.b16 %v874
    %v3477 = vunpack.c.l.b16 %v875
    %v3478 = vunpack.c.h.b16 %v875
    %v3479 = vunpack.c.l.b16 %v876
    %v3480 = vunpack.c.h.b16 %v876
    %v3481 = vunpack.c.l.b16 %v877
    %v3482 = vunpack.c.h.b16 %v877
    %v3483 = vunpack.c.l.b16 %v878
    %v3484 = vunpack.c.h.b16 %v878
    %v3485 = vunpack.c.l.b16 %v879
    %v3486 = vunpack.c.h.b16 %v879
    %v3487 = vunpack.c.l.b16 %v880
    %v3488 = vunpack.c.h.b16 %v880
    %v3489 = vunpack.c.l.b16 %v881
    %v3490 = vunpack.c.h.b16 %v881
    %v3491 = vunpack.c.l.b16 %v882
    %v3492 = vunpack.c.h.b16 %v882
    %v3493 = vunpack.c.l.b16 %v883
    %v3494 = vunpack.c.h.b16 %v883
    %v3495 = vunpack.c.l.b16 %v884
    %v3496 = vunpack.c.h.b16 %v884
    %v3497 = vunpack.c.l.b16 %v885
    %v3498 = vunpack.c.h.b16 %v885
    %v3499 = vunpack.c.l.b16 %v886
    %v3500 = vunpack.c.h.b16 %v886
    %v3501 = vunpack.c.l.b16 %v887
    %v3502 = vunpack.c.h.b16 %v887
    %v3503 = vunpack.c.l.b16 %v888
    %v3504 = vunpack.c.h.b16 %v888
    %v3505 = vunpack.c.l.b16 %v889
    %v3506 = vunpack.c.h.b16 %v889
    %v3507 = vunpack.c.l.b16 %v890
    %v3508 = vunpack.c.h.b16 %v890
    %v3509 = vunpack.c.l.b16 %v891
    %v3510 = vunpack.c.h.b16 %v891
    %v3511 = vunpack.c.l.b16 %v892
    %v3512 = vunpack.c.h.b16 %v892
    %v3513 = vunpack.c.l.b16 %v893
    %v3514 = vunpack.c.h.b16 %v893
    %v3515 = vunpack.c.l.b16 %v894
    %v3516 = vunpack.c.h.b16 %v894
    %v3517 = vunpack.c.l.b16 %v895
    %v3518 = vunpack.c.h.b16 %v895
    %v3519 = vunpack.c.l.b16 %v896
    %v3520 = vunpack.c.h.b16 %v896
    %v3521 = vunpack.c.l.b16 %v897
    %v3522 = vunpack.c.h.b16 %v897
    %v3523 = vunpack.c.l.b16 %v898
    %v3524 = vunpack.c.h.b16 %v898
    %v3525 = vunpack.c.l.b16 %v899
    %v3526 = vunpack.c.h.b16 %v899
    %v3527 = vunpack.c.l.b16 %v900
    %v3528 = vunpack.c.h.b16 %v900
    %v3529 = vunpack.c.l.b16 %v901
    %v3530 = vunpack.c.h.b16 %v901
    %v3531 = vunpack.c.l.b16 %v902
    %v3532 = vunpack.c.h.b16 %v902
    %v3533 = vunpack.c.l.b16 %v903
    %v3534 = vunpack.c.h.b16 %v903
    %v3535 = vunpack.c.l.b16 %v904
    %v3536 = vunpack.c.h.b16 %v904
    %v3537 = vunpack.c.l.b16 %v905
    %v3538 = vunpack.c.h.b16 %v905
    %v3539 = vunpack.c.l.b16 %v906
    %v3540 = vunpack.c.h.b16 %v906
    %v3541 = vunpack.c.l.b16 %v907
    %v3542 = vunpack.c.h.b16 %v907
    %v3543 = vunpack.c.l.b16 %v908
    %v3544 = vunpack.c.h.b16 %v908
    %v3545 = vunpack.c.l.b16 %v909
    %v3546 = vunpack.c.h.b16 %v909
    %v3547 = vunpack.c.l.b16 %v910
    %v3548 = vunpack.c.h.b16 %v910
    %v3549 = vunpack.c.l.b16 %v911
    %v3550 = vunpack.c.h.b16 %v911
    %v3551 = vunpack.c.l.b16 %v912
    %v3552 = vunpack.c.h.b16 %v912
    %v3553 = vunpack.c.l.b16 %v913
    %v3554 = vunpack.c.h.b16 %v913
    %v3555 = vunpack.c.l.b16 %v914
    %v3556 = vunpack.c.h.b16 %v914
    %v3557 = vunpack.c.l.b16 %v915
    %v3558 = vunpack.c.h.b16 %v915
    %v3559 = vunpack.c.l.b16 %v916
    %v3560 = vunpack.c.h.b16 %v916
    %v3561 = vunpack.c.l.b16 %v917
    %v3562 = vunpack.c.h.b16 %v917
    %v3563 = vunpack.c.l.b16 %v918
    %v3564 = vunpack.c.h.b16 %v918
    %v3565 = vunpack.c.l.b16 %v919
    %v3566 = vunpack.c.h.b16 %v919
    %v3567 = vunpack.c.l.b16 %v920
    %v3568 = vunpack.c.h.b16 %v920
    %v3569 = vunpack.c.l.b16 %v921
    %v3570 = vunpack.c.h.b16 %v921
    %v3571 = vunpack.c.l.b16 %v922
    %v3572 = vunpack.c.h.b16 %v922
    %v3573 = vunpack.c.l.b16 %v923
    %v3574 = vunpack.c.h.b16 %v923
    %v3575 = vunpack.c.l.b16 %v924
    %v3576 = vunpack.c.h.b16 %v924
    %v3577 = vunpack.c.l.b16 %v925
    %v3578 = vunpack.c.h.b16 %v925
    %v3579 = vunpack.c.l.b16 %v926
    %v3580 = vunpack.c.h.b16 %v926
    %v3581 = vunpack.c.l.b16 %v927
    %v3582 = vunpack.c.h.b16 %v927
    %v3583 = vunpack.c.l.b16 %v928
    %v3584 = vunpack.c.h.b16 %v928
    %v3585 = vunpack.c.l.b16 %v929
    %v3586 = vunpack.c.h.b16 %v929
    %v3587 = vunpack.c.l.b16 %v930
    %v3588 = vunpack.c.h.b16 %v930
    %v3589 = vunpack.c.l.b16 %v931
    %v3590 = vunpack.c.h.b16 %v931
    %v3591 = vunpack.c.l.b16 %v932
    %v3592 = vunpack.c.h.b16 %v932
    %v3593 = vunpack.c.l.b16 %v933
    %v3594 = vunpack.c.h.b16 %v933
    %v3595 = vunpack.c.l.b16 %v934
    %v3596 = vunpack.c.h.b16 %v934
    %v3597 = vunpack.c.l.b16 %v935
    %v3598 = vunpack.c.h.b16 %v935
    %v3599 = vunpack.c.l.b16 %v936
    %v3600 = vunpack.c.h.b16 %v936
    %v3601 = vunpack.c.l.b16 %v937
    %v3602 = vunpack.c.h.b16 %v937
    %v3603 = vunpack.c.l.b16 %v938
    %v3604 = vunpack.c.h.b16 %v938
    %v3605 = vunpack.c.l.b16 %v939
    %v3606 = vunpack.c.h.b16 %v939
    %v3607 = vunpack.c.l.b16 %v940
    %v3608 = vunpack.c.h.b16 %v940
    %v3609 = vunpack.c.l.b16 %v941
    %v3610 = vunpack.c.h.b16 %v941
    %v3611 = vunpack.c.l.b16 %v942
    %v3612 = vunpack.c.h.b16 %v942
    %v3613 = vunpack.c.l.b16 %v943
    %v3614 = vunpack.c.h.b16 %v943
    %v3615 = vunpack.c.l.b16 %v944
    %v3616 = vunpack.c.h.b16 %v944
    %v3617 = vunpack.c.l.b16 %v945
    %v3618 = vunpack.c.h.b16 %v945
    %v3619 = vunpack.c.l.b16 %v946
    %v3620 = vunpack.c.h.b16 %v946
    %v3621 = vunpack.c.l.b16 %v947
    %v3622 = vunpack.c.h.b16 %v947
    %v3623 = vunpack.c.l.b16 %v948
    %v3624 = vunpack.c.h.b16 %v948
    %v3625 = vunpack.c.l.b16 %v949
    %v3626 = vunpack.c.h.b16 %v949
    %v3627 = vunpack.c.l.b16 %v950
    %v3628 = vunpack.c.h.b16 %v950
    %v3629 = vunpack.c.l.b16 %v951
    %v3630 = vunpack.c.h.b16 %v951
    %v3631 = vunpack.c.l.b16 %v952
    %v3632 = vunpack.c.h.b16 %v952
    %v3633 = vunpack.c.l.b16 %v953
    %v3634 = vunpack.c.h.b16 %v953
    %v3635 = vunpack.c.l.b16 %v954
    %v3636 = vunpack.c.h.b16 %v954
    %v3637 = vunpack.c.l.b16 %v955
    %v3638 = vunpack.c.h.b16 %v955
    %v3639 = vunpack.c.l.b16 %v956
    %v3640 = vunpack.c.h.b16 %v956
    %v3641 = vunpack.c.l.b16 %v957
    %v3642 = vunpack.c.h.b16 %v957
    %v3643 = vunpack.c.l.b16 %v958
    %v3644 = vunpack.c.h.b16 %v958
    %v3645 = vunpack.c.l.b16 %v959
    %v3646 = vunpack.c.h.b16 %v959
    %v3647 = vunpack.c.l.b16 %v960
    %v3648 = vunpack.c.h.b16 %v960
    %v3649 = vunpack.c.l.b16 %v961
    %v3650 = vunpack.c.h.b16 %v961
    %v3651 = vunpack.c.l.b16 %v962
    %v3652 = vunpack.c.h.b16 %v962
    %v3653 = vunpack.c.l.b16 %v963
    %v3654 = vunpack.c.h.b16 %v963
    %v3655 = vunpack.c.l.b16 %v964
    %v3656 = vunpack.c.h.b16 %v964
    %v3657 = vunpack.c.l.b16 %v965
    %v3658 = vunpack.c.h.b16 %v965
    %v3659 = vunpack.c.l.b16 %v966
    %v3660 = vunpack.c.h.b16 %v966
    %v3661 = vunpack.c.l.b16 %v967
    %v3662 = vunpack.c.h.b16 %v967
    %v3663 = vunpack.c.l.b16 %v968
    %v3664 = vunpack.c.h.b16 %v968
    %v3665 = vunpack.c.l.b16 %v969
    %v3666 = vunpack.c.h.b16 %v969
    %v3667 = vunpack.c.l.b16 %v970
    %v3668 = vunpack.c.h.b16 %v970
    %v3669 = vunpack.c.l.b16 %v971
    %v3670 = vunpack.c.h.b16 %v971
    %v3671 = vunpack.c.l.b16 %v972
    %v3672 = vunpack.c.h.b16 %v972
    %v3673 = vunpack.c.l.b16 %v973
    %v3674 = vunpack.c.h.b16 %v973
    %v3675 = vunpack.c.l.b16 %v974
    %v3676 = vunpack.c.h.b16 %v974
    %v3677 = vunpack.c.l.b16 %v975
    %v3678 = vunpack.c.h.b16 %v975
    %v3679 = vunpack.c.l.b16 %v976
    %v3680 = vunpack.c.h.b16 %v976
    %v3681 = vunpack.c.l.b16 %v977
    %v3682 = vunpack.c.h.b16 %v977
    %v3683 = vunpack.c.l.b16 %v978
    %v3684 = vunpack.c.h.b16 %v978
    %v3685 = vunpack.c.l.b16 %v979
    %v3686 = vunpack.c.h.b16 %v979
    %v3687 = vunpack.c.l.b16 %v980
    %v3688 = vunpack.c.h.b16 %v980
    %v3689 = vunpack.c.l.b16 %v981
    %v3690 = vunpack.c.h.b16 %v981
    %v3691 = vunpack.c.l.b16 %v982
    %v3692 = vunpack.c.h.b16 %v982
    %v3693 = vunpack.c.l.b16 %v983
    %v3694 = vunpack.c.h.b16 %v983
    %v3695 = vunpack.c.l.b16 %v984
    %v3696 = vunpack.c.h.b16 %v984
    %v3697 = vunpack.c.l.b16 %v985
    %v3698 = vunpack.c.h.b16 %v985
    %v3699 = vunpack.c.l.b16 %v986
    %v3700 = vunpack.c.h.b16 %v986
    %v3701 = vunpack.c.l.b16 %v987
    %v3702 = vunpack.c.h.b16 %v987
    %v3703 = vunpack.c.l.b16 %v988
    %v3704 = vunpack.c.h.b16 %v988
    %v3705 = vunpack.c.l.b16 %v989
    %v3706 = vunpack.c.h.b16 %v989
    %v3707 = vunpack.c.l.b16 %v990
    %v3708 = vunpack.c.h.b16 %v990
    %v3709 = vpack.c.b16 %v1999, %v1981
    %v3710 = vpack.c.b16 %v2000, %v1982
    %v3711 = vpack.c.b16 %v2001, %v1983
    %v3712 = vpack.c.b16 %v2002, %v1984
    %v3713 = vpack.c.b16 %v2003, %v1985
    %v3714 = vpack.c.b16 %v2004, %v1986
    %v3715 = vpack.c.b16 %v2005, %v1987
    %v3716 = vpack.c.b16 %v2006, %v1988
    %v3717 = vpack.c.b16 %v2007, %v1989
    %v3718 = vpack.c.b16 %v2008, %v1990
    %v3719 = vpack.c.b16 %v2009, %v1991
    %v3720 = vpack.c.b16 %v2010, %v1992
    %v3721 = vpack.c.b16 %v2011, %v1993
    %v3722 = vpack.c.b16 %v2012, %v1994
    %v3723 = vpack.c.b16 %v2013, %v1995
    %v3724 = vpack.c.b16 %v2014, %v1996
    %v3725 = vpack.c.b16 %v2015, %v1997
    %v3726 = vpack.c.b16 %v2016, %v1998
    %v3727 = vpack.c.b16 %v2035, %v2017
    %v3728 = vpack.c.b16 %v2036, %v2018
    %v3729 = vpack.c.b16 %v2037, %v2019
    %v3730 = vpack.c.b16 %v2038, %v2020
    %v3731 = vpack.c.b16 %v2039, %v2021
    %v3732 = vpack.c.b16 %v2040, %v2022
    %v3733 = vpack.c.b16 %v2041, %v2023
    %v3734 = vpack.c.b16 %v2042, %v2024
    %v3735 = vpack.c.b16 %v2043, %v2025
    %v3736 = vpack.c.b16 %v2044, %v2026
    %v3737 = vpack.c.b16 %v2045, %v2027
    %v3738 = vpack.c.b16 %v2046, %v2028
    %v3739 = vpack.c.b16 %v2047, %v2029
    %v3740 = vpack.c.b16 %v2048, %v2030
    %v3741 = vpack.c.b16 %v2049, %v2031
    %v3742 = vpack.c.b16 %v2050, %v2032
    %v3743 = vpack.c.b16 %v2051, %v2033
    %v3744 = vpack.c.b16 %v2052, %v2034
    %v3745 = vpack.c.b16 %v2071, %v2053
    %v3746 = vpack.c.b16 %v2072, %v2054
    %v3747 = vpack.c.b16 %v2073, %v2055
    %v3748 = vpack.c.b16 %v2074, %v2056
    %v3749 = vpack.c.b16 %v2075, %v2057
    %v3750 = vpack.c.b16 %v2076, %v2058
    %v3751 = vpack.c.b16 %v2077, %v2059
    %v3752 = vpack.c.b16 %v2078, %v2060
    %v3753 = vpack.c.b16 %v2079, %v2061
    %v3754 = vpack.c.b16 %v2080, %v2062
    %v3755 = vpack.c.b16 %v2081, %v2063
    %v3756 = vpack.c.b16 %v2082, %v2064
    %v3757 = vpack.c.b16 %v2083, %v2065
    %v3758 = vpack.c.b16 %v2084, %v2066
    %v3759 = vpack.c.b16 %v2085, %v2067
    %v3760 = vpack.c.b16 %v2086, %v2068
    %v3761 = vpack.c.b16 %v2087, %v2069
    %v3762 = vpack.c.b16 %v2088, %v2070
    %v3763 = vpack.c.b16 %v2107, %v2089
    %v3764 = vpack.c.b16 %v2108, %v2090
    %v3765 = vpack.c.b16 %v2109, %v2091
    %v3766 = vpack.c.b16 %v2110, %v2092
    %v3767 = vpack.c.b16 %v2111, %v2093
    %v3768 = vpack.c.b16 %v2112, %v2094
    %v3769 = vpack.c.b16 %v2113, %v2095
    %v3770 = vpack.c.b16 %v2114, %v2096
    %v3771 = vpack.c.b16 %v2115, %v2097
    %v3772 = vpack.c.b16 %v2116, %v2098
    %v3773 = vpack.c.b16 %v2117, %v2099
    %v3774 = vpack.c.b16 %v2118, %v2100
    %v3775 = vpack.c.b16 %v2119, %v2101
    %v3776 = vpack.c.b16 %v2120, %v2102
    %v3777 = vpack.c.b16 %v2121, %v2103
    %v3778 = vpack.c.b16 %v2122, %v2104
    %v3779 = vpack.c.b16 %v2123, %v2105
    %v3780 = vpack.c.b16 %v2124, %v2106
    %v3781 = vpack.c.b16 %v2143, %v2125
    %v3782 = vpack.c.b16 %v2144, %v2126
    %v3783 = vpack.c.b16 %v2145, %v2127
    %v3784 = vpack.c.b16 %v2146, %v2128
    %v3785 = vpack.c.b16 %v2147, %v2129
    %v3786 = vpack.c.b16 %v2148, %v2130
    %v3787 = vpack.c.b16 %v2149, %v2131
    %v3788 = vpack.c.b16 %v2150, %v2132
    %v3789 = vpack.c.b16 %v2151, %v2133
    %v3790 = vpack.c.b16 %v2152, %v2134
    %v3791 = vpack.c.b16 %v2153, %v2135
    %v3792 = vpack.c.b16 %v2154, %v2136
    %v3793 = vpack.c.b16 %v2155, %v2137
    %v3794 = vpack.c.b16 %v2156, %v2138
    %v3795 = vpack.c.b16 %v2157, %v2139
    %v3796 = vpack.c.b16 %v2158, %v2140
    %v3797 = vpack.c.b16 %v2159, %v2141
    %v3798 = vpack.c.b16 %v2160, %v2142
    %v3799 = vpack.c.b16 %v2179, %v2161
    %v3800 = vpack.c.b16 %v2180, %v2162
    %v3801 = vpack.c.b16 %v2181, %v2163
    %v3802 = vpack.c.b16 %v2182, %v2164
    %v3803 = vpack.c.b16 %v2183, %v2165
    %v3804 = vpack.c.b16 %v2184, %v2166
    %v3805 = vpack.c.b16 %v2185, %v2167
    %v3806 = vpack.c.b16 %v2186, %v2168
    %v3807 = vpack.c.b16 %v2187, %v2169
    %v3808 = vpack.c.b16 %v2188, %v2170
    %v3809 = vpack.c.b16 %v2189, %v2171
    %v3810 = vpack.c.b16 %v2190, %v2172
    %v3811 = vpack.c.b16 %v2191, %v2173
    %v3812 = vpack.c.b16 %v2192, %v2174
    %v3813 = vpack.c.b16 %v2193, %v2175
    %v3814 = vpack.c.b16 %v2194, %v2176
    %v3815 = vpack.c.b16 %v2195, %v2177
    %v3816 = vpack.c.b16 %v2196, %v2178
    %v3817 = vpack.c.b16 %v2215, %v2197
    %v3818 = vpack.c.b16 %v2216, %v2198
    %v3819 = vpack.c.b16 %v2217, %v2199
    %v3820 = vpack.c.b16 %v2218, %v2200
    %v3821 = vpack.c.b16 %v2219, %v2201
    %v3822 = vpack.c.b16 %v2220, %v2202
    %v3823 = vpack.c.b16 %v2221, %v2203
    %v3824 = vpack.c.b16 %v2222, %v2204
    %v3825 = vpack.c.b16 %v2223, %v2205
    %v3826 = vpack.c.b16 %v2224, %v2206
    %v3827 = vpack.c.b16 %v2225, %v2207
    %v3828 = vpack.c.b16 %v2226, %v2208
    %v3829 = vpack.c.b16 %v2227, %v2209
    %v3830 = vpack.c.b16 %v2228, %v2210
    %v3831 = vpack.c.b16 %v2229, %v2211
    %v3832 = vpack.c.b16 %v2230, %v2212
    %v3833 = vpack.c.b16 %v2231, %v2213
    %v3834 = vpack.c.b16 %v2232, %v2214
    %v3835 = vpack.c.b16 %v2251, %v2233
    %v3836 = vpack.c.b16 %v2252, %v2234
    %v3837 = vpack.c.b16 %v2253, %v2235
    %v3838 = vpack.c.b16 %v2254, %v2236
    %v3839 = vpack.c.b16 %v2255, %v2237
    %v3840 = vpack.c.b16 %v2256, %v2238
    %v3841 = vpack.c.b16 %v2257, %v2239
    %v3842 = vpack.c.b16 %v2258, %v2240
    %v3843 = vpack.c.b16 %v2259, %v2241
    %v3844 = vpack.c.b16 %v2260, %v2242
    %v3845 = vpack.c.b16 %v2261, %v2243
    %v3846 = vpack.c.b16 %v2262, %v2244
    %v3847 = vpack.c.b16 %v2263, %v2245
    %v3848 = vpack.c.b16 %v2264, %v2246
    %v3849 = vpack.c.b16 %v2265, %v2247
    %v3850 = vpack.c.b16 %v2266, %v2248
    %v3851 = vpack.c.b16 %v2267, %v2249
    %v3852 = vpack.c.b16 %v2268, %v2250
    %v3853 = vpack.c.b16 %v2287, %v2269
    %v3854 = vpack.c.b16 %v2288, %v2270
    %v3855 = vpack.c.b16 %v2289, %v2271
    %v3856 = vpack.c.b16 %v2290, %v2272
    %v3857 = vpack.c.b16 %v2291, %v2273
    %v3858 = vpack.c.b16 %v2292, %v2274
    %v3859 = vpack.c.b16 %v2293, %v2275
    %v3860 = vpack.c.b16 %v2294, %v2276
    %v3861 = vpack.c.b16 %v2295, %v2277
    %v3862 = vpack.c.b16 %v2296, %v2278
    %v3863 = vpack.c.b16 %v2297, %v2279
    %v3864 = vpack.c.b16 %v2298, %v2280
    %v3865 = vpack.c.b16 %v2299, %v2281
    %v3866 = vpack.c.b16 %v2300, %v2282
    %v3867 = vpack.c.b16 %v2301, %v2283
    %v3868 = vpack.c.b16 %v2302, %v2284
    %v3869 = vpack.c.b16 %v2303, %v2285
    %v3870 = vpack.c.b16 %v2304, %v2286
    %v3871 = vpack.c.b16 %v2323, %v2305
    %v3872 = vpack.c.b16 %v2324, %v2306
    %v3873 = vpack.c.b16 %v2325, %v2307
    %v3874 = vpack.c.b16 %v2326, %v2308
    %v3875 = vpack.c.b16 %v2327, %v2309
    %v3876 = vpack.c.b16 %v2328, %v2310
    %v3877 = vpack.c.b16 %v2329, %v2311
    %v3878 = vpack.c.b16 %v2330, %v2312
    %v3879 = vpack.c.b16 %v2331, %v2313
    %v3880 = vpack.c.b16 %v2332, %v2314
    %v3881 = vpack.c.b16 %v2333, %v2315
    %v3882 = vpack.c.b16 %v2334, %v2316
    %v3883 = vpack.c.b16 %v2335, %v2317
    %v3884 = vpack.c.b16 %v2336, %v2318
    %v3885 = vpack.c.b16 %v2337, %v2319
    %v3886 = vpack.c.b16 %v2338, %v2320
    %v3887 = vpack.c.b16 %v2339, %v2321
    %v3888 = vpack.c.b16 %v2340, %v2322
    %v3889 = vpack.c.b16 %v2359, %v2341
    %v3890 = vpack.c.b16 %v2360, %v2342
    %v3891 = vpack.c.b16 %v2361, %v2343
    %v3892 = vpack.c.b16 %v2362, %v2344
    %v3893 = vpack.c.b16 %v2363, %v2345
    %v3894 = vpack.c.b16 %v2364, %v2346
    %v3895 = vpack.c.b16 %v2365, %v2347
    %v3896 = vpack.c.b16 %v2366, %v2348
    %v3897 = vpack.c.b16 %v2367, %v2349
    %v3898 = vpack.c.b16 %v2368, %v2350
    %v3899 = vpack.c.b16 %v2369, %v2351
    %v3900 = vpack.c.b16 %v2370, %v2352
    %v3901 = vpack.c.b16 %v2371, %v2353
    %v3902 = vpack.c.b16 %v2372, %v2354
    %v3903 = vpack.c.b16 %v2373, %v2355
    %v3904 = vpack.c.b16 %v2374, %v2356
    %v3905 = vpack.c.b16 %v2375, %v2357
    %v3906 = vpack.c.b16 %v2376, %v2358
    %v3907 = vpack.c.b16 %v2395, %v2377
    %v3908 = vpack.c.b16 %v2396, %v2378
    %v3909 = vpack.c.b16 %v2397, %v2379
    %v3910 = vpack.c.b16 %v2398, %v2380
    %v3911 = vpack.c.b16 %v2399, %v2381
    %v3912 = vpack.c.b16 %v2400, %v2382
    %v3913 = vpack.c.b16 %v2401, %v2383
    %v3914 = vpack.c.b16 %v2402, %v2384
    %v3915 = vpack.c.b16 %v2403, %v2385
    %v3916 = vpack.c.b16 %v2404, %v2386
    %v3917 = vpack.c.b16 %v2405, %v2387
    %v3918 = vpack.c.b16 %v2406, %v2388
    %v3919 = vpack.c.b16 %v2407, %v2389
    %v3920 = vpack.c.b16 %v2408, %v2390
    %v3921 = vpack.c.b16 %v2409, %v2391
    %v3922 = vpack.c.b16 %v2410, %v2392
    %v3923 = vpack.c.b16 %v2411, %v2393
    %v3924 = vpack.c.b16 %v2412, %v2394
    %v3925 = vpack.c.b16 %v2431, %v2413
    %v3926 = vpack.c.b16 %v2432, %v2414
    %v3927 = vpack.c.b16 %v2433, %v2415
    %v3928 = vpack.c.b16 %v2434, %v2416
    %v3929 = vpack.c.b16 %v2435, %v2417
    %v3930 = vpack.c.b16 %v2436, %v2418
    %v3931 = vpack.c.b16 %v2437, %v2419
    %v3932 = vpack.c.b16 %v2438, %v2420
    %v3933 = vpack.c.b16 %v2439, %v2421
    %v3934 = vpack.c.b16 %v2440, %v2422
    %v3935 = vpack.c.b16 %v2441, %v2423
    %v3936 = vpack.c.b16 %v2442, %v2424
    %v3937 = vpack.c.b16 %v2443, %v2425
    %v3938 = vpack.c.b16 %v2444, %v2426
    %v3939 = vpack.c.b16 %v2445, %v2427
    %v3940 = vpack.c.b16 %v2446, %v2428
    %v3941 = vpack.c.b16 %v2447, %v2429
    %v3942 = vpack.c.b16 %v2448, %v2430
    %v3943 = vpack.c.b16 %v2467, %v2449
    %v3944 = vpack.c.b16 %v2468, %v2450
    %v3945 = vpack.c.b16 %v2469, %v2451
    %v3946 = vpack.c.b16 %v2470, %v2452
    %v3947 = vpack.c.b16 %v2471, %v2453
    %v3948 = vpack.c.b16 %v2472, %v2454
    %v3949 = vpack.c.b16 %v2473, %v2455
    %v3950 = vpack.c.b16 %v2474, %v2456
    %v3951 = vpack.c.b16 %v2475, %v2457
    %v3952 = vpack.c.b16 %v2476, %v2458
    %v3953 = vpack.c.b16 %v2477, %v2459
    %v3954 = vpack.c.b16 %v2478, %v2460
    %v3955 = vpack.c.b16 %v2479, %v2461
    %v3956 = vpack.c.b16 %v2480, %v2462
    %v3957 = vpack.c.b16 %v2481, %v2463
    %v3958 = vpack.c.b16 %v2482, %v2464
    %v3959 = vpack.c.b16 %v2483, %v2465
    %v3960 = vpack.c.b16 %v2484, %v2466
    %v3961 = vpack.c.b16 %v2503, %v2485
    %v3962 = vpack.c.b16 %v2504, %v2486
    %v3963 = vpack.c.b16 %v2505, %v2487
    %v3964 = vpack.c.b16 %v2506, %v2488
    %v3965 = vpack.c.b16 %v2507, %v2489
    %v3966 = vpack.c.b16 %v2508, %v2490
    %v3967 = vpack.c.b16 %v2509, %v2491
    %v3968 = vpack.c.b16 %v2510, %v2492
    %v3969 = vpack.c.b16 %v2511, %v2493
    %v3970 = vpack.c.b16 %v2512, %v2494
    %v3971 = vpack.c.b16 %v2513, %v2495
    %v3972 = vpack.c.b16 %v2514, %v2496
    %v3973 = vpack.c.b16 %v2515, %v2497
    %v3974 = vpack.c.b16 %v2516, %v2498
    %v3975 = vpack.c.b16 %v2517, %v2499
    %v3976 = vpack.c.b16 %v2518, %v2500
    %v3977 = vpack.c.b16 %v2519, %v2501
    %v3978 = vpack.c.b16 %v2520, %v2502
    %v3979 = vpack.c.b16 %v2539, %v2521
    %v3980 = vpack.c.b16 %v2540, %v2522
    %v3981 = vpack.c.b16 %v2541, %v2523
    %v3982 = vpack.c.b16 %v2542, %v2524
    %v3983 = vpack.c.b16 %v2543, %v2525
    %v3984 = vpack.c.b16 %v2544, %v2526
    %v3985 = vpack.c.b16 %v2545, %v2527
    %v3986 = vpack.c.b16 %v2546, %v2528
    %v3987 = vpack.c.b16 %v2547, %v2529
    %v3988 = vpack.c.b16 %v2548, %v2530
    %v3989 = vpack.c.b16 %v2549, %v2531
    %v3990 = vpack.c.b16 %v2550, %v2532
    %v3991 = vpack.c.b16 %v2551, %v2533
    %v3992 = vpack.c.b16 %v2552, %v2534
    %v3993 = vpack.c.b16 %v2553, %v2535
    %v3994 = vpack.c.b16 %v2554, %v2536
    %v3995 = vpack.c.b16 %v2555, %v2537
    %v3996 = vpack.c.b16 %v2556, %v2538
    %v3997 = vpack.c.b16 %v2575, %v2557
    %v3998 = vpack.c.b16 %v2576, %v2558
    %v3999 = vpack.c.b16 %v2577, %v2559
    %v4000 = vpack.c.b16 %v2578, %v2560
    %v4001 = vpack.c.b16 %v2579, %v2561
    %v4002 = vpack.c.b16 %v2580, %v2562
    %v4003 = vpack.c.b16 %v2581, %v2563
    %v4004 = vpack.c.b16 %v2582, %v2564
    %v4005 = vpack.c.b16 %v2583, %v2565
    %v4006 = vpack.c.b16 %v2584, %v2566
    %v4007 = vpack.c.b16 %v2585, %v2567
    %v4008 = vpack.c.b16 %v2586, %v2568
    %v4009 = vpack.c.b16 %v2587, %v2569
    %v4010 = vpack.c.b16 %v2588, %v2570
    %v4011 = vpack.c.b16 %v2589, %v2571
    %v4012 = vpack.c.b16 %v2590, %v2572
    %v4013 = vpack.c.b16 %v2591, %v2573
    %v4014 = vpack.c.b16 %v2592, %v2574
    %v4015 = vpack.c.b16 %v2611, %v2593
    %v4016 = vpack.c.b16 %v2612, %v2594
    %v4017 = vpack.c.b16 %v2613, %v2595
    %v4018 = vpack.c.b16 %v2614, %v2596
    %v4019 = vpack.c.b16 %v2615, %v2597
    %v4020 = vpack.c.b16 %v2616, %v2598
    %v4021 = vpack.c.b16 %v2617, %v2599
    %v4022 = vpack.c.b16 %v2618, %v2600
    %v4023 = vpack.c.b16 %v2619, %v2601
    %v4024 = vpack.c.b16 %v2620, %v2602
    %v4025 = vpack.c.b16 %v2621, %v2603
    %v4026 = vpack.c.b16 %v2622, %v2604
    %v4027 = vpack.c.b16 %v2623, %v2605
    %v4028 = vpack.c.b16 %v2624, %v2606
    %v4029 = vpack.c.b16 %v2625, %v2607
    %v4030 = vpack.c.b16 %v2626, %v2608
    %v4031 = vpack.c.b16 %v2627, %v2609
    %v4032 = vpack.c.b16 %v2628, %v2610
    %v4033 = vpack.c.b16 %v2647, %v2629
    %v4034 = vpack.c.b16 %v2648, %v2630
    %v4035 = vpack.c.b16 %v2649, %v2631
    %v4036 = vpack.c.b16 %v2650, %v2632
    %v4037 = vpack.c.b16 %v2651, %v2633
    %v4038 = vpack.c.b16 %v2652, %v2634
    %v4039 = vpack.c.b16 %v2653, %v2635
    %v4040 = vpack.c.b16 %v2654, %v2636
    %v4041 = vpack.c.b16 %v2655, %v2637
    %v4042 = vpack.c.b16 %v2656, %v2638
    %v4043 = vpack.c.b16 %v2657, %v2639
    %v4044 = vpack.c.b16 %v2658, %v2640
    %v4045 = vpack.c.b16 %v2659, %v2641
    %v4046 = vpack.c.b16 %v2660, %v2642
    %v4047 = vpack.c.b16 %v2661, %v2643
    %v4048 = vpack.c.b16 %v2662, %v2644
    %v4049 = vpack.c.b16 %v2663, %v2645
    %v4050 = vpack.c.b16 %v2664, %v2646
    %v4051 = vpack.c.b16 %v2683, %v2665
    %v4052 = vpack.c.b16 %v2684, %v2666
    %v4053 = vpack.c.b16 %v2685, %v2667
    %v4054 = vpack.c.b16 %v2686, %v2668
    %v4055 = vpack.c.b16 %v2687, %v2669
    %v4056 = vpack.c.b16 %v2688, %v2670
    %v4057 = vpack.c.b16 %v2689, %v2671
    %v4058 = vpack.c.b16 %v2690, %v2672
    %v4059 = vpack.c.b16 %v2691, %v2673
    %v4060 = vpack.c.b16 %v2692, %v2674
    %v4061 = vpack.c.b16 %v2693, %v2675
    %v4062 = vpack.c.b16 %v2694, %v2676
    %v4063 = vpack.c.b16 %v2695, %v2677
    %v4064 = vpack.c.b16 %v2696, %v2678
    %v4065 = vpack.c.b16 %v2697, %v2679
    %v4066 = vpack.c.b16 %v2698, %v2680
    %v4067 = vpack.c.b16 %v2699, %v2681
    %v4068 = vpack.c.b16 %v2700, %v2682
    %v4069 = vpack.c.b16 %v2719, %v2701
    %v4070 = vpack.c.b16 %v2720, %v2702
    %v4071 = vpack.c.b16 %v2721, %v2703
    %v4072 = vpack.c.b16 %v2722, %v2704
    %v4073 = vpack.c.b16 %v2723, %v2705
    %v4074 = vpack.c.b16 %v2724, %v2706
    %v4075 = vpack.c.b16 %v2725, %v2707
    %v4076 = vpack.c.b16 %v2726, %v2708
    %v4077 = vpack.c.b16 %v2727, %v2709
    %v4078 = vpack.c.b16 %v2728, %v2710
    %v4079 = vpack.c.b16 %v2729, %v2711
    %v4080 = vpack.c.b16 %v2730, %v2712
    %v4081 = vpack.c.b16 %v2731, %v2713
    %v4082 = vpack.c.b16 %v2732, %v2714
    %v4083 = vpack.c.b16 %v2733, %v2715
    %v4084 = vpack.c.b16 %v2734, %v2716
    %v4085 = vpack.c.b16 %v2735, %v2717
    %v4086 = vpack.c.b16 %v2736, %v2718
    %v4087 = vpack.c.b16 %v2755, %v2737
    %v4088 = vpack.c.b16 %v2756, %v2738
    %v4089 = vpack.c.b16 %v2757, %v2739
    %v4090 = vpack.c.b16 %v2758, %v2740
    %v4091 = vpack.c.b16 %v2759, %v2741
    %v4092 = vpack.c.b16 %v2760, %v2742
    %v4093 = vpack.c.b16 %v2761, %v2743
    %v4094 = vpack.c.b16 %v2762, %v2744
    %v4095 = vpack.c.b16 %v2763, %v2745
    %v4096 = vpack.c.b16 %v2764, %v2746
    %v4097 = vpack.c.b16 %v2765, %v2747
    %v4098 = vpack.c.b16 %v2766, %v2748
    %v4099 = vpack.c.b16 %v2767, %v2749
    %v4100 = vpack.c.b16 %v2768, %v2750
    %v4101 = vpack.c.b16 %v2769, %v2751
    %v4102 = vpack.c.b16 %v2770, %v2752
    %v4103 = vpack.c.b16 %v2771, %v2753
    %v4104 = vpack.c.b16 %v2772, %v2754
    %v4105 = vpack.c.b16 %v2791, %v2773
    %v4106 = vpack.c.b16 %v2792, %v2774
    %v4107 = vpack.c.b16 %v2793, %v2775
    %v4108 = vpack.c.b16 %v2794, %v2776
    %v4109 = vpack.c.b16 %v2795, %v2777
    %v4110 = vpack.c.b16 %v2796, %v2778
    %v4111 = vpack.c.b16 %v2797, %v2779
    %v4112 = vpack.c.b16 %v2798, %v2780
    %v4113 = vpack.c.b16 %v2799, %v2781
    %v4114 = vpack.c.b16 %v2800, %v2782
    %v4115 = vpack.c.b16 %v2801, %v2783
    %v4116 = vpack.c.b16 %v2802, %v2784
    %v4117 = vpack.c.b16 %v2803, %v2785
    %v4118 = vpack.c.b16 %v2804, %v2786
    %v4119 = vpack.c.b16 %v2805, %v2787
    %v4120 = vpack.c.b16 %v2806, %v2788
    %v4121 = vpack.c.b16 %v2807, %v2789
    %v4122 = vpack.c.b16 %v2808, %v2790
    %v4123 = vpack.c.b16 %v2827, %v2809
    %v4124 = vpack.c.b16 %v2828, %v2810
    %v4125 = vpack.c.b16 %v2829, %v2811
    %v4126 = vpack.c.b16 %v2830, %v2812
    %v4127 = vpack.c.b16 %v2831, %v2813
    %v4128 = vpack.c.b16 %v2832, %v2814
    %v4129 = vpack.c.b16 %v2833, %v2815
    %v4130 = vpack.c.b16 %v2834, %v2816
    %v4131 = vpack.c.b16 %v2835, %v2817
    %v4132 = vpack.c.b16 %v2836, %v2818
    %v4133 = vpack.c.b16 %v2837, %v2819
    %v4134 = vpack.c.b16 %v2838, %v2820
    %v4135 = vpack.c.b16 %v2839, %v2821
    %v4136 = vpack.c.b16 %v2840, %v2822
    %v4137 = vpack.c.b16 %v2841, %v2823
    %v4138 = vpack.c.b16 %v2842, %v2824
    %v4139 = vpack.c.b16 %v2843, %v2825
    %v4140 = vpack.c.b16 %v2844, %v2826
    %v4141 = vpack.c.b16 %v2863, %v2845
    %v4142 = vpack.c.b16 %v2864, %v2846
    %v4143 = vpack.c.b16 %v2865, %v2847
    %v4144 = vpack.c.b16 %v2866, %v2848
    %v4145 = vpack.c.b16 %v2867, %v2849
    %v4146 = vpack.c.b16 %v2868, %v2850
    %v4147 = vpack.c.b16 %v2869, %v2851
    %v4148 = vpack.c.b16 %v2870, %v2852
    %v4149 = vpack.c.b16 %v2871, %v2853
    %v4150 = vpack.c.b16 %v2872, %v2854
    %v4151 = vpack.c.b16 %v2873, %v2855
    %v4152 = vpack.c.b16 %v2874, %v2856
    %v4153 = vpack.c.b16 %v2875, %v2857
    %v4154 = vpack.c.b16 %v2876, %v2858
    %v4155 = vpack.c.b16 %v2877, %v2859
    %v4156 = vpack.c.b16 %v2878, %v2860
    %v4157 = vpack.c.b16 %v2879, %v2861
    %v4158 = vpack.c.b16 %v2880, %v2862
    %v4159 = vpack.c.b16 %v2899, %v2881
    %v4160 = vpack.c.b16 %v2900, %v2882
    %v4161 = vpack.c.b16 %v2901, %v2883
    %v4162 = vpack.c.b16 %v2902, %v2884
    %v4163 = vpack.c.b16 %v2903, %v2885
    %v4164 = vpack.c.b16 %v2904, %v2886
    %v4165 = vpack.c.b16 %v2905, %v2887
    %v4166 = vpack.c.b16 %v2906, %v2888
    %v4167 = vpack.c.b16 %v2907, %v2889
    %v4168 = vpack.c.b16 %v2908, %v2890
    %v4169 = vpack.c.b16 %v2909, %v2891
    %v4170 = vpack.c.b16 %v2910, %v2892
    %v4171 = vpack.c.b16 %v2911, %v2893
    %v4172 = vpack.c.b16 %v2912, %v2894
    %v4173 = vpack.c.b16 %v2913, %v2895
    %v4174 = vpack.c.b16 %v2914, %v2896
    %v4175 = vpack.c.b16 %v2915, %v2897
    %v4176 = vpack.c.b16 %v2916, %v2898
    %v4177 = vpack.c.b16 %v2935, %v2917
    %v4178 = vpack.c.b16 %v2936, %v2918
    %v4179 = vpack.c.b16 %v2937, %v2919
    %v4180 = vpack.c.b16 %v2938, %v2920
    %v4181 = vpack.c.b16 %v2939, %v2921
    %v4182 = vpack.c.b16 %v2940, %v2922
    %v4183 = vpack.c.b16 %v2941, %v2923
    %v4184 = vpack.c.b16 %v2942, %v2924
    %v4185 = vpack.c.b16 %v2943, %v2925
    %v4186 = vpack.c.b16 %v2944, %v2926
    %v4187 = vpack.c.b16 %v2945, %v2927
    %v4188 = vpack.c.b16 %v2946, %v2928
    %v4189 = vpack.c.b16 %v2947, %v2929
    %v4190 = vpack.c.b16 %v2948, %v2930
    %v4191 = vpack.c.b16 %v2949, %v2931
    %v4192 = vpack.c.b16 %v2950, %v2932
    %v4193 = vpack.c.b16 %v2951, %v2933
    %v4194 = vpack.c.b16 %v2952, %v2934
    %v4195 = vpack.c.b16 %v2971, %v2953
    %v4196 = vpack.c.b16 %v2972, %v2954
    %v4197 = vpack.c.b16 %v2973, %v2955
    %v4198 = vpack.c.b16 %v2974, %v2956
    %v4199 = vpack.c.b16 %v2975, %v2957
    %v4200 = vpack.c.b16 %v2976, %v2958
    %v4201 = vpack.c.b16 %v2977, %v2959
    %v4202 = vpack.c.b16 %v2978, %v2960
    %v4203 = vpack.c.b16 %v2979, %v2961
    %v4204 = vpack.c.b16 %v2980, %v2962
    %v4205 = vpack.c.b16 %v2981, %v2963
    %v4206 = vpack.c.b16 %v2982, %v2964
    %v4207 = vpack.c.b16 %v2983, %v2965
    %v4208 = vpack.c.b16 %v2984, %v2966
    %v4209 = vpack.c.b16 %v2985, %v2967
    %v4210 = vpack.c.b16 %v2986, %v2968
    %v4211 = vpack.c.b16 %v2987, %v2969
    %v4212 = vpack.c.b16 %v2988, %v2970
    %v4213 = vpack.c.b16 %v3007, %v2989
    %v4214 = vpack.c.b16 %v3008, %v2990
    %v4215 = vpack.c.b16 %v3009, %v2991
    %v4216 = vpack.c.b16 %v3010, %v2992
    %v4217 = vpack.c.b16 %v3011, %v2993
    %v4218 = vpack.c.b16 %v3012, %v2994
    %v4219 = vpack.c.b16 %v3013, %v2995
    %v4220 = vpack.c.b16 %v3014, %v2996
    %v4221 = vpack.c.b16 %v3015, %v2997
    %v4222 = vpack.c.b16 %v3016, %v2998
    %v4223 = vpack.c.b16 %v3017, %v2999
    %v4224 = vpack.c.b16 %v3018, %v3000
    %v4225 = vpack.c.b16 %v3019, %v3001
    %v4226 = vpack.c.b16 %v3020, %v3002
    %v4227 = vpack.c.b16 %v3021, %v3003
    %v4228 = vpack.c.b16 %v3022, %v3004
    %v4229 = vpack.c.b16 %v3023, %v3005
    %v4230 = vpack.c.b16 %v3024, %v3006
    %v4231 = vpack.c.b16 %v3043, %v3025
    %v4232 = vpack.c.b16 %v3044, %v3026
    %v4233 = vpack.c.b16 %v3045, %v3027
    %v4234 = vpack.c.b16 %v3046, %v3028
    %v4235 = vpack.c.b16 %v3047, %v3029
    %v4236 = vpack.c.b16 %v3048, %v3030
    %v4237 = vpack.c.b16 %v3049, %v3031
    %v4238 = vpack.c.b16 %v3050, %v3032
    %v4239 = vpack.c.b16 %v3051, %v3033
    %v4240 = vpack.c.b16 %v3052, %v3034
    %v4241 = vpack.c.b16 %v3053, %v3035
    %v4242 = vpack.c.b16 %v3054, %v3036
    %v4243 = vpack.c.b16 %v3055, %v3037
    %v4244 = vpack.c.b16 %v3056, %v3038
    %v4245 = vpack.c.b16 %v3057, %v3039
    %v4246 = vpack.c.b16 %v3058, %v3040
    %v4247 = vpack.c.b16 %v3059, %v3041
    %v4248 = vpack.c.b16 %v3060, %v3042
    %v4249 = vpack.c.b16 %v3079, %v3061
    %v4250 = vpack.c.b16 %v3080, %v3062
    %v4251 = vpack.c.b16 %v3081, %v3063
    %v4252 = vpack.c.b16 %v3082, %v3064
    %v4253 = vpack.c.b16 %v3083, %v3065
    %v4254 = vpack.c.b16 %v3084, %v3066
    %v4255 = vpack.c.b16 %v3085, %v3067
    %v4256 = vpack.c.b16 %v3086, %v3068
    %v4257 = vpack.c.b16 %v3087, %v3069
    %v4258 = vpack.c.b16 %v3088, %v3070
    %v4259 = vpack.c.b16 %v3089, %v3071
    %v4260 = vpack.c.b16 %v3090, %v3072
    %v4261 = vpack.c.b16 %v3091, %v3073
    %v4262 = vpack.c.b16 %v3092, %v3074
    %v4263 = vpack.c.b16 %v3093, %v3075
    %v4264 = vpack.c.b16 %v3094, %v3076
    %v4265 = vpack.c.b16 %v3095, %v3077
    %v4266 = vpack.c.b16 %v3096, %v3078
    %v4267 = vpack.c.b16 %v3115, %v3097
    %v4268 = vpack.c.b16 %v3116, %v3098
    %v4269 = vpack.c.b16 %v3117, %v3099
    %v4270 = vpack.c.b16 %v3118, %v3100
    %v4271 = vpack.c.b16 %v3119, %v3101
    %v4272 = vpack.c.b16 %v3120, %v3102
    %v4273 = vpack.c.b16 %v3121, %v3103
    %v4274 = vpack.c.b16 %v3122, %v3104
    %v4275 = vpack.c.b16 %v3123, %v3105
    %v4276 = vpack.c.b16 %v3124, %v3106
    %v4277 = vpack.c.b16 %v3125, %v3107
    %v4278 = vpack.c.b16 %v3126, %v3108
    %v4279 = vpack.c.b16 %v3127, %v3109
    %v4280 = vpack.c.b16 %v3128, %v3110
    %v4281 = vpack.c.b16 %v3129, %v3111
    %v4282 = vpack.c.b16 %v3130, %v3112
    %v4283 = vpack.c.b16 %v3131, %v3113
    %v4284 = vpack.c.b16 %v3132, %v3114
    %v4285 = vpack.c.b16 %v3151, %v3133
    %v4286 = vpack.c.b16 %v3152, %v3134
    %v4287 = vpack.c.b16 %v3153, %v3135
    %v4288 = vpack.c.b16 %v3154, %v3136
    %v4289 = vpack.c.b16 %v3155, %v3137
    %v4290 = vpack.c.b16 %v3156, %v3138
    %v4291 = vpack.c.b16 %v3157, %v3139
    %v4292 = vpack.c.b16 %v3158, %v3140
    %v4293 = vpack.c.b16 %v3159, %v3141
    %v4294 = vpack.c.b16 %v3160, %v3142
    %v4295 = vpack.c.b16 %v3161, %v3143
    %v4296 = vpack.c.b16 %v3162, %v3144
    %v4297 = vpack.c.b16 %v3163, %v3145
    %v4298 = vpack.c.b16 %v3164, %v3146
    %v4299 = vpack.c.b16 %v3165, %v3147
    %v4300 = vpack.c.b16 %v3166, %v3148
    %v4301 = vpack.c.b16 %v3167, %v3149
    %v4302 = vpack.c.b16 %v3168, %v3150
    %v4303 = vpack.c.b16 %v3187, %v3169
    %v4304 = vpack.c.b16 %v3188, %v3170
    %v4305 = vpack.c.b16 %v3189, %v3171
    %v4306 = vpack.c.b16 %v3190, %v3172
    %v4307 = vpack.c.b16 %v3191, %v3173
    %v4308 = vpack.c.b16 %v3192, %v3174
    %v4309 = vpack.c.b16 %v3193, %v3175
    %v4310 = vpack.c.b16 %v3194, %v3176
    %v4311 = vpack.c.b16 %v3195, %v3177
    %v4312 = vpack.c.b16 %v3196, %v3178
    %v4313 = vpack.c.b16 %v3197, %v3179
    %v4314 = vpack.c.b16 %v3198, %v3180
    %v4315 = vpack.c.b16 %v3199, %v3181
    %v4316 = vpack.c.b16 %v3200, %v3182
    %v4317 = vpack.c.b16 %v3201, %v3183
    %v4318 = vpack.c.b16 %v3202, %v3184
    %v4319 = vpack.c.b16 %v3203, %v3185
    %v4320 = vpack.c.b16 %v3204, %v3186
    %v4321 = vpack.c.b16 %v3223, %v3205
    %v4322 = vpack.c.b16 %v3224, %v3206
    %v4323 = vpack.c.b16 %v3225, %v3207
    %v4324 = vpack.c.b16 %v3226, %v3208
    %v4325 = vpack.c.b16 %v3227, %v3209
    %v4326 = vpack.c.b16 %v3228, %v3210
    %v4327 = vpack.c.b16 %v3229, %v3211
    %v4328 = vpack.c.b16 %v3230, %v3212
    %v4329 = vpack.c.b16 %v3231, %v3213
    %v4330 = vpack.c.b16 %v3232, %v3214
    %v4331 = vpack.c.b16 %v3233, %v3215
    %v4332 = vpack.c.b16 %v3234, %v3216
    %v4333 = vpack.c.b16 %v3235, %v3217
    %v4334 = vpack.c.b16 %v3236, %v3218
    %v4335 = vpack.c.b16 %v3237, %v3219
    %v4336 = vpack.c.b16 %v3238, %v3220
    %v4337 = vpack.c.b16 %v3239, %v3221
    %v4338 = vpack.c.b16 %v3240, %v3222
    %v4339 = vpack.c.b16 %v3259, %v3241
    %v4340 = vpack.c.b16 %v3260, %v3242
    %v4341 = vpack.c.b16 %v3261, %v3243
    %v4342 = vpack.c.b16 %v3262, %v3244
    %v4343 = vpack.c.b16 %v3263, %v3245
    %v4344 = vpack.c.b16 %v3264, %v3246
    %v4345 = vpack.c.b16 %v3265, %v3247
    %v4346 = vpack.c.b16 %v3266, %v3248
    %v4347 = vpack.c.b16 %v3267, %v3249
    %v4348 = vpack.c.b16 %v3268, %v3250
    %v4349 = vpack.c.b16 %v3269, %v3251
    %v4350 = vpack.c.b16 %v3270, %v3252
    %v4351 = vpack.c.b16 %v3271, %v3253
    %v4352 = vpack.c.b16 %v3272, %v3254
    %v4353 = vpack.c.b16 %v3273, %v3255
    %v4354 = vpack.c.b16 %v3274, %v3256
    %v4355 = vpack.c.b16 %v3275, %v3257
    %v4356 = vpack.c.b16 %v3276, %v3258
    %v4357 = vpack.c.b16 %v3295, %v3277
    %v4358 = vpack.c.b16 %v3296, %v3278
    %v4359 = vpack.c.b16 %v3297, %v3279
    %v4360 = vpack.c.b16 %v3298, %v3280
    %v4361 = vpack.c.b16 %v3299, %v3281
    %v4362 = vpack.c.b16 %v3300, %v3282
    %v4363 = vpack.c.b16 %v3301, %v3283
    %v4364 = vpack.c.b16 %v3302, %v3284
    %v4365 = vpack.c.b16 %v3303, %v3285
    %v4366 = vpack.c.b16 %v3304, %v3286
    %v4367 = vpack.c.b16 %v3305, %v3287
    %v4368 = vpack.c.b16 %v3306, %v3288
    %v4369 = vpack.c.b16 %v3307, %v3289
    %v4370 = vpack.c.b16 %v3308, %v3290
    %v4371 = vpack.c.b16 %v3309, %v3291
    %v4372 = vpack.c.b16 %v3310, %v3292
    %v4373 = vpack.c.b16 %v3311, %v3293
    %v4374 = vpack.c.b16 %v3312, %v3294
    %v4375 = vpack.c.b16 %v3331, %v3313
    %v4376 = vpack.c.b16 %v3332, %v3314
    %v4377 = vpack.c.b16 %v3333, %v3315
    %v4378 = vpack.c.b16 %v3334, %v3316
    %v4379 = vpack.c.b16 %v3335, %v3317
    %v4380 = vpack.c.b16 %v3336, %v3318
    %v4381 = vpack.c.b16 %v3337, %v3319
    %v4382 = vpack.c.b16 %v3338, %v3320
    %v4383 = vpack.c.b16 %v3339, %v3321
    %v4384 = vpack.c.b16 %v3340, %v3322
    %v4385 = vpack.c.b16 %v3341, %v3323
    %v4386 = vpack.c.b16 %v3342, %v3324
    %v4387 = vpack.c.b16 %v3343, %v3325
    %v4388 = vpack.c.b16 %v3344, %v3326
    %v4389 = vpack.c.b16 %v3345, %v3327
    %v4390 = vpack.c.b16 %v3346, %v3328
    %v4391 = vpack.c.b16 %v3347, %v3329
    %v4392 = vpack.c.b16 %v3348, %v3330
    %v4393 = vpack.c.b16 %v3367, %v3349
    %v4394 = vpack.c.b16 %v3368, %v3350
    %v4395 = vpack.c.b16 %v3369, %v3351
    %v4396 = vpack.c.b16 %v3370, %v3352
    %v4397 = vpack.c.b16 %v3371, %v3353
    %v4398 = vpack.c.b16 %v3372, %v3354
    %v4399 = vpack.c.b16 %v3373, %v3355
    %v4400 = vpack.c.b16 %v3374, %v3356
    %v4401 = vpack.c.b16 %v3375, %v3357
    %v4402 = vpack.c.b16 %v3376, %v3358
    %v4403 = vpack.c.b16 %v3377, %v3359
    %v4404 = vpack.c.b16 %v3378, %v3360
    %v4405 = vpack.c.b16 %v3379, %v3361
    %v4406 = vpack.c.b16 %v3380, %v3362
    %v4407 = vpack.c.b16 %v3381, %v3363
    %v4408 = vpack.c.b16 %v3382, %v3364
    %v4409 = vpack.c.b16 %v3383, %v3365
    %v4410 = vpack.c.b16 %v3384, %v3366
    %v4411 = vpack.c.b16 %v3403, %v3385
    %v4412 = vpack.c.b16 %v3404, %v3386
    %v4413 = vpack.c.b16 %v3405, %v3387
    %v4414 = vpack.c.b16 %v3406, %v3388
    %v4415 = vpack.c.b16 %v3407, %v3389
    %v4416 = vpack.c.b16 %v3408, %v3390
    %v4417 = vpack.c.b16 %v3409, %v3391
    %v4418 = vpack.c.b16 %v3410, %v3392
    %v4419 = vpack.c.b16 %v3411, %v3393
    %v4420 = vpack.c.b16 %v3412, %v3394
    %v4421 = vpack.c.b16 %v3413, %v3395
    %v4422 = vpack.c.b16 %v3414, %v3396
    %v4423 = vpack.c.b16 %v3415, %v3397
    %v4424 = vpack.c.b16 %v3416, %v3398
    %v4425 = vpack.c.b16 %v3417, %v3399
    %v4426 = vpack.c.b16 %v3418, %v3400
    %v4427 = vpack.c.b16 %v3419, %v3401
    %v4428 = vpack.c.b16 %v3420, %v3402
    %v4429 = vpack.c.b16 %v3439, %v3421
    %v4430 = vpack.c.b16 %v3440, %v3422
    %v4431 = vpack.c.b16 %v3441, %v3423
    %v4432 = vpack.c.b16 %v3442, %v3424
    %v4433 = vpack.c.b16 %v3443, %v3425
    %v4434 = vpack.c.b16 %v3444, %v3426
    %v4435 = vpack.c.b16 %v3445, %v3427
    %v4436 = vpack.c.b16 %v3446, %v3428
    %v4437 = vpack.c.b16 %v3447, %v3429
    %v4438 = vpack.c.b16 %v3448, %v3430
    %v4439 = vpack.c.b16 %v3449, %v3431
    %v4440 = vpack.c.b16 %v3450, %v3432
    %v4441 = vpack.c.b16 %v3451, %v3433
    %v4442 = vpack.c.b16 %v3452, %v3434
    %v4443 = vpack.c.b16 %v3453, %v3435
    %v4444 = vpack.c.b16 %v3454, %v3436
    %v4445 = vpack.c.b16 %v3455, %v3437
    %v4446 = vpack.c.b16 %v3456, %v3438
    %v4447 = vpack.c.b16 %v3475, %v3457
    %v4448 = vpack.c.b16 %v3476, %v3458
    %v4449 = vpack.c.b16 %v3477, %v3459
    %v4450 = vpack.c.b16 %v3478, %v3460
    %v4451 = vpack.c.b16 %v3479, %v3461
    %v4452 = vpack.c.b16 %v3480, %v3462
    %v4453 = vpack.c.b16 %v3481, %v3463
    %v4454 = vpack.c.b16 %v3482, %v3464
    %v4455 = vpack.c.b16 %v3483, %v3465
    %v4456 = vpack.c.b16 %v3484, %v3466
    %v4457 = vpack.c.b16 %v3485, %v3467
    %v4458 = vpack.c.b16 %v3486, %v3468
    %v4459 = vpack.c.b16 %v3487, %v3469
    %v4460 = vpack.c.b16 %v3488, %v3470
    %v4461 = vpack.c.b16 %v3489, %v3471
    %v4462 = vpack.c.b16 %v3490, %v3472
    %v4463 = vpack.c.b16 %v3491, %v3473
    %v4464 = vpack.c.b16 %v3492, %v3474
    %v4465 = vpack.c.b16 %v3511, %v3493
    %v4466 = vpack.c.b16 %v3512, %v3494
    %v4467 = vpack.c.b16 %v3513, %v3495
    %v4468 = vpack.c.b16 %v3514, %v3496
    %v4469 = vpack.c.b16 %v3515, %v3497
    %v4470 = vpack.c.b16 %v3516, %v3498
    %v4471 = vpack.c.b16 %v3517, %v3499
    %v4472 = vpack.c.b16 %v3518, %v3500
    %v4473 = vpack.c.b16 %v3519, %v3501
    %v4474 = vpack.c.b16 %v3520, %v3502
    %v4475 = vpack.c.b16 %v3521, %v3503
    %v4476 = vpack.c.b16 %v3522, %v3504
    %v4477 = vpack.c.b16 %v3523, %v3505
    %v4478 = vpack.c.b16 %v3524, %v3506
    %v4479 = vpack.c.b16 %v3525, %v3507
    %v4480 = vpack.c.b16 %v3526, %v3508
    %v4481 = vpack.c.b16 %v3527, %v3509
    %v4482 = vpack.c.b16 %v3528, %v3510
    %v4483 = vpack.c.b16 %v3547, %v3529
    %v4484 = vpack.c.b16 %v3548, %v3530
    %v4485 = vpack.c.b16 %v3549, %v3531
    %v4486 = vpack.c.b16 %v3550, %v3532
    %v4487 = vpack.c.b16 %v3551, %v3533
    %v4488 = vpack.c.b16 %v3552, %v3534
    %v4489 = vpack.c.b16 %v3553, %v3535
    %v4490 = vpack.c.b16 %v3554, %v3536
    %v4491 = vpack.c.b16 %v3555, %v3537
    %v4492 = vpack.c.b16 %v3556, %v3538
    %v4493 = vpack.c.b16 %v3557, %v3539
    %v4494 = vpack.c.b16 %v3558, %v3540
    %v4495 = vpack.c.b16 %v3559, %v3541
    %v4496 = vpack.c.b16 %v3560, %v3542
    %v4497 = vpack.c.b16 %v3561, %v3543
    %v4498 = vpack.c.b16 %v3562, %v3544
    %v4499 = vpack.c.b16 %v3563, %v3545
    %v4500 = vpack.c.b16 %v3564, %v3546
    %v4501 = vpack.c.b16 %v3583, %v3565
    %v4502 = vpack.c.b16 %v3584, %v3566
    %v4503 = vpack.c.b16 %v3585, %v3567
    %v4504 = vpack.c.b16 %v3586, %v3568
    %v4505 = vpack.c.b16 %v3587, %v3569
    %v4506 = vpack.c.b16 %v3588, %v3570
    %v4507 = vpack.c.b16 %v3589, %v3571
    %v4508 = vpack.c.b16 %v3590, %v3572
    %v4509 = vpack.c.b16 %v3591, %v3573
    %v4510 = vpack.c.b16 %v3592, %v3574
    %v4511 = vpack.c.b16 %v3593, %v3575
    %v4512 = vpack.c.b16 %v3594, %v3576
    %v4513 = vpack.c.b16 %v3595, %v3577
    %v4514 = vpack.c.b16 %v3596, %v3578
    %v4515 = vpack.c.b16 %v3597, %v3579
    %v4516 = vpack.c.b16 %v3598, %v3580
    %v4517 = vpack.c.b16 %v3599, %v3581
    %v4518 = vpack.c.b16 %v3600, %v3582
    %v4519 = vpack.c.b16 %v3619, %v3601
    %v4520 = vpack.c.b16 %v3620, %v3602
    %v4521 = vpack.c.b16 %v3621, %v3603
    %v4522 = vpack.c.b16 %v3622, %v3604
    %v4523 = vpack.c.b16 %v3623, %v3605
    %v4524 = vpack.c.b16 %v3624, %v3606
    %v4525 = vpack.c.b16 %v3625, %v3607
    %v4526 = vpack.c.b16 %v3626, %v3608
    %v4527 = vpack.c.b16 %v3627, %v3609
    %v4528 = vpack.c.b16 %v3628, %v3610
    %v4529 = vpack.c.b16 %v3629, %v3611
    %v4530 = vpack.c.b16 %v3630, %v3612
    %v4531 = vpack.c.b16 %v3631, %v3613
    %v4532 = vpack.c.b16 %v3632, %v3614
    %v4533 = vpack.c.b16 %v3633, %v3615
    %v4534 = vpack.c.b16 %v3634, %v3616
    %v4535 = vpack.c.b16 %v3635, %v3617
    %v4536 = vpack.c.b16 %v3636, %v3618
    %v4537 = vpack.c.b16 %v3655, %v3637
    %v4538 = vpack.c.b16 %v3656, %v3638
    %v4539 = vpack.c.b16 %v3657, %v3639
    %v4540 = vpack.c.b16 %v3658, %v3640
    %v4541 = vpack.c.b16 %v3659, %v3641
    %v4542 = vpack.c.b16 %v3660, %v3642
    %v4543 = vpack.c.b16 %v3661, %v3643
    %v4544 = vpack.c.b16 %v3662, %v3644
    %v4545 = vpack.c.b16 %v3663, %v3645
    %v4546 = vpack.c.b16 %v3664, %v3646
    %v4547 = vpack.c.b16 %v3665, %v3647
    %v4548 = vpack.c.b16 %v3666, %v3648
    %v4549 = vpack.c.b16 %v3667, %v3649
    %v4550 = vpack.c.b16 %v3668, %v3650
    %v4551 = vpack.c.b16 %v3669, %v3651
    %v4552 = vpack.c.b16 %v3670, %v3652
    %v4553 = vpack.c.b16 %v3671, %v3653
    %v4554 = vpack.c.b16 %v3672, %v3654
    %v4555 = vpack.c.b16 %v3691, %v3673
    %v4556 = vpack.c.b16 %v3692, %v3674
    %v4557 = vpack.c.b16 %v3693, %v3675
    %v4558 = vpack.c.b16 %v3694, %v3676
    %v4559 = vpack.c.b16 %v3695, %v3677
    %v4560 = vpack.c.b16 %v3696, %v3678
    %v4561 = vpack.c.b16 %v3697, %v3679
    %v4562 = vpack.c.b16 %v3698, %v3680
    %v4563 = vpack.c.b16 %v3699, %v3681
    %v4564 = vpack.c.b16 %v3700, %v3682
    %v4565 = vpack.c.b16 %v3701, %v3683
    %v4566 = vpack.c.b16 %v3702, %v3684
    %v4567 = vpack.c.b16 %v3703, %v3685
    %v4568 = vpack.c.b16 %v3704, %v3686
    %v4569 = vpack.c.b16 %v3705, %v3687
    %v4570 = vpack.c.b16 %v3706, %v3688
    %v4571 = vpack.c.b16 %v3707, %v3689
    %v4572 = vpack.c.b16 %v3708, %v3690
    %5437 = vmatprep.subr.bf16.mxu0 %v3710
    %5438 = vmatpush1.bf16.msra.mxu0 %v3709
    %5439 = vmatprep.subr.bf16.mxu0 %v3728
    %5440 = vmatpush1.bf16.msra.mxu0 %v3727
    %5441 = vmatprep.subr.bf16.mxu0 %v3746
    %5442 = vmatpush1.bf16.msra.mxu0 %v3745
    %5443 = vmatprep.subr.bf16.mxu0 %v3764
    %5444 = vmatpush1.bf16.msra.mxu0 %v3763
    %5445 = vmatprep.subr.bf16.mxu0 %v3782
    %5446 = vmatpush1.bf16.msra.mxu0 %v3781
    %5447 = vmatprep.subr.bf16.mxu0 %v3800
    %5448 = vmatpush1.bf16.msra.mxu0 %v3799
    %5449 = vmatprep.subr.bf16.mxu0 %v3818
    %5450 = vmatpush1.bf16.msra.mxu0 %v3817
    %5451 = vmatprep.subr.bf16.mxu0 %v3836
    %5452 = vmatpush1.bf16.msra.mxu0 %v3835
    %5453 = vmatprep.subr.bf16.mxu0 %v3854
    %5454 = vmatpush1.bf16.msra.mxu0 %v3853
    %5455 = vmatprep.subr.bf16.mxu0 %v3872
    %5456 = vmatpush1.bf16.msra.mxu0 %v3871
    %5457 = vmatprep.subr.bf16.mxu0 %v3890
    %5458 = vmatpush1.bf16.msra.mxu0 %v3889
    %5459 = vmatprep.subr.bf16.mxu0 %v3908
    %5460 = vmatpush1.bf16.msra.mxu0 %v3907
    %5461 = vmatprep.subr.bf16.mxu0 %v3926
    %5462 = vmatpush1.bf16.msra.mxu0 %v3925
    %5463 = vmatprep.subr.bf16.mxu0 %v3944
    %5464 = vmatpush1.bf16.msra.mxu0 %v3943
    %5465 = vmatprep.subr.bf16.mxu0 %v3962
    %5466 = vmatpush1.bf16.msra.mxu0 %v3961
    %5467 = vmatprep.subr.bf16.mxu0 %v3980
    %5468 = vmatpush1.bf16.msra.mxu0 %v3979
    %5469 = vmatprep.mubr.bf16.mxu0 %v1106
    %5470 = vmatmul.mubr.bf16.gmra.mrb[0].mxu0 %v1105
    %v5471 = vpop.f32.mrb[0].mxu0
    %v5472 = vadd.f32 %v1000, %v5471
    %v5473 = vpop.f32.mrb[0].mxu0
    %v5474 = vadd.f32 %v1004, %v5473
    %v5475 = vpop.f32.mrb[0].mxu0
    %v5476 = vadd.f32 %v1000, %v5475
    %v5477 = vpop.f32.mrb[0].mxu0
    %v5478 = vadd.f32 %v1004, %v5477
    %5479 = vdwg.mxu0
    %5480 = vmatprep.subr.bf16.mxu0 %v3998
    %5481 = vmatpush1.bf16.msra.mxu0 %v3997
    %5482 = vmatprep.subr.bf16.mxu0 %v4016
    %5483 = vmatpush1.bf16.msra.mxu0 %v4015
    %5484 = vmatprep.subr.bf16.mxu0 %v4034
    %5485 = vmatpush1.bf16.msra.mxu0 %v4033
    %5486 = vmatprep.subr.bf16.mxu0 %v4052
    %5487 = vmatpush1.bf16.msra.mxu0 %v4051
    %5488 = vmatprep.subr.bf16.mxu0 %v4070
    %5489 = vmatpush1.bf16.msra.mxu0 %v4069
    %5490 = vmatprep.subr.bf16.mxu0 %v4088
    %5491 = vmatpush1.bf16.msra.mxu0 %v4087
    %5492 = vmatprep.subr.bf16.mxu0 %v4106
    %5493 = vmatpush1.bf16.msra.mxu0 %v4105
    %5494 = vmatprep.subr.bf16.mxu0 %v4124
    %5495 = vmatpush1.bf16.msra.mxu0 %v4123
    %5496 = vmatprep.subr.bf16.mxu0 %v4142
    %5497 = vmatpush1.bf16.msra.mxu0 %v4141
    %5498 = vmatprep.subr.bf16.mxu0 %v4160
    %5499 = vmatpush1.bf16.msra.mxu0 %v4159
    %5500 = vmatprep.subr.bf16.mxu0 %v4178
    %5501 = vmatpush1.bf16.msra.mxu0 %v4177
    %5502 = vmatprep.subr.bf16.mxu0 %v4196
    %5503 = vmatpush1.bf16.msra.mxu0 %v4195
    %5504 = vmatprep.subr.bf16.mxu0 %v4214
    %5505 = vmatpush1.bf16.msra.mxu0 %v4213
    %5506 = vmatprep.subr.bf16.mxu0 %v4232
    %5507 = vmatpush1.bf16.msra.mxu0 %v4231
    %5508 = vmatprep.subr.bf16.mxu0 %v4250
    %5509 = vmatpush1.bf16.msra.mxu0 %v4249
    %5510 = vmatprep.subr.bf16.mxu0 %v4268
    %5511 = vmatpush1.bf16.msra.mxu0 %v4267
    %5512 = vmatprep.mubr.bf16.mxu0 %v1108
    %5513 = vmatmul.mubr.bf16.gmra.mrb[0].mxu0 %v1107
    %v5514 = vpop.f32.mrb[0].mxu0
    %v5515 = vadd.f32 %v5472, %v5514
    %v5516 = vpop.f32.mrb[0].mxu0
    %v5517 = vadd.f32 %v5474, %v5516
    %v5518 = vpop.f32.mrb[0].mxu0
    %v5519 = vadd.f32 %v5476, %v5518
    %v5520 = vpop.f32.mrb[0].mxu0
    %v5521 = vadd.f32 %v5478, %v5520
    %5522 = vdwg.mxu0
    %5523 = vmatprep.subr.bf16.mxu0 %v4286
    %5524 = vmatpush1.bf16.msra.mxu0 %v4285
    %5525 = vmatprep.subr.bf16.mxu0 %v4304
    %5526 = vmatpush1.bf16.msra.mxu0 %v4303
    %5527 = vmatprep.subr.bf16.mxu0 %v4322
    %5528 = vmatpush1.bf16.msra.mxu0 %v4321
    %5529 = vmatprep.subr.bf16.mxu0 %v4340
    %5530 = vmatpush1.bf16.msra.mxu0 %v4339
    %5531 = vmatprep.subr.bf16.mxu0 %v4358
    %5532 = vmatpush1.bf16.msra.mxu0 %v4357
    %5533 = vmatprep.subr.bf16.mxu0 %v4376
    %5534 = vmatpush1.bf16.msra.mxu0 %v4375
    %5535 = vmatprep.subr.bf16.mxu0 %v4394
    %5536 = vmatpush1.bf16.msra.mxu0 %v4393
    %5537 = vmatprep.subr.bf16.mxu0 %v4412
    %5538 = vmatpush1.bf16.msra.mxu0 %v4411
    %5539 = vmatprep.subr.bf16.mxu0 %v4430
    %5540 = vmatpush1.bf16.msra.mxu0 %v4429
    %5541 = vmatprep.subr.bf16.mxu0 %v4448
    %5542 = vmatpush1.bf16.msra.mxu0 %v4447
    %5543 = vmatprep.subr.bf16.mxu0 %v4466
    %5544 = vmatpush1.bf16.msra.mxu0 %v4465
    %5545 = vmatprep.subr.bf16.mxu0 %v4484
    %5546 = vmatpush1.bf16.msra.mxu0 %v4483
    %5547 = vmatprep.subr.bf16.mxu0 %v4502
    %5548 = vmatpush1.bf16.msra.mxu0 %v4501
    %5549 = vmatprep.subr.bf16.mxu0 %v4520
    %5550 = vmatpush1.bf16.msra.mxu0 %v4519
    %5551 = vmatprep.subr.bf16.mxu0 %v4538
    %5552 = vmatpush1.bf16.msra.mxu0 %v4537
    %5553 = vmatprep.subr.bf16.mxu0 %v4556
    %5554 = vmatpush1.bf16.msra.mxu0 %v4555
    %5555 = vmatprep.mubr.bf16.mxu0 %v1110
    %5556 = vmatmul.mubr.bf16.gmra.mrb[0].mxu0 %v1109
    %v5557 = vpop.f32.mrb[0].mxu0
    %v5558 = vadd.f32 %v5515, %v5557
    %v5559 = vpop.f32.mrb[0].mxu0
    %v5560 = vadd.f32 %v5517, %v5559
    %v5561 = vpop.f32.mrb[0].mxu0
    %v5562 = vadd.f32 %v5519, %v5561
    %v5563 = vpop.f32.mrb[0].mxu0
    %v5564 = vadd.f32 %v5521, %v5563
    %5565 = vdwg.mxu0
    %5566 = vmatprep.subr.bf16.mxu0 %v3712
    %5567 = vmatpush1.bf16.msra.mxu0 %v3711
    %5568 = vmatprep.subr.bf16.mxu0 %v3730
    %5569 = vmatpush1.bf16.msra.mxu0 %v3729
    %5570 = vmatprep.subr.bf16.mxu0 %v3748
    %5571 = vmatpush1.bf16.msra.mxu0 %v3747
    %5572 = vmatprep.subr.bf16.mxu0 %v3766
    %5573 = vmatpush1.bf16.msra.mxu0 %v3765
    %5574 = vmatprep.subr.bf16.mxu0 %v3784
    %5575 = vmatpush1.bf16.msra.mxu0 %v3783
    %5576 = vmatprep.subr.bf16.mxu0 %v3802
    %5577 = vmatpush1.bf16.msra.mxu0 %v3801
    %5578 = vmatprep.subr.bf16.mxu0 %v3820
    %5579 = vmatpush1.bf16.msra.mxu0 %v3819
    %5580 = vmatprep.subr.bf16.mxu0 %v3838
    %5581 = vmatpush1.bf16.msra.mxu0 %v3837
    %5582 = vmatprep.subr.bf16.mxu0 %v3856
    %5583 = vmatpush1.bf16.msra.mxu0 %v3855
    %5584 = vmatprep.subr.bf16.mxu0 %v3874
    %5585 = vmatpush1.bf16.msra.mxu0 %v3873
    %5586 = vmatprep.subr.bf16.mxu0 %v3892
    %5587 = vmatpush1.bf16.msra.mxu0 %v3891
    %5588 = vmatprep.subr.bf16.mxu0 %v3910
    %5589 = vmatpush1.bf16.msra.mxu0 %v3909
    %5590 = vmatprep.subr.bf16.mxu0 %v3928
    %5591 = vmatpush1.bf16.msra.mxu0 %v3927
    %5592 = vmatprep.subr.bf16.mxu0 %v3946
    %5593 = vmatpush1.bf16.msra.mxu0 %v3945
    %5594 = vmatprep.subr.bf16.mxu0 %v3964
    %5595 = vmatpush1.bf16.msra.mxu0 %v3963
    %5596 = vmatprep.subr.bf16.mxu0 %v3982
    %5597 = vmatpush1.bf16.msra.mxu0 %v3981
    %5598 = vmatprep.mubr.bf16.mxu0 %v1106
    %5599 = vmatmul.mubr.bf16.gmra.mrb[0].mxu0 %v1105
    %v5600 = vpop.f32.mrb[0].mxu0
    %v5601 = vadd.f32 %v1008, %v5600
    %v5602 = vpop.f32.mrb[0].mxu0
    %v5603 = vadd.f32 %v1012, %v5602
    %v5604 = vpop.f32.mrb[0].mxu0
    %v5605 = vadd.f32 %v1008, %v5604
    %v5606 = vpop.f32.mrb[0].mxu0
    %v5607 = vadd.f32 %v1012, %v5606
    %5608 = vdwg.mxu0
    %5609 = vmatprep.subr.bf16.mxu0 %v4000
    %5610 = vmatpush1.bf16.msra.mxu0 %v3999
    %5611 = vmatprep.subr.bf16.mxu0 %v4018
    %5612 = vmatpush1.bf16.msra.mxu0 %v4017
    %5613 = vmatprep.subr.bf16.mxu0 %v4036
    %5614 = vmatpush1.bf16.msra.mxu0 %v4035
    %5615 = vmatprep.subr.bf16.mxu0 %v4054
    %5616 = vmatpush1.bf16.msra.mxu0 %v4053
    %5617 = vmatprep.subr.bf16.mxu0 %v4072
    %5618 = vmatpush1.bf16.msra.mxu0 %v4071
    %5619 = vmatprep.subr.bf16.mxu0 %v4090
    %5620 = vmatpush1.bf16.msra.mxu0 %v4089
    %5621 = vmatprep.subr.bf16.mxu0 %v4108
    %5622 = vmatpush1.bf16.msra.mxu0 %v4107
    %5623 = vmatprep.subr.bf16.mxu0 %v4126
    %5624 = vmatpush1.bf16.msra.mxu0 %v4125
    %5625 = vmatprep.subr.bf16.mxu0 %v4144
    %5626 = vmatpush1.bf16.msra.mxu0 %v4143
    %5627 = vmatprep.subr.bf16.mxu0 %v4162
    %5628 = vmatpush1.bf16.msra.mxu0 %v4161
    %5629 = vmatprep.subr.bf16.mxu0 %v4180
    %5630 = vmatpush1.bf16.msra.mxu0 %v4179
    %5631 = vmatprep.subr.bf16.mxu0 %v4198
    %5632 = vmatpush1.bf16.msra.mxu0 %v4197
    %5633 = vmatprep.subr.bf16.mxu0 %v4216
    %5634 = vmatpush1.bf16.msra.mxu0 %v4215
    %5635 = vmatprep.subr.bf16.mxu0 %v4234
    %5636 = vmatpush1.bf16.msra.mxu0 %v4233
    %5637 = vmatprep.subr.bf16.mxu0 %v4252
    %5638 = vmatpush1.bf16.msra.mxu0 %v4251
    %5639 = vmatprep.subr.bf16.mxu0 %v4270
    %5640 = vmatpush1.bf16.msra.mxu0 %v4269
    %5641 = vmatprep.mubr.bf16.mxu0 %v1108
    %5642 = vmatmul.mubr.bf16.gmra.mrb[0].mxu0 %v1107
    %v5643 = vpop.f32.mrb[0].mxu0
    %v5644 = vadd.f32 %v5601, %v5643
    %v5645 = vpop.f32.mrb[0].mxu0
    %v5646 = vadd.f32 %v5603, %v5645
    %v5647 = vpop.f32.mrb[0].mxu0
    %v5648 = vadd.f32 %v5605, %v5647
    %v5649 = vpop.f32.mrb[0].mxu0
    %v5650 = vadd.f32 %v5607, %v5649
    %5651 = vdwg.mxu0
    %5652 = vmatprep.subr.bf16.mxu0 %v4288
    %5653 = vmatpush1.bf16.msra.mxu0 %v4287
    %5654 = vmatprep.subr.bf16.mxu0 %v4306
    %5655 = vmatpush1.bf16.msra.mxu0 %v4305
    %5656 = vmatprep.subr.bf16.mxu0 %v4324
    %5657 = vmatpush1.bf16.msra.mxu0 %v4323
    %5658 = vmatprep.subr.bf16.mxu0 %v4342
    %5659 = vmatpush1.bf16.msra.mxu0 %v4341
    %5660 = vmatprep.subr.bf16.mxu0 %v4360
    %5661 = vmatpush1.bf16.msra.mxu0 %v4359
    %5662 = vmatprep.subr.bf16.mxu0 %v4378
    %5663 = vmatpush1.bf16.msra.mxu0 %v4377
    %5664 = vmatprep.subr.bf16.mxu0 %v4396
    %5665 = vmatpush1.bf16.msra.mxu0 %v4395
    %5666 = vmatprep.subr.bf16.mxu0 %v4414
    %5667 = vmatpush1.bf16.msra.mxu0 %v4413
    %5668 = vmatprep.subr.bf16.mxu0 %v4432
    %5669 = vmatpush1.bf16.msra.mxu0 %v4431
    %5670 = vmatprep.subr.bf16.mxu0 %v4450
    %5671 = vmatpush1.bf16.msra.mxu0 %v4449
    %5672 = vmatprep.subr.bf16.mxu0 %v4468
    %5673 = vmatpush1.bf16.msra.mxu0 %v4467
    %5674 = vmatprep.subr.bf16.mxu0 %v4486
    %5675 = vmatpush1.bf16.msra.mxu0 %v4485
    %5676 = vmatprep.subr.bf16.mxu0 %v4504
    %5677 = vmatpush1.bf16.msra.mxu0 %v4503
    %5678 = vmatprep.subr.bf16.mxu0 %v4522
    %5679 = vmatpush1.bf16.msra.mxu0 %v4521
    %5680 = vmatprep.subr.bf16.mxu0 %v4540
    %5681 = vmatpush1.bf16.msra.mxu0 %v4539
    %5682 = vmatprep.subr.bf16.mxu0 %v4558
    %5683 = vmatpush1.bf16.msra.mxu0 %v4557
    %5684 = vmatprep.mubr.bf16.mxu0 %v1110
    %5685 = vmatmul.mubr.bf16.gmra.mrb[0].mxu0 %v1109
    %v5686 = vpop.f32.mrb[0].mxu0
    %v5687 = vadd.f32 %v5644, %v5686
    %v5688 = vpop.f32.mrb[0].mxu0
    %v5689 = vadd.f32 %v5646, %v5688
    %v5690 = vpop.f32.mrb[0].mxu0
    %v5691 = vadd.f32 %v5648, %v5690
    %v5692 = vpop.f32.mrb[0].mxu0
    %v5693 = vadd.f32 %v5650, %v5692
    %5694 = vdwg.mxu0
    %5695 = vmatprep.subr.bf16.mxu0 %v3714
    %5696 = vmatpush1.bf16.msra.mxu0 %v3713
    %5697 = vmatprep.subr.bf16.mxu0 %v3732
    %5698 = vmatpush1.bf16.msra.mxu0 %v3731
    %5699 = vmatprep.subr.bf16.mxu0 %v3750
    %5700 = vmatpush1.bf16.msra.mxu0 %v3749
    %5701 = vmatprep.subr.bf16.mxu0 %v3768
    %5702 = vmatpush1.bf16.msra.mxu0 %v3767
    %5703 = vmatprep.subr.bf16.mxu0 %v3786
    %5704 = vmatpush1.bf16.msra.mxu0 %v3785
    %5705 = vmatprep.subr.bf16.mxu0 %v3804
    %5706 = vmatpush1.bf16.msra.mxu0 %v3803
    %5707 = vmatprep.subr.bf16.mxu0 %v3822
    %5708 = vmatpush1.bf16.msra.mxu0 %v3821
    %5709 = vmatprep.subr.bf16.mxu0 %v3840
    %5710 = vmatpush1.bf16.msra.mxu0 %v3839
    %5711 = vmatprep.subr.bf16.mxu0 %v3858
    %5712 = vmatpush1.bf16.msra.mxu0 %v3857
    %5713 = vmatprep.subr.bf16.mxu0 %v3876
    %5714 = vmatpush1.bf16.msra.mxu0 %v3875
    %5715 = vmatprep.subr.bf16.mxu0 %v3894
    %5716 = vmatpush1.bf16.msra.mxu0 %v3893
    %5717 = vmatprep.subr.bf16.mxu0 %v3912
    %5718 = vmatpush1.bf16.msra.mxu0 %v3911
    %5719 = vmatprep.subr.bf16.mxu0 %v3930
    %5720 = vmatpush1.bf16.msra.mxu0 %v3929
    %5721 = vmatprep.subr.bf16.mxu0 %v3948
    %5722 = vmatpush1.bf16.msra.mxu0 %v3947
    %5723 = vmatprep.subr.bf16.mxu0 %v3966
    %5724 = vmatpush1.bf16.msra.mxu0 %v3965
    %5725 = vmatprep.subr.bf16.mxu0 %v3984
    %5726 = vmatpush1.bf16.msra.mxu0 %v3983
    %5727 = vmatprep.mubr.bf16.mxu0 %v1106
    %5728 = vmatmul.mubr.bf16.gmra.mrb[0].mxu0 %v1105
    %v5729 = vpop.f32.mrb[0].mxu0
    %v5730 = vadd.f32 %v1016, %v5729
    %v5731 = vpop.f32.mrb[0].mxu0
    %v5732 = vadd.f32 %v1020, %v5731
    %v5733 = vpop.f32.mrb[0].mxu0
    %v5734 = vadd.f32 %v1016, %v5733
    %v5735 = vpop.f32.mrb[0].mxu0
    %v5736 = vadd.f32 %v1020, %v5735
    %5737 = vdwg.mxu0
    %5738 = vmatprep.subr.bf16.mxu0 %v4002
    %5739 = vmatpush1.bf16.msra.mxu0 %v4001
    %5740 = vmatprep.subr.bf16.mxu0 %v4020
    %5741 = vmatpush1.bf16.msra.mxu0 %v4019
    %5742 = vmatprep.subr.bf16.mxu0 %v4038
    %5743 = vmatpush1.bf16.msra.mxu0 %v4037
    %5744 = vmatprep.subr.bf16.mxu0 %v4056
    %5745 = vmatpush1.bf16.msra.mxu0 %v4055
    %5746 = vmatprep.subr.bf16.mxu0 %v4074
    %5747 = vmatpush1.bf16.msra.mxu0 %v4073
    %5748 = vmatprep.subr.bf16.mxu0 %v4092
    %5749 = vmatpush1.bf16.msra.mxu0 %v4091
    %5750 = vmatprep.subr.bf16.mxu0 %v4110
    %5751 = vmatpush1.bf16.msra.mxu0 %v4109
    %5752 = vmatprep.subr.bf16.mxu0 %v4128
    %5753 = vmatpush1.bf16.msra.mxu0 %v4127
    %5754 = vmatprep.subr.bf16.mxu0 %v4146
    %5755 = vmatpush1.bf16.msra.mxu0 %v4145
    %5756 = vmatprep.subr.bf16.mxu0 %v4164
    %5757 = vmatpush1.bf16.msra.mxu0 %v4163
    %5758 = vmatprep.subr.bf16.mxu0 %v4182
    %5759 = vmatpush1.bf16.msra.mxu0 %v4181
    %5760 = vmatprep.subr.bf16.mxu0 %v4200
    %5761 = vmatpush1.bf16.msra.mxu0 %v4199
    %5762 = vmatprep.subr.bf16.mxu0 %v4218
    %5763 = vmatpush1.bf16.msra.mxu0 %v4217
    %5764 = vmatprep.subr.bf16.mxu0 %v4236
    %5765 = vmatpush1.bf16.msra.mxu0 %v4235
    %5766 = vmatprep.subr.bf16.mxu0 %v4254
    %5767 = vmatpush1.bf16.msra.mxu0 %v4253
    %5768 = vmatprep.subr.bf16.mxu0 %v4272
    %5769 = vmatpush1.bf16.msra.mxu0 %v4271
    %5770 = vmatprep.mubr.bf16.mxu0 %v1108
    %5771 = vmatmul.mubr.bf16.gmra.mrb[0].mxu0 %v1107
    %v5772 = vpop.f32.mrb[0].mxu0
    %v5773 = vadd.f32 %v5730, %v5772
    %v5774 = vpop.f32.mrb[0].mxu0
    %v5775 = vadd.f32 %v5732, %v5774
    %v5776 = vpop.f32.mrb[0].mxu0
    %v5777 = vadd.f32 %v5734, %v5776
    %v5778 = vpop.f32.mrb[0].mxu0
    %v5779 = vadd.f32 %v5736, %v5778
    %5780 = vdwg.mxu0
    %5781 = vmatprep.subr.bf16.mxu0 %v4290
    %5782 = vmatpush1.bf16.msra.mxu0 %v4289
    %5783 = vmatprep.subr.bf16.mxu0 %v4308
    %5784 = vmatpush1.bf16.msra.mxu0 %v4307
    %5785 = vmatprep.subr.bf16.mxu0 %v4326
    %5786 = vmatpush1.bf16.msra.mxu0 %v4325
    %5787 = vmatprep.subr.bf16.mxu0 %v4344
    %5788 = vmatpush1.bf16.msra.mxu0 %v4343
    %5789 = vmatprep.subr.bf16.mxu0 %v4362
    %5790 = vmatpush1.bf16.msra.mxu0 %v4361
    %5791 = vmatprep.subr.bf16.mxu0 %v4380
    %5792 = vmatpush1.bf16.msra.mxu0 %v4379
    %5793 = vmatprep.subr.bf16.mxu0 %v4398
    %5794 = vmatpush1.bf16.msra.mxu0 %v4397
    %5795 = vmatprep.subr.bf16.mxu0 %v4416
    %5796 = vmatpush1.bf16.msra.mxu0 %v4415
    %5797 = vmatprep.subr.bf16.mxu0 %v4434
    %5798 = vmatpush1.bf16.msra.mxu0 %v4433
    %5799 = vmatprep.subr.bf16.mxu0 %v4452
    %5800 = vmatpush1.bf16.msra.mxu0 %v4451
    %5801 = vmatprep.subr.bf16.mxu0 %v4470
    %5802 = vmatpush1.bf16.msra.mxu0 %v4469
    %5803 = vmatprep.subr.bf16.mxu0 %v4488
    %5804 = vmatpush1.bf16.msra.mxu0 %v4487
    %5805 = vmatprep.subr.bf16.mxu0 %v4506
    %5806 = vmatpush1.bf16.msra.mxu0 %v4505
    %5807 = vmatprep.subr.bf16.mxu0 %v4524
    %5808 = vmatpush1.bf16.msra.mxu0 %v4523
    %5809 = vmatprep.subr.bf16.mxu0 %v4542
    %5810 = vmatpush1.bf16.msra.mxu0 %v4541
    %5811 = vmatprep.subr.bf16.mxu0 %v4560
    %5812 = vmatpush1.bf16.msra.mxu0 %v4559
    %5813 = vmatprep.mubr.bf16.mxu0 %v1110
    %5814 = vmatmul.mubr.bf16.gmra.mrb[0].mxu0 %v1109
    %v5815 = vpop.f32.mrb[0].mxu0
    %v5816 = vadd.f32 %v5773, %v5815
    %v5817 = vpop.f32.mrb[0].mxu0
    %v5818 = vadd.f32 %v5775, %v5817
    %v5819 = vpop.f32.mrb[0].mxu0
    %v5820 = vadd.f32 %v5777, %v5819
    %v5821 = vpop.f32.mrb[0].mxu0
    %v5822 = vadd.f32 %v5779, %v5821
    %5823 = vdwg.mxu0
    %5824 = vmatprep.subr.bf16.mxu0 %v3716
    %5825 = vmatpush1.bf16.msra.mxu0 %v3715
    %5826 = vmatprep.subr.bf16.mxu0 %v3734
    %5827 = vmatpush1.bf16.msra.mxu0 %v3733
    %5828 = vmatprep.subr.bf16.mxu0 %v3752
    %5829 = vmatpush1.bf16.msra.mxu0 %v3751
    %5830 = vmatprep.subr.bf16.mxu0 %v3770
    %5831 = vmatpush1.bf16.msra.mxu0 %v3769
    %5832 = vmatprep.subr.bf16.mxu0 %v3788
    %5833 = vmatpush1.bf16.msra.mxu0 %v3787
    %5834 = vmatprep.subr.bf16.mxu0 %v3806
    %5835 = vmatpush1.bf16.msra.mxu0 %v3805
    %5836 = vmatprep.subr.bf16.mxu0 %v3824
    %5837 = vmatpush1.bf16.msra.mxu0 %v3823
    %5838 = vmatprep.subr.bf16.mxu0 %v3842
    %5839 = vmatpush1.bf16.msra.mxu0 %v3841
    %5840 = vmatprep.subr.bf16.mxu0 %v3860
    %5841 = vmatpush1.bf16.msra.mxu0 %v3859
    %5842 = vmatprep.subr.bf16.mxu0 %v3878
    %5843 = vmatpush1.bf16.msra.mxu0 %v3877
    %5844 = vmatprep.subr.bf16.mxu0 %v3896
    %5845 = vmatpush1.bf16.msra.mxu0 %v3895
    %5846 = vmatprep.subr.bf16.mxu0 %v3914
    %5847 = vmatpush1.bf16.msra.mxu0 %v3913
    %5848 = vmatprep.subr.bf16.mxu0 %v3932
    %5849 = vmatpush1.bf16.msra.mxu0 %v3931
    %5850 = vmatprep.subr.bf16.mxu0 %v3950
    %5851 = vmatpush1.bf16.msra.mxu0 %v3949
    %5852 = vmatprep.subr.bf16.mxu0 %v3968
    %5853 = vmatpush1.bf16.msra.mxu0 %v3967
    %5854 = vmatprep.subr.bf16.mxu0 %v3986
    %5855 = vmatpush1.bf16.msra.mxu0 %v3985
    %5856 = vmatprep.mubr.bf16.mxu0 %v1106
    %5857 = vmatmul.mubr.bf16.gmra.mrb[0].mxu0 %v1105
    %v5858 = vpop.f32.mrb[0].mxu0
    %v5859 = vadd.f32 %v1024, %v5858
    %v5860 = vpop.f32.mrb[0].mxu0
    %v5861 = vadd.f32 %v1028, %v5860
    %v5862 = vpop.f32.mrb[0].mxu0
    %v5863 = vadd.f32 %v1024, %v5862
    %v5864 = vpop.f32.mrb[0].mxu0
    %v5865 = vadd.f32 %v1028, %v5864
    %5866 = vdwg.mxu0
    %5867 = vmatprep.subr.bf16.mxu0 %v4004
    %5868 = vmatpush1.bf16.msra.mxu0 %v4003
    %5869 = vmatprep.subr.bf16.mxu0 %v4022
    %5870 = vmatpush1.bf16.msra.mxu0 %v4021
    %5871 = vmatprep.subr.bf16.mxu0 %v4040
    %5872 = vmatpush1.bf16.msra.mxu0 %v4039
    %5873 = vmatprep.subr.bf16.mxu0 %v4058
    %5874 = vmatpush1.bf16.msra.mxu0 %v4057
    %5875 = vmatprep.subr.bf16.mxu0 %v4076
    %5876 = vmatpush1.bf16.msra.mxu0 %v4075
    %5877 = vmatprep.subr.bf16.mxu0 %v4094
    %5878 = vmatpush1.bf16.msra.mxu0 %v4093
    %5879 = vmatprep.subr.bf16.mxu0 %v4112
    %5880 = vmatpush1.bf16.msra.mxu0 %v4111
    %5881 = vmatprep.subr.bf16.mxu0 %v4130
    %5882 = vmatpush1.bf16.msra.mxu0 %v4129
    %5883 = vmatprep.subr.bf16.mxu0 %v4148
    %5884 = vmatpush1.bf16.msra.mxu0 %v4147
    %5885 = vmatprep.subr.bf16.mxu0 %v4166
    %5886 = vmatpush1.bf16.msra.mxu0 %v4165
    %5887 = vmatprep.subr.bf16.mxu0 %v4184
    %5888 = vmatpush1.bf16.msra.mxu0 %v4183
    %5889 = vmatprep.subr.bf16.mxu0 %v4202
    %5890 = vmatpush1.bf16.msra.mxu0 %v4201
    %5891 = vmatprep.subr.bf16.mxu0 %v4220
    %5892 = vmatpush1.bf16.msra.mxu0 %v4219
    %5893 = vmatprep.subr.bf16.mxu0 %v4238
    %5894 = vmatpush1.bf16.msra.mxu0 %v4237
    %5895 = vmatprep.subr.bf16.mxu0 %v4256
    %5896 = vmatpush1.bf16.msra.mxu0 %v4255
    %5897 = vmatprep.subr.bf16.mxu0 %v4274
    %5898 = vmatpush1.bf16.msra.mxu0 %v4273
    %5899 = vmatprep.mubr.bf16.mxu0 %v1108
    %5900 = vmatmul.mubr.bf16.gmra.mrb[0].mxu0 %v1107
    %v5901 = vpop.f32.mrb[0].mxu0
    %v5902 = vadd.f32 %v5859, %v5901
    %v5903 = vpop.f32.mrb[0].mxu0
    %v5904 = vadd.f32 %v5861, %v5903
    %v5905 = vpop.f32.mrb[0].mxu0
    %v5906 = vadd.f32 %v5863, %v5905
    %v5907 = vpop.f32.mrb[0].mxu0
    %v5908 = vadd.f32 %v5865, %v5907
    %5909 = vdwg.mxu0
    %5910 = vmatprep.subr.bf16.mxu0 %v4292
    %5911 = vmatpush1.bf16.msra.mxu0 %v4291
    %5912 = vmatprep.subr.bf16.mxu0 %v4310
    %5913 = vmatpush1.bf16.msra.mxu0 %v4309
    %5914 = vmatprep.subr.bf16.mxu0 %v4328
    %5915 = vmatpush1.bf16.msra.mxu0 %v4327
    %5916 = vmatprep.subr.bf16.mxu0 %v4346
    %5917 = vmatpush1.bf16.msra.mxu0 %v4345
    %5918 = vmatprep.subr.bf16.mxu0 %v4364
    %5919 = vmatpush1.bf16.msra.mxu0 %v4363
    %5920 = vmatprep.subr.bf16.mxu0 %v4382
    %5921 = vmatpush1.bf16.msra.mxu0 %v4381
    %5922 = vmatprep.subr.bf16.mxu0 %v4400
    %5923 = vmatpush1.bf16.msra.mxu0 %v4399
    %5924 = vmatprep.subr.bf16.mxu0 %v4418
    %5925 = vmatpush1.bf16.msra.mxu0 %v4417
    %5926 = vmatprep.subr.bf16.mxu0 %v4436
    %5927 = vmatpush1.bf16.msra.mxu0 %v4435
    %5928 = vmatprep.subr.bf16.mxu0 %v4454
    %5929 = vmatpush1.bf16.msra.mxu0 %v4453
    %5930 = vmatprep.subr.bf16.mxu0 %v4472
    %5931 = vmatpush1.bf16.msra.mxu0 %v4471
    %5932 = vmatprep.subr.bf16.mxu0 %v4490
    %5933 = vmatpush1.bf16.msra.mxu0 %v4489
    %5934 = vmatprep.subr.bf16.mxu0 %v4508
    %5935 = vmatpush1.bf16.msra.mxu0 %v4507
    %5936 = vmatprep.subr.bf16.mxu0 %v4526
    %5937 = vmatpush1.bf16.msra.mxu0 %v4525
    %5938 = vmatprep.subr.bf16.mxu0 %v4544
    %5939 = vmatpush1.bf16.msra.mxu0 %v4543
    %5940 = vmatprep.subr.bf16.mxu0 %v4562
    %5941 = vmatpush1.bf16.msra.mxu0 %v4561
    %5942 = vmatprep.mubr.bf16.mxu0 %v1110
    %5943 = vmatmul.mubr.bf16.gmra.mrb[0].mxu0 %v1109
    %v5944 = vpop.f32.mrb[0].mxu0
    %v5945 = vadd.f32 %v5902, %v5944
    %v5946 = vpop.f32.mrb[0].mxu0
    %v5947 = vadd.f32 %v5904, %v5946
    %v5948 = vpop.f32.mrb[0].mxu0
    %v5949 = vadd.f32 %v5906, %v5948
    %v5950 = vpop.f32.mrb[0].mxu0
    %v5951 = vadd.f32 %v5908, %v5950
    %5952 = vdwg.mxu0
    %5953 = vmatprep.subr.bf16.mxu0 %v3718
    %5954 = vmatpush1.bf16.msra.mxu0 %v3717
    %5955 = vmatprep.subr.bf16.mxu0 %v3736
    %5956 = vmatpush1.bf16.msra.mxu0 %v3735
    %5957 = vmatprep.subr.bf16.mxu0 %v3754
    %5958 = vmatpush1.bf16.msra.mxu0 %v3753
    %5959 = vmatprep.subr.bf16.mxu0 %v3772
    %5960 = vmatpush1.bf16.msra.mxu0 %v3771
    %5961 = vmatprep.subr.bf16.mxu0 %v3790
    %5962 = vmatpush1.bf16.msra.mxu0 %v3789
    %5963 = vmatprep.subr.bf16.mxu0 %v3808
    %5964 = vmatpush1.bf16.msra.mxu0 %v3807
    %5965 = vmatprep.subr.bf16.mxu0 %v3826
    %5966 = vmatpush1.bf16.msra.mxu0 %v3825
    %5967 = vmatprep.subr.bf16.mxu0 %v3844
    %5968 = vmatpush1.bf16.msra.mxu0 %v3843
    %5969 = vmatprep.subr.bf16.mxu0 %v3862
    %5970 = vmatpush1.bf16.msra.mxu0 %v3861
    %5971 = vmatprep.subr.bf16.mxu0 %v3880
    %5972 = vmatpush1.bf16.msra.mxu0 %v3879
    %5973 = vmatprep.subr.bf16.mxu0 %v3898
    %5974 = vmatpush1.bf16.msra.mxu0 %v3897
    %5975 = vmatprep.subr.bf16.mxu0 %v3916
    %5976 = vmatpush1.bf16.msra.mxu0 %v3915
    %5977 = vmatprep.subr.bf16.mxu0 %v3934
    %5978 = vmatpush1.bf16.msra.mxu0 %v3933
    %5979 = vmatprep.subr.bf16.mxu0 %v3952
    %5980 = vmatpush1.bf16.msra.mxu0 %v3951
    %5981 = vmatprep.subr.bf16.mxu0 %v3970
    %5982 = vmatpush1.bf16.msra.mxu0 %v3969
    %5983 = vmatprep.subr.bf16.mxu0 %v3988
    %5984 = vmatpush1.bf16.msra.mxu0 %v3987
    %5985 = vmatprep.mubr.bf16.mxu0 %v1106
    %5986 = vmatmul.mubr.bf16.gmra.mrb[0].mxu0 %v1105
    %v5987 = vpop.f32.mrb[0].mxu0
    %v5988 = vadd.f32 %v1032, %v5987
    %v5989 = vpop.f32.mrb[0].mxu0
    %v5990 = vadd.f32 %v1036, %v5989
    %v5991 = vpop.f32.mrb[0].mxu0
    %v5992 = vadd.f32 %v1032, %v5991
    %v5993 = vpop.f32.mrb[0].mxu0
    %v5994 = vadd.f32 %v1036, %v5993
    %5995 = vdwg.mxu0
    %5996 = vmatprep.subr.bf16.mxu0 %v4006
    %5997 = vmatpush1.bf16.msra.mxu0 %v4005
    %5998 = vmatprep.subr.bf16.mxu0 %v4024
    %5999 = vmatpush1.bf16.msra.mxu0 %v4023
    %6000 = vmatprep.subr.bf16.mxu0 %v4042
    %6001 = vmatpush1.bf16.msra.mxu0 %v4041
    %6002 = vmatprep.subr.bf16.mxu0 %v4060
    %6003 = vmatpush1.bf16.msra.mxu0 %v4059
    %6004 = vmatprep.subr.bf16.mxu0 %v4078
    %6005 = vmatpush1.bf16.msra.mxu0 %v4077
    %6006 = vmatprep.subr.bf16.mxu0 %v4096
    %6007 = vmatpush1.bf16.msra.mxu0 %v4095
    %6008 = vmatprep.subr.bf16.mxu0 %v4114
    %6009 = vmatpush1.bf16.msra.mxu0 %v4113
    %6010 = vmatprep.subr.bf16.mxu0 %v4132
    %6011 = vmatpush1.bf16.msra.mxu0 %v4131
    %6012 = vmatprep.subr.bf16.mxu0 %v4150
    %6013 = vmatpush1.bf16.msra.mxu0 %v4149
    %6014 = vmatprep.subr.bf16.mxu0 %v4168
    %6015 = vmatpush1.bf16.msra.mxu0 %v4167
    %6016 = vmatprep.subr.bf16.mxu0 %v4186
    %6017 = vmatpush1.bf16.msra.mxu0 %v4185
    %6018 = vmatprep.subr.bf16.mxu0 %v4204
    %6019 = vmatpush1.bf16.msra.mxu0 %v4203
    %6020 = vmatprep.subr.bf16.mxu0 %v4222
    %6021 = vmatpush1.bf16.msra.mxu0 %v4221
    %6022 = vmatprep.subr.bf16.mxu0 %v4240
    %6023 = vmatpush1.bf16.msra.mxu0 %v4239
    %6024 = vmatprep.subr.bf16.mxu0 %v4258
    %6025 = vmatpush1.bf16.msra.mxu0 %v4257
    %6026 = vmatprep.subr.bf16.mxu0 %v4276
    %6027 = vmatpush1.bf16.msra.mxu0 %v4275
    %6028 = vmatprep.mubr.bf16.mxu0 %v1108
    %6029 = vmatmul.mubr.bf16.gmra.mrb[0].mxu0 %v1107
    %v6030 = vpop.f32.mrb[0].mxu0
    %v6031 = vadd.f32 %v5988, %v6030
    %v6032 = vpop.f32.mrb[0].mxu0
    %v6033 = vadd.f32 %v5990, %v6032
    %v6034 = vpop.f32.mrb[0].mxu0
    %v6035 = vadd.f32 %v5992, %v6034
    %v6036 = vpop.f32.mrb[0].mxu0
    %v6037 = vadd.f32 %v5994, %v6036
    %6038 = vdwg.mxu0
    %6039 = vmatprep.subr.bf16.mxu0 %v4294
    %6040 = vmatpush1.bf16.msra.mxu0 %v4293
    %6041 = vmatprep.subr.bf16.mxu0 %v4312
    %6042 = vmatpush1.bf16.msra.mxu0 %v4311
    %6043 = vmatprep.subr.bf16.mxu0 %v4330
    %6044 = vmatpush1.bf16.msra.mxu0 %v4329
    %6045 = vmatprep.subr.bf16.mxu0 %v4348
    %6046 = vmatpush1.bf16.msra.mxu0 %v4347
    %6047 = vmatprep.subr.bf16.mxu0 %v4366
    %6048 = vmatpush1.bf16.msra.mxu0 %v4365
    %6049 = vmatprep.subr.bf16.mxu0 %v4384
    %6050 = vmatpush1.bf16.msra.mxu0 %v4383
    %6051 = vmatprep.subr.bf16.mxu0 %v4402
    %6052 = vmatpush1.bf16.msra.mxu0 %v4401
    %6053 = vmatprep.subr.bf16.mxu0 %v4420
    %6054 = vmatpush1.bf16.msra.mxu0 %v4419
    %6055 = vmatprep.subr.bf16.mxu0 %v4438
    %6056 = vmatpush1.bf16.msra.mxu0 %v4437
    %6057 = vmatprep.subr.bf16.mxu0 %v4456
    %6058 = vmatpush1.bf16.msra.mxu0 %v4455
    %6059 = vmatprep.subr.bf16.mxu0 %v4474
    %6060 = vmatpush1.bf16.msra.mxu0 %v4473
    %6061 = vmatprep.subr.bf16.mxu0 %v4492
    %6062 = vmatpush1.bf16.msra.mxu0 %v4491
    %6063 = vmatprep.subr.bf16.mxu0 %v4510
    %6064 = vmatpush1.bf16.msra.mxu0 %v4509
    %6065 = vmatprep.subr.bf16.mxu0 %v4528
    %6066 = vmatpush1.bf16.msra.mxu0 %v4527
    %6067 = vmatprep.subr.bf16.mxu0 %v4546
    %6068 = vmatpush1.bf16.msra.mxu0 %v4545
    %6069 = vmatprep.subr.bf16.mxu0 %v4564
    %6070 = vmatpush1.bf16.msra.mxu0 %v4563
    %6071 = vmatprep.mubr.bf16.mxu0 %v1110
    %6072 = vmatmul.mubr.bf16.gmra.mrb[0].mxu0 %v1109
    %v6073 = vpop.f32.mrb[0].mxu0
    %v6074 = vadd.f32 %v6031, %v6073
    %v6075 = vpop.f32.mrb[0].mxu0
    %v6076 = vadd.f32 %v6033, %v6075
    %v6077 = vpop.f32.mrb[0].mxu0
    %v6078 = vadd.f32 %v6035, %v6077
    %v6079 = vpop.f32.mrb[0].mxu0
    %v6080 = vadd.f32 %v6037, %v6079
    %6081 = vdwg.mxu0
    %6082 = vmatprep.subr.bf16.mxu0 %v3720
    %6083 = vmatpush1.bf16.msra.mxu0 %v3719
    %6084 = vmatprep.subr.bf16.mxu0 %v3738
    %6085 = vmatpush1.bf16.msra.mxu0 %v3737
    %6086 = vmatprep.subr.bf16.mxu0 %v3756
    %6087 = vmatpush1.bf16.msra.mxu0 %v3755
    %6088 = vmatprep.subr.bf16.mxu0 %v3774
    %6089 = vmatpush1.bf16.msra.mxu0 %v3773
    %6090 = vmatprep.subr.bf16.mxu0 %v3792
    %6091 = vmatpush1.bf16.msra.mxu0 %v3791
    %6092 = vmatprep.subr.bf16.mxu0 %v3810
    %6093 = vmatpush1.bf16.msra.mxu0 %v3809
    %6094 = vmatprep.subr.bf16.mxu0 %v3828
    %6095 = vmatpush1.bf16.msra.mxu0 %v3827
    %6096 = vmatprep.subr.bf16.mxu0 %v3846
    %6097 = vmatpush1.bf16.msra.mxu0 %v3845
    %6098 = vmatprep.subr.bf16.mxu0 %v3864
    %6099 = vmatpush1.bf16.msra.mxu0 %v3863
    %6100 = vmatprep.subr.bf16.mxu0 %v3882
    %6101 = vmatpush1.bf16.msra.mxu0 %v3881
    %6102 = vmatprep.subr.bf16.mxu0 %v3900
    %6103 = vmatpush1.bf16.msra.mxu0 %v3899
    %6104 = vmatprep.subr.bf16.mxu0 %v3918
    %6105 = vmatpush1.bf16.msra.mxu0 %v3917
    %6106 = vmatprep.subr.bf16.mxu0 %v3936
    %6107 = vmatpush1.bf16.msra.mxu0 %v3935
    %6108 = vmatprep.subr.bf16.mxu0 %v3954
    %6109 = vmatpush1.bf16.msra.mxu0 %v3953
    %6110 = vmatprep.subr.bf16.mxu0 %v3972
    %6111 = vmatpush1.bf16.msra.mxu0 %v3971
    %6112 = vmatprep.subr.bf16.mxu0 %v3990
    %6113 = vmatpush1.bf16.msra.mxu0 %v3989
    %6114 = vmatprep.mubr.bf16.mxu0 %v1106
    %6115 = vmatmul.mubr.bf16.gmra.mrb[0].mxu0 %v1105
    %v6116 = vpop.f32.mrb[0].mxu0
    %v6117 = vadd.f32 %v1040, %v6116
    %v6118 = vpop.f32.mrb[0].mxu0
    %v6119 = vadd.f32 %v1044, %v6118
    %v6120 = vpop.f32.mrb[0].mxu0
    %v6121 = vadd.f32 %v1040, %v6120
    %v6122 = vpop.f32.mrb[0].mxu0
    %v6123 = vadd.f32 %v1044, %v6122
    %6124 = vdwg.mxu0
    %6125 = vmatprep.subr.bf16.mxu0 %v4008
    %6126 = vmatpush1.bf16.msra.mxu0 %v4007
    %6127 = vmatprep.subr.bf16.mxu0 %v4026
    %6128 = vmatpush1.bf16.msra.mxu0 %v4025
    %6129 = vmatprep.subr.bf16.mxu0 %v4044
    %6130 = vmatpush1.bf16.msra.mxu0 %v4043
    %6131 = vmatprep.subr.bf16.mxu0 %v4062
    %6132 = vmatpush1.bf16.msra.mxu0 %v4061
    %6133 = vmatprep.subr.bf16.mxu0 %v4080
    %6134 = vmatpush1.bf16.msra.mxu0 %v4079
    %6135 = vmatprep.subr.bf16.mxu0 %v4098
    %6136 = vmatpush1.bf16.msra.mxu0 %v4097
    %6137 = vmatprep.subr.bf16.mxu0 %v4116
    %6138 = vmatpush1.bf16.msra.mxu0 %v4115
    %6139 = vmatprep.subr.bf16.mxu0 %v4134
    %6140 = vmatpush1.bf16.msra.mxu0 %v4133
    %6141 = vmatprep.subr.bf16.mxu0 %v4152
    %6142 = vmatpush1.bf16.msra.mxu0 %v4151
    %6143 = vmatprep.subr.bf16.mxu0 %v4170
    %6144 = vmatpush1.bf16.msra.mxu0 %v4169
    %6145 = vmatprep.subr.bf16.mxu0 %v4188
    %6146 = vmatpush1.bf16.msra.mxu0 %v4187
    %6147 = vmatprep.subr.bf16.mxu0 %v4206
    %6148 = vmatpush1.bf16.msra.mxu0 %v4205
    %6149 = vmatprep.subr.bf16.mxu0 %v4224
    %6150 = vmatpush1.bf16.msra.mxu0 %v4223
    %6151 = vmatprep.subr.bf16.mxu0 %v4242
    %6152 = vmatpush1.bf16.msra.mxu0 %v4241
    %6153 = vmatprep.subr.bf16.mxu0 %v4260
    %6154 = vmatpush1.bf16.msra.mxu0 %v4259
    %6155 = vmatprep.subr.bf16.mxu0 %v4278
    %6156 = vmatpush1.bf16.msra.mxu0 %v4277
    %6157 = vmatprep.mubr.bf16.mxu0 %v1108
    %6158 = vmatmul.mubr.bf16.gmra.mrb[0].mxu0 %v1107
    %v6159 = vpop.f32.mrb[0].mxu0
    %v6160 = vadd.f32 %v6117, %v6159
    %v6161 = vpop.f32.mrb[0].mxu0
    %v6162 = vadd.f32 %v6119, %v6161
    %v6163 = vpop.f32.mrb[0].mxu0
    %v6164 = vadd.f32 %v6121, %v6163
    %v6165 = vpop.f32.mrb[0].mxu0
    %v6166 = vadd.f32 %v6123, %v6165
    %6167 = vdwg.mxu0
    %6168 = vmatprep.subr.bf16.mxu0 %v4296
    %6169 = vmatpush1.bf16.msra.mxu0 %v4295
    %6170 = vmatprep.subr.bf16.mxu0 %v4314
    %6171 = vmatpush1.bf16.msra.mxu0 %v4313
    %6172 = vmatprep.subr.bf16.mxu0 %v4332
    %6173 = vmatpush1.bf16.msra.mxu0 %v4331
    %6174 = vmatprep.subr.bf16.mxu0 %v4350
    %6175 = vmatpush1.bf16.msra.mxu0 %v4349
    %6176 = vmatprep.subr.bf16.mxu0 %v4368
    %6177 = vmatpush1.bf16.msra.mxu0 %v4367
    %6178 = vmatprep.subr.bf16.mxu0 %v4386
    %6179 = vmatpush1.bf16.msra.mxu0 %v4385
    %6180 = vmatprep.subr.bf16.mxu0 %v4404
    %6181 = vmatpush1.bf16.msra.mxu0 %v4403
    %6182 = vmatprep.subr.bf16.mxu0 %v4422
    %6183 = vmatpush1.bf16.msra.mxu0 %v4421
    %6184 = vmatprep.subr.bf16.mxu0 %v4440
    %6185 = vmatpush1.bf16.msra.mxu0 %v4439
    %6186 = vmatprep.subr.bf16.mxu0 %v4458
    %6187 = vmatpush1.bf16.msra.mxu0 %v4457
    %6188 = vmatprep.subr.bf16.mxu0 %v4476
    %6189 = vmatpush1.bf16.msra.mxu0 %v4475
    %6190 = vmatprep.subr.bf16.mxu0 %v4494
    %6191 = vmatpush1.bf16.msra.mxu0 %v4493
    %6192 = vmatprep.subr.bf16.mxu0 %v4512
    %6193 = vmatpush1.bf16.msra.mxu0 %v4511
    %6194 = vmatprep.subr.bf16.mxu0 %v4530
    %6195 = vmatpush1.bf16.msra.mxu0 %v4529
    %6196 = vmatprep.subr.bf16.mxu0 %v4548
    %6197 = vmatpush1.bf16.msra.mxu0 %v4547
    %6198 = vmatprep.subr.bf16.mxu0 %v4566
    %6199 = vmatpush1.bf16.msra.mxu0 %v4565
    %6200 = vmatprep.mubr.bf16.mxu0 %v1110
    %6201 = vmatmul.mubr.bf16.gmra.mrb[0].mxu0 %v1109
    %v6202 = vpop.f32.mrb[0].mxu0
    %v6203 = vadd.f32 %v6160, %v6202
    %v6204 = vpop.f32.mrb[0].mxu0
    %v6205 = vadd.f32 %v6162, %v6204
    %v6206 = vpop.f32.mrb[0].mxu0
    %v6207 = vadd.f32 %v6164, %v6206
    %v6208 = vpop.f32.mrb[0].mxu0
    %v6209 = vadd.f32 %v6166, %v6208
    %6210 = vdwg.mxu0
    %6211 = vmatprep.subr.bf16.mxu0 %v3722
    %6212 = vmatpush1.bf16.msra.mxu0 %v3721
    %6213 = vmatprep.subr.bf16.mxu0 %v3740
    %6214 = vmatpush1.bf16.msra.mxu0 %v3739
    %6215 = vmatprep.subr.bf16.mxu0 %v3758
    %6216 = vmatpush1.bf16.msra.mxu0 %v3757
    %6217 = vmatprep.subr.bf16.mxu0 %v3776
    %6218 = vmatpush1.bf16.msra.mxu0 %v3775
    %6219 = vmatprep.subr.bf16.mxu0 %v3794
    %6220 = vmatpush1.bf16.msra.mxu0 %v3793
    %6221 = vmatprep.subr.bf16.mxu0 %v3812
    %6222 = vmatpush1.bf16.msra.mxu0 %v3811
    %6223 = vmatprep.subr.bf16.mxu0 %v3830
    %6224 = vmatpush1.bf16.msra.mxu0 %v3829
    %6225 = vmatprep.subr.bf16.mxu0 %v3848
    %6226 = vmatpush1.bf16.msra.mxu0 %v3847
    %6227 = vmatprep.subr.bf16.mxu0 %v3866
    %6228 = vmatpush1.bf16.msra.mxu0 %v3865
    %6229 = vmatprep.subr.bf16.mxu0 %v3884
    %6230 = vmatpush1.bf16.msra.mxu0 %v3883
    %6231 = vmatprep.subr.bf16.mxu0 %v3902
    %6232 = vmatpush1.bf16.msra.mxu0 %v3901
    %6233 = vmatprep.subr.bf16.mxu0 %v3920
    %6234 = vmatpush1.bf16.msra.mxu0 %v3919
    %6235 = vmatprep.subr.bf16.mxu0 %v3938
    %6236 = vmatpush1.bf16.msra.mxu0 %v3937
    %6237 = vmatprep.subr.bf16.mxu0 %v3956
    %6238 = vmatpush1.bf16.msra.mxu0 %v3955
    %6239 = vmatprep.subr.bf16.mxu0 %v3974
    %6240 = vmatpush1.bf16.msra.mxu0 %v3973
    %6241 = vmatprep.subr.bf16.mxu0 %v3992
    %6242 = vmatpush1.bf16.msra.mxu0 %v3991
    %6243 = vmatprep.mubr.bf16.mxu0 %v1106
    %6244 = vmatmul.mubr.bf16.gmra.mrb[0].mxu0 %v1105
    %v6245 = vpop.f32.mrb[0].mxu0
    %v6246 = vadd.f32 %v1048, %v6245
    %v6247 = vpop.f32.mrb[0].mxu0
    %v6248 = vadd.f32 %v1052, %v6247
    %v6249 = vpop.f32.mrb[0].mxu0
    %v6250 = vadd.f32 %v1048, %v6249
    %v6251 = vpop.f32.mrb[0].mxu0
    %v6252 = vadd.f32 %v1052, %v6251
    %6253 = vdwg.mxu0
    %6254 = vmatprep.subr.bf16.mxu0 %v4010
    %6255 = vmatpush1.bf16.msra.mxu0 %v4009
    %6256 = vmatprep.subr.bf16.mxu0 %v4028
    %6257 = vmatpush1.bf16.msra.mxu0 %v4027
    %6258 = vmatprep.subr.bf16.mxu0 %v4046
    %6259 = vmatpush1.bf16.msra.mxu0 %v4045
    %6260 = vmatprep.subr.bf16.mxu0 %v4064
    %6261 = vmatpush1.bf16.msra.mxu0 %v4063
    %6262 = vmatprep.subr.bf16.mxu0 %v4082
    %6263 = vmatpush1.bf16.msra.mxu0 %v4081
    %6264 = vmatprep.subr.bf16.mxu0 %v4100
    %6265 = vmatpush1.bf16.msra.mxu0 %v4099
    %6266 = vmatprep.subr.bf16.mxu0 %v4118
    %6267 = vmatpush1.bf16.msra.mxu0 %v4117
    %6268 = vmatprep.subr.bf16.mxu0 %v4136
    %6269 = vmatpush1.bf16.msra.mxu0 %v4135
    %6270 = vmatprep.subr.bf16.mxu0 %v4154
    %6271 = vmatpush1.bf16.msra.mxu0 %v4153
    %6272 = vmatprep.subr.bf16.mxu0 %v4172
    %6273 = vmatpush1.bf16.msra.mxu0 %v4171
    %6274 = vmatprep.subr.bf16.mxu0 %v4190
    %6275 = vmatpush1.bf16.msra.mxu0 %v4189
    %6276 = vmatprep.subr.bf16.mxu0 %v4208
    %6277 = vmatpush1.bf16.msra.mxu0 %v4207
    %6278 = vmatprep.subr.bf16.mxu0 %v4226
    %6279 = vmatpush1.bf16.msra.mxu0 %v4225
    %6280 = vmatprep.subr.bf16.mxu0 %v4244
    %6281 = vmatpush1.bf16.msra.mxu0 %v4243
    %6282 = vmatprep.subr.bf16.mxu0 %v4262
    %6283 = vmatpush1.bf16.msra.mxu0 %v4261
    %6284 = vmatprep.subr.bf16.mxu0 %v4280
    %6285 = vmatpush1.bf16.msra.mxu0 %v4279
    %6286 = vmatprep.mubr.bf16.mxu0 %v1108
    %6287 = vmatmul.mubr.bf16.gmra.mrb[0].mxu0 %v1107
    %v6288 = vpop.f32.mrb[0].mxu0
    %v6289 = vadd.f32 %v6246, %v6288
    %v6290 = vpop.f32.mrb[0].mxu0
    %v6291 = vadd.f32 %v6248, %v6290
    %v6292 = vpop.f32.mrb[0].mxu0
    %v6293 = vadd.f32 %v6250, %v6292
    %v6294 = vpop.f32.mrb[0].mxu0
    %v6295 = vadd.f32 %v6252, %v6294
    %6296 = vdwg.mxu0
    %6297 = vmatprep.subr.bf16.mxu0 %v4298
    %6298 = vmatpush1.bf16.msra.mxu0 %v4297
    %6299 = vmatprep.subr.bf16.mxu0 %v4316
    %6300 = vmatpush1.bf16.msra.mxu0 %v4315
    %6301 = vmatprep.subr.bf16.mxu0 %v4334
    %6302 = vmatpush1.bf16.msra.mxu0 %v4333
    %6303 = vmatprep.subr.bf16.mxu0 %v4352
    %6304 = vmatpush1.bf16.msra.mxu0 %v4351
    %6305 = vmatprep.subr.bf16.mxu0 %v4370
    %6306 = vmatpush1.bf16.msra.mxu0 %v4369
    %6307 = vmatprep.subr.bf16.mxu0 %v4388
    %6308 = vmatpush1.bf16.msra.mxu0 %v4387
    %6309 = vmatprep.subr.bf16.mxu0 %v4406
    %6310 = vmatpush1.bf16.msra.mxu0 %v4405
    %6311 = vmatprep.subr.bf16.mxu0 %v4424
    %6312 = vmatpush1.bf16.msra.mxu0 %v4423
    %6313 = vmatprep.subr.bf16.mxu0 %v4442
    %6314 = vmatpush1.bf16.msra.mxu0 %v4441
    %6315 = vmatprep.subr.bf16.mxu0 %v4460
    %6316 = vmatpush1.bf16.msra.mxu0 %v4459
    %6317 = vmatprep.subr.bf16.mxu0 %v4478
    %6318 = vmatpush1.bf16.msra.mxu0 %v4477
    %6319 = vmatprep.subr.bf16.mxu0 %v4496
    %6320 = vmatpush1.bf16.msra.mxu0 %v4495
    %6321 = vmatprep.subr.bf16.mxu0 %v4514
    %6322 = vmatpush1.bf16.msra.mxu0 %v4513
    %6323 = vmatprep.subr.bf16.mxu0 %v4532
    %6324 = vmatpush1.bf16.msra.mxu0 %v4531
    %6325 = vmatprep.subr.bf16.mxu0 %v4550
    %6326 = vmatpush1.bf16.msra.mxu0 %v4549
    %6327 = vmatprep.subr.bf16.mxu0 %v4568
    %6328 = vmatpush1.bf16.msra.mxu0 %v4567
    %6329 = vmatprep.mubr.bf16.mxu0 %v1110
    %6330 = vmatmul.mubr.bf16.gmra.mrb[0].mxu0 %v1109
    %v6331 = vpop.f32.mrb[0].mxu0
    %v6332 = vadd.f32 %v6289, %v6331
    %v6333 = vpop.f32.mrb[0].mxu0
    %v6334 = vadd.f32 %v6291, %v6333
    %v6335 = vpop.f32.mrb[0].mxu0
    %v6336 = vadd.f32 %v6293, %v6335
    %v6337 = vpop.f32.mrb[0].mxu0
    %v6338 = vadd.f32 %v6295, %v6337
    %6339 = vdwg.mxu0
    %6340 = vmatprep.subr.bf16.mxu0 %v3724
    %6341 = vmatpush1.bf16.msra.mxu0 %v3723
    %6342 = vmatprep.subr.bf16.mxu0 %v3742
    %6343 = vmatpush1.bf16.msra.mxu0 %v3741
    %6344 = vmatprep.subr.bf16.mxu0 %v3760
    %6345 = vmatpush1.bf16.msra.mxu0 %v3759
    %6346 = vmatprep.subr.bf16.mxu0 %v3778
    %6347 = vmatpush1.bf16.msra.mxu0 %v3777
    %6348 = vmatprep.subr.bf16.mxu0 %v3796
    %6349 = vmatpush1.bf16.msra.mxu0 %v3795
    %6350 = vmatprep.subr.bf16.mxu0 %v3814
    %6351 = vmatpush1.bf16.msra.mxu0 %v3813
    %6352 = vmatprep.subr.bf16.mxu0 %v3832
    %6353 = vmatpush1.bf16.msra.mxu0 %v3831
    %6354 = vmatprep.subr.bf16.mxu0 %v3850
    %6355 = vmatpush1.bf16.msra.mxu0 %v3849
    %6356 = vmatprep.subr.bf16.mxu0 %v3868
    %6357 = vmatpush1.bf16.msra.mxu0 %v3867
    %6358 = vmatprep.subr.bf16.mxu0 %v3886
    %6359 = vmatpush1.bf16.msra.mxu0 %v3885
    %6360 = vmatprep.subr.bf16.mxu0 %v3904
    %6361 = vmatpush1.bf16.msra.mxu0 %v3903
    %6362 = vmatprep.subr.bf16.mxu0 %v3922
    %6363 = vmatpush1.bf16.msra.mxu0 %v3921
    %6364 = vmatprep.subr.bf16.mxu0 %v3940
    %6365 = vmatpush1.bf16.msra.mxu0 %v3939
    %6366 = vmatprep.subr.bf16.mxu0 %v3958
    %6367 = vmatpush1.bf16.msra.mxu0 %v3957
    %6368 = vmatprep.subr.bf16.mxu0 %v3976
    %6369 = vmatpush1.bf16.msra.mxu0 %v3975
    %6370 = vmatprep.subr.bf16.mxu0 %v3994
    %6371 = vmatpush1.bf16.msra.mxu0 %v3993
    %6372 = vmatprep.mubr.bf16.mxu0 %v1106
    %6373 = vmatmul.mubr.bf16.gmra.mrb[0].mxu0 %v1105
    %v6374 = vpop.f32.mrb[0].mxu0
    %v6375 = vadd.f32 %v1056, %v6374
    %v6376 = vpop.f32.mrb[0].mxu0
    %v6377 = vadd.f32 %v1060, %v6376
    %v6378 = vpop.f32.mrb[0].mxu0
    %v6379 = vadd.f32 %v1056, %v6378
    %v6380 = vpop.f32.mrb[0].mxu0
    %v6381 = vadd.f32 %v1060, %v6380
    %6382 = vdwg.mxu0
    %6383 = vmatprep.subr.bf16.mxu0 %v4012
    %6384 = vmatpush1.bf16.msra.mxu0 %v4011
    %6385 = vmatprep.subr.bf16.mxu0 %v4030
    %6386 = vmatpush1.bf16.msra.mxu0 %v4029
    %6387 = vmatprep.subr.bf16.mxu0 %v4048
    %6388 = vmatpush1.bf16.msra.mxu0 %v4047
    %6389 = vmatprep.subr.bf16.mxu0 %v4066
    %6390 = vmatpush1.bf16.msra.mxu0 %v4065
    %6391 = vmatprep.subr.bf16.mxu0 %v4084
    %6392 = vmatpush1.bf16.msra.mxu0 %v4083
    %6393 = vmatprep.subr.bf16.mxu0 %v4102
    %6394 = vmatpush1.bf16.msra.mxu0 %v4101
    %6395 = vmatprep.subr.bf16.mxu0 %v4120
    %6396 = vmatpush1.bf16.msra.mxu0 %v4119
    %6397 = vmatprep.subr.bf16.mxu0 %v4138
    %6398 = vmatpush1.bf16.msra.mxu0 %v4137
    %6399 = vmatprep.subr.bf16.mxu0 %v4156
    %6400 = vmatpush1.bf16.msra.mxu0 %v4155
    %6401 = vmatprep.subr.bf16.mxu0 %v4174
    %6402 = vmatpush1.bf16.msra.mxu0 %v4173
    %6403 = vmatprep.subr.bf16.mxu0 %v4192
    %6404 = vmatpush1.bf16.msra.mxu0 %v4191
    %6405 = vmatprep.subr.bf16.mxu0 %v4210
    %6406 = vmatpush1.bf16.msra.mxu0 %v4209
    %6407 = vmatprep.subr.bf16.mxu0 %v4228
    %6408 = vmatpush1.bf16.msra.mxu0 %v4227
    %6409 = vmatprep.subr.bf16.mxu0 %v4246
    %6410 = vmatpush1.bf16.msra.mxu0 %v4245
    %6411 = vmatprep.subr.bf16.mxu0 %v4264
    %6412 = vmatpush1.bf16.msra.mxu0 %v4263
    %6413 = vmatprep.subr.bf16.mxu0 %v4282
    %6414 = vmatpush1.bf16.msra.mxu0 %v4281
    %6415 = vmatprep.mubr.bf16.mxu0 %v1108
    %6416 = vmatmul.mubr.bf16.gmra.mrb[0].mxu0 %v1107
    %v6417 = vpop.f32.mrb[0].mxu0
    %v6418 = vadd.f32 %v6375, %v6417
    %v6419 = vpop.f32.mrb[0].mxu0
    %v6420 = vadd.f32 %v6377, %v6419
    %v6421 = vpop.f32.mrb[0].mxu0
    %v6422 = vadd.f32 %v6379, %v6421
    %v6423 = vpop.f32.mrb[0].mxu0
    %v6424 = vadd.f32 %v6381, %v6423
    %6425 = vdwg.mxu0
    %6426 = vmatprep.subr.bf16.mxu0 %v4300
    %6427 = vmatpush1.bf16.msra.mxu0 %v4299
    %6428 = vmatprep.subr.bf16.mxu0 %v4318
    %6429 = vmatpush1.bf16.msra.mxu0 %v4317
    %6430 = vmatprep.subr.bf16.mxu0 %v4336
    %6431 = vmatpush1.bf16.msra.mxu0 %v4335
    %6432 = vmatprep.subr.bf16.mxu0 %v4354
    %6433 = vmatpush1.bf16.msra.mxu0 %v4353
    %6434 = vmatprep.subr.bf16.mxu0 %v4372
    %6435 = vmatpush1.bf16.msra.mxu0 %v4371
    %6436 = vmatprep.subr.bf16.mxu0 %v4390
    %6437 = vmatpush1.bf16.msra.mxu0 %v4389
    %6438 = vmatprep.subr.bf16.mxu0 %v4408
    %6439 = vmatpush1.bf16.msra.mxu0 %v4407
    %6440 = vmatprep.subr.bf16.mxu0 %v4426
    %6441 = vmatpush1.bf16.msra.mxu0 %v4425
    %6442 = vmatprep.subr.bf16.mxu0 %v4444
    %6443 = vmatpush1.bf16.msra.mxu0 %v4443
    %6444 = vmatprep.subr.bf16.mxu0 %v4462
    %6445 = vmatpush1.bf16.msra.mxu0 %v4461
    %6446 = vmatprep.subr.bf16.mxu0 %v4480
    %6447 = vmatpush1.bf16.msra.mxu0 %v4479
    %6448 = vmatprep.subr.bf16.mxu0 %v4498
    %6449 = vmatpush1.bf16.msra.mxu0 %v4497
    %6450 = vmatprep.subr.bf16.mxu0 %v4516
    %6451 = vmatpush1.bf16.msra.mxu0 %v4515
    %6452 = vmatprep.subr.bf16.mxu0 %v4534
    %6453 = vmatpush1.bf16.msra.mxu0 %v4533
    %6454 = vmatprep.subr.bf16.mxu0 %v4552
    %6455 = vmatpush1.bf16.msra.mxu0 %v4551
    %6456 = vmatprep.subr.bf16.mxu0 %v4570
    %6457 = vmatpush1.bf16.msra.mxu0 %v4569
    %6458 = vmatprep.mubr.bf16.mxu0 %v1110
    %6459 = vmatmul.mubr.bf16.gmra.mrb[0].mxu0 %v1109
    %v6460 = vpop.f32.mrb[0].mxu0
    %v6461 = vadd.f32 %v6418, %v6460
    %v6462 = vpop.f32.mrb[0].mxu0
    %v6463 = vadd.f32 %v6420, %v6462
    %v6464 = vpop.f32.mrb[0].mxu0
    %v6465 = vadd.f32 %v6422, %v6464
    %v6466 = vpop.f32.mrb[0].mxu0
    %v6467 = vadd.f32 %v6424, %v6466
    %6468 = vdwg.mxu0
    %6469 = vmatprep.subr.bf16.mxu0 %v3726
    %6470 = vmatpush1.bf16.msra.mxu0 %v3725
    %6471 = vmatprep.subr.bf16.mxu0 %v3744
    %6472 = vmatpush1.bf16.msra.mxu0 %v3743
    %6473 = vmatprep.subr.bf16.mxu0 %v3762
    %6474 = vmatpush1.bf16.msra.mxu0 %v3761
    %6475 = vmatprep.subr.bf16.mxu0 %v3780
    %6476 = vmatpush1.bf16.msra.mxu0 %v3779
    %6477 = vmatprep.subr.bf16.mxu0 %v3798
    %6478 = vmatpush1.bf16.msra.mxu0 %v3797
    %6479 = vmatprep.subr.bf16.mxu0 %v3816
    %6480 = vmatpush1.bf16.msra.mxu0 %v3815
    %6481 = vmatprep.subr.bf16.mxu0 %v3834
    %6482 = vmatpush1.bf16.msra.mxu0 %v3833
    %6483 = vmatprep.subr.bf16.mxu0 %v3852
    %6484 = vmatpush1.bf16.msra.mxu0 %v3851
    %6485 = vmatprep.subr.bf16.mxu0 %v3870
    %6486 = vmatpush1.bf16.msra.mxu0 %v3869
    %6487 = vmatprep.subr.bf16.mxu0 %v3888
    %6488 = vmatpush1.bf16.msra.mxu0 %v3887
    %6489 = vmatprep.subr.bf16.mxu0 %v3906
    %6490 = vmatpush1.bf16.msra.mxu0 %v3905
    %6491 = vmatprep.subr.bf16.mxu0 %v3924
    %6492 = vmatpush1.bf16.msra.mxu0 %v3923
    %6493 = vmatprep.subr.bf16.mxu0 %v3942
    %6494 = vmatpush1.bf16.msra.mxu0 %v3941
    %6495 = vmatprep.subr.bf16.mxu0 %v3960
    %6496 = vmatpush1.bf16.msra.mxu0 %v3959
    %6497 = vmatprep.subr.bf16.mxu0 %v3978
    %6498 = vmatpush1.bf16.msra.mxu0 %v3977
    %6499 = vmatprep.subr.bf16.mxu0 %v3996
    %6500 = vmatpush1.bf16.msra.mxu0 %v3995
    %6501 = vmatprep.mubr.bf16.mxu0 %v1106
    %6502 = vmatmul.mubr.bf16.gmra.mrb[0].mxu0 %v1105
    %v6503 = vpop.f32.mrb[0].mxu0
    %v6504 = vadd.f32 %v1064, %v6503
    %v6505 = vpop.f32.mrb[0].mxu0
    %v6506 = vadd.f32 %v1068, %v6505
    %v6507 = vpop.f32.mrb[0].mxu0
    %v6508 = vadd.f32 %v1064, %v6507
    %v6509 = vpop.f32.mrb[0].mxu0
    %v6510 = vadd.f32 %v1068, %v6509
    %6511 = vdwg.mxu0
    %6512 = vmatprep.subr.bf16.mxu0 %v4014
    %6513 = vmatpush1.bf16.msra.mxu0 %v4013
    %6514 = vmatprep.subr.bf16.mxu0 %v4032
    %6515 = vmatpush1.bf16.msra.mxu0 %v4031
    %6516 = vmatprep.subr.bf16.mxu0 %v4050
    %6517 = vmatpush1.bf16.msra.mxu0 %v4049
    %6518 = vmatprep.subr.bf16.mxu0 %v4068
    %6519 = vmatpush1.bf16.msra.mxu0 %v4067
    %6520 = vmatprep.subr.bf16.mxu0 %v4086
    %6521 = vmatpush1.bf16.msra.mxu0 %v4085
    %6522 = vmatprep.subr.bf16.mxu0 %v4104
    %6523 = vmatpush1.bf16.msra.mxu0 %v4103
    %6524 = vmatprep.subr.bf16.mxu0 %v4122
    %6525 = vmatpush1.bf16.msra.mxu0 %v4121
    %6526 = vmatprep.subr.bf16.mxu0 %v4140
    %6527 = vmatpush1.bf16.msra.mxu0 %v4139
    %6528 = vmatprep.subr.bf16.mxu0 %v4158
    %6529 = vmatpush1.bf16.msra.mxu0 %v4157
    %6530 = vmatprep.subr.bf16.mxu0 %v4176
    %6531 = vmatpush1.bf16.msra.mxu0 %v4175
    %6532 = vmatprep.subr.bf16.mxu0 %v4194
    %6533 = vmatpush1.bf16.msra.mxu0 %v4193
    %6534 = vmatprep.subr.bf16.mxu0 %v4212
    %6535 = vmatpush1.bf16.msra.mxu0 %v4211
    %6536 = vmatprep.subr.bf16.mxu0 %v4230
    %6537 = vmatpush1.bf16.msra.mxu0 %v4229
    %6538 = vmatprep.subr.bf16.mxu0 %v4248
    %6539 = vmatpush1.bf16.msra.mxu0 %v4247
    %6540 = vmatprep.subr.bf16.mxu0 %v4266
    %6541 = vmatpush1.bf16.msra.mxu0 %v4265
    %6542 = vmatprep.subr.bf16.mxu0 %v4284
    %6543 = vmatpush1.bf16.msra.mxu0 %v4283
    %6544 = vmatprep.mubr.bf16.mxu0 %v1108
    %6545 = vmatmul.mubr.bf16.gmra.mrb[0].mxu0 %v1107
    %v6546 = vpop.f32.mrb[0].mxu0
    %v6547 = vadd.f32 %v6504, %v6546
    %v6548 = vpop.f32.mrb[0].mxu0
    %v6549 = vadd.f32 %v6506, %v6548
    %v6550 = vpop.f32.mrb[0].mxu0
    %v6551 = vadd.f32 %v6508, %v6550
    %v6552 = vpop.f32.mrb[0].mxu0
    %v6553 = vadd.f32 %v6510, %v6552
    %6554 = vdwg.mxu0
    %6555 = vmatprep.subr.bf16.mxu0 %v4302
    %6556 = vmatpush1.bf16.msra.mxu0 %v4301
    %6557 = vmatprep.subr.bf16.mxu0 %v4320
    %6558 = vmatpush1.bf16.msra.mxu0 %v4319
    %6559 = vmatprep.subr.bf16.mxu0 %v4338
    %6560 = vmatpush1.bf16.msra.mxu0 %v4337
    %6561 = vmatprep.subr.bf16.mxu0 %v4356
    %6562 = vmatpush1.bf16.msra.mxu0 %v4355
    %6563 = vmatprep.subr.bf16.mxu0 %v4374
    %6564 = vmatpush1.bf16.msra.mxu0 %v4373
    %6565 = vmatprep.subr.bf16.mxu0 %v4392
    %6566 = vmatpush1.bf16.msra.mxu0 %v4391
    %6567 = vmatprep.subr.bf16.mxu0 %v4410
    %6568 = vmatpush1.bf16.msra.mxu0 %v4409
    %6569 = vmatprep.subr.bf16.mxu0 %v4428
    %6570 = vmatpush1.bf16.msra.mxu0 %v4427
    %6571 = vmatprep.subr.bf16.mxu0 %v4446
    %6572 = vmatpush1.bf16.msra.mxu0 %v4445
    %6573 = vmatprep.subr.bf16.mxu0 %v4464
    %6574 = vmatpush1.bf16.msra.mxu0 %v4463
    %6575 = vmatprep.subr.bf16.mxu0 %v4482
    %6576 = vmatpush1.bf16.msra.mxu0 %v4481
    %6577 = vmatprep.subr.bf16.mxu0 %v4500
    %6578 = vmatpush1.bf16.msra.mxu0 %v4499
    %6579 = vmatprep.subr.bf16.mxu0 %v4518
    %6580 = vmatpush1.bf16.msra.mxu0 %v4517
    %6581 = vmatprep.subr.bf16.mxu0 %v4536
    %6582 = vmatpush1.bf16.msra.mxu0 %v4535
    %6583 = vmatprep.subr.bf16.mxu0 %v4554
    %6584 = vmatpush1.bf16.msra.mxu0 %v4553
    %6585 = vmatprep.subr.bf16.mxu0 %v4572
    %6586 = vmatpush1.bf16.msra.mxu0 %v4571
    %6587 = vmatprep.mubr.bf16.mxu0 %v1110
    %6588 = vmatmul.mubr.bf16.gmra.mrb[0].mxu0 %v1109
    %v6589 = vpop.f32.mrb[0].mxu0
    %v6590 = vadd.f32 %v6547, %v6589
    %v6591 = vpop.f32.mrb[0].mxu0
    %v6592 = vadd.f32 %v6549, %v6591
    %v6593 = vpop.f32.mrb[0].mxu0
    %v6594 = vadd.f32 %v6551, %v6593
    %v6595 = vpop.f32.mrb[0].mxu0
    %v6596 = vadd.f32 %v6553, %v6595
    %6597 = vdwg.mxu0
    %6598 = vmatprep.subr.mxu0 %v5947
    %6599 = vmatpush1.xpose.msra.mxu0 %v5945
    %6600 = vmatprep.subr.mxu0 0.0
    %6601 = vmatpush1.xpose.msra.mxu0 0.0
    %6602 = vmatprep.subr.mxu0 0.0
    %6603 = vmatpush1.xpose.msra.mxu0 0.0
    %6604 = vmatprep.subr.mxu0 0.0
    %6605 = vmatpush1.xpose.msra.mxu0 0.0
    %6606 = vmatprep.subr.mxu0 0.0
    %6607 = vmatpush1.xpose.msra.mxu0 0.0
    %6608 = vmatprep.subr.mxu0 0.0
    %6609 = vmatpush1.xpose.msra.mxu0 0.0
    %6610 = vmatprep.subr.mxu0 0.0
    %6611 = vmatpush1.xpose.msra.mxu0 0.0
    %6612 = vmatprep.subr.mxu0 0.0
    %6613 = vmatpush1.xpose.msra.mxu0 0.0
    %6614 = vmatprep.subr.mxu0 0.0
    %6615 = vmatpush1.xpose.msra.mxu0 0.0
    %6616 = vmatprep.subr.mxu0 0.0
    %6617 = vmatpush1.xpose.msra.mxu0 0.0
    %6618 = vmatprep.subr.mxu0 0.0
    %6619 = vmatpush1.xpose.msra.mxu0 0.0
    %6620 = vmatprep.subr.mxu0 0.0
    %6621 = vmatpush1.xpose.msra.mxu0 0.0
    %6622 = vmatprep.subr.mxu0 0.0
    %6623 = vmatpush1.xpose.msra.mxu0 0.0
    %6624 = vmatprep.subr.mxu0 0.0
    %6625 = vmatpush1.xpose.msra.mxu0 0.0
    %6626 = vmatprep.subr.mxu0 0.0
    %6627 = vmatpush1.xpose.msra.mxu0 0.0
    %6628 = vmatprep.subr.mxu0 0.0
    %6629 = vmatpush1.xpose.msra.mxu0 0.0
    %6630 = vmatprep.subr.mxu0 0.0
    %6631 = vmatpush1.xpose.msra.mxu0 0.0
    %6632 = vmatprep.subr.mxu0 0.0
    %6633 = vmatpush1.xpose.msra.mxu0 0.0
    %6634 = vmatprep.subr.mxu0 0.0
    %6635 = vmatpush1.xpose.msra.mxu0 0.0
    %6636 = vmatprep.subr.mxu0 0.0
    %6637 = vmatpush1.xpose.msra.mxu0 0.0
    %6638 = vmatprep.subr.mxu0 0.0
    %6639 = vmatpush1.xpose.msra.mxu0 0.0
    %6640 = vmatprep.subr.mxu0 0.0
    %6641 = vmatpush1.xpose.msra.mxu0 0.0
    %6642 = vmatprep.subr.mxu0 0.0
    %6643 = vmatpush1.xpose.msra.mxu0 0.0
    %6644 = vmatprep.subr.mxu0 0.0
    %6645 = vmatpush1.xpose.msra.mxu0 0.0
    %6646 = vmatprep.subr.mxu0 0.0
    %6647 = vmatpush1.xpose.msra.mxu0 0.0
    %6648 = vmatprep.subr.mxu0 0.0
    %6649 = vmatpush1.xpose.msra.mxu0 0.0
    %6650 = vmatprep.subr.mxu0 0.0
    %6651 = vmatpush1.xpose.msra.mxu0 0.0
    %6652 = vmatprep.subr.mxu0 0.0
    %6653 = vmatpush1.xpose.msra.mxu0 0.0
    %6654 = vmatprep.subr.mxu0 0.0
    %6655 = vmatpush1.xpose.msra.mxu0 0.0
    %6656 = vmatprep.subr.mxu0 0.0
    %6657 = vmatpush1.xpose.msra.mxu0 0.0
    %6658 = vmatprep.subr.mxu0 0.0
    %6659 = vmatpush1.xpose.msra.mxu0 0.0
    %6660 = vmatprep.subr.mxu0 0.0
    %6661 = vmatpush1.xpose.msra.mxu0 0.0
    %6662 = vmatprep.mubr.f32.mxu0 %v5560
    %6663 = vmatmul.mubr.f32.gmra.mrb[0].mxu0 %v5558
    %v6664 = vpop.f32.mrb[0].mxu0
    %v6665 = vadd.f32 0.0, %v6664
    %v6666 = vpop.f32.mrb[0].mxu0
    %6667 = vdwg.mxu0
    %6668 = vmatprep.subr.mxu0 %v6076
    %6669 = vmatpush1.xpose.msra.mxu0 %v6074
    %6670 = vmatprep.subr.mxu0 0.0
    %6671 = vmatpush1.xpose.msra.mxu0 0.0
    %6672 = vmatprep.subr.mxu0 0.0
    %6673 = vmatpush1.xpose.msra.mxu0 0.0
    %6674 = vmatprep.subr.mxu0 0.0
    %6675 = vmatpush1.xpose.msra.mxu0 0.0
    %6676 = vmatprep.subr.mxu0 0.0
    %6677 = vmatpush1.xpose.msra.mxu0 0.0
    %6678 = vmatprep.subr.mxu0 0.0
    %6679 = vmatpush1.xpose.msra.mxu0 0.0
    %6680 = vmatprep.subr.mxu0 0.0
    %6681 = vmatpush1.xpose.msra.mxu0 0.0
    %6682 = vmatprep.subr.mxu0 0.0
    %6683 = vmatpush1.xpose.msra.mxu0 0.0
    %6684 = vmatprep.subr.mxu0 0.0
    %6685 = vmatpush1.xpose.msra.mxu0 0.0
    %6686 = vmatprep.subr.mxu0 0.0
    %6687 = vmatpush1.xpose.msra.mxu0 0.0
    %6688 = vmatprep.subr.mxu0 0.0
    %6689 = vmatpush1.xpose.msra.mxu0 0.0
    %6690 = vmatprep.subr.mxu0 0.0
    %6691 = vmatpush1.xpose.msra.mxu0 0.0
    %6692 = vmatprep.subr.mxu0 0.0
    %6693 = vmatpush1.xpose.msra.mxu0 0.0
    %6694 = vmatprep.subr.mxu0 0.0
    %6695 = vmatpush1.xpose.msra.mxu0 0.0
    %6696 = vmatprep.subr.mxu0 0.0
    %6697 = vmatpush1.xpose.msra.mxu0 0.0
    %6698 = vmatprep.subr.mxu0 0.0
    %6699 = vmatpush1.xpose.msra.mxu0 0.0
    %6700 = vmatprep.subr.mxu0 0.0
    %6701 = vmatpush1.xpose.msra.mxu0 0.0
    %6702 = vmatprep.subr.mxu0 0.0
    %6703 = vmatpush1.xpose.msra.mxu0 0.0
    %6704 = vmatprep.subr.mxu0 0.0
    %6705 = vmatpush1.xpose.msra.mxu0 0.0
    %6706 = vmatprep.subr.mxu0 0.0
    %6707 = vmatpush1.xpose.msra.mxu0 0.0
    %6708 = vmatprep.subr.mxu0 0.0
    %6709 = vmatpush1.xpose.msra.mxu0 0.0
    %6710 = vmatprep.subr.mxu0 0.0
    %6711 = vmatpush1.xpose.msra.mxu0 0.0
    %6712 = vmatprep.subr.mxu0 0.0
    %6713 = vmatpush1.xpose.msra.mxu0 0.0
    %6714 = vmatprep.subr.mxu0 0.0
    %6715 = vmatpush1.xpose.msra.mxu0 0.0
    %6716 = vmatprep.subr.mxu0 0.0
    %6717 = vmatpush1.xpose.msra.mxu0 0.0
    %6718 = vmatprep.subr.mxu0 0.0
    %6719 = vmatpush1.xpose.msra.mxu0 0.0
    %6720 = vmatprep.subr.mxu0 0.0
    %6721 = vmatpush1.xpose.msra.mxu0 0.0
    %6722 = vmatprep.subr.mxu0 0.0
    %6723 = vmatpush1.xpose.msra.mxu0 0.0
    %6724 = vmatprep.subr.mxu0 0.0
    %6725 = vmatpush1.xpose.msra.mxu0 0.0
    %6726 = vmatprep.subr.mxu0 0.0
    %6727 = vmatpush1.xpose.msra.mxu0 0.0
    %6728 = vmatprep.subr.mxu0 0.0
    %6729 = vmatpush1.xpose.msra.mxu0 0.0
    %6730 = vmatprep.subr.mxu0 0.0
    %6731 = vmatpush1.xpose.msra.mxu0 0.0
    %6732 = vmatprep.mubr.f32.mxu0 %v5689
    %6733 = vmatmul.mubr.f32.gmra.mrb[0].mxu0 %v5687
    %v6734 = vpop.f32.mrb[0].mxu0
    %v6735 = vadd.f32 %v6665, %v6734
    %v6736 = vpop.f32.mrb[0].mxu0
    %6737 = vdwg.mxu0
    %6738 = vmatprep.subr.mxu0 %v6205
    %6739 = vmatpush1.xpose.msra.mxu0 %v6203
    %6740 = vmatprep.subr.mxu0 0.0
    %6741 = vmatpush1.xpose.msra.mxu0 0.0
    %6742 = vmatprep.subr.mxu0 0.0
    %6743 = vmatpush1.xpose.msra.mxu0 0.0
    %6744 = vmatprep.subr.mxu0 0.0
    %6745 = vmatpush1.xpose.msra.mxu0 0.0
    %6746 = vmatprep.subr.mxu0 0.0
    %6747 = vmatpush1.xpose.msra.mxu0 0.0
    %6748 = vmatprep.subr.mxu0 0.0
    %6749 = vmatpush1.xpose.msra.mxu0 0.0
    %6750 = vmatprep.subr.mxu0 0.0
    %6751 = vmatpush1.xpose.msra.mxu0 0.0
    %6752 = vmatprep.subr.mxu0 0.0
    %6753 = vmatpush1.xpose.msra.mxu0 0.0
    %6754 = vmatprep.subr.mxu0 0.0
    %6755 = vmatpush1.xpose.msra.mxu0 0.0
    %6756 = vmatprep.subr.mxu0 0.0
    %6757 = vmatpush1.xpose.msra.mxu0 0.0
    %6758 = vmatprep.subr.mxu0 0.0
    %6759 = vmatpush1.xpose.msra.mxu0 0.0
    %6760 = vmatprep.subr.mxu0 0.0
    %6761 = vmatpush1.xpose.msra.mxu0 0.0
    %6762 = vmatprep.subr.mxu0 0.0
    %6763 = vmatpush1.xpose.msra.mxu0 0.0
    %6764 = vmatprep.subr.mxu0 0.0
    %6765 = vmatpush1.xpose.msra.mxu0 0.0
    %6766 = vmatprep.subr.mxu0 0.0
    %6767 = vmatpush1.xpose.msra.mxu0 0.0
    %6768 = vmatprep.subr.mxu0 0.0
    %6769 = vmatpush1.xpose.msra.mxu0 0.0
    %6770 = vmatprep.subr.mxu0 0.0
    %6771 = vmatpush1.xpose.msra.mxu0 0.0
    %6772 = vmatprep.subr.mxu0 0.0
    %6773 = vmatpush1.xpose.msra.mxu0 0.0
    %6774 = vmatprep.subr.mxu0 0.0
    %6775 = vmatpush1.xpose.msra.mxu0 0.0
    %6776 = vmatprep.subr.mxu0 0.0
    %6777 = vmatpush1.xpose.msra.mxu0 0.0
    %6778 = vmatprep.subr.mxu0 0.0
    %6779 = vmatpush1.xpose.msra.mxu0 0.0
    %6780 = vmatprep.subr.mxu0 0.0
    %6781 = vmatpush1.xpose.msra.mxu0 0.0
    %6782 = vmatprep.subr.mxu0 0.0
    %6783 = vmatpush1.xpose.msra.mxu0 0.0
    %6784 = vmatprep.subr.mxu0 0.0
    %6785 = vmatpush1.xpose.msra.mxu0 0.0
    %6786 = vmatprep.subr.mxu0 0.0
    %6787 = vmatpush1.xpose.msra.mxu0 0.0
    %6788 = vmatprep.subr.mxu0 0.0
    %6789 = vmatpush1.xpose.msra.mxu0 0.0
    %6790 = vmatprep.subr.mxu0 0.0
    %6791 = vmatpush1.xpose.msra.mxu0 0.0
    %6792 = vmatprep.subr.mxu0 0.0
    %6793 = vmatpush1.xpose.msra.mxu0 0.0
    %6794 = vmatprep.subr.mxu0 0.0
    %6795 = vmatpush1.xpose.msra.mxu0 0.0
    %6796 = vmatprep.subr.mxu0 0.0
    %6797 = vmatpush1.xpose.msra.mxu0 0.0
    %6798 = vmatprep.subr.mxu0 0.0
    %6799 = vmatpush1.xpose.msra.mxu0 0.0
    %6800 = vmatprep.subr.mxu0 0.0
    %6801 = vmatpush1.xpose.msra.mxu0 0.0
    %6802 = vmatprep.mubr.f32.mxu0 %v5818
    %6803 = vmatmul.mubr.f32.gmra.mrb[0].mxu0 %v5816
    %v6804 = vpop.f32.mrb[0].mxu0
    %v6805 = vadd.f32 %v6735, %v6804
    %v6806 = vpop.f32.mrb[0].mxu0
    %6807 = vdwg.mxu0
    %6808 = vmatprep.subr.mxu0 %v5951
    %6809 = vmatpush1.xpose.msra.mxu0 %v5949
    %6810 = vmatprep.subr.mxu0 0.0
    %6811 = vmatpush1.xpose.msra.mxu0 0.0
    %6812 = vmatprep.subr.mxu0 0.0
    %6813 = vmatpush1.xpose.msra.mxu0 0.0
    %6814 = vmatprep.subr.mxu0 0.0
    %6815 = vmatpush1.xpose.msra.mxu0 0.0
    %6816 = vmatprep.subr.mxu0 0.0
    %6817 = vmatpush1.xpose.msra.mxu0 0.0
    %6818 = vmatprep.subr.mxu0 0.0
    %6819 = vmatpush1.xpose.msra.mxu0 0.0
    %6820 = vmatprep.subr.mxu0 0.0
    %6821 = vmatpush1.xpose.msra.mxu0 0.0
    %6822 = vmatprep.subr.mxu0 0.0
    %6823 = vmatpush1.xpose.msra.mxu0 0.0
    %6824 = vmatprep.subr.mxu0 0.0
    %6825 = vmatpush1.xpose.msra.mxu0 0.0
    %6826 = vmatprep.subr.mxu0 0.0
    %6827 = vmatpush1.xpose.msra.mxu0 0.0
    %6828 = vmatprep.subr.mxu0 0.0
    %6829 = vmatpush1.xpose.msra.mxu0 0.0
    %6830 = vmatprep.subr.mxu0 0.0
    %6831 = vmatpush1.xpose.msra.mxu0 0.0
    %6832 = vmatprep.subr.mxu0 0.0
    %6833 = vmatpush1.xpose.msra.mxu0 0.0
    %6834 = vmatprep.subr.mxu0 0.0
    %6835 = vmatpush1.xpose.msra.mxu0 0.0
    %6836 = vmatprep.subr.mxu0 0.0
    %6837 = vmatpush1.xpose.msra.mxu0 0.0
    %6838 = vmatprep.subr.mxu0 0.0
    %6839 = vmatpush1.xpose.msra.mxu0 0.0
    %6840 = vmatprep.subr.mxu0 0.0
    %6841 = vmatpush1.xpose.msra.mxu0 0.0
    %6842 = vmatprep.subr.mxu0 0.0
    %6843 = vmatpush1.xpose.msra.mxu0 0.0
    %6844 = vmatprep.subr.mxu0 0.0
    %6845 = vmatpush1.xpose.msra.mxu0 0.0
    %6846 = vmatprep.subr.mxu0 0.0
    %6847 = vmatpush1.xpose.msra.mxu0 0.0
    %6848 = vmatprep.subr.mxu0 0.0
    %6849 = vmatpush1.xpose.msra.mxu0 0.0
    %6850 = vmatprep.subr.mxu0 0.0
    %6851 = vmatpush1.xpose.msra.mxu0 0.0
    %6852 = vmatprep.subr.mxu0 0.0
    %6853 = vmatpush1.xpose.msra.mxu0 0.0
    %6854 = vmatprep.subr.mxu0 0.0
    %6855 = vmatpush1.xpose.msra.mxu0 0.0
    %6856 = vmatprep.subr.mxu0 0.0
    %6857 = vmatpush1.xpose.msra.mxu0 0.0
    %6858 = vmatprep.subr.mxu0 0.0
    %6859 = vmatpush1.xpose.msra.mxu0 0.0
    %6860 = vmatprep.subr.mxu0 0.0
    %6861 = vmatpush1.xpose.msra.mxu0 0.0
    %6862 = vmatprep.subr.mxu0 0.0
    %6863 = vmatpush1.xpose.msra.mxu0 0.0
    %6864 = vmatprep.subr.mxu0 0.0
    %6865 = vmatpush1.xpose.msra.mxu0 0.0
    %6866 = vmatprep.subr.mxu0 0.0
    %6867 = vmatpush1.xpose.msra.mxu0 0.0
    %6868 = vmatprep.subr.mxu0 0.0
    %6869 = vmatpush1.xpose.msra.mxu0 0.0
    %6870 = vmatprep.subr.mxu0 0.0
    %6871 = vmatpush1.xpose.msra.mxu0 0.0
    %6872 = vmatprep.mubr.f32.mxu0 %v5564
    %6873 = vmatmul.mubr.f32.gmra.mrb[0].mxu0 %v5562
    %v6874 = vpop.f32.mrb[0].mxu0
    %v6875 = vadd.f32 0.0, %v6874
    %v6876 = vpop.f32.mrb[0].mxu0
    %6877 = vdwg.mxu0
    %6878 = vmatprep.subr.mxu0 %v6080
    %6879 = vmatpush1.xpose.msra.mxu0 %v6078
    %6880 = vmatprep.subr.mxu0 0.0
    %6881 = vmatpush1.xpose.msra.mxu0 0.0
    %6882 = vmatprep.subr.mxu0 0.0
    %6883 = vmatpush1.xpose.msra.mxu0 0.0
    %6884 = vmatprep.subr.mxu0 0.0
    %6885 = vmatpush1.xpose.msra.mxu0 0.0
    %6886 = vmatprep.subr.mxu0 0.0
    %6887 = vmatpush1.xpose.msra.mxu0 0.0
    %6888 = vmatprep.subr.mxu0 0.0
    %6889 = vmatpush1.xpose.msra.mxu0 0.0
    %6890 = vmatprep.subr.mxu0 0.0
    %6891 = vmatpush1.xpose.msra.mxu0 0.0
    %6892 = vmatprep.subr.mxu0 0.0
    %6893 = vmatpush1.xpose.msra.mxu0 0.0
    %6894 = vmatprep.subr.mxu0 0.0
    %6895 = vmatpush1.xpose.msra.mxu0 0.0
    %6896 = vmatprep.subr.mxu0 0.0
    %6897 = vmatpush1.xpose.msra.mxu0 0.0
    %6898 = vmatprep.subr.mxu0 0.0
    %6899 = vmatpush1.xpose.msra.mxu0 0.0
    %6900 = vmatprep.subr.mxu0 0.0
    %6901 = vmatpush1.xpose.msra.mxu0 0.0
    %6902 = vmatprep.subr.mxu0 0.0
    %6903 = vmatpush1.xpose.msra.mxu0 0.0
    %6904 = vmatprep.subr.mxu0 0.0
    %6905 = vmatpush1.xpose.msra.mxu0 0.0
    %6906 = vmatprep.subr.mxu0 0.0
    %6907 = vmatpush1.xpose.msra.mxu0 0.0
    %6908 = vmatprep.subr.mxu0 0.0
    %6909 = vmatpush1.xpose.msra.mxu0 0.0
    %6910 = vmatprep.subr.mxu0 0.0
    %6911 = vmatpush1.xpose.msra.mxu0 0.0
    %6912 = vmatprep.subr.mxu0 0.0
    %6913 = vmatpush1.xpose.msra.mxu0 0.0
    %6914 = vmatprep.subr.mxu0 0.0
    %6915 = vmatpush1.xpose.msra.mxu0 0.0
    %6916 = vmatprep.subr.mxu0 0.0
    %6917 = vmatpush1.xpose.msra.mxu0 0.0
    %6918 = vmatprep.subr.mxu0 0.0
    %6919 = vmatpush1.xpose.msra.mxu0 0.0
    %6920 = vmatprep.subr.mxu0 0.0
    %6921 = vmatpush1.xpose.msra.mxu0 0.0
    %6922 = vmatprep.subr.mxu0 0.0
    %6923 = vmatpush1.xpose.msra.mxu0 0.0
    %6924 = vmatprep.subr.mxu0 0.0
    %6925 = vmatpush1.xpose.msra.mxu0 0.0
    %6926 = vmatprep.subr.mxu0 0.0
    %6927 = vmatpush1.xpose.msra.mxu0 0.0
    %6928 = vmatprep.subr.mxu0 0.0
    %6929 = vmatpush1.xpose.msra.mxu0 0.0
    %6930 = vmatprep.subr.mxu0 0.0
    %6931 = vmatpush1.xpose.msra.mxu0 0.0
    %6932 = vmatprep.subr.mxu0 0.0
    %6933 = vmatpush1.xpose.msra.mxu0 0.0
    %6934 = vmatprep.subr.mxu0 0.0
    %6935 = vmatpush1.xpose.msra.mxu0 0.0
    %6936 = vmatprep.subr.mxu0 0.0
    %6937 = vmatpush1.xpose.msra.mxu0 0.0
    %6938 = vmatprep.subr.mxu0 0.0
    %6939 = vmatpush1.xpose.msra.mxu0 0.0
    %6940 = vmatprep.subr.mxu0 0.0
    %6941 = vmatpush1.xpose.msra.mxu0 0.0
    %6942 = vmatprep.mubr.f32.mxu0 %v5693
    %6943 = vmatmul.mubr.f32.gmra.mrb[0].mxu0 %v5691
    %v6944 = vpop.f32.mrb[0].mxu0
    %v6945 = vadd.f32 %v6875, %v6944
    %v6946 = vpop.f32.mrb[0].mxu0
    %6947 = vdwg.mxu0
    %6948 = vmatprep.subr.mxu0 %v6209
    %6949 = vmatpush1.xpose.msra.mxu0 %v6207
    %6950 = vmatprep.subr.mxu0 0.0
    %6951 = vmatpush1.xpose.msra.mxu0 0.0
    %6952 = vmatprep.subr.mxu0 0.0
    %6953 = vmatpush1.xpose.msra.mxu0 0.0
    %6954 = vmatprep.subr.mxu0 0.0
    %6955 = vmatpush1.xpose.msra.mxu0 0.0
    %6956 = vmatprep.subr.mxu0 0.0
    %6957 = vmatpush1.xpose.msra.mxu0 0.0
    %6958 = vmatprep.subr.mxu0 0.0
    %6959 = vmatpush1.xpose.msra.mxu0 0.0
    %6960 = vmatprep.subr.mxu0 0.0
    %6961 = vmatpush1.xpose.msra.mxu0 0.0
    %6962 = vmatprep.subr.mxu0 0.0
    %6963 = vmatpush1.xpose.msra.mxu0 0.0
    %6964 = vmatprep.subr.mxu0 0.0
    %6965 = vmatpush1.xpose.msra.mxu0 0.0
    %6966 = vmatprep.subr.mxu0 0.0
    %6967 = vmatpush1.xpose.msra.mxu0 0.0
    %6968 = vmatprep.subr.mxu0 0.0
    %6969 = vmatpush1.xpose.msra.mxu0 0.0
    %6970 = vmatprep.subr.mxu0 0.0
    %6971 = vmatpush1.xpose.msra.mxu0 0.0
    %6972 = vmatprep.subr.mxu0 0.0
    %6973 = vmatpush1.xpose.msra.mxu0 0.0
    %6974 = vmatprep.subr.mxu0 0.0
    %6975 = vmatpush1.xpose.msra.mxu0 0.0
    %6976 = vmatprep.subr.mxu0 0.0
    %6977 = vmatpush1.xpose.msra.mxu0 0.0
    %6978 = vmatprep.subr.mxu0 0.0
    %6979 = vmatpush1.xpose.msra.mxu0 0.0
    %6980 = vmatprep.subr.mxu0 0.0
    %6981 = vmatpush1.xpose.msra.mxu0 0.0
    %6982 = vmatprep.subr.mxu0 0.0
    %6983 = vmatpush1.xpose.msra.mxu0 0.0
    %6984 = vmatprep.subr.mxu0 0.0
    %6985 = vmatpush1.xpose.msra.mxu0 0.0
    %6986 = vmatprep.subr.mxu0 0.0
    %6987 = vmatpush1.xpose.msra.mxu0 0.0
    %6988 = vmatprep.subr.mxu0 0.0
    %6989 = vmatpush1.xpose.msra.mxu0 0.0
    %6990 = vmatprep.subr.mxu0 0.0
    %6991 = vmatpush1.xpose.msra.mxu0 0.0
    %6992 = vmatprep.subr.mxu0 0.0
    %6993 = vmatpush1.xpose.msra.mxu0 0.0
    %6994 = vmatprep.subr.mxu0 0.0
    %6995 = vmatpush1.xpose.msra.mxu0 0.0
    %6996 = vmatprep.subr.mxu0 0.0
    %6997 = vmatpush1.xpose.msra.mxu0 0.0
    %6998 = vmatprep.subr.mxu0 0.0
    %6999 = vmatpush1.xpose.msra.mxu0 0.0
    %7000 = vmatprep.subr.mxu0 0.0
    %7001 = vmatpush1.xpose.msra.mxu0 0.0
    %7002 = vmatprep.subr.mxu0 0.0
    %7003 = vmatpush1.xpose.msra.mxu0 0.0
    %7004 = vmatprep.subr.mxu0 0.0
    %7005 = vmatpush1.xpose.msra.mxu0 0.0
    %7006 = vmatprep.subr.mxu0 0.0
    %7007 = vmatpush1.xpose.msra.mxu0 0.0
    %7008 = vmatprep.subr.mxu0 0.0
    %7009 = vmatpush1.xpose.msra.mxu0 0.0
    %7010 = vmatprep.subr.mxu0 0.0
    %7011 = vmatpush1.xpose.msra.mxu0 0.0
    %7012 = vmatprep.mubr.f32.mxu0 %v5822
    %7013 = vmatmul.mubr.f32.gmra.mrb[0].mxu0 %v5820
    %v7014 = vpop.f32.mrb[0].mxu0
    %v7015 = vadd.f32 %v6945, %v7014
    %v7016 = vpop.f32.mrb[0].mxu0
    %7017 = vdwg.mxu0
    %v7018 = vmul.f32 %v6805, 0.03608439
    %v7019 = vmul.f32 %v7015, 0.03608439
    %vm7020 = vcmask 64512
    %v7021 = vsel %vm7020, %v7018, -inf
    %7022 = vmax.xlane.f32.xlu0 %v7021
    %v7023 = vpop.xlane.xlu0 %7022
    %v7024 = vsel %vm7020, %v7019, -inf
    %7025 = vmax.xlane.f32.xlu0 %v7024
    %v7026 = vpop.xlane.xlu0 %7025
    %v7027 = vsub.f32 %v7018, %v7023
    %v7028 = vsub.f32 %v7019, %v7026
    %v7029 = vmul.f32 %v7027, 1.442695
    %v7030 = vpow.pop %v7029
    %v7031 = vmul.f32 %v7028, 1.442695
    %v7032 = vpow.pop %v7031
    %v7033 = vsel %vm7020, %v7030, 0.0
    %7034 = vadd.xlane.f32.xlu0 %v7033
    %v7035 = vpop.xlane.xlu0 %7034
    %v7036 = vsel %vm7020, %v7032, 0.0
    %7037 = vadd.xlane.f32.xlu0 %v7036
    %v7038 = vpop.xlane.xlu0 %7037
    %v7039 = vrcp.pop %v7035
    %v7040 = vmul.f32 %v7030, %v7039
    %v7041 = vrcp.pop %v7038
    %v7042 = vmul.f32 %v7032, %v7041
    %v7043 = vsel %vm7020, %v7040, 0.0
    %v7044 = vrot.slane %v7043, 4
    %v7045 = vadd.f32 %v7043, %v7044
    %v7046 = vrot.slane %v7045, 2
    %v7047 = vadd.f32 %v7045, %v7046
    %v7048 = vrot.slane %v7047, 1
    %v7049 = vadd.f32 %v7047, %v7048
    %v7050 = vsel %vm7020, %v7042, 0.0
    %v7051 = vrot.slane %v7050, 4
    %v7052 = vadd.f32 %v7050, %v7051
    %v7053 = vrot.slane %v7052, 2
    %v7054 = vadd.f32 %v7052, %v7053
    %v7055 = vrot.slane %v7054, 1
    %v7056 = vadd.f32 %v7054, %v7055
    %v7057 = vrcp.pop 8.0
    %v7058 = vmul.f32 %v7049, %v7057
    %v7059 = vmul.f32 %v7056, %v7057
    %7061 = vbcast.lane.b32.xlu0 %v7058, 256
    %v7062 = vpop.permute.xlu0 %7061
    %7064 = vbcast.lane.b32.xlu0 %v7059, 256
    %v7065 = vpop.permute.xlu0 %7064
    %v7066 = vmul.f32 %v7062, %v6332
    %v7067 = vmul.f32 %v7062, %v6334
    %v7068 = vmul.f32 %v7062, %v6461
    %v7069 = vmul.f32 %v7062, %v6463
    %v7070 = vmul.f32 %v7062, %v6590
    %v7071 = vmul.f32 %v7062, %v6592
    %v7072 = vmul.f32 %v7065, %v6336
    %v7073 = vmul.f32 %v7065, %v6338
    %v7074 = vmul.f32 %v7065, %v6465
    %v7075 = vmul.f32 %v7065, %v6467
    %v7076 = vmul.f32 %v7065, %v6594
    %v7077 = vmul.f32 %v7065, %v6596
    %v7078 = vrot.slane %v7066, 4
    %v7079 = vadd.f32 %v7066, %v7078
    %v7080 = vrot.slane %v7079, 2
    %v7081 = vadd.f32 %v7079, %v7080
    %v7082 = vrot.slane %v7081, 1
    %v7083 = vadd.f32 %v7081, %v7082
    %v7084 = vrot.slane %v7067, 4
    %v7085 = vadd.f32 %v7067, %v7084
    %v7086 = vrot.slane %v7085, 2
    %v7087 = vadd.f32 %v7085, %v7086
    %v7088 = vrot.slane %v7087, 1
    %v7089 = vadd.f32 %v7087, %v7088
    %v7090 = vrot.slane %v7068, 4
    %v7091 = vadd.f32 %v7068, %v7090
    %v7092 = vrot.slane %v7091, 2
    %v7093 = vadd.f32 %v7091, %v7092
    %v7094 = vrot.slane %v7093, 1
    %v7095 = vadd.f32 %v7093, %v7094
    %v7096 = vrot.slane %v7069, 4
    %v7097 = vadd.f32 %v7069, %v7096
    %v7098 = vrot.slane %v7097, 2
    %v7099 = vadd.f32 %v7097, %v7098
    %v7100 = vrot.slane %v7099, 1
    %v7101 = vadd.f32 %v7099, %v7100
    %v7102 = vrot.slane %v7070, 4
    %v7103 = vadd.f32 %v7070, %v7102
    %v7104 = vrot.slane %v7103, 2
    %v7105 = vadd.f32 %v7103, %v7104
    %v7106 = vrot.slane %v7105, 1
    %v7107 = vadd.f32 %v7105, %v7106
    %v7108 = vrot.slane %v7071, 4
    %v7109 = vadd.f32 %v7071, %v7108
    %v7110 = vrot.slane %v7109, 2
    %v7111 = vadd.f32 %v7109, %v7110
    %v7112 = vrot.slane %v7111, 1
    %v7113 = vadd.f32 %v7111, %v7112
    %v7114 = vrot.slane %v7072, 4
    %v7115 = vadd.f32 %v7072, %v7114
    %v7116 = vrot.slane %v7115, 2
    %v7117 = vadd.f32 %v7115, %v7116
    %v7118 = vrot.slane %v7117, 1
    %v7119 = vadd.f32 %v7117, %v7118
    %v7120 = vrot.slane %v7073, 4
    %v7121 = vadd.f32 %v7073, %v7120
    %v7122 = vrot.slane %v7121, 2
    %v7123 = vadd.f32 %v7121, %v7122
    %v7124 = vrot.slane %v7123, 1
    %v7125 = vadd.f32 %v7123, %v7124
    %v7126 = vrot.slane %v7074, 4
    %v7127 = vadd.f32 %v7074, %v7126
    %v7128 = vrot.slane %v7127, 2
    %v7129 = vadd.f32 %v7127, %v7128
    %v7130 = vrot.slane %v7129, 1
    %v7131 = vadd.f32 %v7129, %v7130
    %v7132 = vrot.slane %v7075, 4
    %v7133 = vadd.f32 %v7075, %v7132
    %v7134 = vrot.slane %v7133, 2
    %v7135 = vadd.f32 %v7133, %v7134
    %v7136 = vrot.slane %v7135, 1
    %v7137 = vadd.f32 %v7135, %v7136
    %v7138 = vrot.slane %v7076, 4
    %v7139 = vadd.f32 %v7076, %v7138
    %v7140 = vrot.slane %v7139, 2
    %v7141 = vadd.f32 %v7139, %v7140
    %v7142 = vrot.slane %v7141, 1
    %v7143 = vadd.f32 %v7141, %v7142
    %v7144 = vrot.slane %v7077, 4
    %v7145 = vadd.f32 %v7077, %v7144
    %v7146 = vrot.slane %v7145, 2
    %v7147 = vadd.f32 %v7145, %v7146
    %v7148 = vrot.slane %v7147, 1
    %v7149 = vadd.f32 %v7147, %v7148
    %v7150 = vpack.c.bf16 %v7083, %v7083
    %v7151 = vpack.c.bf16 %v7089, %v7089
    %v7152 = vpack.c.bf16 %v7095, %v7095
    %v7153 = vpack.c.bf16 %v7101, %v7101
    %v7154 = vpack.c.bf16 %v7107, %v7107
    %v7155 = vpack.c.bf16 %v7113, %v7113
    %v7156 = vpack.c.bf16 %v7119, %v7119
    %v7157 = vpack.c.bf16 %v7125, %v7125
    %v7158 = vpack.c.bf16 %v7131, %v7131
    %v7159 = vpack.c.bf16 %v7137, %v7137
    %v7160 = vpack.c.bf16 %v7143, %v7143
    %v7161 = vpack.c.bf16 %v7149, %v7149
    %v7162 = vld [vmem:[#allocation8] sm:$0xf]
    %v7163 = vld [vmem:[#allocation8 + $0x4] sm:$0xf]
    %v7164 = vld [vmem:[#allocation8 + $0x8] sm:$0xf]
    %v7165 = vld [vmem:[#allocation8 + $0xc] sm:$0xf]
    %v7166 = vld [vmem:[#allocation8 + $0x10] sm:$0xf]
    %v7167 = vld [vmem:[#allocation8 + $0x14] sm:$0xf]
    %v7168 = vld [vmem:[#allocation8 + $0x18] sm:$0xf]
    %v7169 = vld [vmem:[#allocation8 + $0x1c] sm:$0xf]
    %v7170 = vld [vmem:[#allocation8 + $0x20] sm:$0xf]
    %v7171 = vld [vmem:[#allocation8 + $0x24] sm:$0xf]
    %v7172 = vld [vmem:[#allocation8 + $0x28] sm:$0xf]
    %v7173 = vld [vmem:[#allocation8 + $0x2c] sm:$0xf]
    %v7174 = vld [vmem:[#allocation8 + $0x30] sm:$0xf]
    %v7175 = vld [vmem:[#allocation8 + $0x34] sm:$0xf]
    %v7176 = vld [vmem:[#allocation8 + $0x38] sm:$0xf]
    %v7177 = vld [vmem:[#allocation8 + $0x3c] sm:$0xf]
    %v7178 = vld [vmem:[#allocation8 + $0x40] sm:$0xf]
    %v7179 = vld [vmem:[#allocation8 + $0x44] sm:$0xf]
    %v7180 = vld [vmem:[#allocation8 + $0x48] sm:$0xf]
    %v7181 = vld [vmem:[#allocation8 + $0x4c] sm:$0xf]
    %v7182 = vld [vmem:[#allocation8 + $0x50] sm:$0xf]
    %v7183 = vld [vmem:[#allocation8 + $0x54] sm:$0xf]
    %v7184 = vld [vmem:[#allocation8 + $0x58] sm:$0xf]
    %v7185 = vld [vmem:[#allocation8 + $0x5c] sm:$0xf]
    %v7186 = vld [vmem:[#allocation8 + $0x60] sm:$0xf]
    %v7187 = vld [vmem:[#allocation8 + $0x64] sm:$0xf]
    %v7188 = vld [vmem:[#allocation8 + $0x68] sm:$0xf]
    %v7189 = vld [vmem:[#allocation8 + $0x6c] sm:$0xf]
    %v7190 = vld [vmem:[#allocation8 + $0x70] sm:$0xf]
    %v7191 = vld [vmem:[#allocation8 + $0x74] sm:$0xf]
    %v7192 = vld [vmem:[#allocation8 + $0x78] sm:$0xf]
    %v7193 = vld [vmem:[#allocation8 + $0x7c] sm:$0xf]
    %v7194 = vld [vmem:[#allocation8 + $0x80] sm:$0xf]
    %v7195 = vld [vmem:[#allocation8 + $0x84] sm:$0xf]
    %v7196 = vld [vmem:[#allocation8 + $0x88] sm:$0xf]
    %v7197 = vld [vmem:[#allocation8 + $0x8c] sm:$0xf]
    %v7198 = vld [vmem:[#allocation8 + $0x90] sm:$0xf]
    %v7199 = vld [vmem:[#allocation8 + $0x94] sm:$0xf]
    %v7200 = vld [vmem:[#allocation8 + $0x98] sm:$0xf]
    %v7201 = vld [vmem:[#allocation8 + $0x9c] sm:$0xf]
    %v7202 = vld [vmem:[#allocation8 + $0xa0] sm:$0xf]
    %v7203 = vld [vmem:[#allocation8 + $0xa4] sm:$0xf]
    %v7204 = vld [vmem:[#allocation8 + $0xa8] sm:$0xf]
    %v7205 = vld [vmem:[#allocation8 + $0xac] sm:$0xf]
    %v7206 = vld [vmem:[#allocation8 + $0xb0] sm:$0xf]
    %v7207 = vld [vmem:[#allocation8 + $0xb4] sm:$0xf]
    %v7208 = vld [vmem:[#allocation8 + $0xb8] sm:$0xf]
    %v7209 = vld [vmem:[#allocation8 + $0xbc] sm:$0xf]
    %v7210 = vld [vmem:[#allocation8 + $0xc0] sm:$0xf]
    %v7211 = vld [vmem:[#allocation8 + $0xc4] sm:$0xf]
    %v7212 = vld [vmem:[#allocation8 + $0xc8] sm:$0xf]
    %v7213 = vld [vmem:[#allocation8 + $0xcc] sm:$0xf]
    %v7214 = vld [vmem:[#allocation8 + $0xd0] sm:$0xf]
    %v7215 = vld [vmem:[#allocation8 + $0xd4] sm:$0xf]
    %v7216 = vld [vmem:[#allocation8 + $0xd8] sm:$0xf]
    %v7217 = vld [vmem:[#allocation8 + $0xdc] sm:$0xf]
    %v7218 = vld [vmem:[#allocation8 + $0xe0] sm:$0xf]
    %v7219 = vld [vmem:[#allocation8 + $0xe4] sm:$0xf]
    %v7220 = vld [vmem:[#allocation8 + $0xe8] sm:$0xf]
    %v7221 = vld [vmem:[#allocation8 + $0xec] sm:$0xf]
    %v7222 = vld [vmem:[#allocation8 + $0xf0] sm:$0xf]
    %v7223 = vld [vmem:[#allocation8 + $0xf4] sm:$0xf]
    %v7224 = vld [vmem:[#allocation8 + $0xf8] sm:$0xf]
    %v7225 = vld [vmem:[#allocation8 + $0xfc] sm:$0xf]
    %v7226 = vld [vmem:[#allocation8 + $0x100] sm:$0xf]
    %v7227 = vld [vmem:[#allocation8 + $0x104] sm:$0xf]
    %v7228 = vld [vmem:[#allocation8 + $0x108] sm:$0xf]
    %v7229 = vld [vmem:[#allocation8 + $0x10c] sm:$0xf]
    %v7230 = vld [vmem:[#allocation8 + $0x110] sm:$0xf]
    %v7231 = vld [vmem:[#allocation8 + $0x114] sm:$0xf]
    %v7232 = vld [vmem:[#allocation8 + $0x118] sm:$0xf]
    %v7233 = vld [vmem:[#allocation8 + $0x11c] sm:$0xf]
    %v7234 = vld [vmem:[#allocation8 + $0x120] sm:$0xf]
    %v7235 = vld [vmem:[#allocation8 + $0x124] sm:$0xf]
    %v7236 = vld [vmem:[#allocation8 + $0x128] sm:$0xf]
    %v7237 = vld [vmem:[#allocation8 + $0x12c] sm:$0xf]
    %v7238 = vld [vmem:[#allocation8 + $0x130] sm:$0xf]
    %v7239 = vld [vmem:[#allocation8 + $0x134] sm:$0xf]
    %v7240 = vld [vmem:[#allocation8 + $0x138] sm:$0xf]
    %v7241 = vld [vmem:[#allocation8 + $0x13c] sm:$0xf]
    %v7242 = vld [vmem:[#allocation8 + $0x140] sm:$0xf]
    %v7243 = vld [vmem:[#allocation8 + $0x144] sm:$0xf]
    %v7244 = vld [vmem:[#allocation8 + $0x148] sm:$0xf]
    %v7245 = vld [vmem:[#allocation8 + $0x14c] sm:$0xf]
    %v7246 = vld [vmem:[#allocation8 + $0x150] sm:$0xf]
    %v7247 = vld [vmem:[#allocation8 + $0x154] sm:$0xf]
    %v7248 = vld [vmem:[#allocation8 + $0x158] sm:$0xf]
    %v7249 = vld [vmem:[#allocation8 + $0x15c] sm:$0xf]
    %v7250 = vld [vmem:[#allocation8 + $0x160] sm:$0xf]
    %v7251 = vld [vmem:[#allocation8 + $0x164] sm:$0xf]
    %v7252 = vld [vmem:[#allocation8 + $0x168] sm:$0xf]
    %v7253 = vld [vmem:[#allocation8 + $0x16c] sm:$0xf]
    %v7254 = vld [vmem:[#allocation8 + $0x170] sm:$0xf]
    %v7255 = vld [vmem:[#allocation8 + $0x174] sm:$0xf]
    %v7256 = vld [vmem:[#allocation8 + $0x178] sm:$0xf]
    %v7257 = vld [vmem:[#allocation8 + $0x17c] sm:$0xf]
    %v7258 = vld [vmem:[#allocation10] sm:$0x1]
    %v7260 = vlaneseq
    %v7261 = vshrl.u32 %v7260, 7
    %v7262 = vsub.s32 0, %v7261
    %v7263 = vrot.slane %v7258, %v7262
    %v7277 = vunpack.c.l.b16 %v7150
    %v7278 = vunpack.c.l.b16 %v7151
    %v7279 = vunpack.c.l.b16 %v7152
    %v7280 = vunpack.c.l.b16 %v7153
    %v7281 = vunpack.c.l.b16 %v7154
    %v7282 = vunpack.c.l.b16 %v7155
    %v7283 = vunpack.c.l.b16 %v7156
    %v7284 = vunpack.c.l.b16 %v7157
    %v7285 = vunpack.c.l.b16 %v7158
    %v7286 = vunpack.c.l.b16 %v7159
    %v7287 = vunpack.c.l.b16 %v7160
    %v7288 = vunpack.c.l.b16 %v7161
    %vm7289 = vcmask 1041409
    %v7290 = vsel %vm7289, %v7283, %v7277
    %v7291 = vsel %vm7289, %v7284, %v7278
    %v7292 = vsel %vm7289, %v7285, %v7279
    %v7293 = vsel %vm7289, %v7286, %v7280
    %v7294 = vsel %vm7289, %v7287, %v7281
    %v7295 = vsel %vm7289, %v7288, %v7282
    %v7296 = vpack.c.b16 %v7290, %v7290
    %v7297 = vpack.c.b16 %v7291, %v7291
    %v7298 = vpack.c.b16 %v7292, %v7292
    %v7299 = vpack.c.b16 %v7293, %v7293
    %v7300 = vpack.c.b16 %v7294, %v7294
    %v7301 = vpack.c.b16 %v7295, %v7295
    %v7404 = vunpack.c.l.b16 %v7162
    %v7405 = vunpack.c.l.b16 %v7163
    %v7406 = vunpack.c.l.b16 %v7164
    %v7407 = vunpack.c.l.b16 %v7165
    %v7408 = vunpack.c.l.b16 %v7166
    %v7409 = vunpack.c.l.b16 %v7167
    %v7410 = vunpack.c.l.b16 %v7168
    %v7411 = vunpack.c.l.b16 %v7169
    %v7412 = vunpack.c.l.b16 %v7170
    %v7413 = vunpack.c.l.b16 %v7171
    %v7414 = vunpack.c.l.b16 %v7172
    %v7415 = vunpack.c.l.b16 %v7173
    %v7416 = vunpack.c.l.b16 %v7174
    %v7417 = vunpack.c.l.b16 %v7175
    %v7418 = vunpack.c.l.b16 %v7176
    %v7419 = vunpack.c.l.b16 %v7177
    %v7420 = vunpack.c.l.b16 %v7178
    %v7421 = vunpack.c.l.b16 %v7179
    %v7422 = vunpack.c.l.b16 %v7180
    %v7423 = vunpack.c.l.b16 %v7181
    %v7424 = vunpack.c.l.b16 %v7182
    %v7425 = vunpack.c.l.b16 %v7183
    %v7426 = vunpack.c.l.b16 %v7184
    %v7427 = vunpack.c.l.b16 %v7185
    %v7428 = vunpack.c.l.b16 %v7186
    %v7429 = vunpack.c.l.b16 %v7187
    %v7430 = vunpack.c.l.b16 %v7188
    %v7431 = vunpack.c.l.b16 %v7189
    %v7432 = vunpack.c.l.b16 %v7190
    %v7433 = vunpack.c.l.b16 %v7191
    %v7434 = vunpack.c.l.b16 %v7192
    %v7435 = vunpack.c.l.b16 %v7193
    %v7436 = vunpack.c.l.b16 %v7194
    %v7437 = vunpack.c.l.b16 %v7195
    %v7438 = vunpack.c.l.b16 %v7196
    %v7439 = vunpack.c.l.b16 %v7197
    %v7440 = vunpack.c.l.b16 %v7198
    %v7441 = vunpack.c.l.b16 %v7199
    %v7442 = vunpack.c.l.b16 %v7200
    %v7443 = vunpack.c.l.b16 %v7201
    %v7444 = vunpack.c.l.b16 %v7202
    %v7445 = vunpack.c.l.b16 %v7203
    %v7446 = vunpack.c.l.b16 %v7204
    %v7447 = vunpack.c.l.b16 %v7205
    %v7448 = vunpack.c.l.b16 %v7206
    %v7449 = vunpack.c.l.b16 %v7207
    %v7450 = vunpack.c.l.b16 %v7208
    %v7451 = vunpack.c.l.b16 %v7209
    %v7452 = vunpack.c.l.b16 %v7210
    %v7453 = vunpack.c.l.b16 %v7211
    %v7454 = vunpack.c.l.b16 %v7212
    %v7455 = vunpack.c.l.b16 %v7213
    %v7456 = vunpack.c.l.b16 %v7214
    %v7457 = vunpack.c.l.b16 %v7215
    %v7458 = vunpack.c.l.b16 %v7216
    %v7459 = vunpack.c.l.b16 %v7217
    %v7460 = vunpack.c.l.b16 %v7218
    %v7461 = vunpack.c.l.b16 %v7219
    %v7462 = vunpack.c.l.b16 %v7220
    %v7463 = vunpack.c.l.b16 %v7221
    %v7464 = vunpack.c.l.b16 %v7222
    %v7465 = vunpack.c.l.b16 %v7223
    %v7466 = vunpack.c.l.b16 %v7224
    %v7467 = vunpack.c.l.b16 %v7225
    %v7468 = vunpack.c.l.b16 %v7226
    %v7469 = vunpack.c.l.b16 %v7227
    %v7470 = vunpack.c.l.b16 %v7228
    %v7471 = vunpack.c.l.b16 %v7229
    %v7472 = vunpack.c.l.b16 %v7230
    %v7473 = vunpack.c.l.b16 %v7231
    %v7474 = vunpack.c.l.b16 %v7232
    %v7475 = vunpack.c.l.b16 %v7233
    %v7476 = vunpack.c.l.b16 %v7234
    %v7477 = vunpack.c.l.b16 %v7235
    %v7478 = vunpack.c.l.b16 %v7236
    %v7479 = vunpack.c.l.b16 %v7237
    %v7480 = vunpack.c.l.b16 %v7238
    %v7481 = vunpack.c.l.b16 %v7239
    %v7482 = vunpack.c.l.b16 %v7240
    %v7483 = vunpack.c.l.b16 %v7241
    %v7484 = vunpack.c.l.b16 %v7242
    %v7485 = vunpack.c.l.b16 %v7243
    %v7486 = vunpack.c.l.b16 %v7244
    %v7487 = vunpack.c.l.b16 %v7245
    %v7488 = vunpack.c.l.b16 %v7246
    %v7489 = vunpack.c.l.b16 %v7247
    %v7490 = vunpack.c.l.b16 %v7248
    %v7491 = vunpack.c.l.b16 %v7249
    %v7492 = vunpack.c.l.b16 %v7250
    %v7493 = vunpack.c.l.b16 %v7251
    %v7494 = vunpack.c.l.b16 %v7252
    %v7495 = vunpack.c.l.b16 %v7253
    %v7496 = vunpack.c.l.b16 %v7254
    %v7497 = vunpack.c.l.b16 %v7255
    %v7498 = vunpack.c.l.b16 %v7256
    %v7499 = vunpack.c.l.b16 %v7257
    %v7500 = vpack.c.b16 %v7405, %v7404
    %v7501 = vpack.c.b16 %v7407, %v7406
    %v7502 = vpack.c.b16 %v7409, %v7408
    %v7503 = vpack.c.b16 %v7411, %v7410
    %v7504 = vpack.c.b16 %v7413, %v7412
    %v7505 = vpack.c.b16 %v7415, %v7414
    %v7506 = vpack.c.b16 %v7417, %v7416
    %v7507 = vpack.c.b16 %v7419, %v7418
    %v7508 = vpack.c.b16 %v7421, %v7420
    %v7509 = vpack.c.b16 %v7423, %v7422
    %v7510 = vpack.c.b16 %v7425, %v7424
    %v7511 = vpack.c.b16 %v7427, %v7426
    %v7512 = vpack.c.b16 %v7429, %v7428
    %v7513 = vpack.c.b16 %v7431, %v7430
    %v7514 = vpack.c.b16 %v7433, %v7432
    %v7515 = vpack.c.b16 %v7435, %v7434
    %v7516 = vpack.c.b16 %v7437, %v7436
    %v7517 = vpack.c.b16 %v7439, %v7438
    %v7518 = vpack.c.b16 %v7441, %v7440
    %v7519 = vpack.c.b16 %v7443, %v7442
    %v7520 = vpack.c.b16 %v7445, %v7444
    %v7521 = vpack.c.b16 %v7447, %v7446
    %v7522 = vpack.c.b16 %v7449, %v7448
    %v7523 = vpack.c.b16 %v7451, %v7450
    %v7524 = vpack.c.b16 %v7453, %v7452
    %v7525 = vpack.c.b16 %v7455, %v7454
    %v7526 = vpack.c.b16 %v7457, %v7456
    %v7527 = vpack.c.b16 %v7459, %v7458
    %v7528 = vpack.c.b16 %v7461, %v7460
    %v7529 = vpack.c.b16 %v7463, %v7462
    %v7530 = vpack.c.b16 %v7465, %v7464
    %v7531 = vpack.c.b16 %v7467, %v7466
    %v7532 = vpack.c.b16 %v7469, %v7468
    %v7533 = vpack.c.b16 %v7471, %v7470
    %v7534 = vpack.c.b16 %v7473, %v7472
    %v7535 = vpack.c.b16 %v7475, %v7474
    %v7536 = vpack.c.b16 %v7477, %v7476
    %v7537 = vpack.c.b16 %v7479, %v7478
    %v7538 = vpack.c.b16 %v7481, %v7480
    %v7539 = vpack.c.b16 %v7483, %v7482
    %v7540 = vpack.c.b16 %v7485, %v7484
    %v7541 = vpack.c.b16 %v7487, %v7486
    %v7542 = vpack.c.b16 %v7489, %v7488
    %v7543 = vpack.c.b16 %v7491, %v7490
    %v7544 = vpack.c.b16 %v7493, %v7492
    %v7545 = vpack.c.b16 %v7495, %v7494
    %v7546 = vpack.c.b16 %v7497, %v7496
    %v7547 = vpack.c.b16 %v7499, %v7498
    %7596 = vmatprep.subr.bf16.mxu0 0
    %7597 = vmatpush1.bf16.msra.mxu0 %v7500
    %7598 = vmatprep.subr.bf16.mxu0 0
    %7599 = vmatpush1.bf16.msra.mxu0 %v7501
    %7600 = vmatprep.subr.bf16.mxu0 0
    %7601 = vmatpush1.bf16.msra.mxu0 %v7502
    %7602 = vmatprep.subr.bf16.mxu0 0
    %7603 = vmatpush1.bf16.msra.mxu0 %v7503
    %7604 = vmatprep.subr.bf16.mxu0 0
    %7605 = vmatpush1.bf16.msra.mxu0 %v7504
    %7606 = vmatprep.subr.bf16.mxu0 0
    %7607 = vmatpush1.bf16.msra.mxu0 %v7505
    %7608 = vmatprep.subr.bf16.mxu0 0
    %7609 = vmatpush1.bf16.msra.mxu0 %v7506
    %7610 = vmatprep.subr.bf16.mxu0 0
    %7611 = vmatpush1.bf16.msra.mxu0 %v7507
    %7612 = vmatprep.subr.bf16.mxu0 0
    %7613 = vmatpush1.bf16.msra.mxu0 %v7508
    %7614 = vmatprep.subr.bf16.mxu0 0
    %7615 = vmatpush1.bf16.msra.mxu0 %v7509
    %7616 = vmatprep.subr.bf16.mxu0 0
    %7617 = vmatpush1.bf16.msra.mxu0 %v7510
    %7618 = vmatprep.subr.bf16.mxu0 0
    %7619 = vmatpush1.bf16.msra.mxu0 %v7511
    %7620 = vmatprep.subr.bf16.mxu0 0
    %7621 = vmatpush1.bf16.msra.mxu0 %v7512
    %7622 = vmatprep.subr.bf16.mxu0 0
    %7623 = vmatpush1.bf16.msra.mxu0 %v7513
    %7624 = vmatprep.subr.bf16.mxu0 0
    %7625 = vmatpush1.bf16.msra.mxu0 %v7514
    %7626 = vmatprep.subr.bf16.mxu0 0
    %7627 = vmatpush1.bf16.msra.mxu0 %v7515
    %7628 = vmatprep.mubr.bf16.mxu0 %v7297
    %7629 = vmatmul.mubr.bf16.gmra.mrb[0].mxu0 %v7296
    %v7630 = vpop.f32.mrb[0].mxu0
    %v7631 = vadd.f32 %v7263, %v7630
    %v7632 = vpop.f32.mrb[0].mxu0
    %v7633 = vpop.f32.mrb[0].mxu0
    %v7634 = vpop.f32.mrb[0].mxu0
    %7635 = vdwg.mxu0
    %7636 = vmatprep.subr.bf16.mxu0 0
    %7637 = vmatpush1.bf16.msra.mxu0 %v7516
    %7638 = vmatprep.subr.bf16.mxu0 0
    %7639 = vmatpush1.bf16.msra.mxu0 %v7517
    %7640 = vmatprep.subr.bf16.mxu0 0
    %7641 = vmatpush1.bf16.msra.mxu0 %v7518
    %7642 = vmatprep.subr.bf16.mxu0 0
    %7643 = vmatpush1.bf16.msra.mxu0 %v7519
    %7644 = vmatprep.subr.bf16.mxu0 0
    %7645 = vmatpush1.bf16.msra.mxu0 %v7520
    %7646 = vmatprep.subr.bf16.mxu0 0
    %7647 = vmatpush1.bf16.msra.mxu0 %v7521
    %7648 = vmatprep.subr.bf16.mxu0 0
    %7649 = vmatpush1.bf16.msra.mxu0 %v7522
    %7650 = vmatprep.subr.bf16.mxu0 0
    %7651 = vmatpush1.bf16.msra.mxu0 %v7523
    %7652 = vmatprep.subr.bf16.mxu0 0
    %7653 = vmatpush1.bf16.msra.mxu0 %v7524
    %7654 = vmatprep.subr.bf16.mxu0 0
    %7655 = vmatpush1.bf16.msra.mxu0 %v7525
    %7656 = vmatprep.subr.bf16.mxu0 0
    %7657 = vmatpush1.bf16.msra.mxu0 %v7526
    %7658 = vmatprep.subr.bf16.mxu0 0
    %7659 = vmatpush1.bf16.msra.mxu0 %v7527
    %7660 = vmatprep.subr.bf16.mxu0 0
    %7661 = vmatpush1.bf16.msra.mxu0 %v7528
    %7662 = vmatprep.subr.bf16.mxu0 0
    %7663 = vmatpush1.bf16.msra.mxu0 %v7529
    %7664 = vmatprep.subr.bf16.mxu0 0
    %7665 = vmatpush1.bf16.msra.mxu0 %v7530
    %7666 = vmatprep.subr.bf16.mxu0 0
    %7667 = vmatpush1.bf16.msra.mxu0 %v7531
    %7668 = vmatprep.mubr.bf16.mxu0 %v7299
    %7669 = vmatmul.mubr.bf16.gmra.mrb[0].mxu0 %v7298
    %v7670 = vpop.f32.mrb[0].mxu0
    %v7671 = vadd.f32 %v7631, %v7670
    %v7672 = vpop.f32.mrb[0].mxu0
    %v7673 = vpop.f32.mrb[0].mxu0
    %v7674 = vpop.f32.mrb[0].mxu0
    %7675 = vdwg.mxu0
    %7676 = vmatprep.subr.bf16.mxu0 0
    %7677 = vmatpush1.bf16.msra.mxu0 %v7532
    %7678 = vmatprep.subr.bf16.mxu0 0
    %7679 = vmatpush1.bf16.msra.mxu0 %v7533
    %7680 = vmatprep.subr.bf16.mxu0 0
    %7681 = vmatpush1.bf16.msra.mxu0 %v7534
    %7682 = vmatprep.subr.bf16.mxu0 0
    %7683 = vmatpush1.bf16.msra.mxu0 %v7535
    %7684 = vmatprep.subr.bf16.mxu0 0
    %7685 = vmatpush1.bf16.msra.mxu0 %v7536
    %7686 = vmatprep.subr.bf16.mxu0 0
    %7687 = vmatpush1.bf16.msra.mxu0 %v7537
    %7688 = vmatprep.subr.bf16.mxu0 0
    %7689 = vmatpush1.bf16.msra.mxu0 %v7538
    %7690 = vmatprep.subr.bf16.mxu0 0
    %7691 = vmatpush1.bf16.msra.mxu0 %v7539
    %7692 = vmatprep.subr.bf16.mxu0 0
    %7693 = vmatpush1.bf16.msra.mxu0 %v7540
    %7694 = vmatprep.subr.bf16.mxu0 0
    %7695 = vmatpush1.bf16.msra.mxu0 %v7541
    %7696 = vmatprep.subr.bf16.mxu0 0
    %7697 = vmatpush1.bf16.msra.mxu0 %v7542
    %7698 = vmatprep.subr.bf16.mxu0 0
    %7699 = vmatpush1.bf16.msra.mxu0 %v7543
    %7700 = vmatprep.subr.bf16.mxu0 0
    %7701 = vmatpush1.bf16.msra.mxu0 %v7544
    %7702 = vmatprep.subr.bf16.mxu0 0
    %7703 = vmatpush1.bf16.msra.mxu0 %v7545
    %7704 = vmatprep.subr.bf16.mxu0 0
    %7705 = vmatpush1.bf16.msra.mxu0 %v7546
    %7706 = vmatprep.subr.bf16.mxu0 0
    %7707 = vmatpush1.bf16.msra.mxu0 %v7547
    %7708 = vmatprep.mubr.bf16.mxu0 %v7301
    %7709 = vmatmul.mubr.bf16.gmra.mrb[0].mxu0 %v7300
    %v7710 = vpop.f32.mrb[0].mxu0
    %v7711 = vadd.f32 %v7671, %v7710
    %v7712 = vpop.f32.mrb[0].mxu0
    %v7713 = vpop.f32.mrb[0].mxu0
    %v7714 = vpop.f32.mrb[0].mxu0
    %7715 = vdwg.mxu0
    %v7716 = vpack.c.bf16 %v7711, %v7711
    %v7717 = vld [vmem:[%s5] sm:$0xf]
    %v7718 = vld [vmem:[%s5 + $0x4] sm:$0xf]
    %v7719 = vld [vmem:[%s5 + $0x8] sm:$0xf]
    %v7720 = vld [vmem:[%s5 + $0xc] sm:$0xf]
    %v7721 = vld [vmem:[%s5 + $0x10] sm:$0xf]
    %v7722 = vld [vmem:[%s5 + $0x14] sm:$0xf]
    %v7723 = vld [vmem:[%s5 + $0x18] sm:$0xf]
    %v7724 = vld [vmem:[%s5 + $0x1c] sm:$0xf]
    %v7725 = vld [vmem:[%s5 + $0x20] sm:$0xf]
    %v7726 = vld [vmem:[%s5 + $0x24] sm:$0xf]
    %v7727 = vld [vmem:[%s5 + $0x28] sm:$0xf]
    %v7728 = vld [vmem:[%s5 + $0x2c] sm:$0xf]
    %v7729 = vld [vmem:[%s5 + $0x30] sm:$0xf]
    %v7730 = vld [vmem:[%s5 + $0x34] sm:$0xf]
    %v7731 = vld [vmem:[%s5 + $0x38] sm:$0xf]
    %v7732 = vld [vmem:[%s5 + $0x3c] sm:$0xf]
    %v7733 = vld [vmem:[#allocation11] sm:$0x1]
    %v7735 = vlaneseq
    %v7736 = vshrl.u32 %v7735, 7
    %v7737 = vsub.s32 0, %v7736
    %v7738 = vrot.slane %v7733, %v7737
    %v7756 = vunpack.c.l.b16 %v7717
    %v7757 = vunpack.c.l.b16 %v7718
    %v7758 = vunpack.c.l.b16 %v7719
    %v7759 = vunpack.c.l.b16 %v7720
    %v7760 = vunpack.c.l.b16 %v7721
    %v7761 = vunpack.c.l.b16 %v7722
    %v7762 = vunpack.c.l.b16 %v7723
    %v7763 = vunpack.c.l.b16 %v7724
    %v7764 = vunpack.c.l.b16 %v7725
    %v7765 = vunpack.c.l.b16 %v7726
    %v7766 = vunpack.c.l.b16 %v7727
    %v7767 = vunpack.c.l.b16 %v7728
    %v7768 = vunpack.c.l.b16 %v7729
    %v7769 = vunpack.c.l.b16 %v7730
    %v7770 = vunpack.c.l.b16 %v7731
    %v7771 = vunpack.c.l.b16 %v7732
    %v7772 = vpack.c.b16 %v7757, %v7756
    %v7773 = vpack.c.b16 %v7759, %v7758
    %v7774 = vpack.c.b16 %v7761, %v7760
    %v7775 = vpack.c.b16 %v7763, %v7762
    %v7776 = vpack.c.b16 %v7765, %v7764
    %v7777 = vpack.c.b16 %v7767, %v7766
    %v7778 = vpack.c.b16 %v7769, %v7768
    %v7779 = vpack.c.b16 %v7771, %v7770
    %7788 = vmatprep.subr.bf16.mxu0 0
    %7789 = vmatpush1.bf16.msra.mxu0 %v7772
    %7790 = vmatprep.subr.bf16.mxu0 0
    %7791 = vmatpush1.bf16.msra.mxu0 %v7773
    %7792 = vmatprep.subr.bf16.mxu0 0
    %7793 = vmatpush1.bf16.msra.mxu0 %v7774
    %7794 = vmatprep.subr.bf16.mxu0 0
    %7795 = vmatpush1.bf16.msra.mxu0 %v7775
    %7796 = vmatprep.subr.bf16.mxu0 0
    %7797 = vmatpush1.bf16.msra.mxu0 %v7776
    %7798 = vmatprep.subr.bf16.mxu0 0
    %7799 = vmatpush1.bf16.msra.mxu0 %v7777
    %7800 = vmatprep.subr.bf16.mxu0 0
    %7801 = vmatpush1.bf16.msra.mxu0 %v7778
    %7802 = vmatprep.subr.bf16.mxu0 0
    %7803 = vmatpush1.bf16.msra.mxu0 %v7779
    %7804 = vmatprep.subr.bf16.mxu0 0
    %7805 = vmatpush1.bf16.msra.mxu0 0
    %7806 = vmatprep.subr.bf16.mxu0 0
    %7807 = vmatpush1.bf16.msra.mxu0 0
    %7808 = vmatprep.subr.bf16.mxu0 0
    %7809 = vmatpush1.bf16.msra.mxu0 0
    %7810 = vmatprep.subr.bf16.mxu0 0
    %7811 = vmatpush1.bf16.msra.mxu0 0
    %7812 = vmatprep.subr.bf16.mxu0 0
    %7813 = vmatpush1.bf16.msra.mxu0 0
    %7814 = vmatprep.subr.bf16.mxu0 0
    %7815 = vmatpush1.bf16.msra.mxu0 0
    %7816 = vmatprep.subr.bf16.mxu0 0
    %7817 = vmatpush1.bf16.msra.mxu0 0
    %7818 = vmatprep.subr.bf16.mxu0 0
    %7819 = vmatpush1.bf16.msra.mxu0 0
    %7820 = vmatprep.mubr.bf16.mxu0 0
    %7821 = vmatmul.mubr.bf16.gmra.mrb[0].mxu0 %v7716
    %v7822 = vpop.f32.mrb[0].mxu0
    %v7823 = vadd.f32 %v7738, %v7822
    %v7824 = vpop.f32.mrb[0].mxu0
    %v7825 = vpop.f32.mrb[0].mxu0
    %v7826 = vpop.f32.mrb[0].mxu0
    %7827 = vdwg.mxu0
    %v7828 = vpack.c.bf16 %v7823, %v7823
    %v7829 = vld [vmem:[%s7] sm:$0xf]
    %v7830 = vld [vmem:[%s7 + $0x4] sm:$0xf]
    %v7831 = vld [vmem:[#allocation13] sm:$0x1]
    %v7833 = vlaneseq
    %v7834 = vshrl.u32 %v7833, 7
    %v7835 = vsub.s32 0, %v7834
    %v7836 = vrot.slane %v7831, %v7835
    %v7840 = vunpack.c.l.b16 %v7829
    %v7841 = vunpack.c.l.b16 %v7830
    %v7842 = vpack.c.b16 %v7841, %v7840
    %vm7844 = vcmask 130048
    %v7846 = vsel %vm7844, %v7828, 0
    %7848 = vmatprep.subr.bf16.mxu0 0
    %7849 = vmatpush1.bf16.msra.mxu0 %v7842
    %7850 = vmatprep.subr.bf16.mxu0 0
    %7851 = vmatpush1.bf16.msra.mxu0 0
    %7852 = vmatprep.subr.bf16.mxu0 0
    %7853 = vmatpush1.bf16.msra.mxu0 0
    %7854 = vmatprep.subr.bf16.mxu0 0
    %7855 = vmatpush1.bf16.msra.mxu0 0
    %7856 = vmatprep.subr.bf16.mxu0 0
    %7857 = vmatpush1.bf16.msra.mxu0 0
    %7858 = vmatprep.subr.bf16.mxu0 0
    %7859 = vmatpush1.bf16.msra.mxu0 0
    %7860 = vmatprep.subr.bf16.mxu0 0
    %7861 = vmatpush1.bf16.msra.mxu0 0
    %7862 = vmatprep.subr.bf16.mxu0 0
    %7863 = vmatpush1.bf16.msra.mxu0 0
    %7864 = vmatprep.subr.bf16.mxu0 0
    %7865 = vmatpush1.bf16.msra.mxu0 0
    %7866 = vmatprep.subr.bf16.mxu0 0
    %7867 = vmatpush1.bf16.msra.mxu0 0
    %7868 = vmatprep.subr.bf16.mxu0 0
    %7869 = vmatpush1.bf16.msra.mxu0 0
    %7870 = vmatprep.subr.bf16.mxu0 0
    %7871 = vmatpush1.bf16.msra.mxu0 0
    %7872 = vmatprep.subr.bf16.mxu0 0
    %7873 = vmatpush1.bf16.msra.mxu0 0
    %7874 = vmatprep.subr.bf16.mxu0 0
    %7875 = vmatpush1.bf16.msra.mxu0 0
    %7876 = vmatprep.subr.bf16.mxu0 0
    %7877 = vmatpush1.bf16.msra.mxu0 0
    %7878 = vmatprep.subr.bf16.mxu0 0
    %7879 = vmatpush1.bf16.msra.mxu0 0
    %7880 = vmatprep.mubr.bf16.mxu0 0
    %7881 = vmatmul.mubr.bf16.gmra.mrb[0].mxu0 %v7846
    %v7882 = vpop.f32.mrb[0].mxu0
    %v7883 = vadd.f32 %v7836, %v7882
    %v7884 = vpop.f32.mrb[0].mxu0
    %v7885 = vpop.f32.mrb[0].mxu0
    %v7886 = vpop.f32.mrb[0].mxu0
    %7887 = vdwg.mxu0
    %vm7888 = vcmask 25600
    %v7889 = vsel %vm7888, %v7883, -inf
    %7890 = vmax.xlane.f32.xlu0 %v7889
    %v7891 = vpop.xlane.xlu0 %7890
    %v7892 = vsub.f32 %v7883, %v7891
    %v7893 = vmul.f32 %v7892, 1.442695
    %v7894 = vpow.pop %v7893
    %v7895 = vsel %vm7888, %v7894, 0.0
    %7896 = vadd.xlane.f32.xlu0 %v7895
    %v7897 = vpop.xlane.xlu0 %7896
    %v7898 = vrcp.pop %v7897
    %v7899 = vmul.f32 %v7894, %v7898
    %7900 = vst.msk [vmem:[#allocation14] sm:$0x3] %vm7888, %v7899
    // Predicated region
    $region66: #{tpu_custom_call.1} parent=1 // pred_check
      _
    $region67: #{tpu_custom_call.1} parent=1 // pred_check_branch
      %7902 = sbr.rel (0) target = $region69
    $region68: #{tpu_custom_call.1} parent=1 // pred_region
      %s7904 = ssub.s32 32, 32
      %7905 = vsyncadd [#allocation4], %s7904
      %s7907 = sshll.u32 [#allocation14], 4
      %s7908 = int_to_ptr.vmem [resolvable:$true] %s7907
      %7910 = dma.vmem_to_hbm [thread:$0]  %s7908, 32, %s9, [#allocation4]
    $region69: #{tpu_custom_call.1} parent=1 // pred_fallthru
      _
    // Predicated region
    $region70: #{tpu_custom_call.1} parent=1 // pred_check
      _
    $region71: #{tpu_custom_call.1} parent=1 // pred_check_branch
      %7912 = sbr.rel (0) target = $region73
    $region72: #{tpu_custom_call.1} parent=1 // pred_region
      %7913 = dma.done [#allocation4], 32
    $region73: #{tpu_custom_call.1} parent=1 // pred_fallthru
      _
    %7914 = vsyncpa [#allocation3], 1
    %7915 = vsyncpa [#allocation6], 1
    %7916 = vsyncpa [#allocation9], 1
    %7917 = vsyncpa [#allocation12], 1
    %7918 = vsyncpa [#allocation4], 1

</llo_original>
